<compile_context>
chip_gen: v7x
topology: tpu7x:2x2x1
jax: 0.10.0
libtpu: 0.0.40
codegen_flags: <defaults>
</compile_context>

<pallas_src>
import jax
import jax.numpy as jnp
from jax.experimental import pallas as pl
from jax.experimental.pallas import tpu as pltpu

# --- small, module-consistent hyper-parameters -------------------------------
nEmb     = 48            # embedding dim (divisible by nHead)
nHead    = 6
headSiz  = nEmb // nHead
nLayers  = 5
blockSiz = 16            # max context length
vocabSiz = 65            # e.g. char-level vocab
VPAD     = 128           # lane-dense padded vocab for the LM-head output
LN_EPS   = 1e-5          # nn.LayerNorm default
NEG_INF  = -1e30         # finite "-inf": no NaN even for fully-masked rows


# --- in-kernel helpers --------------------------------------------------------
def _layer_norm(x, g, b):
    # x: (T, C) f32, g/b: (1, C) f32
    mu  = jnp.mean(x, axis=-1, keepdims=True)
    var = jnp.mean((x - mu) ** 2, axis=-1, keepdims=True)
    return (x - mu) * jax.lax.rsqrt(var + LN_EPS) * g + b


# --- single fused forward kernel (one batch element per grid step) ------------
def fused_forward_kernel(ids_ref, pos_ref, tok_ref,
                         ln1g_ref, ln1b_ref, wqkv_ref, wp_ref, bp_ref,
                         ln2g_ref, ln2b_ref, w1_ref, b1_ref, w2_ref, b2_ref,
                         lnfg_ref, lnfb_ref, wlm_ref, blm_ref,
                         o_ref):
    T = ids_ref.shape[0]                 # sequence length of this block
    V, C = tok_ref.shape
    H, D = nHead, headSiz
    HD = H * D
    bf16, f32 = jnp.bfloat16, jnp.float32

    # ---- token embedding gather as a one-hot matmul (table resident in VMEM) ----
    ids = ids_ref[...]                                                    # (T, 1) int32
    onehot = (ids == jax.lax.broadcasted_iota(jnp.int32, (T, V), 1)).astype(bf16)
    x = jnp.dot(onehot, tok_ref[...], preferred_element_type=f32)         # (T, C) f32
    x = x + pos_ref[0:T, :]                                               # + positional emb

    # ---- (T, T) causal mask built in-kernel; head broadcast hoisted from loop ----
    qi = jax.lax.broadcasted_iota(jnp.int32, (T, T), 0)
    ki = jax.lax.broadcasted_iota(jnp.int32, (T, T), 1)
    bias = jnp.where(qi >= ki, 0.0, NEG_INF).astype(f32)                  # (T, T)
    bias_h = jnp.broadcast_to(bias[None, :, :], (H, T, T))                # hoisted

    scale = headSiz ** -0.5

    def heads(mat, base):
        # (T, 3*HD) f32 -> (H, T, D) bf16 via lane slices + stack (data movement only)
        return jnp.stack([mat[:, base + h * D: base + (h + 1) * D]
                          for h in range(H)], axis=0).astype(bf16)

    for l in range(nLayers):             # weights stay VMEM-resident across layers
        # ---- multi-head causal self-attention on LN1(x) ----
        xn = _layer_norm(x, ln1g_ref[l], ln1b_ref[l])
        qkv = jnp.dot(xn.astype(bf16), wqkv_ref[l],
                      preferred_element_type=f32)                         # (T, 3*HD)
        q, k, v = heads(qkv, 0), heads(qkv, HD), heads(qkv, 2 * HD)       # (H, T, D)

        s = jnp.einsum('hnd,hmd->hnm', q, k,
                       preferred_element_type=f32) * scale                # (H, T, T)
        s = s + bias_h
        s = s - jnp.max(s, axis=-1, keepdims=True)
        p = jnp.exp(s)
        p = p * pl.reciprocal(jnp.sum(p, axis=-1, keepdims=True), approx=True)
        ctx = jnp.einsum('hnm,hmd->hnd', p.astype(bf16), v,
                         preferred_element_type=f32)                      # (H, T, D)

        # concat heads -> one K=48 output projection (single MXU matmul)
        ctx_cat = jnp.concatenate([ctx[h] for h in range(H)], axis=-1)    # (T, HD)
        x = x + jnp.dot(ctx_cat.astype(bf16), wp_ref[l],
                        preferred_element_type=f32) + bp_ref[l]           # residual 1

        # ---- feed-forward on LN2(x) ----
        xn2 = _layer_norm(x, ln2g_ref[l], ln2b_ref[l])
        h1 = jnp.maximum(
            jnp.dot(xn2.astype(bf16), w1_ref[l], preferred_element_type=f32)
            + b1_ref[l], 0.0)
        x = x + jnp.dot(h1.astype(bf16), w2_ref[l],
                        preferred_element_type=f32) + b2_ref[l]           # residual 2

    # ---- final LayerNorm + LM head (vocab padded to 128 -> lane-dense store) ----
    xnf = _layer_norm(x, lnfg_ref[...], lnfb_ref[...])
    o_ref[...] = (jnp.dot(xnf.astype(bf16), wlm_ref[...],
                          preferred_element_type=f32)
                  + blm_ref[...]).astype(o_ref.dtype)


# --- wrapper -------------------------------------------------------------------
def _resident_spec(arr):
    """Full-array block, constant index map -> fetched once, VMEM-resident."""
    return pl.BlockSpec(arr.shape, lambda b, _nd=arr.ndim: (0,) * _nd)


def forward(kp, ix):
    """Equivalent of BigramLanguageModel.forward(ix, targt=None) -> (logits, None)."""
    B, T = ix.shape
    N = B * T
    ids = ix.reshape(N, 1).astype(jnp.int32)

    weight_names = ["pos_emb", "tok_emb",
                    "ln1_g", "ln1_b", "w_qkv", "wp", "bp",
                    "ln2_g", "ln2_b", "w1", "b1", "w2", "b2",
                    "lnf_g", "lnf_b", "wlm_pad", "blm_pad"]
    weights = [kp[n] for n in weight_names]

    in_specs = ([pl.BlockSpec((T, 1), lambda b: (b, 0))]      # ids: one sequence per step
                + [_resident_spec(w) for w in weights])

    out = pl.pallas_call(
        fused_forward_kernel,
        grid=(B,),
        in_specs=in_specs,
        out_specs=pl.BlockSpec((T, VPAD), lambda b: (b, 0)),
        out_shape=jax.ShapeDtypeStruct((N, VPAD), jnp.float32),
        compiler_params=pltpu.CompilerParams(
            dimension_semantics=("parallel",),                # v7x: 2 TCs split batch
            vmem_limit_bytes=32 * 1024 * 1024),               # explicit, v7x-safe
    )(ids, *weights)

    logits = out[:, :vocabSiz].reshape(B, T, vocabSiz)
    return logits, None
    # TODO(synk): training-time cross-entropy loss / dropout masks not implemented
    # (forward here reproduces inference semantics, targt=None).


# --- deterministic parameter init (normal std=0.02, zero biases, LN=identity) --
def init_params(key):
    keys = iter(jax.random.split(key, 64))

    def nrm(shape):
        return 0.02 * jax.random.normal(next(keys), shape, jnp.float32)

    params = {
        "tok_emb": nrm((vocabSiz, nEmb)),
        "pos_emb": nrm((blockSiz, nEmb)),
        "blocks": [],
        "lnf_g": jnp.ones((1, nEmb), jnp.float32),
        "lnf_b": jnp.zeros((1, nEmb), jnp.float32),
        "wlm": nrm((nEmb, vocabSiz)),
        "blm": jnp.zeros((1, vocabSiz), jnp.float32),
    }
    for _ in range(nLayers):
        params["blocks"].append(dict(
            ln1_g=jnp.ones((1, nEmb), jnp.float32),
            ln1_b=jnp.zeros((1, nEmb), jnp.float32),
            wq=nrm((nEmb, nEmb)), wk=nrm((nEmb, nEmb)), wv=nrm((nEmb, nEmb)),
            wp=nrm((nEmb, nEmb)), bp=jnp.zeros((1, nEmb), jnp.float32),
            ln2_g=jnp.ones((1, nEmb), jnp.float32),
            ln2_b=jnp.zeros((1, nEmb), jnp.float32),
            w1=nrm((nEmb, 4 * nEmb)), b1=jnp.zeros((1, 4 * nEmb), jnp.float32),
            w2=nrm((4 * nEmb, nEmb)), b2=jnp.zeros((1, nEmb), jnp.float32),
        ))
    return params


# --- pack logical params into the kernel layout (stacked / fused / bf16 / padded)
def pack_params(p):
    C = nEmb
    bf = jnp.bfloat16
    stack = lambda name: jnp.stack([b[name] for b in p["blocks"]])

    # fused QKV weight: columns = [q heads | k heads | v heads], head-major, (L, C, 3C)
    w_qkv = jnp.stack([jnp.concatenate([b["wq"], b["wk"], b["wv"]], axis=1)
                       for b in p["blocks"]]).astype(bf)

    wlm_pad = jnp.zeros((C, VPAD), jnp.float32).at[:, :vocabSiz].set(p["wlm"]).astype(bf)
    blm_pad = jnp.zeros((1, VPAD), jnp.float32).at[:, :vocabSiz].set(p["blm"])

    return dict(
        pos_emb=p["pos_emb"],                         # (blockSiz, C) f32
        tok_emb=p["tok_emb"].astype(bf),              # (V, C) bf16
        ln1_g=stack("ln1_g"), ln1_b=stack("ln1_b"),   # (L, 1, C) f32
        w_qkv=w_qkv,                                  # (L, C, 3C) bf16
        wp=stack("wp").astype(bf),                    # (L, C, C) bf16
        bp=stack("bp"),                               # (L, 1, C) f32
        ln2_g=stack("ln2_g"), ln2_b=stack("ln2_b"),
        w1=stack("w1").astype(bf), b1=stack("b1"),    # (L, C, 4C) bf16 / (L, 1, 4C) f32
        w2=stack("w2").astype(bf), b2=stack("b2"),    # (L, 4C, C) bf16 / (L, 1, C) f32
        lnf_g=p["lnf_g"], lnf_b=p["lnf_b"],
        wlm_pad=wlm_pad, blm_pad=blm_pad)


# --- pure-JAX f32 reference (same math, per-head formulation) -------------------
def _layer_norm_ref(x, g, b):
    mu = jnp.mean(x, axis=-1, keepdims=True)
    var = jnp.mean((x - mu) ** 2, axis=-1, keepdims=True)
    return (x - mu) * jax.lax.rsqrt(var + LN_EPS) * g + b


def _ref_forward(params, ix):
    B, T = ix.shape
    x = jnp.take(params["tok_emb"], ix, axis=0) + params["pos_emb"][:T][None]
    causal = jnp.tril(jnp.ones((T, T), bool))
    for blk in params["blocks"]:
        xn = _layer_norm_ref(x, blk["ln1_g"], blk["ln1_b"])
        q, k, v = xn @ blk["wq"], xn @ blk["wk"], xn @ blk["wv"]
        outs = []
        for h in range(nHead):
            sl = slice(h * headSiz, (h + 1) * headSiz)
            w = (q[..., sl] @ jnp.swapaxes(k[..., sl], -2, -1)) * headSiz ** -0.5
            w = jnp.where(causal, w, -jnp.inf)
            w = jax.nn.softmax(w, axis=-1)
            outs.append(w @ v[..., sl])
        attn = jnp.concatenate(outs, axis=-1) @ blk["wp"] + blk["bp"]
        x = x + attn
        xn2 = _layer_norm_ref(x, blk["ln2_g"], blk["ln2_b"])
        x = x + (jnp.maximum(xn2 @ blk["w1"] + blk["b1"], 0.0) @ blk["w2"] + blk["b2"])
    xn = _layer_norm_ref(x, params["lnf_g"], params["lnf_b"])
    return xn @ params["wlm"] + params["blm"]


if __name__ == "__main__":
    key = jax.random.PRNGKey(0)
    pkey, ikey = jax.random.split(key)
    params = init_params(pkey)
    kparams = pack_params(params)

    B, T = 2, 8                               # small (B, T) with T <= blockSiz
    ix = jax.random.randint(ikey, (B, T), 0, vocabSiz, dtype=jnp.int32)

    fwd = jax.jit(forward)
    logits, loss = fwd(kparams, ix)
    logits = jax.block_until_ready(logits)
    assert logits.shape == (B, T, vocabSiz)
    assert loss is None

    ref = jax.block_until_ready(_ref_forward(params, ix))
    # bf16 matmul operands (f32 accumulation) -> relaxed tolerance vs f32 reference
    assert jnp.allclose(logits, ref, atol=2e-2, rtol=2e-2), "mismatch vs JAX reference"

    print("KERNEL_OK")
</pallas_src>

<mosaic_0001>
module attributes {stable_mosaic.version = 11 : i64} {
  func.func @fused_forward_kernel(%arg0: i32, %arg1: memref<8x1xi32, #tpu.memory_space<vmem>>, %arg2: memref<16x48xf32, #tpu.memory_space<vmem>>, %arg3: memref<65x48xbf16, #tpu.memory_space<vmem>>, %arg4: memref<5x1x48xf32, #tpu.memory_space<vmem>>, %arg5: memref<5x1x48xf32, #tpu.memory_space<vmem>>, %arg6: memref<5x48x144xbf16, #tpu.memory_space<vmem>>, %arg7: memref<5x48x48xbf16, #tpu.memory_space<vmem>>, %arg8: memref<5x1x48xf32, #tpu.memory_space<vmem>>, %arg9: memref<5x1x48xf32, #tpu.memory_space<vmem>>, %arg10: memref<5x1x48xf32, #tpu.memory_space<vmem>>, %arg11: memref<5x48x192xbf16, #tpu.memory_space<vmem>>, %arg12: memref<5x1x192xf32, #tpu.memory_space<vmem>>, %arg13: memref<5x192x48xbf16, #tpu.memory_space<vmem>>, %arg14: memref<5x1x48xf32, #tpu.memory_space<vmem>>, %arg15: memref<1x48xf32, #tpu.memory_space<vmem>>, %arg16: memref<1x48xf32, #tpu.memory_space<vmem>>, %arg17: memref<48x128xbf16, #tpu.memory_space<vmem>>, %arg18: memref<1x128xf32, #tpu.memory_space<vmem>>, %arg19: memref<8x128xf32, #tpu.memory_space<vmem>>) attributes {dimension_semantics = [#tpu.dimension_semantics<parallel>], iteration_bounds = array<i64: 2>, scalar_prefetch = 0 : i64, scratch_operands = 0 : i64, tpu.core_type = #tpu.core_type<tc>, window_params = [{transform_indices = @transform_0, window_bounds = array<i64: 8, 1>}, {pipeline_mode = #tpu.pipeline_mode<synchronous>, transform_indices = @transform_1, window_bounds = array<i64: 16, 48>}, {pipeline_mode = #tpu.pipeline_mode<synchronous>, transform_indices = @transform_2, window_bounds = array<i64: 65, 48>}, {pipeline_mode = #tpu.pipeline_mode<synchronous>, transform_indices = @transform_3, window_bounds = array<i64: 5, 1, 48>}, {pipeline_mode = #tpu.pipeline_mode<synchronous>, transform_indices = @transform_4, window_bounds = array<i64: 5, 1, 48>}, {pipeline_mode = #tpu.pipeline_mode<synchronous>, transform_indices = @transform_5, window_bounds = array<i64: 5, 48, 144>}, {pipeline_mode = #tpu.pipeline_mode<synchronous>, transform_indices = @transform_6, window_bounds = array<i64: 5, 48, 48>}, {pipeline_mode = #tpu.pipeline_mode<synchronous>, transform_indices = @transform_7, window_bounds = array<i64: 5, 1, 48>}, {pipeline_mode = #tpu.pipeline_mode<synchronous>, transform_indices = @transform_8, window_bounds = array<i64: 5, 1, 48>}, {pipeline_mode = #tpu.pipeline_mode<synchronous>, transform_indices = @transform_9, window_bounds = array<i64: 5, 1, 48>}, {pipeline_mode = #tpu.pipeline_mode<synchronous>, transform_indices = @transform_10, window_bounds = array<i64: 5, 48, 192>}, {pipeline_mode = #tpu.pipeline_mode<synchronous>, transform_indices = @transform_11, window_bounds = array<i64: 5, 1, 192>}, {pipeline_mode = #tpu.pipeline_mode<synchronous>, transform_indices = @transform_12, window_bounds = array<i64: 5, 192, 48>}, {pipeline_mode = #tpu.pipeline_mode<synchronous>, transform_indices = @transform_13, window_bounds = array<i64: 5, 1, 48>}, {pipeline_mode = #tpu.pipeline_mode<synchronous>, transform_indices = @transform_14, window_bounds = array<i64: 1, 48>}, {pipeline_mode = #tpu.pipeline_mode<synchronous>, transform_indices = @transform_15, window_bounds = array<i64: 1, 48>}, {pipeline_mode = #tpu.pipeline_mode<synchronous>, transform_indices = @transform_16, window_bounds = array<i64: 48, 128>}, {pipeline_mode = #tpu.pipeline_mode<synchronous>, transform_indices = @transform_17, window_bounds = array<i64: 1, 128>}, {transform_indices = @transform_18, window_bounds = array<i64: 8, 128>}]} {
    %c0 = arith.constant 0 : index
    %c0_0 = arith.constant 0 : index
    %0 = vector.load %arg1[%c0, %c0_0] : memref<8x1xi32, #tpu.memory_space<vmem>>, vector<8x1xi32>
    %1 = tpu.iota {dimensions = array<i32: 1>} : vector<8x65xi32>
    %2 = vector.broadcast %0 : vector<8x1xi32> to vector<8x65xi32>
    %3 = arith.cmpi eq, %2, %1 : vector<8x65xi32>
    %4 = arith.extui %3 : vector<8x65xi1> to vector<8x65xi32>
    %5 = arith.sitofp %4 : vector<8x65xi32> to vector<8x65xf32>
    %6 = arith.truncf %5 : vector<8x65xf32> to vector<8x65xbf16>
    %c0_1 = arith.constant 0 : index
    %c0_2 = arith.constant 0 : index
    %7 = vector.load %arg3[%c0_1, %c0_2] : memref<65x48xbf16, #tpu.memory_space<vmem>>, vector<65x48xbf16>
    %cst = arith.constant dense<0.000000e+00> : vector<8x48xf32>
    %8 = tpu.matmul %6, %7, %cst {dimension_numbers = #tpu.dot_dimension_numbers<[1], [0], [0], [1], [0, 0, 1, 1], [], []>} : vector<8x65xbf16>, vector<65x48xbf16>, vector<8x48xf32> -> vector<8x48xf32>
    %c0_3 = arith.constant 0 : index
    %c0_4 = arith.constant 0 : index
    %9 = vector.load %arg2[%c0_3, %c0_4] : memref<16x48xf32, #tpu.memory_space<vmem>>, vector<8x48xf32>
    %10 = arith.addf %8, %9 : vector<8x48xf32>
    %11 = tpu.iota {dimensions = array<i32: 0>} : vector<8x8xi32>
    %12 = tpu.iota {dimensions = array<i32: 1>} : vector<8x8xi32>
    %13 = arith.cmpi sge, %11, %12 : vector<8x8xi32>
    %cst_5 = arith.constant 0.000000e+00 : f32
    %cst_6 = arith.constant -1.000000e+30 : f32
    %14 = vector.broadcast %cst_5 : f32 to vector<8x8xf32>
    %15 = vector.broadcast %cst_6 : f32 to vector<8x8xf32>
    %16 = arith.select %13, %14, %15 : vector<8x8xi1>, vector<8x8xf32>
    %17 = vector.shape_cast %16 : vector<8x8xf32> to vector<1x8x8xf32>
    %18 = vector.shape_cast %17 : vector<1x8x8xf32> to vector<1x8x8xf32>
    %19 = vector.broadcast %18 : vector<1x8x8xf32> to vector<6x8x8xf32>
    %c0_7 = arith.constant 0 : index
    %c0_8 = arith.constant 0 : index
    %c0_9 = arith.constant 0 : index
    %20 = vector.load %arg4[%c0_7, %c0_8, %c0_9] : memref<5x1x48xf32, #tpu.memory_space<vmem>>, vector<1x1x48xf32>
    %21 = vector.shape_cast %20 : vector<1x1x48xf32> to vector<1x48xf32>
    %c0_10 = arith.constant 0 : index
    %c0_11 = arith.constant 0 : index
    %c0_12 = arith.constant 0 : index
    %22 = vector.load %arg5[%c0_10, %c0_11, %c0_12] : memref<5x1x48xf32, #tpu.memory_space<vmem>>, vector<1x1x48xf32>
    %23 = vector.shape_cast %22 : vector<1x1x48xf32> to vector<1x48xf32>
    %cst_13 = arith.constant dense<0.000000e+00> : vector<8xf32>
    %24 = vector.multi_reduction <add>, %10, %cst_13 [1] : vector<8x48xf32> to vector<8xf32>
    %25 = vector.shape_cast %24 : vector<8xf32> to vector<8x1xf32>
    %cst_14 = arith.constant 4.800000e+01 : f32
    %26 = vector.broadcast %cst_14 : f32 to vector<8x1xf32>
    %27 = arith.divf %25, %26 : vector<8x1xf32>
    %28 = vector.broadcast %27 : vector<8x1xf32> to vector<8x48xf32>
    %29 = arith.subf %10, %28 : vector<8x48xf32>
    %30 = arith.mulf %29, %29 : vector<8x48xf32>
    %cst_15 = arith.constant dense<0.000000e+00> : vector<8xf32>
    %31 = vector.multi_reduction <add>, %30, %cst_15 [1] : vector<8x48xf32> to vector<8xf32>
    %32 = vector.shape_cast %31 : vector<8xf32> to vector<8x1xf32>
    %cst_16 = arith.constant 4.800000e+01 : f32
    %33 = vector.broadcast %cst_16 : f32 to vector<8x1xf32>
    %34 = arith.divf %32, %33 : vector<8x1xf32>
    %35 = vector.broadcast %27 : vector<8x1xf32> to vector<8x48xf32>
    %36 = arith.subf %10, %35 : vector<8x48xf32>
    %cst_17 = arith.constant 9.99999974E-6 : f32
    %37 = vector.broadcast %cst_17 : f32 to vector<8x1xf32>
    %38 = arith.addf %34, %37 : vector<8x1xf32>
    %39 = math.rsqrt %38 : vector<8x1xf32>
    %40 = vector.broadcast %39 : vector<8x1xf32> to vector<8x48xf32>
    %41 = arith.mulf %36, %40 : vector<8x48xf32>
    %42 = vector.broadcast %21 : vector<1x48xf32> to vector<8x48xf32>
    %43 = arith.mulf %41, %42 : vector<8x48xf32>
    %44 = vector.broadcast %23 : vector<1x48xf32> to vector<8x48xf32>
    %45 = arith.addf %43, %44 : vector<8x48xf32>
    %46 = arith.truncf %45 : vector<8x48xf32> to vector<8x48xbf16>
    %c0_18 = arith.constant 0 : index
    %c0_19 = arith.constant 0 : index
    %c0_20 = arith.constant 0 : index
    %47 = vector.load %arg6[%c0_18, %c0_19, %c0_20] : memref<5x48x144xbf16, #tpu.memory_space<vmem>>, vector<1x48x144xbf16>
    %48 = vector.shape_cast %47 : vector<1x48x144xbf16> to vector<48x144xbf16>
    %cst_21 = arith.constant dense<0.000000e+00> : vector<8x144xf32>
    %49 = tpu.matmul %46, %48, %cst_21 {dimension_numbers = #tpu.dot_dimension_numbers<[1], [0], [0], [1], [0, 0, 1, 1], [], []>} : vector<8x48xbf16>, vector<48x144xbf16>, vector<8x144xf32> -> vector<8x144xf32>
    %50 = vector.extract_strided_slice %49 {offsets = [0, 0], sizes = [8, 8], strides = [1, 1]} : vector<8x144xf32> to vector<8x8xf32>
    %51 = vector.extract_strided_slice %49 {offsets = [0, 8], sizes = [8, 8], strides = [1, 1]} : vector<8x144xf32> to vector<8x8xf32>
    %52 = vector.extract_strided_slice %49 {offsets = [0, 16], sizes = [8, 8], strides = [1, 1]} : vector<8x144xf32> to vector<8x8xf32>
    %53 = vector.extract_strided_slice %49 {offsets = [0, 24], sizes = [8, 8], strides = [1, 1]} : vector<8x144xf32> to vector<8x8xf32>
    %54 = vector.extract_strided_slice %49 {offsets = [0, 32], sizes = [8, 8], strides = [1, 1]} : vector<8x144xf32> to vector<8x8xf32>
    %55 = vector.extract_strided_slice %49 {offsets = [0, 40], sizes = [8, 8], strides = [1, 1]} : vector<8x144xf32> to vector<8x8xf32>
    %56 = vector.shape_cast %50 : vector<8x8xf32> to vector<1x8x8xf32>
    %57 = vector.shape_cast %51 : vector<8x8xf32> to vector<1x8x8xf32>
    %58 = vector.shape_cast %52 : vector<8x8xf32> to vector<1x8x8xf32>
    %59 = vector.shape_cast %53 : vector<8x8xf32> to vector<1x8x8xf32>
    %60 = vector.shape_cast %54 : vector<8x8xf32> to vector<1x8x8xf32>
    %61 = vector.shape_cast %55 : vector<8x8xf32> to vector<1x8x8xf32>
    %62 = tpu.concatenate %56, %57, %58, %59, %60, %61 in 0 : vector<1x8x8xf32>, vector<1x8x8xf32>, vector<1x8x8xf32>, vector<1x8x8xf32>, vector<1x8x8xf32>, vector<1x8x8xf32> -> vector<6x8x8xf32>
    %63 = arith.truncf %62 : vector<6x8x8xf32> to vector<6x8x8xbf16>
    %64 = vector.extract_strided_slice %49 {offsets = [0, 48], sizes = [8, 8], strides = [1, 1]} : vector<8x144xf32> to vector<8x8xf32>
    %65 = vector.extract_strided_slice %49 {offsets = [0, 56], sizes = [8, 8], strides = [1, 1]} : vector<8x144xf32> to vector<8x8xf32>
    %66 = vector.extract_strided_slice %49 {offsets = [0, 64], sizes = [8, 8], strides = [1, 1]} : vector<8x144xf32> to vector<8x8xf32>
    %67 = vector.extract_strided_slice %49 {offsets = [0, 72], sizes = [8, 8], strides = [1, 1]} : vector<8x144xf32> to vector<8x8xf32>
    %68 = vector.extract_strided_slice %49 {offsets = [0, 80], sizes = [8, 8], strides = [1, 1]} : vector<8x144xf32> to vector<8x8xf32>
    %69 = vector.extract_strided_slice %49 {offsets = [0, 88], sizes = [8, 8], strides = [1, 1]} : vector<8x144xf32> to vector<8x8xf32>
    %70 = vector.shape_cast %64 : vector<8x8xf32> to vector<1x8x8xf32>
    %71 = vector.shape_cast %65 : vector<8x8xf32> to vector<1x8x8xf32>
    %72 = vector.shape_cast %66 : vector<8x8xf32> to vector<1x8x8xf32>
    %73 = vector.shape_cast %67 : vector<8x8xf32> to vector<1x8x8xf32>
    %74 = vector.shape_cast %68 : vector<8x8xf32> to vector<1x8x8xf32>
    %75 = vector.shape_cast %69 : vector<8x8xf32> to vector<1x8x8xf32>
    %76 = tpu.concatenate %70, %71, %72, %73, %74, %75 in 0 : vector<1x8x8xf32>, vector<1x8x8xf32>, vector<1x8x8xf32>, vector<1x8x8xf32>, vector<1x8x8xf32>, vector<1x8x8xf32> -> vector<6x8x8xf32>
    %77 = arith.truncf %76 : vector<6x8x8xf32> to vector<6x8x8xbf16>
    %78 = vector.extract_strided_slice %49 {offsets = [0, 96], sizes = [8, 8], strides = [1, 1]} : vector<8x144xf32> to vector<8x8xf32>
    %79 = vector.extract_strided_slice %49 {offsets = [0, 104], sizes = [8, 8], strides = [1, 1]} : vector<8x144xf32> to vector<8x8xf32>
    %80 = vector.extract_strided_slice %49 {offsets = [0, 112], sizes = [8, 8], strides = [1, 1]} : vector<8x144xf32> to vector<8x8xf32>
    %81 = vector.extract_strided_slice %49 {offsets = [0, 120], sizes = [8, 8], strides = [1, 1]} : vector<8x144xf32> to vector<8x8xf32>
    %82 = vector.extract_strided_slice %49 {offsets = [0, 128], sizes = [8, 8], strides = [1, 1]} : vector<8x144xf32> to vector<8x8xf32>
    %83 = vector.extract_strided_slice %49 {offsets = [0, 136], sizes = [8, 8], strides = [1, 1]} : vector<8x144xf32> to vector<8x8xf32>
    %84 = vector.shape_cast %78 : vector<8x8xf32> to vector<1x8x8xf32>
    %85 = vector.shape_cast %79 : vector<8x8xf32> to vector<1x8x8xf32>
    %86 = vector.shape_cast %80 : vector<8x8xf32> to vector<1x8x8xf32>
    %87 = vector.shape_cast %81 : vector<8x8xf32> to vector<1x8x8xf32>
    %88 = vector.shape_cast %82 : vector<8x8xf32> to vector<1x8x8xf32>
    %89 = vector.shape_cast %83 : vector<8x8xf32> to vector<1x8x8xf32>
    %90 = tpu.concatenate %84, %85, %86, %87, %88, %89 in 0 : vector<1x8x8xf32>, vector<1x8x8xf32>, vector<1x8x8xf32>, vector<1x8x8xf32>, vector<1x8x8xf32>, vector<1x8x8xf32> -> vector<6x8x8xf32>
    %91 = arith.truncf %90 : vector<6x8x8xf32> to vector<6x8x8xbf16>
    "tpu.trace_start"() <{level = 10 : i32, message = "hnd,hmd->hnm"}> : () -> ()
    %cst_22 = arith.constant dense<0.000000e+00> : vector<6x8x8xf32>
    %92 = tpu.matmul %63, %77, %cst_22 {dimension_numbers = #tpu.dot_dimension_numbers<[2], [2], [1], [1], [0, 0, 0, 1, 1, 1], [0], [0]>} : vector<6x8x8xbf16>, vector<6x8x8xbf16>, vector<6x8x8xf32> -> vector<6x8x8xf32>
    "tpu.trace_stop"() : () -> ()
    %cst_23 = arith.constant 0.353553385 : f32
    %93 = vector.broadcast %cst_23 : f32 to vector<6x8x8xf32>
    %94 = arith.mulf %92, %93 : vector<6x8x8xf32>
    %95 = arith.addf %94, %19 : vector<6x8x8xf32>
    %cst_24 = arith.constant dense<0xFF800000> : vector<6x8xf32>
    %96 = vector.multi_reduction <maximumf>, %95, %cst_24 [2] : vector<6x8x8xf32> to vector<6x8xf32>
    %97 = vector.shape_cast %96 : vector<6x8xf32> to vector<6x8x1xf32>
    %98 = vector.broadcast %97 : vector<6x8x1xf32> to vector<6x8x8xf32>
    %99 = arith.subf %95, %98 : vector<6x8x8xf32>
    %100 = math.exp %99 : vector<6x8x8xf32>
    %cst_25 = arith.constant dense<0.000000e+00> : vector<6x8xf32>
    %101 = vector.multi_reduction <add>, %100, %cst_25 [2] : vector<6x8x8xf32> to vector<6x8xf32>
    %102 = vector.shape_cast %101 : vector<6x8xf32> to vector<6x8x1xf32>
    %103 = tpu.reciprocal %102 {approx = true} : vector<6x8x1xf32> -> vector<6x8x1xf32>
    %104 = vector.broadcast %103 : vector<6x8x1xf32> to vector<6x8x8xf32>
    %105 = arith.mulf %100, %104 : vector<6x8x8xf32>
    %106 = arith.truncf %105 : vector<6x8x8xf32> to vector<6x8x8xbf16>
    "tpu.trace_start"() <{level = 10 : i32, message = "hnm,hmd->hnd"}> : () -> ()
    %cst_26 = arith.constant dense<0.000000e+00> : vector<6x8x8xf32>
    %107 = tpu.matmul %106, %91, %cst_26 {dimension_numbers = #tpu.dot_dimension_numbers<[2], [1], [1], [2], [0, 0, 0, 1, 1, 2], [0], [0]>} : vector<6x8x8xbf16>, vector<6x8x8xbf16>, vector<6x8x8xf32> -> vector<6x8x8xf32>
    "tpu.trace_stop"() : () -> ()
    %108 = vector.extract_strided_slice %107 {offsets = [0, 0, 0], sizes = [1, 8, 8], strides = [1, 1, 1]} : vector<6x8x8xf32> to vector<1x8x8xf32>
    %109 = vector.shape_cast %108 : vector<1x8x8xf32> to vector<8x8xf32>
    %110 = vector.extract_strided_slice %107 {offsets = [1, 0, 0], sizes = [1, 8, 8], strides = [1, 1, 1]} : vector<6x8x8xf32> to vector<1x8x8xf32>
    %111 = vector.shape_cast %110 : vector<1x8x8xf32> to vector<8x8xf32>
    %112 = vector.extract_strided_slice %107 {offsets = [2, 0, 0], sizes = [1, 8, 8], strides = [1, 1, 1]} : vector<6x8x8xf32> to vector<1x8x8xf32>
    %113 = vector.shape_cast %112 : vector<1x8x8xf32> to vector<8x8xf32>
    %114 = vector.extract_strided_slice %107 {offsets = [3, 0, 0], sizes = [1, 8, 8], strides = [1, 1, 1]} : vector<6x8x8xf32> to vector<1x8x8xf32>
    %115 = vector.shape_cast %114 : vector<1x8x8xf32> to vector<8x8xf32>
    %116 = vector.extract_strided_slice %107 {offsets = [4, 0, 0], sizes = [1, 8, 8], strides = [1, 1, 1]} : vector<6x8x8xf32> to vector<1x8x8xf32>
    %117 = vector.shape_cast %116 : vector<1x8x8xf32> to vector<8x8xf32>
    %118 = vector.extract_strided_slice %107 {offsets = [5, 0, 0], sizes = [1, 8, 8], strides = [1, 1, 1]} : vector<6x8x8xf32> to vector<1x8x8xf32>
    %119 = vector.shape_cast %118 : vector<1x8x8xf32> to vector<8x8xf32>
    %120 = tpu.concatenate %109, %111, %113, %115, %117, %119 in 1 : vector<8x8xf32>, vector<8x8xf32>, vector<8x8xf32>, vector<8x8xf32>, vector<8x8xf32>, vector<8x8xf32> -> vector<8x48xf32>
    %121 = arith.truncf %120 : vector<8x48xf32> to vector<8x48xbf16>
    %c0_27 = arith.constant 0 : index
    %c0_28 = arith.constant 0 : index
    %c0_29 = arith.constant 0 : index
    %122 = vector.load %arg7[%c0_27, %c0_28, %c0_29] : memref<5x48x48xbf16, #tpu.memory_space<vmem>>, vector<1x48x48xbf16>
    %123 = vector.shape_cast %122 : vector<1x48x48xbf16> to vector<48x48xbf16>
    %cst_30 = arith.constant dense<0.000000e+00> : vector<8x48xf32>
    %124 = tpu.matmul %121, %123, %cst_30 {dimension_numbers = #tpu.dot_dimension_numbers<[1], [0], [0], [1], [0, 0, 1, 1], [], []>} : vector<8x48xbf16>, vector<48x48xbf16>, vector<8x48xf32> -> vector<8x48xf32>
    %125 = arith.addf %10, %124 : vector<8x48xf32>
    %c0_31 = arith.constant 0 : index
    %c0_32 = arith.constant 0 : index
    %c0_33 = arith.constant 0 : index
    %126 = vector.load %arg8[%c0_31, %c0_32, %c0_33] : memref<5x1x48xf32, #tpu.memory_space<vmem>>, vector<1x1x48xf32>
    %127 = vector.shape_cast %126 : vector<1x1x48xf32> to vector<1x48xf32>
    %128 = vector.broadcast %127 : vector<1x48xf32> to vector<8x48xf32>
    %129 = arith.addf %125, %128 : vector<8x48xf32>
    %c0_34 = arith.constant 0 : index
    %c0_35 = arith.constant 0 : index
    %c0_36 = arith.constant 0 : index
    %130 = vector.load %arg9[%c0_34, %c0_35, %c0_36] : memref<5x1x48xf32, #tpu.memory_space<vmem>>, vector<1x1x48xf32>
    %131 = vector.shape_cast %130 : vector<1x1x48xf32> to vector<1x48xf32>
    %c0_37 = arith.constant 0 : index
    %c0_38 = arith.constant 0 : index
    %c0_39 = arith.constant 0 : index
    %132 = vector.load %arg10[%c0_37, %c0_38, %c0_39] : memref<5x1x48xf32, #tpu.memory_space<vmem>>, vector<1x1x48xf32>
    %133 = vector.shape_cast %132 : vector<1x1x48xf32> to vector<1x48xf32>
    %cst_40 = arith.constant dense<0.000000e+00> : vector<8xf32>
    %134 = vector.multi_reduction <add>, %129, %cst_40 [1] : vector<8x48xf32> to vector<8xf32>
    %135 = vector.shape_cast %134 : vector<8xf32> to vector<8x1xf32>
    %cst_41 = arith.constant 4.800000e+01 : f32
    %136 = vector.broadcast %cst_41 : f32 to vector<8x1xf32>
    %137 = arith.divf %135, %136 : vector<8x1xf32>
    %138 = vector.broadcast %137 : vector<8x1xf32> to vector<8x48xf32>
    %139 = arith.subf %129, %138 : vector<8x48xf32>
    %140 = arith.mulf %139, %139 : vector<8x48xf32>
    %cst_42 = arith.constant dense<0.000000e+00> : vector<8xf32>
    %141 = vector.multi_reduction <add>, %140, %cst_42 [1] : vector<8x48xf32> to vector<8xf32>
    %142 = vector.shape_cast %141 : vector<8xf32> to vector<8x1xf32>
    %cst_43 = arith.constant 4.800000e+01 : f32
    %143 = vector.broadcast %cst_43 : f32 to vector<8x1xf32>
    %144 = arith.divf %142, %143 : vector<8x1xf32>
    %145 = vector.broadcast %137 : vector<8x1xf32> to vector<8x48xf32>
    %146 = arith.subf %129, %145 : vector<8x48xf32>
    %cst_44 = arith.constant 9.99999974E-6 : f32
    %147 = vector.broadcast %cst_44 : f32 to vector<8x1xf32>
    %148 = arith.addf %144, %147 : vector<8x1xf32>
    %149 = math.rsqrt %148 : vector<8x1xf32>
    %150 = vector.broadcast %149 : vector<8x1xf32> to vector<8x48xf32>
    %151 = arith.mulf %146, %150 : vector<8x48xf32>
    %152 = vector.broadcast %131 : vector<1x48xf32> to vector<8x48xf32>
    %153 = arith.mulf %151, %152 : vector<8x48xf32>
    %154 = vector.broadcast %133 : vector<1x48xf32> to vector<8x48xf32>
    %155 = arith.addf %153, %154 : vector<8x48xf32>
    %156 = arith.truncf %155 : vector<8x48xf32> to vector<8x48xbf16>
    %c0_45 = arith.constant 0 : index
    %c0_46 = arith.constant 0 : index
    %c0_47 = arith.constant 0 : index
    %157 = vector.load %arg11[%c0_45, %c0_46, %c0_47] : memref<5x48x192xbf16, #tpu.memory_space<vmem>>, vector<1x48x192xbf16>
    %158 = vector.shape_cast %157 : vector<1x48x192xbf16> to vector<48x192xbf16>
    %cst_48 = arith.constant dense<0.000000e+00> : vector<8x192xf32>
    %159 = tpu.matmul %156, %158, %cst_48 {dimension_numbers = #tpu.dot_dimension_numbers<[1], [0], [0], [1], [0, 0, 1, 1], [], []>} : vector<8x48xbf16>, vector<48x192xbf16>, vector<8x192xf32> -> vector<8x192xf32>
    %c0_49 = arith.constant 0 : index
    %c0_50 = arith.constant 0 : index
    %c0_51 = arith.constant 0 : index
    %160 = vector.load %arg12[%c0_49, %c0_50, %c0_51] : memref<5x1x192xf32, #tpu.memory_space<vmem>>, vector<1x1x192xf32>
    %161 = vector.shape_cast %160 : vector<1x1x192xf32> to vector<1x192xf32>
    %162 = vector.broadcast %161 : vector<1x192xf32> to vector<8x192xf32>
    %163 = arith.addf %159, %162 : vector<8x192xf32>
    %cst_52 = arith.constant 0.000000e+00 : f32
    %164 = vector.broadcast %cst_52 : f32 to vector<8x192xf32>
    %165 = arith.maximumf %163, %164 : vector<8x192xf32>
    %166 = arith.truncf %165 : vector<8x192xf32> to vector<8x192xbf16>
    %c0_53 = arith.constant 0 : index
    %c0_54 = arith.constant 0 : index
    %c0_55 = arith.constant 0 : index
    %167 = vector.load %arg13[%c0_53, %c0_54, %c0_55] : memref<5x192x48xbf16, #tpu.memory_space<vmem>>, vector<1x192x48xbf16>
    %168 = vector.shape_cast %167 : vector<1x192x48xbf16> to vector<192x48xbf16>
    %cst_56 = arith.constant dense<0.000000e+00> : vector<8x48xf32>
    %169 = tpu.matmul %166, %168, %cst_56 {dimension_numbers = #tpu.dot_dimension_numbers<[1], [0], [0], [1], [0, 0, 1, 1], [], []>} : vector<8x192xbf16>, vector<192x48xbf16>, vector<8x48xf32> -> vector<8x48xf32>
    %170 = arith.addf %129, %169 : vector<8x48xf32>
    %c0_57 = arith.constant 0 : index
    %c0_58 = arith.constant 0 : index
    %c0_59 = arith.constant 0 : index
    %171 = vector.load %arg14[%c0_57, %c0_58, %c0_59] : memref<5x1x48xf32, #tpu.memory_space<vmem>>, vector<1x1x48xf32>
    %172 = vector.shape_cast %171 : vector<1x1x48xf32> to vector<1x48xf32>
    %173 = vector.broadcast %172 : vector<1x48xf32> to vector<8x48xf32>
    %174 = arith.addf %170, %173 : vector<8x48xf32>
    %c1 = arith.constant 1 : index
    %c0_60 = arith.constant 0 : index
    %c0_61 = arith.constant 0 : index
    %175 = vector.load %arg4[%c1, %c0_60, %c0_61] : memref<5x1x48xf32, #tpu.memory_space<vmem>>, vector<1x1x48xf32>
    %176 = vector.shape_cast %175 : vector<1x1x48xf32> to vector<1x48xf32>
    %c1_62 = arith.constant 1 : index
    %c0_63 = arith.constant 0 : index
    %c0_64 = arith.constant 0 : index
    %177 = vector.load %arg5[%c1_62, %c0_63, %c0_64] : memref<5x1x48xf32, #tpu.memory_space<vmem>>, vector<1x1x48xf32>
    %178 = vector.shape_cast %177 : vector<1x1x48xf32> to vector<1x48xf32>
    %cst_65 = arith.constant dense<0.000000e+00> : vector<8xf32>
    %179 = vector.multi_reduction <add>, %174, %cst_65 [1] : vector<8x48xf32> to vector<8xf32>
    %180 = vector.shape_cast %179 : vector<8xf32> to vector<8x1xf32>
    %cst_66 = arith.constant 4.800000e+01 : f32
    %181 = vector.broadcast %cst_66 : f32 to vector<8x1xf32>
    %182 = arith.divf %180, %181 : vector<8x1xf32>
    %183 = vector.broadcast %182 : vector<8x1xf32> to vector<8x48xf32>
    %184 = arith.subf %174, %183 : vector<8x48xf32>
    %185 = arith.mulf %184, %184 : vector<8x48xf32>
    %cst_67 = arith.constant dense<0.000000e+00> : vector<8xf32>
    %186 = vector.multi_reduction <add>, %185, %cst_67 [1] : vector<8x48xf32> to vector<8xf32>
    %187 = vector.shape_cast %186 : vector<8xf32> to vector<8x1xf32>
    %cst_68 = arith.constant 4.800000e+01 : f32
    %188 = vector.broadcast %cst_68 : f32 to vector<8x1xf32>
    %189 = arith.divf %187, %188 : vector<8x1xf32>
    %190 = vector.broadcast %182 : vector<8x1xf32> to vector<8x48xf32>
    %191 = arith.subf %174, %190 : vector<8x48xf32>
    %cst_69 = arith.constant 9.99999974E-6 : f32
    %192 = vector.broadcast %cst_69 : f32 to vector<8x1xf32>
    %193 = arith.addf %189, %192 : vector<8x1xf32>
    %194 = math.rsqrt %193 : vector<8x1xf32>
    %195 = vector.broadcast %194 : vector<8x1xf32> to vector<8x48xf32>
    %196 = arith.mulf %191, %195 : vector<8x48xf32>
    %197 = vector.broadcast %176 : vector<1x48xf32> to vector<8x48xf32>
    %198 = arith.mulf %196, %197 : vector<8x48xf32>
    %199 = vector.broadcast %178 : vector<1x48xf32> to vector<8x48xf32>
    %200 = arith.addf %198, %199 : vector<8x48xf32>
    %201 = arith.truncf %200 : vector<8x48xf32> to vector<8x48xbf16>
    %c1_70 = arith.constant 1 : index
    %c0_71 = arith.constant 0 : index
    %c0_72 = arith.constant 0 : index
    %202 = vector.load %arg6[%c1_70, %c0_71, %c0_72] : memref<5x48x144xbf16, #tpu.memory_space<vmem>>, vector<1x48x144xbf16>
    %203 = vector.shape_cast %202 : vector<1x48x144xbf16> to vector<48x144xbf16>
    %cst_73 = arith.constant dense<0.000000e+00> : vector<8x144xf32>
    %204 = tpu.matmul %201, %203, %cst_73 {dimension_numbers = #tpu.dot_dimension_numbers<[1], [0], [0], [1], [0, 0, 1, 1], [], []>} : vector<8x48xbf16>, vector<48x144xbf16>, vector<8x144xf32> -> vector<8x144xf32>
    %205 = vector.extract_strided_slice %204 {offsets = [0, 0], sizes = [8, 8], strides = [1, 1]} : vector<8x144xf32> to vector<8x8xf32>
    %206 = vector.extract_strided_slice %204 {offsets = [0, 8], sizes = [8, 8], strides = [1, 1]} : vector<8x144xf32> to vector<8x8xf32>
    %207 = vector.extract_strided_slice %204 {offsets = [0, 16], sizes = [8, 8], strides = [1, 1]} : vector<8x144xf32> to vector<8x8xf32>
    %208 = vector.extract_strided_slice %204 {offsets = [0, 24], sizes = [8, 8], strides = [1, 1]} : vector<8x144xf32> to vector<8x8xf32>
    %209 = vector.extract_strided_slice %204 {offsets = [0, 32], sizes = [8, 8], strides = [1, 1]} : vector<8x144xf32> to vector<8x8xf32>
    %210 = vector.extract_strided_slice %204 {offsets = [0, 40], sizes = [8, 8], strides = [1, 1]} : vector<8x144xf32> to vector<8x8xf32>
    %211 = vector.shape_cast %205 : vector<8x8xf32> to vector<1x8x8xf32>
    %212 = vector.shape_cast %206 : vector<8x8xf32> to vector<1x8x8xf32>
    %213 = vector.shape_cast %207 : vector<8x8xf32> to vector<1x8x8xf32>
    %214 = vector.shape_cast %208 : vector<8x8xf32> to vector<1x8x8xf32>
    %215 = vector.shape_cast %209 : vector<8x8xf32> to vector<1x8x8xf32>
    %216 = vector.shape_cast %210 : vector<8x8xf32> to vector<1x8x8xf32>
    %217 = tpu.concatenate %211, %212, %213, %214, %215, %216 in 0 : vector<1x8x8xf32>, vector<1x8x8xf32>, vector<1x8x8xf32>, vector<1x8x8xf32>, vector<1x8x8xf32>, vector<1x8x8xf32> -> vector<6x8x8xf32>
    %218 = arith.truncf %217 : vector<6x8x8xf32> to vector<6x8x8xbf16>
    %219 = vector.extract_strided_slice %204 {offsets = [0, 48], sizes = [8, 8], strides = [1, 1]} : vector<8x144xf32> to vector<8x8xf32>
    %220 = vector.extract_strided_slice %204 {offsets = [0, 56], sizes = [8, 8], strides = [1, 1]} : vector<8x144xf32> to vector<8x8xf32>
    %221 = vector.extract_strided_slice %204 {offsets = [0, 64], sizes = [8, 8], strides = [1, 1]} : vector<8x144xf32> to vector<8x8xf32>
    %222 = vector.extract_strided_slice %204 {offsets = [0, 72], sizes = [8, 8], strides = [1, 1]} : vector<8x144xf32> to vector<8x8xf32>
    %223 = vector.extract_strided_slice %204 {offsets = [0, 80], sizes = [8, 8], strides = [1, 1]} : vector<8x144xf32> to vector<8x8xf32>
    %224 = vector.extract_strided_slice %204 {offsets = [0, 88], sizes = [8, 8], strides = [1, 1]} : vector<8x144xf32> to vector<8x8xf32>
    %225 = vector.shape_cast %219 : vector<8x8xf32> to vector<1x8x8xf32>
    %226 = vector.shape_cast %220 : vector<8x8xf32> to vector<1x8x8xf32>
    %227 = vector.shape_cast %221 : vector<8x8xf32> to vector<1x8x8xf32>
    %228 = vector.shape_cast %222 : vector<8x8xf32> to vector<1x8x8xf32>
    %229 = vector.shape_cast %223 : vector<8x8xf32> to vector<1x8x8xf32>
    %230 = vector.shape_cast %224 : vector<8x8xf32> to vector<1x8x8xf32>
    %231 = tpu.concatenate %225, %226, %227, %228, %229, %230 in 0 : vector<1x8x8xf32>, vector<1x8x8xf32>, vector<1x8x8xf32>, vector<1x8x8xf32>, vector<1x8x8xf32>, vector<1x8x8xf32> -> vector<6x8x8xf32>
    %232 = arith.truncf %231 : vector<6x8x8xf32> to vector<6x8x8xbf16>
    %233 = vector.extract_strided_slice %204 {offsets = [0, 96], sizes = [8, 8], strides = [1, 1]} : vector<8x144xf32> to vector<8x8xf32>
    %234 = vector.extract_strided_slice %204 {offsets = [0, 104], sizes = [8, 8], strides = [1, 1]} : vector<8x144xf32> to vector<8x8xf32>
    %235 = vector.extract_strided_slice %204 {offsets = [0, 112], sizes = [8, 8], strides = [1, 1]} : vector<8x144xf32> to vector<8x8xf32>
    %236 = vector.extract_strided_slice %204 {offsets = [0, 120], sizes = [8, 8], strides = [1, 1]} : vector<8x144xf32> to vector<8x8xf32>
    %237 = vector.extract_strided_slice %204 {offsets = [0, 128], sizes = [8, 8], strides = [1, 1]} : vector<8x144xf32> to vector<8x8xf32>
    %238 = vector.extract_strided_slice %204 {offsets = [0, 136], sizes = [8, 8], strides = [1, 1]} : vector<8x144xf32> to vector<8x8xf32>
    %239 = vector.shape_cast %233 : vector<8x8xf32> to vector<1x8x8xf32>
    %240 = vector.shape_cast %234 : vector<8x8xf32> to vector<1x8x8xf32>
    %241 = vector.shape_cast %235 : vector<8x8xf32> to vector<1x8x8xf32>
    %242 = vector.shape_cast %236 : vector<8x8xf32> to vector<1x8x8xf32>
    %243 = vector.shape_cast %237 : vector<8x8xf32> to vector<1x8x8xf32>
    %244 = vector.shape_cast %238 : vector<8x8xf32> to vector<1x8x8xf32>
    %245 = tpu.concatenate %239, %240, %241, %242, %243, %244 in 0 : vector<1x8x8xf32>, vector<1x8x8xf32>, vector<1x8x8xf32>, vector<1x8x8xf32>, vector<1x8x8xf32>, vector<1x8x8xf32> -> vector<6x8x8xf32>
    %246 = arith.truncf %245 : vector<6x8x8xf32> to vector<6x8x8xbf16>
    "tpu.trace_start"() <{level = 10 : i32, message = "hnd,hmd->hnm"}> : () -> ()
    %cst_74 = arith.constant dense<0.000000e+00> : vector<6x8x8xf32>
    %247 = tpu.matmul %218, %232, %cst_74 {dimension_numbers = #tpu.dot_dimension_numbers<[2], [2], [1], [1], [0, 0, 0, 1, 1, 1], [0], [0]>} : vector<6x8x8xbf16>, vector<6x8x8xbf16>, vector<6x8x8xf32> -> vector<6x8x8xf32>
    "tpu.trace_stop"() : () -> ()
    %cst_75 = arith.constant 0.353553385 : f32
    %248 = vector.broadcast %cst_75 : f32 to vector<6x8x8xf32>
    %249 = arith.mulf %247, %248 : vector<6x8x8xf32>
    %250 = arith.addf %249, %19 : vector<6x8x8xf32>
    %cst_76 = arith.constant dense<0xFF800000> : vector<6x8xf32>
    %251 = vector.multi_reduction <maximumf>, %250, %cst_76 [2] : vector<6x8x8xf32> to vector<6x8xf32>
    %252 = vector.shape_cast %251 : vector<6x8xf32> to vector<6x8x1xf32>
    %253 = vector.broadcast %252 : vector<6x8x1xf32> to vector<6x8x8xf32>
    %254 = arith.subf %250, %253 : vector<6x8x8xf32>
    %255 = math.exp %254 : vector<6x8x8xf32>
    %cst_77 = arith.constant dense<0.000000e+00> : vector<6x8xf32>
    %256 = vector.multi_reduction <add>, %255, %cst_77 [2] : vector<6x8x8xf32> to vector<6x8xf32>
    %257 = vector.shape_cast %256 : vector<6x8xf32> to vector<6x8x1xf32>
    %258 = tpu.reciprocal %257 {approx = true} : vector<6x8x1xf32> -> vector<6x8x1xf32>
    %259 = vector.broadcast %258 : vector<6x8x1xf32> to vector<6x8x8xf32>
    %260 = arith.mulf %255, %259 : vector<6x8x8xf32>
    %261 = arith.truncf %260 : vector<6x8x8xf32> to vector<6x8x8xbf16>
    "tpu.trace_start"() <{level = 10 : i32, message = "hnm,hmd->hnd"}> : () -> ()
    %cst_78 = arith.constant dense<0.000000e+00> : vector<6x8x8xf32>
    %262 = tpu.matmul %261, %246, %cst_78 {dimension_numbers = #tpu.dot_dimension_numbers<[2], [1], [1], [2], [0, 0, 0, 1, 1, 2], [0], [0]>} : vector<6x8x8xbf16>, vector<6x8x8xbf16>, vector<6x8x8xf32> -> vector<6x8x8xf32>
    "tpu.trace_stop"() : () -> ()
    %263 = vector.extract_strided_slice %262 {offsets = [0, 0, 0], sizes = [1, 8, 8], strides = [1, 1, 1]} : vector<6x8x8xf32> to vector<1x8x8xf32>
    %264 = vector.shape_cast %263 : vector<1x8x8xf32> to vector<8x8xf32>
    %265 = vector.extract_strided_slice %262 {offsets = [1, 0, 0], sizes = [1, 8, 8], strides = [1, 1, 1]} : vector<6x8x8xf32> to vector<1x8x8xf32>
    %266 = vector.shape_cast %265 : vector<1x8x8xf32> to vector<8x8xf32>
    %267 = vector.extract_strided_slice %262 {offsets = [2, 0, 0], sizes = [1, 8, 8], strides = [1, 1, 1]} : vector<6x8x8xf32> to vector<1x8x8xf32>
    %268 = vector.shape_cast %267 : vector<1x8x8xf32> to vector<8x8xf32>
    %269 = vector.extract_strided_slice %262 {offsets = [3, 0, 0], sizes = [1, 8, 8], strides = [1, 1, 1]} : vector<6x8x8xf32> to vector<1x8x8xf32>
    %270 = vector.shape_cast %269 : vector<1x8x8xf32> to vector<8x8xf32>
    %271 = vector.extract_strided_slice %262 {offsets = [4, 0, 0], sizes = [1, 8, 8], strides = [1, 1, 1]} : vector<6x8x8xf32> to vector<1x8x8xf32>
    %272 = vector.shape_cast %271 : vector<1x8x8xf32> to vector<8x8xf32>
    %273 = vector.extract_strided_slice %262 {offsets = [5, 0, 0], sizes = [1, 8, 8], strides = [1, 1, 1]} : vector<6x8x8xf32> to vector<1x8x8xf32>
    %274 = vector.shape_cast %273 : vector<1x8x8xf32> to vector<8x8xf32>
    %275 = tpu.concatenate %264, %266, %268, %270, %272, %274 in 1 : vector<8x8xf32>, vector<8x8xf32>, vector<8x8xf32>, vector<8x8xf32>, vector<8x8xf32>, vector<8x8xf32> -> vector<8x48xf32>
    %276 = arith.truncf %275 : vector<8x48xf32> to vector<8x48xbf16>
    %c1_79 = arith.constant 1 : index
    %c0_80 = arith.constant 0 : index
    %c0_81 = arith.constant 0 : index
    %277 = vector.load %arg7[%c1_79, %c0_80, %c0_81] : memref<5x48x48xbf16, #tpu.memory_space<vmem>>, vector<1x48x48xbf16>
    %278 = vector.shape_cast %277 : vector<1x48x48xbf16> to vector<48x48xbf16>
    %cst_82 = arith.constant dense<0.000000e+00> : vector<8x48xf32>
    %279 = tpu.matmul %276, %278, %cst_82 {dimension_numbers = #tpu.dot_dimension_numbers<[1], [0], [0], [1], [0, 0, 1, 1], [], []>} : vector<8x48xbf16>, vector<48x48xbf16>, vector<8x48xf32> -> vector<8x48xf32>
    %280 = arith.addf %174, %279 : vector<8x48xf32>
    %c1_83 = arith.constant 1 : index
    %c0_84 = arith.constant 0 : index
    %c0_85 = arith.constant 0 : index
    %281 = vector.load %arg8[%c1_83, %c0_84, %c0_85] : memref<5x1x48xf32, #tpu.memory_space<vmem>>, vector<1x1x48xf32>
    %282 = vector.shape_cast %281 : vector<1x1x48xf32> to vector<1x48xf32>
    %283 = vector.broadcast %282 : vector<1x48xf32> to vector<8x48xf32>
    %284 = arith.addf %280, %283 : vector<8x48xf32>
    %c1_86 = arith.constant 1 : index
    %c0_87 = arith.constant 0 : index
    %c0_88 = arith.constant 0 : index
    %285 = vector.load %arg9[%c1_86, %c0_87, %c0_88] : memref<5x1x48xf32, #tpu.memory_space<vmem>>, vector<1x1x48xf32>
    %286 = vector.shape_cast %285 : vector<1x1x48xf32> to vector<1x48xf32>
    %c1_89 = arith.constant 1 : index
    %c0_90 = arith.constant 0 : index
    %c0_91 = arith.constant 0 : index
    %287 = vector.load %arg10[%c1_89, %c0_90, %c0_91] : memref<5x1x48xf32, #tpu.memory_space<vmem>>, vector<1x1x48xf32>
    %288 = vector.shape_cast %287 : vector<1x1x48xf32> to vector<1x48xf32>
    %cst_92 = arith.constant dense<0.000000e+00> : vector<8xf32>
    %289 = vector.multi_reduction <add>, %284, %cst_92 [1] : vector<8x48xf32> to vector<8xf32>
    %290 = vector.shape_cast %289 : vector<8xf32> to vector<8x1xf32>
    %cst_93 = arith.constant 4.800000e+01 : f32
    %291 = vector.broadcast %cst_93 : f32 to vector<8x1xf32>
    %292 = arith.divf %290, %291 : vector<8x1xf32>
    %293 = vector.broadcast %292 : vector<8x1xf32> to vector<8x48xf32>
    %294 = arith.subf %284, %293 : vector<8x48xf32>
    %295 = arith.mulf %294, %294 : vector<8x48xf32>
    %cst_94 = arith.constant dense<0.000000e+00> : vector<8xf32>
    %296 = vector.multi_reduction <add>, %295, %cst_94 [1] : vector<8x48xf32> to vector<8xf32>
    %297 = vector.shape_cast %296 : vector<8xf32> to vector<8x1xf32>
    %cst_95 = arith.constant 4.800000e+01 : f32
    %298 = vector.broadcast %cst_95 : f32 to vector<8x1xf32>
    %299 = arith.divf %297, %298 : vector<8x1xf32>
    %300 = vector.broadcast %292 : vector<8x1xf32> to vector<8x48xf32>
    %301 = arith.subf %284, %300 : vector<8x48xf32>
    %cst_96 = arith.constant 9.99999974E-6 : f32
    %302 = vector.broadcast %cst_96 : f32 to vector<8x1xf32>
    %303 = arith.addf %299, %302 : vector<8x1xf32>
    %304 = math.rsqrt %303 : vector<8x1xf32>
    %305 = vector.broadcast %304 : vector<8x1xf32> to vector<8x48xf32>
    %306 = arith.mulf %301, %305 : vector<8x48xf32>
    %307 = vector.broadcast %286 : vector<1x48xf32> to vector<8x48xf32>
    %308 = arith.mulf %306, %307 : vector<8x48xf32>
    %309 = vector.broadcast %288 : vector<1x48xf32> to vector<8x48xf32>
    %310 = arith.addf %308, %309 : vector<8x48xf32>
    %311 = arith.truncf %310 : vector<8x48xf32> to vector<8x48xbf16>
    %c1_97 = arith.constant 1 : index
    %c0_98 = arith.constant 0 : index
    %c0_99 = arith.constant 0 : index
    %312 = vector.load %arg11[%c1_97, %c0_98, %c0_99] : memref<5x48x192xbf16, #tpu.memory_space<vmem>>, vector<1x48x192xbf16>
    %313 = vector.shape_cast %312 : vector<1x48x192xbf16> to vector<48x192xbf16>
    %cst_100 = arith.constant dense<0.000000e+00> : vector<8x192xf32>
    %314 = tpu.matmul %311, %313, %cst_100 {dimension_numbers = #tpu.dot_dimension_numbers<[1], [0], [0], [1], [0, 0, 1, 1], [], []>} : vector<8x48xbf16>, vector<48x192xbf16>, vector<8x192xf32> -> vector<8x192xf32>
    %c1_101 = arith.constant 1 : index
    %c0_102 = arith.constant 0 : index
    %c0_103 = arith.constant 0 : index
    %315 = vector.load %arg12[%c1_101, %c0_102, %c0_103] : memref<5x1x192xf32, #tpu.memory_space<vmem>>, vector<1x1x192xf32>
    %316 = vector.shape_cast %315 : vector<1x1x192xf32> to vector<1x192xf32>
    %317 = vector.broadcast %316 : vector<1x192xf32> to vector<8x192xf32>
    %318 = arith.addf %314, %317 : vector<8x192xf32>
    %cst_104 = arith.constant 0.000000e+00 : f32
    %319 = vector.broadcast %cst_104 : f32 to vector<8x192xf32>
    %320 = arith.maximumf %318, %319 : vector<8x192xf32>
    %321 = arith.truncf %320 : vector<8x192xf32> to vector<8x192xbf16>
    %c1_105 = arith.constant 1 : index
    %c0_106 = arith.constant 0 : index
    %c0_107 = arith.constant 0 : index
    %322 = vector.load %arg13[%c1_105, %c0_106, %c0_107] : memref<5x192x48xbf16, #tpu.memory_space<vmem>>, vector<1x192x48xbf16>
    %323 = vector.shape_cast %322 : vector<1x192x48xbf16> to vector<192x48xbf16>
    %cst_108 = arith.constant dense<0.000000e+00> : vector<8x48xf32>
    %324 = tpu.matmul %321, %323, %cst_108 {dimension_numbers = #tpu.dot_dimension_numbers<[1], [0], [0], [1], [0, 0, 1, 1], [], []>} : vector<8x192xbf16>, vector<192x48xbf16>, vector<8x48xf32> -> vector<8x48xf32>
    %325 = arith.addf %284, %324 : vector<8x48xf32>
    %c1_109 = arith.constant 1 : index
    %c0_110 = arith.constant 0 : index
    %c0_111 = arith.constant 0 : index
    %326 = vector.load %arg14[%c1_109, %c0_110, %c0_111] : memref<5x1x48xf32, #tpu.memory_space<vmem>>, vector<1x1x48xf32>
    %327 = vector.shape_cast %326 : vector<1x1x48xf32> to vector<1x48xf32>
    %328 = vector.broadcast %327 : vector<1x48xf32> to vector<8x48xf32>
    %329 = arith.addf %325, %328 : vector<8x48xf32>
    %c2 = arith.constant 2 : index
    %c0_112 = arith.constant 0 : index
    %c0_113 = arith.constant 0 : index
    %330 = vector.load %arg4[%c2, %c0_112, %c0_113] : memref<5x1x48xf32, #tpu.memory_space<vmem>>, vector<1x1x48xf32>
    %331 = vector.shape_cast %330 : vector<1x1x48xf32> to vector<1x48xf32>
    %c2_114 = arith.constant 2 : index
    %c0_115 = arith.constant 0 : index
    %c0_116 = arith.constant 0 : index
    %332 = vector.load %arg5[%c2_114, %c0_115, %c0_116] : memref<5x1x48xf32, #tpu.memory_space<vmem>>, vector<1x1x48xf32>
    %333 = vector.shape_cast %332 : vector<1x1x48xf32> to vector<1x48xf32>
    %cst_117 = arith.constant dense<0.000000e+00> : vector<8xf32>
    %334 = vector.multi_reduction <add>, %329, %cst_117 [1] : vector<8x48xf32> to vector<8xf32>
    %335 = vector.shape_cast %334 : vector<8xf32> to vector<8x1xf32>
    %cst_118 = arith.constant 4.800000e+01 : f32
    %336 = vector.broadcast %cst_118 : f32 to vector<8x1xf32>
    %337 = arith.divf %335, %336 : vector<8x1xf32>
    %338 = vector.broadcast %337 : vector<8x1xf32> to vector<8x48xf32>
    %339 = arith.subf %329, %338 : vector<8x48xf32>
    %340 = arith.mulf %339, %339 : vector<8x48xf32>
    %cst_119 = arith.constant dense<0.000000e+00> : vector<8xf32>
    %341 = vector.multi_reduction <add>, %340, %cst_119 [1] : vector<8x48xf32> to vector<8xf32>
    %342 = vector.shape_cast %341 : vector<8xf32> to vector<8x1xf32>
    %cst_120 = arith.constant 4.800000e+01 : f32
    %343 = vector.broadcast %cst_120 : f32 to vector<8x1xf32>
    %344 = arith.divf %342, %343 : vector<8x1xf32>
    %345 = vector.broadcast %337 : vector<8x1xf32> to vector<8x48xf32>
    %346 = arith.subf %329, %345 : vector<8x48xf32>
    %cst_121 = arith.constant 9.99999974E-6 : f32
    %347 = vector.broadcast %cst_121 : f32 to vector<8x1xf32>
    %348 = arith.addf %344, %347 : vector<8x1xf32>
    %349 = math.rsqrt %348 : vector<8x1xf32>
    %350 = vector.broadcast %349 : vector<8x1xf32> to vector<8x48xf32>
    %351 = arith.mulf %346, %350 : vector<8x48xf32>
    %352 = vector.broadcast %331 : vector<1x48xf32> to vector<8x48xf32>
    %353 = arith.mulf %351, %352 : vector<8x48xf32>
    %354 = vector.broadcast %333 : vector<1x48xf32> to vector<8x48xf32>
    %355 = arith.addf %353, %354 : vector<8x48xf32>
    %356 = arith.truncf %355 : vector<8x48xf32> to vector<8x48xbf16>
    %c2_122 = arith.constant 2 : index
    %c0_123 = arith.constant 0 : index
    %c0_124 = arith.constant 0 : index
    %357 = vector.load %arg6[%c2_122, %c0_123, %c0_124] : memref<5x48x144xbf16, #tpu.memory_space<vmem>>, vector<1x48x144xbf16>
    %358 = vector.shape_cast %357 : vector<1x48x144xbf16> to vector<48x144xbf16>
    %cst_125 = arith.constant dense<0.000000e+00> : vector<8x144xf32>
    %359 = tpu.matmul %356, %358, %cst_125 {dimension_numbers = #tpu.dot_dimension_numbers<[1], [0], [0], [1], [0, 0, 1, 1], [], []>} : vector<8x48xbf16>, vector<48x144xbf16>, vector<8x144xf32> -> vector<8x144xf32>
    %360 = vector.extract_strided_slice %359 {offsets = [0, 0], sizes = [8, 8], strides = [1, 1]} : vector<8x144xf32> to vector<8x8xf32>
    %361 = vector.extract_strided_slice %359 {offsets = [0, 8], sizes = [8, 8], strides = [1, 1]} : vector<8x144xf32> to vector<8x8xf32>
    %362 = vector.extract_strided_slice %359 {offsets = [0, 16], sizes = [8, 8], strides = [1, 1]} : vector<8x144xf32> to vector<8x8xf32>
    %363 = vector.extract_strided_slice %359 {offsets = [0, 24], sizes = [8, 8], strides = [1, 1]} : vector<8x144xf32> to vector<8x8xf32>
    %364 = vector.extract_strided_slice %359 {offsets = [0, 32], sizes = [8, 8], strides = [1, 1]} : vector<8x144xf32> to vector<8x8xf32>
    %365 = vector.extract_strided_slice %359 {offsets = [0, 40], sizes = [8, 8], strides = [1, 1]} : vector<8x144xf32> to vector<8x8xf32>
    %366 = vector.shape_cast %360 : vector<8x8xf32> to vector<1x8x8xf32>
    %367 = vector.shape_cast %361 : vector<8x8xf32> to vector<1x8x8xf32>
    %368 = vector.shape_cast %362 : vector<8x8xf32> to vector<1x8x8xf32>
    %369 = vector.shape_cast %363 : vector<8x8xf32> to vector<1x8x8xf32>
    %370 = vector.shape_cast %364 : vector<8x8xf32> to vector<1x8x8xf32>
    %371 = vector.shape_cast %365 : vector<8x8xf32> to vector<1x8x8xf32>
    %372 = tpu.concatenate %366, %367, %368, %369, %370, %371 in 0 : vector<1x8x8xf32>, vector<1x8x8xf32>, vector<1x8x8xf32>, vector<1x8x8xf32>, vector<1x8x8xf32>, vector<1x8x8xf32> -> vector<6x8x8xf32>
    %373 = arith.truncf %372 : vector<6x8x8xf32> to vector<6x8x8xbf16>
    %374 = vector.extract_strided_slice %359 {offsets = [0, 48], sizes = [8, 8], strides = [1, 1]} : vector<8x144xf32> to vector<8x8xf32>
    %375 = vector.extract_strided_slice %359 {offsets = [0, 56], sizes = [8, 8], strides = [1, 1]} : vector<8x144xf32> to vector<8x8xf32>
    %376 = vector.extract_strided_slice %359 {offsets = [0, 64], sizes = [8, 8], strides = [1, 1]} : vector<8x144xf32> to vector<8x8xf32>
    %377 = vector.extract_strided_slice %359 {offsets = [0, 72], sizes = [8, 8], strides = [1, 1]} : vector<8x144xf32> to vector<8x8xf32>
    %378 = vector.extract_strided_slice %359 {offsets = [0, 80], sizes = [8, 8], strides = [1, 1]} : vector<8x144xf32> to vector<8x8xf32>
    %379 = vector.extract_strided_slice %359 {offsets = [0, 88], sizes = [8, 8], strides = [1, 1]} : vector<8x144xf32> to vector<8x8xf32>
    %380 = vector.shape_cast %374 : vector<8x8xf32> to vector<1x8x8xf32>
    %381 = vector.shape_cast %375 : vector<8x8xf32> to vector<1x8x8xf32>
    %382 = vector.shape_cast %376 : vector<8x8xf32> to vector<1x8x8xf32>
    %383 = vector.shape_cast %377 : vector<8x8xf32> to vector<1x8x8xf32>
    %384 = vector.shape_cast %378 : vector<8x8xf32> to vector<1x8x8xf32>
    %385 = vector.shape_cast %379 : vector<8x8xf32> to vector<1x8x8xf32>
    %386 = tpu.concatenate %380, %381, %382, %383, %384, %385 in 0 : vector<1x8x8xf32>, vector<1x8x8xf32>, vector<1x8x8xf32>, vector<1x8x8xf32>, vector<1x8x8xf32>, vector<1x8x8xf32> -> vector<6x8x8xf32>
    %387 = arith.truncf %386 : vector<6x8x8xf32> to vector<6x8x8xbf16>
    %388 = vector.extract_strided_slice %359 {offsets = [0, 96], sizes = [8, 8], strides = [1, 1]} : vector<8x144xf32> to vector<8x8xf32>
    %389 = vector.extract_strided_slice %359 {offsets = [0, 104], sizes = [8, 8], strides = [1, 1]} : vector<8x144xf32> to vector<8x8xf32>
    %390 = vector.extract_strided_slice %359 {offsets = [0, 112], sizes = [8, 8], strides = [1, 1]} : vector<8x144xf32> to vector<8x8xf32>
    %391 = vector.extract_strided_slice %359 {offsets = [0, 120], sizes = [8, 8], strides = [1, 1]} : vector<8x144xf32> to vector<8x8xf32>
    %392 = vector.extract_strided_slice %359 {offsets = [0, 128], sizes = [8, 8], strides = [1, 1]} : vector<8x144xf32> to vector<8x8xf32>
    %393 = vector.extract_strided_slice %359 {offsets = [0, 136], sizes = [8, 8], strides = [1, 1]} : vector<8x144xf32> to vector<8x8xf32>
    %394 = vector.shape_cast %388 : vector<8x8xf32> to vector<1x8x8xf32>
    %395 = vector.shape_cast %389 : vector<8x8xf32> to vector<1x8x8xf32>
    %396 = vector.shape_cast %390 : vector<8x8xf32> to vector<1x8x8xf32>
    %397 = vector.shape_cast %391 : vector<8x8xf32> to vector<1x8x8xf32>
    %398 = vector.shape_cast %392 : vector<8x8xf32> to vector<1x8x8xf32>
    %399 = vector.shape_cast %393 : vector<8x8xf32> to vector<1x8x8xf32>
    %400 = tpu.concatenate %394, %395, %396, %397, %398, %399 in 0 : vector<1x8x8xf32>, vector<1x8x8xf32>, vector<1x8x8xf32>, vector<1x8x8xf32>, vector<1x8x8xf32>, vector<1x8x8xf32> -> vector<6x8x8xf32>
    %401 = arith.truncf %400 : vector<6x8x8xf32> to vector<6x8x8xbf16>
    "tpu.trace_start"() <{level = 10 : i32, message = "hnd,hmd->hnm"}> : () -> ()
    %cst_126 = arith.constant dense<0.000000e+00> : vector<6x8x8xf32>
    %402 = tpu.matmul %373, %387, %cst_126 {dimension_numbers = #tpu.dot_dimension_numbers<[2], [2], [1], [1], [0, 0, 0, 1, 1, 1], [0], [0]>} : vector<6x8x8xbf16>, vector<6x8x8xbf16>, vector<6x8x8xf32> -> vector<6x8x8xf32>
    "tpu.trace_stop"() : () -> ()
    %cst_127 = arith.constant 0.353553385 : f32
    %403 = vector.broadcast %cst_127 : f32 to vector<6x8x8xf32>
    %404 = arith.mulf %402, %403 : vector<6x8x8xf32>
    %405 = arith.addf %404, %19 : vector<6x8x8xf32>
    %cst_128 = arith.constant dense<0xFF800000> : vector<6x8xf32>
    %406 = vector.multi_reduction <maximumf>, %405, %cst_128 [2] : vector<6x8x8xf32> to vector<6x8xf32>
    %407 = vector.shape_cast %406 : vector<6x8xf32> to vector<6x8x1xf32>
    %408 = vector.broadcast %407 : vector<6x8x1xf32> to vector<6x8x8xf32>
    %409 = arith.subf %405, %408 : vector<6x8x8xf32>
    %410 = math.exp %409 : vector<6x8x8xf32>
    %cst_129 = arith.constant dense<0.000000e+00> : vector<6x8xf32>
    %411 = vector.multi_reduction <add>, %410, %cst_129 [2] : vector<6x8x8xf32> to vector<6x8xf32>
    %412 = vector.shape_cast %411 : vector<6x8xf32> to vector<6x8x1xf32>
    %413 = tpu.reciprocal %412 {approx = true} : vector<6x8x1xf32> -> vector<6x8x1xf32>
    %414 = vector.broadcast %413 : vector<6x8x1xf32> to vector<6x8x8xf32>
    %415 = arith.mulf %410, %414 : vector<6x8x8xf32>
    %416 = arith.truncf %415 : vector<6x8x8xf32> to vector<6x8x8xbf16>
    "tpu.trace_start"() <{level = 10 : i32, message = "hnm,hmd->hnd"}> : () -> ()
    %cst_130 = arith.constant dense<0.000000e+00> : vector<6x8x8xf32>
    %417 = tpu.matmul %416, %401, %cst_130 {dimension_numbers = #tpu.dot_dimension_numbers<[2], [1], [1], [2], [0, 0, 0, 1, 1, 2], [0], [0]>} : vector<6x8x8xbf16>, vector<6x8x8xbf16>, vector<6x8x8xf32> -> vector<6x8x8xf32>
    "tpu.trace_stop"() : () -> ()
    %418 = vector.extract_strided_slice %417 {offsets = [0, 0, 0], sizes = [1, 8, 8], strides = [1, 1, 1]} : vector<6x8x8xf32> to vector<1x8x8xf32>
    %419 = vector.shape_cast %418 : vector<1x8x8xf32> to vector<8x8xf32>
    %420 = vector.extract_strided_slice %417 {offsets = [1, 0, 0], sizes = [1, 8, 8], strides = [1, 1, 1]} : vector<6x8x8xf32> to vector<1x8x8xf32>
    %421 = vector.shape_cast %420 : vector<1x8x8xf32> to vector<8x8xf32>
    %422 = vector.extract_strided_slice %417 {offsets = [2, 0, 0], sizes = [1, 8, 8], strides = [1, 1, 1]} : vector<6x8x8xf32> to vector<1x8x8xf32>
    %423 = vector.shape_cast %422 : vector<1x8x8xf32> to vector<8x8xf32>
    %424 = vector.extract_strided_slice %417 {offsets = [3, 0, 0], sizes = [1, 8, 8], strides = [1, 1, 1]} : vector<6x8x8xf32> to vector<1x8x8xf32>
    %425 = vector.shape_cast %424 : vector<1x8x8xf32> to vector<8x8xf32>
    %426 = vector.extract_strided_slice %417 {offsets = [4, 0, 0], sizes = [1, 8, 8], strides = [1, 1, 1]} : vector<6x8x8xf32> to vector<1x8x8xf32>
    %427 = vector.shape_cast %426 : vector<1x8x8xf32> to vector<8x8xf32>
    %428 = vector.extract_strided_slice %417 {offsets = [5, 0, 0], sizes = [1, 8, 8], strides = [1, 1, 1]} : vector<6x8x8xf32> to vector<1x8x8xf32>
    %429 = vector.shape_cast %428 : vector<1x8x8xf32> to vector<8x8xf32>
    %430 = tpu.concatenate %419, %421, %423, %425, %427, %429 in 1 : vector<8x8xf32>, vector<8x8xf32>, vector<8x8xf32>, vector<8x8xf32>, vector<8x8xf32>, vector<8x8xf32> -> vector<8x48xf32>
    %431 = arith.truncf %430 : vector<8x48xf32> to vector<8x48xbf16>
    %c2_131 = arith.constant 2 : index
    %c0_132 = arith.constant 0 : index
    %c0_133 = arith.constant 0 : index
    %432 = vector.load %arg7[%c2_131, %c0_132, %c0_133] : memref<5x48x48xbf16, #tpu.memory_space<vmem>>, vector<1x48x48xbf16>
    %433 = vector.shape_cast %432 : vector<1x48x48xbf16> to vector<48x48xbf16>
    %cst_134 = arith.constant dense<0.000000e+00> : vector<8x48xf32>
    %434 = tpu.matmul %431, %433, %cst_134 {dimension_numbers = #tpu.dot_dimension_numbers<[1], [0], [0], [1], [0, 0, 1, 1], [], []>} : vector<8x48xbf16>, vector<48x48xbf16>, vector<8x48xf32> -> vector<8x48xf32>
    %435 = arith.addf %329, %434 : vector<8x48xf32>
    %c2_135 = arith.constant 2 : index
    %c0_136 = arith.constant 0 : index
    %c0_137 = arith.constant 0 : index
    %436 = vector.load %arg8[%c2_135, %c0_136, %c0_137] : memref<5x1x48xf32, #tpu.memory_space<vmem>>, vector<1x1x48xf32>
    %437 = vector.shape_cast %436 : vector<1x1x48xf32> to vector<1x48xf32>
    %438 = vector.broadcast %437 : vector<1x48xf32> to vector<8x48xf32>
    %439 = arith.addf %435, %438 : vector<8x48xf32>
    %c2_138 = arith.constant 2 : index
    %c0_139 = arith.constant 0 : index
    %c0_140 = arith.constant 0 : index
    %440 = vector.load %arg9[%c2_138, %c0_139, %c0_140] : memref<5x1x48xf32, #tpu.memory_space<vmem>>, vector<1x1x48xf32>
    %441 = vector.shape_cast %440 : vector<1x1x48xf32> to vector<1x48xf32>
    %c2_141 = arith.constant 2 : index
    %c0_142 = arith.constant 0 : index
    %c0_143 = arith.constant 0 : index
    %442 = vector.load %arg10[%c2_141, %c0_142, %c0_143] : memref<5x1x48xf32, #tpu.memory_space<vmem>>, vector<1x1x48xf32>
    %443 = vector.shape_cast %442 : vector<1x1x48xf32> to vector<1x48xf32>
    %cst_144 = arith.constant dense<0.000000e+00> : vector<8xf32>
    %444 = vector.multi_reduction <add>, %439, %cst_144 [1] : vector<8x48xf32> to vector<8xf32>
    %445 = vector.shape_cast %444 : vector<8xf32> to vector<8x1xf32>
    %cst_145 = arith.constant 4.800000e+01 : f32
    %446 = vector.broadcast %cst_145 : f32 to vector<8x1xf32>
    %447 = arith.divf %445, %446 : vector<8x1xf32>
    %448 = vector.broadcast %447 : vector<8x1xf32> to vector<8x48xf32>
    %449 = arith.subf %439, %448 : vector<8x48xf32>
    %450 = arith.mulf %449, %449 : vector<8x48xf32>
    %cst_146 = arith.constant dense<0.000000e+00> : vector<8xf32>
    %451 = vector.multi_reduction <add>, %450, %cst_146 [1] : vector<8x48xf32> to vector<8xf32>
    %452 = vector.shape_cast %451 : vector<8xf32> to vector<8x1xf32>
    %cst_147 = arith.constant 4.800000e+01 : f32
    %453 = vector.broadcast %cst_147 : f32 to vector<8x1xf32>
    %454 = arith.divf %452, %453 : vector<8x1xf32>
    %455 = vector.broadcast %447 : vector<8x1xf32> to vector<8x48xf32>
    %456 = arith.subf %439, %455 : vector<8x48xf32>
    %cst_148 = arith.constant 9.99999974E-6 : f32
    %457 = vector.broadcast %cst_148 : f32 to vector<8x1xf32>
    %458 = arith.addf %454, %457 : vector<8x1xf32>
    %459 = math.rsqrt %458 : vector<8x1xf32>
    %460 = vector.broadcast %459 : vector<8x1xf32> to vector<8x48xf32>
    %461 = arith.mulf %456, %460 : vector<8x48xf32>
    %462 = vector.broadcast %441 : vector<1x48xf32> to vector<8x48xf32>
    %463 = arith.mulf %461, %462 : vector<8x48xf32>
    %464 = vector.broadcast %443 : vector<1x48xf32> to vector<8x48xf32>
    %465 = arith.addf %463, %464 : vector<8x48xf32>
    %466 = arith.truncf %465 : vector<8x48xf32> to vector<8x48xbf16>
    %c2_149 = arith.constant 2 : index
    %c0_150 = arith.constant 0 : index
    %c0_151 = arith.constant 0 : index
    %467 = vector.load %arg11[%c2_149, %c0_150, %c0_151] : memref<5x48x192xbf16, #tpu.memory_space<vmem>>, vector<1x48x192xbf16>
    %468 = vector.shape_cast %467 : vector<1x48x192xbf16> to vector<48x192xbf16>
    %cst_152 = arith.constant dense<0.000000e+00> : vector<8x192xf32>
    %469 = tpu.matmul %466, %468, %cst_152 {dimension_numbers = #tpu.dot_dimension_numbers<[1], [0], [0], [1], [0, 0, 1, 1], [], []>} : vector<8x48xbf16>, vector<48x192xbf16>, vector<8x192xf32> -> vector<8x192xf32>
    %c2_153 = arith.constant 2 : index
    %c0_154 = arith.constant 0 : index
    %c0_155 = arith.constant 0 : index
    %470 = vector.load %arg12[%c2_153, %c0_154, %c0_155] : memref<5x1x192xf32, #tpu.memory_space<vmem>>, vector<1x1x192xf32>
    %471 = vector.shape_cast %470 : vector<1x1x192xf32> to vector<1x192xf32>
    %472 = vector.broadcast %471 : vector<1x192xf32> to vector<8x192xf32>
    %473 = arith.addf %469, %472 : vector<8x192xf32>
    %cst_156 = arith.constant 0.000000e+00 : f32
    %474 = vector.broadcast %cst_156 : f32 to vector<8x192xf32>
    %475 = arith.maximumf %473, %474 : vector<8x192xf32>
    %476 = arith.truncf %475 : vector<8x192xf32> to vector<8x192xbf16>
    %c2_157 = arith.constant 2 : index
    %c0_158 = arith.constant 0 : index
    %c0_159 = arith.constant 0 : index
    %477 = vector.load %arg13[%c2_157, %c0_158, %c0_159] : memref<5x192x48xbf16, #tpu.memory_space<vmem>>, vector<1x192x48xbf16>
    %478 = vector.shape_cast %477 : vector<1x192x48xbf16> to vector<192x48xbf16>
    %cst_160 = arith.constant dense<0.000000e+00> : vector<8x48xf32>
    %479 = tpu.matmul %476, %478, %cst_160 {dimension_numbers = #tpu.dot_dimension_numbers<[1], [0], [0], [1], [0, 0, 1, 1], [], []>} : vector<8x192xbf16>, vector<192x48xbf16>, vector<8x48xf32> -> vector<8x48xf32>
    %480 = arith.addf %439, %479 : vector<8x48xf32>
    %c2_161 = arith.constant 2 : index
    %c0_162 = arith.constant 0 : index
    %c0_163 = arith.constant 0 : index
    %481 = vector.load %arg14[%c2_161, %c0_162, %c0_163] : memref<5x1x48xf32, #tpu.memory_space<vmem>>, vector<1x1x48xf32>
    %482 = vector.shape_cast %481 : vector<1x1x48xf32> to vector<1x48xf32>
    %483 = vector.broadcast %482 : vector<1x48xf32> to vector<8x48xf32>
    %484 = arith.addf %480, %483 : vector<8x48xf32>
    %c3 = arith.constant 3 : index
    %c0_164 = arith.constant 0 : index
    %c0_165 = arith.constant 0 : index
    %485 = vector.load %arg4[%c3, %c0_164, %c0_165] : memref<5x1x48xf32, #tpu.memory_space<vmem>>, vector<1x1x48xf32>
    %486 = vector.shape_cast %485 : vector<1x1x48xf32> to vector<1x48xf32>
    %c3_166 = arith.constant 3 : index
    %c0_167 = arith.constant 0 : index
    %c0_168 = arith.constant 0 : index
    %487 = vector.load %arg5[%c3_166, %c0_167, %c0_168] : memref<5x1x48xf32, #tpu.memory_space<vmem>>, vector<1x1x48xf32>
    %488 = vector.shape_cast %487 : vector<1x1x48xf32> to vector<1x48xf32>
    %cst_169 = arith.constant dense<0.000000e+00> : vector<8xf32>
    %489 = vector.multi_reduction <add>, %484, %cst_169 [1] : vector<8x48xf32> to vector<8xf32>
    %490 = vector.shape_cast %489 : vector<8xf32> to vector<8x1xf32>
    %cst_170 = arith.constant 4.800000e+01 : f32
    %491 = vector.broadcast %cst_170 : f32 to vector<8x1xf32>
    %492 = arith.divf %490, %491 : vector<8x1xf32>
    %493 = vector.broadcast %492 : vector<8x1xf32> to vector<8x48xf32>
    %494 = arith.subf %484, %493 : vector<8x48xf32>
    %495 = arith.mulf %494, %494 : vector<8x48xf32>
    %cst_171 = arith.constant dense<0.000000e+00> : vector<8xf32>
    %496 = vector.multi_reduction <add>, %495, %cst_171 [1] : vector<8x48xf32> to vector<8xf32>
    %497 = vector.shape_cast %496 : vector<8xf32> to vector<8x1xf32>
    %cst_172 = arith.constant 4.800000e+01 : f32
    %498 = vector.broadcast %cst_172 : f32 to vector<8x1xf32>
    %499 = arith.divf %497, %498 : vector<8x1xf32>
    %500 = vector.broadcast %492 : vector<8x1xf32> to vector<8x48xf32>
    %501 = arith.subf %484, %500 : vector<8x48xf32>
    %cst_173 = arith.constant 9.99999974E-6 : f32
    %502 = vector.broadcast %cst_173 : f32 to vector<8x1xf32>
    %503 = arith.addf %499, %502 : vector<8x1xf32>
    %504 = math.rsqrt %503 : vector<8x1xf32>
    %505 = vector.broadcast %504 : vector<8x1xf32> to vector<8x48xf32>
    %506 = arith.mulf %501, %505 : vector<8x48xf32>
    %507 = vector.broadcast %486 : vector<1x48xf32> to vector<8x48xf32>
    %508 = arith.mulf %506, %507 : vector<8x48xf32>
    %509 = vector.broadcast %488 : vector<1x48xf32> to vector<8x48xf32>
    %510 = arith.addf %508, %509 : vector<8x48xf32>
    %511 = arith.truncf %510 : vector<8x48xf32> to vector<8x48xbf16>
    %c3_174 = arith.constant 3 : index
    %c0_175 = arith.constant 0 : index
    %c0_176 = arith.constant 0 : index
    %512 = vector.load %arg6[%c3_174, %c0_175, %c0_176] : memref<5x48x144xbf16, #tpu.memory_space<vmem>>, vector<1x48x144xbf16>
    %513 = vector.shape_cast %512 : vector<1x48x144xbf16> to vector<48x144xbf16>
    %cst_177 = arith.constant dense<0.000000e+00> : vector<8x144xf32>
    %514 = tpu.matmul %511, %513, %cst_177 {dimension_numbers = #tpu.dot_dimension_numbers<[1], [0], [0], [1], [0, 0, 1, 1], [], []>} : vector<8x48xbf16>, vector<48x144xbf16>, vector<8x144xf32> -> vector<8x144xf32>
    %515 = vector.extract_strided_slice %514 {offsets = [0, 0], sizes = [8, 8], strides = [1, 1]} : vector<8x144xf32> to vector<8x8xf32>
    %516 = vector.extract_strided_slice %514 {offsets = [0, 8], sizes = [8, 8], strides = [1, 1]} : vector<8x144xf32> to vector<8x8xf32>
    %517 = vector.extract_strided_slice %514 {offsets = [0, 16], sizes = [8, 8], strides = [1, 1]} : vector<8x144xf32> to vector<8x8xf32>
    %518 = vector.extract_strided_slice %514 {offsets = [0, 24], sizes = [8, 8], strides = [1, 1]} : vector<8x144xf32> to vector<8x8xf32>
    %519 = vector.extract_strided_slice %514 {offsets = [0, 32], sizes = [8, 8], strides = [1, 1]} : vector<8x144xf32> to vector<8x8xf32>
    %520 = vector.extract_strided_slice %514 {offsets = [0, 40], sizes = [8, 8], strides = [1, 1]} : vector<8x144xf32> to vector<8x8xf32>
    %521 = vector.shape_cast %515 : vector<8x8xf32> to vector<1x8x8xf32>
    %522 = vector.shape_cast %516 : vector<8x8xf32> to vector<1x8x8xf32>
    %523 = vector.shape_cast %517 : vector<8x8xf32> to vector<1x8x8xf32>
    %524 = vector.shape_cast %518 : vector<8x8xf32> to vector<1x8x8xf32>
    %525 = vector.shape_cast %519 : vector<8x8xf32> to vector<1x8x8xf32>
    %526 = vector.shape_cast %520 : vector<8x8xf32> to vector<1x8x8xf32>
    %527 = tpu.concatenate %521, %522, %523, %524, %525, %526 in 0 : vector<1x8x8xf32>, vector<1x8x8xf32>, vector<1x8x8xf32>, vector<1x8x8xf32>, vector<1x8x8xf32>, vector<1x8x8xf32> -> vector<6x8x8xf32>
    %528 = arith.truncf %527 : vector<6x8x8xf32> to vector<6x8x8xbf16>
    %529 = vector.extract_strided_slice %514 {offsets = [0, 48], sizes = [8, 8], strides = [1, 1]} : vector<8x144xf32> to vector<8x8xf32>
    %530 = vector.extract_strided_slice %514 {offsets = [0, 56], sizes = [8, 8], strides = [1, 1]} : vector<8x144xf32> to vector<8x8xf32>
    %531 = vector.extract_strided_slice %514 {offsets = [0, 64], sizes = [8, 8], strides = [1, 1]} : vector<8x144xf32> to vector<8x8xf32>
    %532 = vector.extract_strided_slice %514 {offsets = [0, 72], sizes = [8, 8], strides = [1, 1]} : vector<8x144xf32> to vector<8x8xf32>
    %533 = vector.extract_strided_slice %514 {offsets = [0, 80], sizes = [8, 8], strides = [1, 1]} : vector<8x144xf32> to vector<8x8xf32>
    %534 = vector.extract_strided_slice %514 {offsets = [0, 88], sizes = [8, 8], strides = [1, 1]} : vector<8x144xf32> to vector<8x8xf32>
    %535 = vector.shape_cast %529 : vector<8x8xf32> to vector<1x8x8xf32>
    %536 = vector.shape_cast %530 : vector<8x8xf32> to vector<1x8x8xf32>
    %537 = vector.shape_cast %531 : vector<8x8xf32> to vector<1x8x8xf32>
    %538 = vector.shape_cast %532 : vector<8x8xf32> to vector<1x8x8xf32>
    %539 = vector.shape_cast %533 : vector<8x8xf32> to vector<1x8x8xf32>
    %540 = vector.shape_cast %534 : vector<8x8xf32> to vector<1x8x8xf32>
    %541 = tpu.concatenate %535, %536, %537, %538, %539, %540 in 0 : vector<1x8x8xf32>, vector<1x8x8xf32>, vector<1x8x8xf32>, vector<1x8x8xf32>, vector<1x8x8xf32>, vector<1x8x8xf32> -> vector<6x8x8xf32>
    %542 = arith.truncf %541 : vector<6x8x8xf32> to vector<6x8x8xbf16>
    %543 = vector.extract_strided_slice %514 {offsets = [0, 96], sizes = [8, 8], strides = [1, 1]} : vector<8x144xf32> to vector<8x8xf32>
    %544 = vector.extract_strided_slice %514 {offsets = [0, 104], sizes = [8, 8], strides = [1, 1]} : vector<8x144xf32> to vector<8x8xf32>
    %545 = vector.extract_strided_slice %514 {offsets = [0, 112], sizes = [8, 8], strides = [1, 1]} : vector<8x144xf32> to vector<8x8xf32>
    %546 = vector.extract_strided_slice %514 {offsets = [0, 120], sizes = [8, 8], strides = [1, 1]} : vector<8x144xf32> to vector<8x8xf32>
    %547 = vector.extract_strided_slice %514 {offsets = [0, 128], sizes = [8, 8], strides = [1, 1]} : vector<8x144xf32> to vector<8x8xf32>
    %548 = vector.extract_strided_slice %514 {offsets = [0, 136], sizes = [8, 8], strides = [1, 1]} : vector<8x144xf32> to vector<8x8xf32>
    %549 = vector.shape_cast %543 : vector<8x8xf32> to vector<1x8x8xf32>
    %550 = vector.shape_cast %544 : vector<8x8xf32> to vector<1x8x8xf32>
    %551 = vector.shape_cast %545 : vector<8x8xf32> to vector<1x8x8xf32>
    %552 = vector.shape_cast %546 : vector<8x8xf32> to vector<1x8x8xf32>
    %553 = vector.shape_cast %547 : vector<8x8xf32> to vector<1x8x8xf32>
    %554 = vector.shape_cast %548 : vector<8x8xf32> to vector<1x8x8xf32>
    %555 = tpu.concatenate %549, %550, %551, %552, %553, %554 in 0 : vector<1x8x8xf32>, vector<1x8x8xf32>, vector<1x8x8xf32>, vector<1x8x8xf32>, vector<1x8x8xf32>, vector<1x8x8xf32> -> vector<6x8x8xf32>
    %556 = arith.truncf %555 : vector<6x8x8xf32> to vector<6x8x8xbf16>
    "tpu.trace_start"() <{level = 10 : i32, message = "hnd,hmd->hnm"}> : () -> ()
    %cst_178 = arith.constant dense<0.000000e+00> : vector<6x8x8xf32>
    %557 = tpu.matmul %528, %542, %cst_178 {dimension_numbers = #tpu.dot_dimension_numbers<[2], [2], [1], [1], [0, 0, 0, 1, 1, 1], [0], [0]>} : vector<6x8x8xbf16>, vector<6x8x8xbf16>, vector<6x8x8xf32> -> vector<6x8x8xf32>
    "tpu.trace_stop"() : () -> ()
    %cst_179 = arith.constant 0.353553385 : f32
    %558 = vector.broadcast %cst_179 : f32 to vector<6x8x8xf32>
    %559 = arith.mulf %557, %558 : vector<6x8x8xf32>
    %560 = arith.addf %559, %19 : vector<6x8x8xf32>
    %cst_180 = arith.constant dense<0xFF800000> : vector<6x8xf32>
    %561 = vector.multi_reduction <maximumf>, %560, %cst_180 [2] : vector<6x8x8xf32> to vector<6x8xf32>
    %562 = vector.shape_cast %561 : vector<6x8xf32> to vector<6x8x1xf32>
    %563 = vector.broadcast %562 : vector<6x8x1xf32> to vector<6x8x8xf32>
    %564 = arith.subf %560, %563 : vector<6x8x8xf32>
    %565 = math.exp %564 : vector<6x8x8xf32>
    %cst_181 = arith.constant dense<0.000000e+00> : vector<6x8xf32>
    %566 = vector.multi_reduction <add>, %565, %cst_181 [2] : vector<6x8x8xf32> to vector<6x8xf32>
    %567 = vector.shape_cast %566 : vector<6x8xf32> to vector<6x8x1xf32>
    %568 = tpu.reciprocal %567 {approx = true} : vector<6x8x1xf32> -> vector<6x8x1xf32>
    %569 = vector.broadcast %568 : vector<6x8x1xf32> to vector<6x8x8xf32>
    %570 = arith.mulf %565, %569 : vector<6x8x8xf32>
    %571 = arith.truncf %570 : vector<6x8x8xf32> to vector<6x8x8xbf16>
    "tpu.trace_start"() <{level = 10 : i32, message = "hnm,hmd->hnd"}> : () -> ()
    %cst_182 = arith.constant dense<0.000000e+00> : vector<6x8x8xf32>
    %572 = tpu.matmul %571, %556, %cst_182 {dimension_numbers = #tpu.dot_dimension_numbers<[2], [1], [1], [2], [0, 0, 0, 1, 1, 2], [0], [0]>} : vector<6x8x8xbf16>, vector<6x8x8xbf16>, vector<6x8x8xf32> -> vector<6x8x8xf32>
    "tpu.trace_stop"() : () -> ()
    %573 = vector.extract_strided_slice %572 {offsets = [0, 0, 0], sizes = [1, 8, 8], strides = [1, 1, 1]} : vector<6x8x8xf32> to vector<1x8x8xf32>
    %574 = vector.shape_cast %573 : vector<1x8x8xf32> to vector<8x8xf32>
    %575 = vector.extract_strided_slice %572 {offsets = [1, 0, 0], sizes = [1, 8, 8], strides = [1, 1, 1]} : vector<6x8x8xf32> to vector<1x8x8xf32>
    %576 = vector.shape_cast %575 : vector<1x8x8xf32> to vector<8x8xf32>
    %577 = vector.extract_strided_slice %572 {offsets = [2, 0, 0], sizes = [1, 8, 8], strides = [1, 1, 1]} : vector<6x8x8xf32> to vector<1x8x8xf32>
    %578 = vector.shape_cast %577 : vector<1x8x8xf32> to vector<8x8xf32>
    %579 = vector.extract_strided_slice %572 {offsets = [3, 0, 0], sizes = [1, 8, 8], strides = [1, 1, 1]} : vector<6x8x8xf32> to vector<1x8x8xf32>
    %580 = vector.shape_cast %579 : vector<1x8x8xf32> to vector<8x8xf32>
    %581 = vector.extract_strided_slice %572 {offsets = [4, 0, 0], sizes = [1, 8, 8], strides = [1, 1, 1]} : vector<6x8x8xf32> to vector<1x8x8xf32>
    %582 = vector.shape_cast %581 : vector<1x8x8xf32> to vector<8x8xf32>
    %583 = vector.extract_strided_slice %572 {offsets = [5, 0, 0], sizes = [1, 8, 8], strides = [1, 1, 1]} : vector<6x8x8xf32> to vector<1x8x8xf32>
    %584 = vector.shape_cast %583 : vector<1x8x8xf32> to vector<8x8xf32>
    %585 = tpu.concatenate %574, %576, %578, %580, %582, %584 in 1 : vector<8x8xf32>, vector<8x8xf32>, vector<8x8xf32>, vector<8x8xf32>, vector<8x8xf32>, vector<8x8xf32> -> vector<8x48xf32>
    %586 = arith.truncf %585 : vector<8x48xf32> to vector<8x48xbf16>
    %c3_183 = arith.constant 3 : index
    %c0_184 = arith.constant 0 : index
    %c0_185 = arith.constant 0 : index
    %587 = vector.load %arg7[%c3_183, %c0_184, %c0_185] : memref<5x48x48xbf16, #tpu.memory_space<vmem>>, vector<1x48x48xbf16>
    %588 = vector.shape_cast %587 : vector<1x48x48xbf16> to vector<48x48xbf16>
    %cst_186 = arith.constant dense<0.000000e+00> : vector<8x48xf32>
    %589 = tpu.matmul %586, %588, %cst_186 {dimension_numbers = #tpu.dot_dimension_numbers<[1], [0], [0], [1], [0, 0, 1, 1], [], []>} : vector<8x48xbf16>, vector<48x48xbf16>, vector<8x48xf32> -> vector<8x48xf32>
    %590 = arith.addf %484, %589 : vector<8x48xf32>
    %c3_187 = arith.constant 3 : index
    %c0_188 = arith.constant 0 : index
    %c0_189 = arith.constant 0 : index
    %591 = vector.load %arg8[%c3_187, %c0_188, %c0_189] : memref<5x1x48xf32, #tpu.memory_space<vmem>>, vector<1x1x48xf32>
    %592 = vector.shape_cast %591 : vector<1x1x48xf32> to vector<1x48xf32>
    %593 = vector.broadcast %592 : vector<1x48xf32> to vector<8x48xf32>
    %594 = arith.addf %590, %593 : vector<8x48xf32>
    %c3_190 = arith.constant 3 : index
    %c0_191 = arith.constant 0 : index
    %c0_192 = arith.constant 0 : index
    %595 = vector.load %arg9[%c3_190, %c0_191, %c0_192] : memref<5x1x48xf32, #tpu.memory_space<vmem>>, vector<1x1x48xf32>
    %596 = vector.shape_cast %595 : vector<1x1x48xf32> to vector<1x48xf32>
    %c3_193 = arith.constant 3 : index
    %c0_194 = arith.constant 0 : index
    %c0_195 = arith.constant 0 : index
    %597 = vector.load %arg10[%c3_193, %c0_194, %c0_195] : memref<5x1x48xf32, #tpu.memory_space<vmem>>, vector<1x1x48xf32>
    %598 = vector.shape_cast %597 : vector<1x1x48xf32> to vector<1x48xf32>
    %cst_196 = arith.constant dense<0.000000e+00> : vector<8xf32>
    %599 = vector.multi_reduction <add>, %594, %cst_196 [1] : vector<8x48xf32> to vector<8xf32>
    %600 = vector.shape_cast %599 : vector<8xf32> to vector<8x1xf32>
    %cst_197 = arith.constant 4.800000e+01 : f32
    %601 = vector.broadcast %cst_197 : f32 to vector<8x1xf32>
    %602 = arith.divf %600, %601 : vector<8x1xf32>
    %603 = vector.broadcast %602 : vector<8x1xf32> to vector<8x48xf32>
    %604 = arith.subf %594, %603 : vector<8x48xf32>
    %605 = arith.mulf %604, %604 : vector<8x48xf32>
    %cst_198 = arith.constant dense<0.000000e+00> : vector<8xf32>
    %606 = vector.multi_reduction <add>, %605, %cst_198 [1] : vector<8x48xf32> to vector<8xf32>
    %607 = vector.shape_cast %606 : vector<8xf32> to vector<8x1xf32>
    %cst_199 = arith.constant 4.800000e+01 : f32
    %608 = vector.broadcast %cst_199 : f32 to vector<8x1xf32>
    %609 = arith.divf %607, %608 : vector<8x1xf32>
    %610 = vector.broadcast %602 : vector<8x1xf32> to vector<8x48xf32>
    %611 = arith.subf %594, %610 : vector<8x48xf32>
    %cst_200 = arith.constant 9.99999974E-6 : f32
    %612 = vector.broadcast %cst_200 : f32 to vector<8x1xf32>
    %613 = arith.addf %609, %612 : vector<8x1xf32>
    %614 = math.rsqrt %613 : vector<8x1xf32>
    %615 = vector.broadcast %614 : vector<8x1xf32> to vector<8x48xf32>
    %616 = arith.mulf %611, %615 : vector<8x48xf32>
    %617 = vector.broadcast %596 : vector<1x48xf32> to vector<8x48xf32>
    %618 = arith.mulf %616, %617 : vector<8x48xf32>
    %619 = vector.broadcast %598 : vector<1x48xf32> to vector<8x48xf32>
    %620 = arith.addf %618, %619 : vector<8x48xf32>
    %621 = arith.truncf %620 : vector<8x48xf32> to vector<8x48xbf16>
    %c3_201 = arith.constant 3 : index
    %c0_202 = arith.constant 0 : index
    %c0_203 = arith.constant 0 : index
    %622 = vector.load %arg11[%c3_201, %c0_202, %c0_203] : memref<5x48x192xbf16, #tpu.memory_space<vmem>>, vector<1x48x192xbf16>
    %623 = vector.shape_cast %622 : vector<1x48x192xbf16> to vector<48x192xbf16>
    %cst_204 = arith.constant dense<0.000000e+00> : vector<8x192xf32>
    %624 = tpu.matmul %621, %623, %cst_204 {dimension_numbers = #tpu.dot_dimension_numbers<[1], [0], [0], [1], [0, 0, 1, 1], [], []>} : vector<8x48xbf16>, vector<48x192xbf16>, vector<8x192xf32> -> vector<8x192xf32>
    %c3_205 = arith.constant 3 : index
    %c0_206 = arith.constant 0 : index
    %c0_207 = arith.constant 0 : index
    %625 = vector.load %arg12[%c3_205, %c0_206, %c0_207] : memref<5x1x192xf32, #tpu.memory_space<vmem>>, vector<1x1x192xf32>
    %626 = vector.shape_cast %625 : vector<1x1x192xf32> to vector<1x192xf32>
    %627 = vector.broadcast %626 : vector<1x192xf32> to vector<8x192xf32>
    %628 = arith.addf %624, %627 : vector<8x192xf32>
    %cst_208 = arith.constant 0.000000e+00 : f32
    %629 = vector.broadcast %cst_208 : f32 to vector<8x192xf32>
    %630 = arith.maximumf %628, %629 : vector<8x192xf32>
    %631 = arith.truncf %630 : vector<8x192xf32> to vector<8x192xbf16>
    %c3_209 = arith.constant 3 : index
    %c0_210 = arith.constant 0 : index
    %c0_211 = arith.constant 0 : index
    %632 = vector.load %arg13[%c3_209, %c0_210, %c0_211] : memref<5x192x48xbf16, #tpu.memory_space<vmem>>, vector<1x192x48xbf16>
    %633 = vector.shape_cast %632 : vector<1x192x48xbf16> to vector<192x48xbf16>
    %cst_212 = arith.constant dense<0.000000e+00> : vector<8x48xf32>
    %634 = tpu.matmul %631, %633, %cst_212 {dimension_numbers = #tpu.dot_dimension_numbers<[1], [0], [0], [1], [0, 0, 1, 1], [], []>} : vector<8x192xbf16>, vector<192x48xbf16>, vector<8x48xf32> -> vector<8x48xf32>
    %635 = arith.addf %594, %634 : vector<8x48xf32>
    %c3_213 = arith.constant 3 : index
    %c0_214 = arith.constant 0 : index
    %c0_215 = arith.constant 0 : index
    %636 = vector.load %arg14[%c3_213, %c0_214, %c0_215] : memref<5x1x48xf32, #tpu.memory_space<vmem>>, vector<1x1x48xf32>
    %637 = vector.shape_cast %636 : vector<1x1x48xf32> to vector<1x48xf32>
    %638 = vector.broadcast %637 : vector<1x48xf32> to vector<8x48xf32>
    %639 = arith.addf %635, %638 : vector<8x48xf32>
    %c4 = arith.constant 4 : index
    %c0_216 = arith.constant 0 : index
    %c0_217 = arith.constant 0 : index
    %640 = vector.load %arg4[%c4, %c0_216, %c0_217] : memref<5x1x48xf32, #tpu.memory_space<vmem>>, vector<1x1x48xf32>
    %641 = vector.shape_cast %640 : vector<1x1x48xf32> to vector<1x48xf32>
    %c4_218 = arith.constant 4 : index
    %c0_219 = arith.constant 0 : index
    %c0_220 = arith.constant 0 : index
    %642 = vector.load %arg5[%c4_218, %c0_219, %c0_220] : memref<5x1x48xf32, #tpu.memory_space<vmem>>, vector<1x1x48xf32>
    %643 = vector.shape_cast %642 : vector<1x1x48xf32> to vector<1x48xf32>
    %cst_221 = arith.constant dense<0.000000e+00> : vector<8xf32>
    %644 = vector.multi_reduction <add>, %639, %cst_221 [1] : vector<8x48xf32> to vector<8xf32>
    %645 = vector.shape_cast %644 : vector<8xf32> to vector<8x1xf32>
    %cst_222 = arith.constant 4.800000e+01 : f32
    %646 = vector.broadcast %cst_222 : f32 to vector<8x1xf32>
    %647 = arith.divf %645, %646 : vector<8x1xf32>
    %648 = vector.broadcast %647 : vector<8x1xf32> to vector<8x48xf32>
    %649 = arith.subf %639, %648 : vector<8x48xf32>
    %650 = arith.mulf %649, %649 : vector<8x48xf32>
    %cst_223 = arith.constant dense<0.000000e+00> : vector<8xf32>
    %651 = vector.multi_reduction <add>, %650, %cst_223 [1] : vector<8x48xf32> to vector<8xf32>
    %652 = vector.shape_cast %651 : vector<8xf32> to vector<8x1xf32>
    %cst_224 = arith.constant 4.800000e+01 : f32
    %653 = vector.broadcast %cst_224 : f32 to vector<8x1xf32>
    %654 = arith.divf %652, %653 : vector<8x1xf32>
    %655 = vector.broadcast %647 : vector<8x1xf32> to vector<8x48xf32>
    %656 = arith.subf %639, %655 : vector<8x48xf32>
    %cst_225 = arith.constant 9.99999974E-6 : f32
    %657 = vector.broadcast %cst_225 : f32 to vector<8x1xf32>
    %658 = arith.addf %654, %657 : vector<8x1xf32>
    %659 = math.rsqrt %658 : vector<8x1xf32>
    %660 = vector.broadcast %659 : vector<8x1xf32> to vector<8x48xf32>
    %661 = arith.mulf %656, %660 : vector<8x48xf32>
    %662 = vector.broadcast %641 : vector<1x48xf32> to vector<8x48xf32>
    %663 = arith.mulf %661, %662 : vector<8x48xf32>
    %664 = vector.broadcast %643 : vector<1x48xf32> to vector<8x48xf32>
    %665 = arith.addf %663, %664 : vector<8x48xf32>
    %666 = arith.truncf %665 : vector<8x48xf32> to vector<8x48xbf16>
    %c4_226 = arith.constant 4 : index
    %c0_227 = arith.constant 0 : index
    %c0_228 = arith.constant 0 : index
    %667 = vector.load %arg6[%c4_226, %c0_227, %c0_228] : memref<5x48x144xbf16, #tpu.memory_space<vmem>>, vector<1x48x144xbf16>
    %668 = vector.shape_cast %667 : vector<1x48x144xbf16> to vector<48x144xbf16>
    %cst_229 = arith.constant dense<0.000000e+00> : vector<8x144xf32>
    %669 = tpu.matmul %666, %668, %cst_229 {dimension_numbers = #tpu.dot_dimension_numbers<[1], [0], [0], [1], [0, 0, 1, 1], [], []>} : vector<8x48xbf16>, vector<48x144xbf16>, vector<8x144xf32> -> vector<8x144xf32>
    %670 = vector.extract_strided_slice %669 {offsets = [0, 0], sizes = [8, 8], strides = [1, 1]} : vector<8x144xf32> to vector<8x8xf32>
    %671 = vector.extract_strided_slice %669 {offsets = [0, 8], sizes = [8, 8], strides = [1, 1]} : vector<8x144xf32> to vector<8x8xf32>
    %672 = vector.extract_strided_slice %669 {offsets = [0, 16], sizes = [8, 8], strides = [1, 1]} : vector<8x144xf32> to vector<8x8xf32>
    %673 = vector.extract_strided_slice %669 {offsets = [0, 24], sizes = [8, 8], strides = [1, 1]} : vector<8x144xf32> to vector<8x8xf32>
    %674 = vector.extract_strided_slice %669 {offsets = [0, 32], sizes = [8, 8], strides = [1, 1]} : vector<8x144xf32> to vector<8x8xf32>
    %675 = vector.extract_strided_slice %669 {offsets = [0, 40], sizes = [8, 8], strides = [1, 1]} : vector<8x144xf32> to vector<8x8xf32>
    %676 = vector.shape_cast %670 : vector<8x8xf32> to vector<1x8x8xf32>
    %677 = vector.shape_cast %671 : vector<8x8xf32> to vector<1x8x8xf32>
    %678 = vector.shape_cast %672 : vector<8x8xf32> to vector<1x8x8xf32>
    %679 = vector.shape_cast %673 : vector<8x8xf32> to vector<1x8x8xf32>
    %680 = vector.shape_cast %674 : vector<8x8xf32> to vector<1x8x8xf32>
    %681 = vector.shape_cast %675 : vector<8x8xf32> to vector<1x8x8xf32>
    %682 = tpu.concatenate %676, %677, %678, %679, %680, %681 in 0 : vector<1x8x8xf32>, vector<1x8x8xf32>, vector<1x8x8xf32>, vector<1x8x8xf32>, vector<1x8x8xf32>, vector<1x8x8xf32> -> vector<6x8x8xf32>
    %683 = arith.truncf %682 : vector<6x8x8xf32> to vector<6x8x8xbf16>
    %684 = vector.extract_strided_slice %669 {offsets = [0, 48], sizes = [8, 8], strides = [1, 1]} : vector<8x144xf32> to vector<8x8xf32>
    %685 = vector.extract_strided_slice %669 {offsets = [0, 56], sizes = [8, 8], strides = [1, 1]} : vector<8x144xf32> to vector<8x8xf32>
    %686 = vector.extract_strided_slice %669 {offsets = [0, 64], sizes = [8, 8], strides = [1, 1]} : vector<8x144xf32> to vector<8x8xf32>
    %687 = vector.extract_strided_slice %669 {offsets = [0, 72], sizes = [8, 8], strides = [1, 1]} : vector<8x144xf32> to vector<8x8xf32>
    %688 = vector.extract_strided_slice %669 {offsets = [0, 80], sizes = [8, 8], strides = [1, 1]} : vector<8x144xf32> to vector<8x8xf32>
    %689 = vector.extract_strided_slice %669 {offsets = [0, 88], sizes = [8, 8], strides = [1, 1]} : vector<8x144xf32> to vector<8x8xf32>
    %690 = vector.shape_cast %684 : vector<8x8xf32> to vector<1x8x8xf32>
    %691 = vector.shape_cast %685 : vector<8x8xf32> to vector<1x8x8xf32>
    %692 = vector.shape_cast %686 : vector<8x8xf32> to vector<1x8x8xf32>
    %693 = vector.shape_cast %687 : vector<8x8xf32> to vector<1x8x8xf32>
    %694 = vector.shape_cast %688 : vector<8x8xf32> to vector<1x8x8xf32>
    %695 = vector.shape_cast %689 : vector<8x8xf32> to vector<1x8x8xf32>
    %696 = tpu.concatenate %690, %691, %692, %693, %694, %695 in 0 : vector<1x8x8xf32>, vector<1x8x8xf32>, vector<1x8x8xf32>, vector<1x8x8xf32>, vector<1x8x8xf32>, vector<1x8x8xf32> -> vector<6x8x8xf32>
    %697 = arith.truncf %696 : vector<6x8x8xf32> to vector<6x8x8xbf16>
    %698 = vector.extract_strided_slice %669 {offsets = [0, 96], sizes = [8, 8], strides = [1, 1]} : vector<8x144xf32> to vector<8x8xf32>
    %699 = vector.extract_strided_slice %669 {offsets = [0, 104], sizes = [8, 8], strides = [1, 1]} : vector<8x144xf32> to vector<8x8xf32>
    %700 = vector.extract_strided_slice %669 {offsets = [0, 112], sizes = [8, 8], strides = [1, 1]} : vector<8x144xf32> to vector<8x8xf32>
    %701 = vector.extract_strided_slice %669 {offsets = [0, 120], sizes = [8, 8], strides = [1, 1]} : vector<8x144xf32> to vector<8x8xf32>
    %702 = vector.extract_strided_slice %669 {offsets = [0, 128], sizes = [8, 8], strides = [1, 1]} : vector<8x144xf32> to vector<8x8xf32>
    %703 = vector.extract_strided_slice %669 {offsets = [0, 136], sizes = [8, 8], strides = [1, 1]} : vector<8x144xf32> to vector<8x8xf32>
    %704 = vector.shape_cast %698 : vector<8x8xf32> to vector<1x8x8xf32>
    %705 = vector.shape_cast %699 : vector<8x8xf32> to vector<1x8x8xf32>
    %706 = vector.shape_cast %700 : vector<8x8xf32> to vector<1x8x8xf32>
    %707 = vector.shape_cast %701 : vector<8x8xf32> to vector<1x8x8xf32>
    %708 = vector.shape_cast %702 : vector<8x8xf32> to vector<1x8x8xf32>
    %709 = vector.shape_cast %703 : vector<8x8xf32> to vector<1x8x8xf32>
    %710 = tpu.concatenate %704, %705, %706, %707, %708, %709 in 0 : vector<1x8x8xf32>, vector<1x8x8xf32>, vector<1x8x8xf32>, vector<1x8x8xf32>, vector<1x8x8xf32>, vector<1x8x8xf32> -> vector<6x8x8xf32>
    %711 = arith.truncf %710 : vector<6x8x8xf32> to vector<6x8x8xbf16>
    "tpu.trace_start"() <{level = 10 : i32, message = "hnd,hmd->hnm"}> : () -> ()
    %cst_230 = arith.constant dense<0.000000e+00> : vector<6x8x8xf32>
    %712 = tpu.matmul %683, %697, %cst_230 {dimension_numbers = #tpu.dot_dimension_numbers<[2], [2], [1], [1], [0, 0, 0, 1, 1, 1], [0], [0]>} : vector<6x8x8xbf16>, vector<6x8x8xbf16>, vector<6x8x8xf32> -> vector<6x8x8xf32>
    "tpu.trace_stop"() : () -> ()
    %cst_231 = arith.constant 0.353553385 : f32
    %713 = vector.broadcast %cst_231 : f32 to vector<6x8x8xf32>
    %714 = arith.mulf %712, %713 : vector<6x8x8xf32>
    %715 = arith.addf %714, %19 : vector<6x8x8xf32>
    %cst_232 = arith.constant dense<0xFF800000> : vector<6x8xf32>
    %716 = vector.multi_reduction <maximumf>, %715, %cst_232 [2] : vector<6x8x8xf32> to vector<6x8xf32>
    %717 = vector.shape_cast %716 : vector<6x8xf32> to vector<6x8x1xf32>
    %718 = vector.broadcast %717 : vector<6x8x1xf32> to vector<6x8x8xf32>
    %719 = arith.subf %715, %718 : vector<6x8x8xf32>
    %720 = math.exp %719 : vector<6x8x8xf32>
    %cst_233 = arith.constant dense<0.000000e+00> : vector<6x8xf32>
    %721 = vector.multi_reduction <add>, %720, %cst_233 [2] : vector<6x8x8xf32> to vector<6x8xf32>
    %722 = vector.shape_cast %721 : vector<6x8xf32> to vector<6x8x1xf32>
    %723 = tpu.reciprocal %722 {approx = true} : vector<6x8x1xf32> -> vector<6x8x1xf32>
    %724 = vector.broadcast %723 : vector<6x8x1xf32> to vector<6x8x8xf32>
    %725 = arith.mulf %720, %724 : vector<6x8x8xf32>
    %726 = arith.truncf %725 : vector<6x8x8xf32> to vector<6x8x8xbf16>
    "tpu.trace_start"() <{level = 10 : i32, message = "hnm,hmd->hnd"}> : () -> ()
    %cst_234 = arith.constant dense<0.000000e+00> : vector<6x8x8xf32>
    %727 = tpu.matmul %726, %711, %cst_234 {dimension_numbers = #tpu.dot_dimension_numbers<[2], [1], [1], [2], [0, 0, 0, 1, 1, 2], [0], [0]>} : vector<6x8x8xbf16>, vector<6x8x8xbf16>, vector<6x8x8xf32> -> vector<6x8x8xf32>
    "tpu.trace_stop"() : () -> ()
    %728 = vector.extract_strided_slice %727 {offsets = [0, 0, 0], sizes = [1, 8, 8], strides = [1, 1, 1]} : vector<6x8x8xf32> to vector<1x8x8xf32>
    %729 = vector.shape_cast %728 : vector<1x8x8xf32> to vector<8x8xf32>
    %730 = vector.extract_strided_slice %727 {offsets = [1, 0, 0], sizes = [1, 8, 8], strides = [1, 1, 1]} : vector<6x8x8xf32> to vector<1x8x8xf32>
    %731 = vector.shape_cast %730 : vector<1x8x8xf32> to vector<8x8xf32>
    %732 = vector.extract_strided_slice %727 {offsets = [2, 0, 0], sizes = [1, 8, 8], strides = [1, 1, 1]} : vector<6x8x8xf32> to vector<1x8x8xf32>
    %733 = vector.shape_cast %732 : vector<1x8x8xf32> to vector<8x8xf32>
    %734 = vector.extract_strided_slice %727 {offsets = [3, 0, 0], sizes = [1, 8, 8], strides = [1, 1, 1]} : vector<6x8x8xf32> to vector<1x8x8xf32>
    %735 = vector.shape_cast %734 : vector<1x8x8xf32> to vector<8x8xf32>
    %736 = vector.extract_strided_slice %727 {offsets = [4, 0, 0], sizes = [1, 8, 8], strides = [1, 1, 1]} : vector<6x8x8xf32> to vector<1x8x8xf32>
    %737 = vector.shape_cast %736 : vector<1x8x8xf32> to vector<8x8xf32>
    %738 = vector.extract_strided_slice %727 {offsets = [5, 0, 0], sizes = [1, 8, 8], strides = [1, 1, 1]} : vector<6x8x8xf32> to vector<1x8x8xf32>
    %739 = vector.shape_cast %738 : vector<1x8x8xf32> to vector<8x8xf32>
    %740 = tpu.concatenate %729, %731, %733, %735, %737, %739 in 1 : vector<8x8xf32>, vector<8x8xf32>, vector<8x8xf32>, vector<8x8xf32>, vector<8x8xf32>, vector<8x8xf32> -> vector<8x48xf32>
    %741 = arith.truncf %740 : vector<8x48xf32> to vector<8x48xbf16>
    %c4_235 = arith.constant 4 : index
    %c0_236 = arith.constant 0 : index
    %c0_237 = arith.constant 0 : index
    %742 = vector.load %arg7[%c4_235, %c0_236, %c0_237] : memref<5x48x48xbf16, #tpu.memory_space<vmem>>, vector<1x48x48xbf16>
    %743 = vector.shape_cast %742 : vector<1x48x48xbf16> to vector<48x48xbf16>
    %cst_238 = arith.constant dense<0.000000e+00> : vector<8x48xf32>
    %744 = tpu.matmul %741, %743, %cst_238 {dimension_numbers = #tpu.dot_dimension_numbers<[1], [0], [0], [1], [0, 0, 1, 1], [], []>} : vector<8x48xbf16>, vector<48x48xbf16>, vector<8x48xf32> -> vector<8x48xf32>
    %745 = arith.addf %639, %744 : vector<8x48xf32>
    %c4_239 = arith.constant 4 : index
    %c0_240 = arith.constant 0 : index
    %c0_241 = arith.constant 0 : index
    %746 = vector.load %arg8[%c4_239, %c0_240, %c0_241] : memref<5x1x48xf32, #tpu.memory_space<vmem>>, vector<1x1x48xf32>
    %747 = vector.shape_cast %746 : vector<1x1x48xf32> to vector<1x48xf32>
    %748 = vector.broadcast %747 : vector<1x48xf32> to vector<8x48xf32>
    %749 = arith.addf %745, %748 : vector<8x48xf32>
    %c4_242 = arith.constant 4 : index
    %c0_243 = arith.constant 0 : index
    %c0_244 = arith.constant 0 : index
    %750 = vector.load %arg9[%c4_242, %c0_243, %c0_244] : memref<5x1x48xf32, #tpu.memory_space<vmem>>, vector<1x1x48xf32>
    %751 = vector.shape_cast %750 : vector<1x1x48xf32> to vector<1x48xf32>
    %c4_245 = arith.constant 4 : index
    %c0_246 = arith.constant 0 : index
    %c0_247 = arith.constant 0 : index
    %752 = vector.load %arg10[%c4_245, %c0_246, %c0_247] : memref<5x1x48xf32, #tpu.memory_space<vmem>>, vector<1x1x48xf32>
    %753 = vector.shape_cast %752 : vector<1x1x48xf32> to vector<1x48xf32>
    %cst_248 = arith.constant dense<0.000000e+00> : vector<8xf32>
    %754 = vector.multi_reduction <add>, %749, %cst_248 [1] : vector<8x48xf32> to vector<8xf32>
    %755 = vector.shape_cast %754 : vector<8xf32> to vector<8x1xf32>
    %cst_249 = arith.constant 4.800000e+01 : f32
    %756 = vector.broadcast %cst_249 : f32 to vector<8x1xf32>
    %757 = arith.divf %755, %756 : vector<8x1xf32>
    %758 = vector.broadcast %757 : vector<8x1xf32> to vector<8x48xf32>
    %759 = arith.subf %749, %758 : vector<8x48xf32>
    %760 = arith.mulf %759, %759 : vector<8x48xf32>
    %cst_250 = arith.constant dense<0.000000e+00> : vector<8xf32>
    %761 = vector.multi_reduction <add>, %760, %cst_250 [1] : vector<8x48xf32> to vector<8xf32>
    %762 = vector.shape_cast %761 : vector<8xf32> to vector<8x1xf32>
    %cst_251 = arith.constant 4.800000e+01 : f32
    %763 = vector.broadcast %cst_251 : f32 to vector<8x1xf32>
    %764 = arith.divf %762, %763 : vector<8x1xf32>
    %765 = vector.broadcast %757 : vector<8x1xf32> to vector<8x48xf32>
    %766 = arith.subf %749, %765 : vector<8x48xf32>
    %cst_252 = arith.constant 9.99999974E-6 : f32
    %767 = vector.broadcast %cst_252 : f32 to vector<8x1xf32>
    %768 = arith.addf %764, %767 : vector<8x1xf32>
    %769 = math.rsqrt %768 : vector<8x1xf32>
    %770 = vector.broadcast %769 : vector<8x1xf32> to vector<8x48xf32>
    %771 = arith.mulf %766, %770 : vector<8x48xf32>
    %772 = vector.broadcast %751 : vector<1x48xf32> to vector<8x48xf32>
    %773 = arith.mulf %771, %772 : vector<8x48xf32>
    %774 = vector.broadcast %753 : vector<1x48xf32> to vector<8x48xf32>
    %775 = arith.addf %773, %774 : vector<8x48xf32>
    %776 = arith.truncf %775 : vector<8x48xf32> to vector<8x48xbf16>
    %c4_253 = arith.constant 4 : index
    %c0_254 = arith.constant 0 : index
    %c0_255 = arith.constant 0 : index
    %777 = vector.load %arg11[%c4_253, %c0_254, %c0_255] : memref<5x48x192xbf16, #tpu.memory_space<vmem>>, vector<1x48x192xbf16>
    %778 = vector.shape_cast %777 : vector<1x48x192xbf16> to vector<48x192xbf16>
    %cst_256 = arith.constant dense<0.000000e+00> : vector<8x192xf32>
    %779 = tpu.matmul %776, %778, %cst_256 {dimension_numbers = #tpu.dot_dimension_numbers<[1], [0], [0], [1], [0, 0, 1, 1], [], []>} : vector<8x48xbf16>, vector<48x192xbf16>, vector<8x192xf32> -> vector<8x192xf32>
    %c4_257 = arith.constant 4 : index
    %c0_258 = arith.constant 0 : index
    %c0_259 = arith.constant 0 : index
    %780 = vector.load %arg12[%c4_257, %c0_258, %c0_259] : memref<5x1x192xf32, #tpu.memory_space<vmem>>, vector<1x1x192xf32>
    %781 = vector.shape_cast %780 : vector<1x1x192xf32> to vector<1x192xf32>
    %782 = vector.broadcast %781 : vector<1x192xf32> to vector<8x192xf32>
    %783 = arith.addf %779, %782 : vector<8x192xf32>
    %cst_260 = arith.constant 0.000000e+00 : f32
    %784 = vector.broadcast %cst_260 : f32 to vector<8x192xf32>
    %785 = arith.maximumf %783, %784 : vector<8x192xf32>
    %786 = arith.truncf %785 : vector<8x192xf32> to vector<8x192xbf16>
    %c4_261 = arith.constant 4 : index
    %c0_262 = arith.constant 0 : index
    %c0_263 = arith.constant 0 : index
    %787 = vector.load %arg13[%c4_261, %c0_262, %c0_263] : memref<5x192x48xbf16, #tpu.memory_space<vmem>>, vector<1x192x48xbf16>
    %788 = vector.shape_cast %787 : vector<1x192x48xbf16> to vector<192x48xbf16>
    %cst_264 = arith.constant dense<0.000000e+00> : vector<8x48xf32>
    %789 = tpu.matmul %786, %788, %cst_264 {dimension_numbers = #tpu.dot_dimension_numbers<[1], [0], [0], [1], [0, 0, 1, 1], [], []>} : vector<8x192xbf16>, vector<192x48xbf16>, vector<8x48xf32> -> vector<8x48xf32>
    %790 = arith.addf %749, %789 : vector<8x48xf32>
    %c4_265 = arith.constant 4 : index
    %c0_266 = arith.constant 0 : index
    %c0_267 = arith.constant 0 : index
    %791 = vector.load %arg14[%c4_265, %c0_266, %c0_267] : memref<5x1x48xf32, #tpu.memory_space<vmem>>, vector<1x1x48xf32>
    %792 = vector.shape_cast %791 : vector<1x1x48xf32> to vector<1x48xf32>
    %793 = vector.broadcast %792 : vector<1x48xf32> to vector<8x48xf32>
    %794 = arith.addf %790, %793 : vector<8x48xf32>
    %c0_268 = arith.constant 0 : index
    %c0_269 = arith.constant 0 : index
    %795 = vector.load %arg15[%c0_268, %c0_269] : memref<1x48xf32, #tpu.memory_space<vmem>>, vector<1x48xf32>
    %c0_270 = arith.constant 0 : index
    %c0_271 = arith.constant 0 : index
    %796 = vector.load %arg16[%c0_270, %c0_271] : memref<1x48xf32, #tpu.memory_space<vmem>>, vector<1x48xf32>
    %cst_272 = arith.constant dense<0.000000e+00> : vector<8xf32>
    %797 = vector.multi_reduction <add>, %794, %cst_272 [1] : vector<8x48xf32> to vector<8xf32>
    %798 = vector.shape_cast %797 : vector<8xf32> to vector<8x1xf32>
    %cst_273 = arith.constant 4.800000e+01 : f32
    %799 = vector.broadcast %cst_273 : f32 to vector<8x1xf32>
    %800 = arith.divf %798, %799 : vector<8x1xf32>
    %801 = vector.broadcast %800 : vector<8x1xf32> to vector<8x48xf32>
    %802 = arith.subf %794, %801 : vector<8x48xf32>
    %803 = arith.mulf %802, %802 : vector<8x48xf32>
    %cst_274 = arith.constant dense<0.000000e+00> : vector<8xf32>
    %804 = vector.multi_reduction <add>, %803, %cst_274 [1] : vector<8x48xf32> to vector<8xf32>
    %805 = vector.shape_cast %804 : vector<8xf32> to vector<8x1xf32>
    %cst_275 = arith.constant 4.800000e+01 : f32
    %806 = vector.broadcast %cst_275 : f32 to vector<8x1xf32>
    %807 = arith.divf %805, %806 : vector<8x1xf32>
    %808 = vector.broadcast %800 : vector<8x1xf32> to vector<8x48xf32>
    %809 = arith.subf %794, %808 : vector<8x48xf32>
    %cst_276 = arith.constant 9.99999974E-6 : f32
    %810 = vector.broadcast %cst_276 : f32 to vector<8x1xf32>
    %811 = arith.addf %807, %810 : vector<8x1xf32>
    %812 = math.rsqrt %811 : vector<8x1xf32>
    %813 = vector.broadcast %812 : vector<8x1xf32> to vector<8x48xf32>
    %814 = arith.mulf %809, %813 : vector<8x48xf32>
    %815 = vector.broadcast %795 : vector<1x48xf32> to vector<8x48xf32>
    %816 = arith.mulf %814, %815 : vector<8x48xf32>
    %817 = vector.broadcast %796 : vector<1x48xf32> to vector<8x48xf32>
    %818 = arith.addf %816, %817 : vector<8x48xf32>
    %819 = arith.truncf %818 : vector<8x48xf32> to vector<8x48xbf16>
    %c0_277 = arith.constant 0 : index
    %c0_278 = arith.constant 0 : index
    %820 = vector.load %arg17[%c0_277, %c0_278] : memref<48x128xbf16, #tpu.memory_space<vmem>>, vector<48x128xbf16>
    %cst_279 = arith.constant dense<0.000000e+00> : vector<8x128xf32>
    %821 = tpu.matmul %819, %820, %cst_279 {dimension_numbers = #tpu.dot_dimension_numbers<[1], [0], [0], [1], [0, 0, 1, 1], [], []>} : vector<8x48xbf16>, vector<48x128xbf16>, vector<8x128xf32> -> vector<8x128xf32>
    %c0_280 = arith.constant 0 : index
    %c0_281 = arith.constant 0 : index
    %822 = vector.load %arg18[%c0_280, %c0_281] : memref<1x128xf32, #tpu.memory_space<vmem>>, vector<1x128xf32>
    %823 = vector.broadcast %822 : vector<1x128xf32> to vector<8x128xf32>
    %824 = arith.addf %821, %823 : vector<8x128xf32>
    %c0_282 = arith.constant 0 : index
    %c0_283 = arith.constant 0 : index
    %825 = vector.load %arg19[%c0_282, %c0_283] : memref<8x128xf32, #tpu.memory_space<vmem>>, vector<8x128xf32>
    tpu.vector_store %arg19[%c0_282, %c0_283], %824 {strides = array<i32>} : memref<8x128xf32, #tpu.memory_space<vmem>>, vector<8x128xf32>,
    return
  }
  func.func @transform_0(%arg0: i32) -> (i32, i32) {
    %c0_i32 = arith.constant 0 : i32
    %c0_i32_0 = arith.constant 0 : i32
    return %arg0, %c0_i32 : i32, i32
  }
  func.func @transform_1(%arg0: i32) -> (i32, i32) {
    %c0_i32 = arith.constant 0 : i32
    %c0_i32_0 = arith.constant 0 : i32
    %c0_i32_1 = arith.constant 0 : i32
    return %c0_i32, %c0_i32_0 : i32, i32
  }
  func.func @transform_2(%arg0: i32) -> (i32, i32) {
    %c0_i32 = arith.constant 0 : i32
    %c0_i32_0 = arith.constant 0 : i32
    %c0_i32_1 = arith.constant 0 : i32
    return %c0_i32, %c0_i32_0 : i32, i32
  }
  func.func @transform_3(%arg0: i32) -> (i32, i32, i32) {
    %c0_i32 = arith.constant 0 : i32
    %c0_i32_0 = arith.constant 0 : i32
    %c0_i32_1 = arith.constant 0 : i32
    %c0_i32_2 = arith.constant 0 : i32
    return %c0_i32, %c0_i32_0, %c0_i32_1 : i32, i32, i32
  }
  func.func @transform_4(%arg0: i32) -> (i32, i32, i32) {
    %c0_i32 = arith.constant 0 : i32
    %c0_i32_0 = arith.constant 0 : i32
    %c0_i32_1 = arith.constant 0 : i32
    %c0_i32_2 = arith.constant 0 : i32
    return %c0_i32, %c0_i32_0, %c0_i32_1 : i32, i32, i32
  }
  func.func @transform_5(%arg0: i32) -> (i32, i32, i32) {
    %c0_i32 = arith.constant 0 : i32
    %c0_i32_0 = arith.constant 0 : i32
    %c0_i32_1 = arith.constant 0 : i32
    %c0_i32_2 = arith.constant 0 : i32
    return %c0_i32, %c0_i32_0, %c0_i32_1 : i32, i32, i32
  }
  func.func @transform_6(%arg0: i32) -> (i32, i32, i32) {
    %c0_i32 = arith.constant 0 : i32
    %c0_i32_0 = arith.constant 0 : i32
    %c0_i32_1 = arith.constant 0 : i32
    %c0_i32_2 = arith.constant 0 : i32
    return %c0_i32, %c0_i32_0, %c0_i32_1 : i32, i32, i32
  }
  func.func @transform_7(%arg0: i32) -> (i32, i32, i32) {
    %c0_i32 = arith.constant 0 : i32
    %c0_i32_0 = arith.constant 0 : i32
    %c0_i32_1 = arith.constant 0 : i32
    %c0_i32_2 = arith.constant 0 : i32
    return %c0_i32, %c0_i32_0, %c0_i32_1 : i32, i32, i32
  }
  func.func @transform_8(%arg0: i32) -> (i32, i32, i32) {
    %c0_i32 = arith.constant 0 : i32
    %c0_i32_0 = arith.constant 0 : i32
    %c0_i32_1 = arith.constant 0 : i32
    %c0_i32_2 = arith.constant 0 : i32
    return %c0_i32, %c0_i32_0, %c0_i32_1 : i32, i32, i32
  }
  func.func @transform_9(%arg0: i32) -> (i32, i32, i32) {
    %c0_i32 = arith.constant 0 : i32
    %c0_i32_0 = arith.constant 0 : i32
    %c0_i32_1 = arith.constant 0 : i32
    %c0_i32_2 = arith.constant 0 : i32
    return %c0_i32, %c0_i32_0, %c0_i32_1 : i32, i32, i32
  }
  func.func @transform_10(%arg0: i32) -> (i32, i32, i32) {
    %c0_i32 = arith.constant 0 : i32
    %c0_i32_0 = arith.constant 0 : i32
    %c0_i32_1 = arith.constant 0 : i32
    %c0_i32_2 = arith.constant 0 : i32
    return %c0_i32, %c0_i32_0, %c0_i32_1 : i32, i32, i32
  }
  func.func @transform_11(%arg0: i32) -> (i32, i32, i32) {
    %c0_i32 = arith.constant 0 : i32
    %c0_i32_0 = arith.constant 0 : i32
    %c0_i32_1 = arith.constant 0 : i32
    %c0_i32_2 = arith.constant 0 : i32
    return %c0_i32, %c0_i32_0, %c0_i32_1 : i32, i32, i32
  }
  func.func @transform_12(%arg0: i32) -> (i32, i32, i32) {
    %c0_i32 = arith.constant 0 : i32
    %c0_i32_0 = arith.constant 0 : i32
    %c0_i32_1 = arith.constant 0 : i32
    %c0_i32_2 = arith.constant 0 : i32
    return %c0_i32, %c0_i32_0, %c0_i32_1 : i32, i32, i32
  }
  func.func @transform_13(%arg0: i32) -> (i32, i32, i32) {
    %c0_i32 = arith.constant 0 : i32
    %c0_i32_0 = arith.constant 0 : i32
    %c0_i32_1 = arith.constant 0 : i32
    %c0_i32_2 = arith.constant 0 : i32
    return %c0_i32, %c0_i32_0, %c0_i32_1 : i32, i32, i32
  }
  func.func @transform_14(%arg0: i32) -> (i32, i32) {
    %c0_i32 = arith.constant 0 : i32
    %c0_i32_0 = arith.constant 0 : i32
    %c0_i32_1 = arith.constant 0 : i32
    return %c0_i32, %c0_i32_0 : i32, i32
  }
  func.func @transform_15(%arg0: i32) -> (i32, i32) {
    %c0_i32 = arith.constant 0 : i32
    %c0_i32_0 = arith.constant 0 : i32
    %c0_i32_1 = arith.constant 0 : i32
    return %c0_i32, %c0_i32_0 : i32, i32
  }
  func.func @transform_16(%arg0: i32) -> (i32, i32) {
    %c0_i32 = arith.constant 0 : i32
    %c0_i32_0 = arith.constant 0 : i32
    %c0_i32_1 = arith.constant 0 : i32
    return %c0_i32, %c0_i32_0 : i32, i32
  }
  func.func @transform_17(%arg0: i32) -> (i32, i32) {
    %c0_i32 = arith.constant 0 : i32
    %c0_i32_0 = arith.constant 0 : i32
    %c0_i32_1 = arith.constant 0 : i32
    return %c0_i32, %c0_i32_0 : i32, i32
  }
  func.func @transform_18(%arg0: i32) -> (i32, i32) {
    %c0_i32 = arith.constant 0 : i32
    %c0_i32_0 = arith.constant 0 : i32
    return %arg0, %c0_i32 : i32, i32
  }
}

</mosaic_0001>

<llo_original>
// kernel: forward.1
$region0: #{forward.1}
  #allocation0 [shape = 'u32[]', space=smem, size = 0x4, offset = 0x4, fixed_abs, tag = 'smem constant byte address 0x4 - core index']
  #allocation1 [shape = 'u32[144,128]{1,0:T(1,128)}', space=vmem, size = 0x12000, scoped, tag = 'internal scratch']
  %s0 = inlined_call_operand.vmem [shape: s32[16,1], index: 0, kind: input, shape index: {}]
  %s1 = inlined_call_operand.vmem [shape: f32[16,48], index: 1, kind: input, shape index: {}]
  %s2 = inlined_call_operand.vmem [shape: bf16[65,48], index: 2, kind: input, shape index: {}]
  %s3 = inlined_call_operand.vmem [shape: f32[5,1,48], index: 3, kind: input, shape index: {}]
  %s4 = inlined_call_operand.vmem [shape: f32[5,1,48], index: 4, kind: input, shape index: {}]
  %s5 = inlined_call_operand.vmem [shape: bf16[5,48,144], index: 5, kind: input, shape index: {}]
  %s6 = inlined_call_operand.vmem [shape: bf16[5,48,48], index: 6, kind: input, shape index: {}]
  %s7 = inlined_call_operand.vmem [shape: f32[5,1,48], index: 7, kind: input, shape index: {}]
  %s8 = inlined_call_operand.vmem [shape: f32[5,1,48], index: 8, kind: input, shape index: {}]
  %s9 = inlined_call_operand.vmem [shape: f32[5,1,48], index: 9, kind: input, shape index: {}]
  %s10 = inlined_call_operand.vmem [shape: bf16[5,48,192], index: 10, kind: input, shape index: {}]
  %s11 = inlined_call_operand.vmem [shape: f32[5,1,192], index: 11, kind: input, shape index: {}]
  %s12 = inlined_call_operand.vmem [shape: bf16[5,192,48], index: 12, kind: input, shape index: {}]
  %s13 = inlined_call_operand.vmem [shape: f32[5,1,48], index: 13, kind: input, shape index: {}]
  %s14 = inlined_call_operand.vmem [shape: f32[1,48], index: 14, kind: input, shape index: {}]
  %s15 = inlined_call_operand.vmem [shape: f32[1,48], index: 15, kind: input, shape index: {}]
  %s16 = inlined_call_operand.vmem [shape: bf16[48,128], index: 16, kind: input, shape index: {}]
  %s17 = inlined_call_operand.vmem [shape: f32[1,128], index: 17, kind: input, shape index: {}]
  %s18 = inlined_call_operand.vmem [shape: f32[16,128], index: 18, kind: output, shape index: {}]
  %s19 = sld [smem:[#allocation0]]
  $region105: #{forward.1} parent=0
    _
  %s21 = ssub.s32 1, %s19
  %s22 = scalar_select 0, %s21, %s19
  loop: start=0, step=1, limit=4
  $region2: #{forward.1} parent=0 // loop_pre_header
    _
  $region3: #{forward.1} parent=0 // loop_header
    %s24 = sphi 0, %s28
    %p25 = scmp.ge.s32.totalorder %s24, 4
    %s34 = sphi 0, %s36
    %s37 = sphi 0, %s34
    %s38 = sphi 0, %s37
    %s54 = sphi 0, %s38
    %s58 = sphi 0, %s58
    %s60 = sphi 0, %s58
    %s61 = sphi 0, %s60
    %s75 = sphi 0, %s61
    %s79 = sphi 0, %s79
    %s81 = sphi 0, %s79
    %s82 = sphi 0, %s81
    %s96 = sphi 0, %s82
    %s100 = sphi 0, %s100
    %s102 = sphi 0, %s100
    %s103 = sphi 0, %s102
    %s117 = sphi 0, %s103
    %s121 = sphi 0, %s121
    %s123 = sphi 0, %s121
    %s124 = sphi 0, %s123
    %s138 = sphi 0, %s124
    %s142 = sphi 0, %s142
    %s144 = sphi 0, %s142
    %s145 = sphi 0, %s144
    %s159 = sphi 0, %s145
    %s163 = sphi 0, %s163
    %s165 = sphi 0, %s163
    %s166 = sphi 0, %s165
    %s180 = sphi 0, %s166
    %s184 = sphi 0, %s184
    %s186 = sphi 0, %s184
    %s187 = sphi 0, %s186
    %s201 = sphi 0, %s187
    %s205 = sphi 0, %s205
    %s207 = sphi 0, %s205
    %s208 = sphi 0, %s207
    %s222 = sphi 0, %s208
    %s226 = sphi 0, %s226
    %s228 = sphi 0, %s226
    %s229 = sphi 0, %s228
    %s243 = sphi 0, %s229
    %s247 = sphi 0, %s247
    %s249 = sphi 0, %s247
    %s250 = sphi 0, %s249
    %s264 = sphi 0, %s250
    %s268 = sphi 0, %s268
    %s270 = sphi 0, %s268
    %s271 = sphi 0, %s270
    %s285 = sphi 0, %s271
    %s289 = sphi 0, %s289
    %s291 = sphi 0, %s289
    %s292 = sphi 0, %s291
    %s306 = sphi 0, %s292
    %s310 = sphi 0, %s310
    %s312 = sphi 0, %s310
    %s313 = sphi 0, %s312
    %s327 = sphi 0, %s313
    %s331 = sphi 0, %s331
    %s333 = sphi 0, %s331
    %s334 = sphi 0, %s333
    %s348 = sphi 0, %s334
    %s352 = sphi 0, %s352
    %s354 = sphi 0, %s352
    %s355 = sphi 0, %s354
    %s369 = sphi 0, %s355
    %s373 = sphi 0, %s373
    %s375 = sphi 0, %s373
    %s376 = sphi 0, %s375
    %s390 = sphi 0, %s376
    %s394 = sphi 0, %s394
    %s396 = sphi 0, %s394
    %s397 = sphi 0, %s396
    %s411 = sphi 0, %s397
    %s417 = sphi 0, %s419
    %s420 = sphi 0, %s417
    %s421 = sphi 0, %s420
    %s437 = sphi 0, %s421
  $region4: #{forward.1} parent=0 // loop_header_branch
    %27 = sbr.rel (%p25) target = $region8
  $region5: #{forward.1} parent=0 // loop_body
    %s29 = ssub.s32 %s24, 1
    %s30 = ssub.s32 %s24, 2
    %s31 = sadd.s32 %s24, 1
    %s32 = ssub.s32 %s24, %s31
    %p33 = scmp.eq.s32.totalorder %s32, 0
    %s35 = sadd.s32 %s34, 1
    %s36 = scalar_select %p33, %s34, %s35
    %p39 = pneg %p33
    %p40 = scmp.eq.s32.totalorder %s24, 1
    %p41 = por %p39, %p40
    %p42 = scmp.ne.s32.totalorder %s34, %s37
    %p43 = scmp.eq.s32.totalorder %s24, 0
    %p44 = por %p42, %p43
    %p45 = scmp.ne.s32.totalorder %s34, %s37
    %p46 = scmp.eq.s32.totalorder %s29, 1
    %p47 = por %p45, %p46
    %p48 = scmp.ne.s32.totalorder %s37, %s38
    %p49 = scmp.eq.s32.totalorder %s29, 0
    %p50 = por %p48, %p49
    %p51 = scmp.ne.s32.totalorder %s37, %s38
    %p52 = scmp.eq.s32.totalorder %s30, 1
    %p53 = por %p51, %p52
    %p55 = scmp.ne.s32.totalorder %s38, %s54
    %p56 = scmp.eq.s32.totalorder %s30, 0
    %p57 = por %p55, %p56
    %s59 = sadd.s32 %s58, 1
    %p62 = scmp.eq.s32.totalorder %s24, 1
    %p63 = scmp.ne.s32.totalorder %s58, %s60
    %p64 = scmp.eq.s32.totalorder %s24, 0
    %p65 = por %p63, %p64
    %p66 = scmp.ne.s32.totalorder %s58, %s60
    %p67 = scmp.eq.s32.totalorder %s29, 1
    %p68 = por %p66, %p67
    %p69 = scmp.ne.s32.totalorder %s60, %s61
    %p70 = scmp.eq.s32.totalorder %s29, 0
    %p71 = por %p69, %p70
    %p72 = scmp.ne.s32.totalorder %s60, %s61
    %p73 = scmp.eq.s32.totalorder %s30, 1
    %p74 = por %p72, %p73
    %p76 = scmp.ne.s32.totalorder %s61, %s75
    %p77 = scmp.eq.s32.totalorder %s30, 0
    %p78 = por %p76, %p77
    %s80 = sadd.s32 %s79, 1
    %p83 = scmp.eq.s32.totalorder %s24, 1
    %p84 = scmp.ne.s32.totalorder %s79, %s81
    %p85 = scmp.eq.s32.totalorder %s24, 0
    %p86 = por %p84, %p85
    %p87 = scmp.ne.s32.totalorder %s79, %s81
    %p88 = scmp.eq.s32.totalorder %s29, 1
    %p89 = por %p87, %p88
    %p90 = scmp.ne.s32.totalorder %s81, %s82
    %p91 = scmp.eq.s32.totalorder %s29, 0
    %p92 = por %p90, %p91
    %p93 = scmp.ne.s32.totalorder %s81, %s82
    %p94 = scmp.eq.s32.totalorder %s30, 1
    %p95 = por %p93, %p94
    %p97 = scmp.ne.s32.totalorder %s82, %s96
    %p98 = scmp.eq.s32.totalorder %s30, 0
    %p99 = por %p97, %p98
    %s101 = sadd.s32 %s100, 1
    %p104 = scmp.eq.s32.totalorder %s24, 1
    %p105 = scmp.ne.s32.totalorder %s100, %s102
    %p106 = scmp.eq.s32.totalorder %s24, 0
    %p107 = por %p105, %p106
    %p108 = scmp.ne.s32.totalorder %s100, %s102
    %p109 = scmp.eq.s32.totalorder %s29, 1
    %p110 = por %p108, %p109
    %p111 = scmp.ne.s32.totalorder %s102, %s103
    %p112 = scmp.eq.s32.totalorder %s29, 0
    %p113 = por %p111, %p112
    %p114 = scmp.ne.s32.totalorder %s102, %s103
    %p115 = scmp.eq.s32.totalorder %s30, 1
    %p116 = por %p114, %p115
    %p118 = scmp.ne.s32.totalorder %s103, %s117
    %p119 = scmp.eq.s32.totalorder %s30, 0
    %p120 = por %p118, %p119
    %s122 = sadd.s32 %s121, 1
    %p125 = scmp.eq.s32.totalorder %s24, 1
    %p126 = scmp.ne.s32.totalorder %s121, %s123
    %p127 = scmp.eq.s32.totalorder %s24, 0
    %p128 = por %p126, %p127
    %p129 = scmp.ne.s32.totalorder %s121, %s123
    %p130 = scmp.eq.s32.totalorder %s29, 1
    %p131 = por %p129, %p130
    %p132 = scmp.ne.s32.totalorder %s123, %s124
    %p133 = scmp.eq.s32.totalorder %s29, 0
    %p134 = por %p132, %p133
    %p135 = scmp.ne.s32.totalorder %s123, %s124
    %p136 = scmp.eq.s32.totalorder %s30, 1
    %p137 = por %p135, %p136
    %p139 = scmp.ne.s32.totalorder %s124, %s138
    %p140 = scmp.eq.s32.totalorder %s30, 0
    %p141 = por %p139, %p140
    %s143 = sadd.s32 %s142, 1
    %p146 = scmp.eq.s32.totalorder %s24, 1
    %p147 = scmp.ne.s32.totalorder %s142, %s144
    %p148 = scmp.eq.s32.totalorder %s24, 0
    %p149 = por %p147, %p148
    %p150 = scmp.ne.s32.totalorder %s142, %s144
    %p151 = scmp.eq.s32.totalorder %s29, 1
    %p152 = por %p150, %p151
    %p153 = scmp.ne.s32.totalorder %s144, %s145
    %p154 = scmp.eq.s32.totalorder %s29, 0
    %p155 = por %p153, %p154
    %p156 = scmp.ne.s32.totalorder %s144, %s145
    %p157 = scmp.eq.s32.totalorder %s30, 1
    %p158 = por %p156, %p157
    %p160 = scmp.ne.s32.totalorder %s145, %s159
    %p161 = scmp.eq.s32.totalorder %s30, 0
    %p162 = por %p160, %p161
    %s164 = sadd.s32 %s163, 1
    %p167 = scmp.eq.s32.totalorder %s24, 1
    %p168 = scmp.ne.s32.totalorder %s163, %s165
    %p169 = scmp.eq.s32.totalorder %s24, 0
    %p170 = por %p168, %p169
    %p171 = scmp.ne.s32.totalorder %s163, %s165
    %p172 = scmp.eq.s32.totalorder %s29, 1
    %p173 = por %p171, %p172
    %p174 = scmp.ne.s32.totalorder %s165, %s166
    %p175 = scmp.eq.s32.totalorder %s29, 0
    %p176 = por %p174, %p175
    %p177 = scmp.ne.s32.totalorder %s165, %s166
    %p178 = scmp.eq.s32.totalorder %s30, 1
    %p179 = por %p177, %p178
    %p181 = scmp.ne.s32.totalorder %s166, %s180
    %p182 = scmp.eq.s32.totalorder %s30, 0
    %p183 = por %p181, %p182
    %s185 = sadd.s32 %s184, 1
    %p188 = scmp.eq.s32.totalorder %s24, 1
    %p189 = scmp.ne.s32.totalorder %s184, %s186
    %p190 = scmp.eq.s32.totalorder %s24, 0
    %p191 = por %p189, %p190
    %p192 = scmp.ne.s32.totalorder %s184, %s186
    %p193 = scmp.eq.s32.totalorder %s29, 1
    %p194 = por %p192, %p193
    %p195 = scmp.ne.s32.totalorder %s186, %s187
    %p196 = scmp.eq.s32.totalorder %s29, 0
    %p197 = por %p195, %p196
    %p198 = scmp.ne.s32.totalorder %s186, %s187
    %p199 = scmp.eq.s32.totalorder %s30, 1
    %p200 = por %p198, %p199
    %p202 = scmp.ne.s32.totalorder %s187, %s201
    %p203 = scmp.eq.s32.totalorder %s30, 0
    %p204 = por %p202, %p203
    %s206 = sadd.s32 %s205, 1
    %p209 = scmp.eq.s32.totalorder %s24, 1
    %p210 = scmp.ne.s32.totalorder %s205, %s207
    %p211 = scmp.eq.s32.totalorder %s24, 0
    %p212 = por %p210, %p211
    %p213 = scmp.ne.s32.totalorder %s205, %s207
    %p214 = scmp.eq.s32.totalorder %s29, 1
    %p215 = por %p213, %p214
    %p216 = scmp.ne.s32.totalorder %s207, %s208
    %p217 = scmp.eq.s32.totalorder %s29, 0
    %p218 = por %p216, %p217
    %p219 = scmp.ne.s32.totalorder %s207, %s208
    %p220 = scmp.eq.s32.totalorder %s30, 1
    %p221 = por %p219, %p220
    %p223 = scmp.ne.s32.totalorder %s208, %s222
    %p224 = scmp.eq.s32.totalorder %s30, 0
    %p225 = por %p223, %p224
    %s227 = sadd.s32 %s226, 1
    %p230 = scmp.eq.s32.totalorder %s24, 1
    %p231 = scmp.ne.s32.totalorder %s226, %s228
    %p232 = scmp.eq.s32.totalorder %s24, 0
    %p233 = por %p231, %p232
    %p234 = scmp.ne.s32.totalorder %s226, %s228
    %p235 = scmp.eq.s32.totalorder %s29, 1
    %p236 = por %p234, %p235
    %p237 = scmp.ne.s32.totalorder %s228, %s229
    %p238 = scmp.eq.s32.totalorder %s29, 0
    %p239 = por %p237, %p238
    %p240 = scmp.ne.s32.totalorder %s228, %s229
    %p241 = scmp.eq.s32.totalorder %s30, 1
    %p242 = por %p240, %p241
    %p244 = scmp.ne.s32.totalorder %s229, %s243
    %p245 = scmp.eq.s32.totalorder %s30, 0
    %p246 = por %p244, %p245
    %s248 = sadd.s32 %s247, 1
    %p251 = scmp.eq.s32.totalorder %s24, 1
    %p252 = scmp.ne.s32.totalorder %s247, %s249
    %p253 = scmp.eq.s32.totalorder %s24, 0
    %p254 = por %p252, %p253
    %p255 = scmp.ne.s32.totalorder %s247, %s249
    %p256 = scmp.eq.s32.totalorder %s29, 1
    %p257 = por %p255, %p256
    %p258 = scmp.ne.s32.totalorder %s249, %s250
    %p259 = scmp.eq.s32.totalorder %s29, 0
    %p260 = por %p258, %p259
    %p261 = scmp.ne.s32.totalorder %s249, %s250
    %p262 = scmp.eq.s32.totalorder %s30, 1
    %p263 = por %p261, %p262
    %p265 = scmp.ne.s32.totalorder %s250, %s264
    %p266 = scmp.eq.s32.totalorder %s30, 0
    %p267 = por %p265, %p266
    %s269 = sadd.s32 %s268, 1
    %p272 = scmp.eq.s32.totalorder %s24, 1
    %p273 = scmp.ne.s32.totalorder %s268, %s270
    %p274 = scmp.eq.s32.totalorder %s24, 0
    %p275 = por %p273, %p274
    %p276 = scmp.ne.s32.totalorder %s268, %s270
    %p277 = scmp.eq.s32.totalorder %s29, 1
    %p278 = por %p276, %p277
    %p279 = scmp.ne.s32.totalorder %s270, %s271
    %p280 = scmp.eq.s32.totalorder %s29, 0
    %p281 = por %p279, %p280
    %p282 = scmp.ne.s32.totalorder %s270, %s271
    %p283 = scmp.eq.s32.totalorder %s30, 1
    %p284 = por %p282, %p283
    %p286 = scmp.ne.s32.totalorder %s271, %s285
    %p287 = scmp.eq.s32.totalorder %s30, 0
    %p288 = por %p286, %p287
    %s290 = sadd.s32 %s289, 1
    %p293 = scmp.eq.s32.totalorder %s24, 1
    %p294 = scmp.ne.s32.totalorder %s289, %s291
    %p295 = scmp.eq.s32.totalorder %s24, 0
    %p296 = por %p294, %p295
    %p297 = scmp.ne.s32.totalorder %s289, %s291
    %p298 = scmp.eq.s32.totalorder %s29, 1
    %p299 = por %p297, %p298
    %p300 = scmp.ne.s32.totalorder %s291, %s292
    %p301 = scmp.eq.s32.totalorder %s29, 0
    %p302 = por %p300, %p301
    %p303 = scmp.ne.s32.totalorder %s291, %s292
    %p304 = scmp.eq.s32.totalorder %s30, 1
    %p305 = por %p303, %p304
    %p307 = scmp.ne.s32.totalorder %s292, %s306
    %p308 = scmp.eq.s32.totalorder %s30, 0
    %p309 = por %p307, %p308
    %s311 = sadd.s32 %s310, 1
    %p314 = scmp.eq.s32.totalorder %s24, 1
    %p315 = scmp.ne.s32.totalorder %s310, %s312
    %p316 = scmp.eq.s32.totalorder %s24, 0
    %p317 = por %p315, %p316
    %p318 = scmp.ne.s32.totalorder %s310, %s312
    %p319 = scmp.eq.s32.totalorder %s29, 1
    %p320 = por %p318, %p319
    %p321 = scmp.ne.s32.totalorder %s312, %s313
    %p322 = scmp.eq.s32.totalorder %s29, 0
    %p323 = por %p321, %p322
    %p324 = scmp.ne.s32.totalorder %s312, %s313
    %p325 = scmp.eq.s32.totalorder %s30, 1
    %p326 = por %p324, %p325
    %p328 = scmp.ne.s32.totalorder %s313, %s327
    %p329 = scmp.eq.s32.totalorder %s30, 0
    %p330 = por %p328, %p329
    %s332 = sadd.s32 %s331, 1
    %p335 = scmp.eq.s32.totalorder %s24, 1
    %p336 = scmp.ne.s32.totalorder %s331, %s333
    %p337 = scmp.eq.s32.totalorder %s24, 0
    %p338 = por %p336, %p337
    %p339 = scmp.ne.s32.totalorder %s331, %s333
    %p340 = scmp.eq.s32.totalorder %s29, 1
    %p341 = por %p339, %p340
    %p342 = scmp.ne.s32.totalorder %s333, %s334
    %p343 = scmp.eq.s32.totalorder %s29, 0
    %p344 = por %p342, %p343
    %p345 = scmp.ne.s32.totalorder %s333, %s334
    %p346 = scmp.eq.s32.totalorder %s30, 1
    %p347 = por %p345, %p346
    %p349 = scmp.ne.s32.totalorder %s334, %s348
    %p350 = scmp.eq.s32.totalorder %s30, 0
    %p351 = por %p349, %p350
    %s353 = sadd.s32 %s352, 1
    %p356 = scmp.eq.s32.totalorder %s24, 1
    %p357 = scmp.ne.s32.totalorder %s352, %s354
    %p358 = scmp.eq.s32.totalorder %s24, 0
    %p359 = por %p357, %p358
    %p360 = scmp.ne.s32.totalorder %s352, %s354
    %p361 = scmp.eq.s32.totalorder %s29, 1
    %p362 = por %p360, %p361
    %p363 = scmp.ne.s32.totalorder %s354, %s355
    %p364 = scmp.eq.s32.totalorder %s29, 0
    %p365 = por %p363, %p364
    %p366 = scmp.ne.s32.totalorder %s354, %s355
    %p367 = scmp.eq.s32.totalorder %s30, 1
    %p368 = por %p366, %p367
    %p370 = scmp.ne.s32.totalorder %s355, %s369
    %p371 = scmp.eq.s32.totalorder %s30, 0
    %p372 = por %p370, %p371
    %s374 = sadd.s32 %s373, 1
    %p377 = scmp.eq.s32.totalorder %s24, 1
    %p378 = scmp.ne.s32.totalorder %s373, %s375
    %p379 = scmp.eq.s32.totalorder %s24, 0
    %p380 = por %p378, %p379
    %p381 = scmp.ne.s32.totalorder %s373, %s375
    %p382 = scmp.eq.s32.totalorder %s29, 1
    %p383 = por %p381, %p382
    %p384 = scmp.ne.s32.totalorder %s375, %s376
    %p385 = scmp.eq.s32.totalorder %s29, 0
    %p386 = por %p384, %p385
    %p387 = scmp.ne.s32.totalorder %s375, %s376
    %p388 = scmp.eq.s32.totalorder %s30, 1
    %p389 = por %p387, %p388
    %p391 = scmp.ne.s32.totalorder %s376, %s390
    %p392 = scmp.eq.s32.totalorder %s30, 0
    %p393 = por %p391, %p392
    %s395 = sadd.s32 %s394, 1
    %p398 = scmp.eq.s32.totalorder %s24, 1
    %p399 = scmp.ne.s32.totalorder %s394, %s396
    %p400 = scmp.eq.s32.totalorder %s24, 0
    %p401 = por %p399, %p400
    %p402 = scmp.ne.s32.totalorder %s394, %s396
    %p403 = scmp.eq.s32.totalorder %s29, 1
    %p404 = por %p402, %p403
    %p405 = scmp.ne.s32.totalorder %s396, %s397
    %p406 = scmp.eq.s32.totalorder %s29, 0
    %p407 = por %p405, %p406
    %p408 = scmp.ne.s32.totalorder %s396, %s397
    %p409 = scmp.eq.s32.totalorder %s30, 1
    %p410 = por %p408, %p409
    %p412 = scmp.ne.s32.totalorder %s397, %s411
    %p413 = scmp.eq.s32.totalorder %s30, 0
    %p414 = por %p412, %p413
    %s415 = ssub.s32 %s24, %s31
    %p416 = scmp.eq.s32.totalorder %s415, 0
    %s418 = sadd.s32 %s417, 1
    %s419 = scalar_select %p416, %s417, %s418
    %p422 = pneg %p416
    %p423 = scmp.eq.s32.totalorder %s24, 1
    %p424 = por %p422, %p423
    %p425 = scmp.ne.s32.totalorder %s417, %s420
    %p426 = scmp.eq.s32.totalorder %s24, 0
    %p427 = por %p425, %p426
    %p428 = scmp.ne.s32.totalorder %s417, %s420
    %p429 = scmp.eq.s32.totalorder %s29, 1
    %p430 = por %p428, %p429
    %p431 = scmp.ne.s32.totalorder %s420, %s421
    %p432 = scmp.eq.s32.totalorder %s29, 0
    %p433 = por %p431, %p432
    %p434 = scmp.ne.s32.totalorder %s420, %s421
    %p435 = scmp.eq.s32.totalorder %s30, 1
    %p436 = por %p434, %p435
    %p438 = scmp.ne.s32.totalorder %s421, %s437
    %p439 = scmp.eq.s32.totalorder %s30, 0
    %p440 = por %p438, %p439
    %p441 = scmp.le.s32.totalorder 1, %s24
    %p442 = scmp.lt.s32.totalorder %s24, 3
    %p443 = pnand %p441, %p442
    %p444 = pneg %p443
    // Predicated region
    $region9: #{forward.1} parent=5 // pred_check
      _
    $region10: #{forward.1} parent=5 // pred_check_branch
      %446 = sbr.rel (%p443) target = $region12
    $region11: #{forward.1} parent=5 // pred_region
      %s447 = ssub.s32 %s24, 1
      // Predicated region
      $region13: #{forward.1} parent=11 // pred_check
        %p448 = pneg %p71
      $region14: #{forward.1} parent=11 // pred_check_branch
        %450 = sbr.rel (%p448) target = $region16
      $region15: #{forward.1} parent=11 // pred_region
        _
      $region16: #{forward.1} parent=11 // pred_fallthru
        _
      // Predicated region
      $region17: #{forward.1} parent=11 // pred_check
        %p451 = pneg %p92
      $region18: #{forward.1} parent=11 // pred_check_branch
        %453 = sbr.rel (%p451) target = $region20
      $region19: #{forward.1} parent=11 // pred_region
        _
      $region20: #{forward.1} parent=11 // pred_fallthru
        _
      // Predicated region
      $region21: #{forward.1} parent=11 // pred_check
        %p454 = pneg %p113
      $region22: #{forward.1} parent=11 // pred_check_branch
        %456 = sbr.rel (%p454) target = $region24
      $region23: #{forward.1} parent=11 // pred_region
        _
      $region24: #{forward.1} parent=11 // pred_fallthru
        _
      // Predicated region
      $region25: #{forward.1} parent=11 // pred_check
        %p457 = pneg %p134
      $region26: #{forward.1} parent=11 // pred_check_branch
        %459 = sbr.rel (%p457) target = $region28
      $region27: #{forward.1} parent=11 // pred_region
        _
      $region28: #{forward.1} parent=11 // pred_fallthru
        _
      // Predicated region
      $region29: #{forward.1} parent=11 // pred_check
        %p460 = pneg %p155
      $region30: #{forward.1} parent=11 // pred_check_branch
        %462 = sbr.rel (%p460) target = $region32
      $region31: #{forward.1} parent=11 // pred_region
        _
      $region32: #{forward.1} parent=11 // pred_fallthru
        _
      // Predicated region
      $region33: #{forward.1} parent=11 // pred_check
        %p463 = pneg %p176
      $region34: #{forward.1} parent=11 // pred_check_branch
        %465 = sbr.rel (%p463) target = $region36
      $region35: #{forward.1} parent=11 // pred_region
        _
      $region36: #{forward.1} parent=11 // pred_fallthru
        _
      // Predicated region
      $region37: #{forward.1} parent=11 // pred_check
        %p466 = pneg %p197
      $region38: #{forward.1} parent=11 // pred_check_branch
        %468 = sbr.rel (%p466) target = $region40
      $region39: #{forward.1} parent=11 // pred_region
        _
      $region40: #{forward.1} parent=11 // pred_fallthru
        _
      // Predicated region
      $region41: #{forward.1} parent=11 // pred_check
        %p469 = pneg %p218
      $region42: #{forward.1} parent=11 // pred_check_branch
        %471 = sbr.rel (%p469) target = $region44
      $region43: #{forward.1} parent=11 // pred_region
        _
      $region44: #{forward.1} parent=11 // pred_fallthru
        _
      // Predicated region
      $region45: #{forward.1} parent=11 // pred_check
        %p472 = pneg %p239
      $region46: #{forward.1} parent=11 // pred_check_branch
        %474 = sbr.rel (%p472) target = $region48
      $region47: #{forward.1} parent=11 // pred_region
        _
      $region48: #{forward.1} parent=11 // pred_fallthru
        _
      // Predicated region
      $region49: #{forward.1} parent=11 // pred_check
        %p475 = pneg %p260
      $region50: #{forward.1} parent=11 // pred_check_branch
        %477 = sbr.rel (%p475) target = $region52
      $region51: #{forward.1} parent=11 // pred_region
        _
      $region52: #{forward.1} parent=11 // pred_fallthru
        _
      // Predicated region
      $region53: #{forward.1} parent=11 // pred_check
        %p478 = pneg %p281
      $region54: #{forward.1} parent=11 // pred_check_branch
        %480 = sbr.rel (%p478) target = $region56
      $region55: #{forward.1} parent=11 // pred_region
        _
      $region56: #{forward.1} parent=11 // pred_fallthru
        _
      // Predicated region
      $region57: #{forward.1} parent=11 // pred_check
        %p481 = pneg %p302
      $region58: #{forward.1} parent=11 // pred_check_branch
        %483 = sbr.rel (%p481) target = $region60
      $region59: #{forward.1} parent=11 // pred_region
        _
      $region60: #{forward.1} parent=11 // pred_fallthru
        _
      // Predicated region
      $region61: #{forward.1} parent=11 // pred_check
        %p484 = pneg %p323
      $region62: #{forward.1} parent=11 // pred_check_branch
        %486 = sbr.rel (%p484) target = $region64
      $region63: #{forward.1} parent=11 // pred_region
        _
      $region64: #{forward.1} parent=11 // pred_fallthru
        _
      // Predicated region
      $region65: #{forward.1} parent=11 // pred_check
        %p487 = pneg %p344
      $region66: #{forward.1} parent=11 // pred_check_branch
        %489 = sbr.rel (%p487) target = $region68
      $region67: #{forward.1} parent=11 // pred_region
        _
      $region68: #{forward.1} parent=11 // pred_fallthru
        _
      // Predicated region
      $region69: #{forward.1} parent=11 // pred_check
        %p490 = pneg %p365
      $region70: #{forward.1} parent=11 // pred_check_branch
        %492 = sbr.rel (%p490) target = $region72
      $region71: #{forward.1} parent=11 // pred_region
        _
      $region72: #{forward.1} parent=11 // pred_fallthru
        _
      // Predicated region
      $region73: #{forward.1} parent=11 // pred_check
        %p493 = pneg %p386
      $region74: #{forward.1} parent=11 // pred_check_branch
        %495 = sbr.rel (%p493) target = $region76
      $region75: #{forward.1} parent=11 // pred_region
        _
      $region76: #{forward.1} parent=11 // pred_fallthru
        _
      // Predicated region
      $region77: #{forward.1} parent=11 // pred_check
        %p496 = pneg %p407
      $region78: #{forward.1} parent=11 // pred_check_branch
        %498 = sbr.rel (%p496) target = $region80
      $region79: #{forward.1} parent=11 // pred_region
        _
      $region80: #{forward.1} parent=11 // pred_fallthru
        _
    $region12: #{forward.1} parent=5 // pred_fallthru
      _
    %p499 = scmp.lt.s32.totalorder %s24, 2
    // Predicated region
    $region81: #{forward.1} parent=5 // pred_check
      %p500 = pneg %p499
    $region82: #{forward.1} parent=5 // pred_check_branch
      %502 = sbr.rel (%p500) target = $region84
    $region83: #{forward.1} parent=5 // pred_region
      // Predicated region
      $region85: #{forward.1} parent=83 // pred_check
        %p503 = pneg %p44
      $region86: #{forward.1} parent=83 // pred_check_branch
        %505 = sbr.rel (%p503) target = $region88
      $region87: #{forward.1} parent=83 // pred_region
        %p506 = scmp.lt.s32.totalorder %s24, 1
        %s507 = scalar_select %p506, %s24, 1
        %s508 = smul.addr %s507, 8
        %s509 = scalar_lea.vmem %s0, %s508
      $region88: #{forward.1} parent=83 // pred_fallthru
        _
    $region84: #{forward.1} parent=5 // pred_fallthru
      _
    %p510 = scmp.le.s32.totalorder 1, %s24
    %p511 = scmp.lt.s32.totalorder %s24, 3
    %p512 = pnand %p510, %p511
    %p513 = pneg %p512
    // Predicated region
    $region89: #{forward.1} parent=5 // pred_check
      _
    $region90: #{forward.1} parent=5 // pred_check_branch
      %515 = sbr.rel (%p512) target = $region92
    $region91: #{forward.1} parent=5 // pred_region
      %s516 = ssub.s32 %s24, 1
      %p517 = scmp.lt.s32.totalorder %s29, 1
      %s518 = scalar_select %p517, %s29, 1
      %s519 = smul.addr %s518, 8
      %s520 = scalar_lea.vmem %s0, %s519
      %p521 = pneg %p50
      %p522 = pneg %p47
      %p523 = pneg %p71
      %p524 = pneg %p68
      %p525 = pneg %p92
      %p526 = pneg %p89
      %p527 = pneg %p113
      %p528 = pneg %p110
      %p529 = pneg %p134
      %p530 = pneg %p131
      %p531 = pneg %p155
      %p532 = pneg %p152
      %p533 = pneg %p176
      %p534 = pneg %p173
      %p535 = pneg %p197
      %p536 = pneg %p194
      %p537 = pneg %p218
      %p538 = pneg %p215
      %p539 = pneg %p239
      %p540 = pneg %p236
      %p541 = pneg %p260
      %p542 = pneg %p257
      %p543 = pneg %p281
      %p544 = pneg %p278
      %p545 = pneg %p302
      %p546 = pneg %p299
      %p547 = pneg %p323
      %p548 = pneg %p320
      %p549 = pneg %p344
      %p550 = pneg %p341
      %p551 = pneg %p365
      %p552 = pneg %p362
      %p553 = pneg %p386
      %p554 = pneg %p383
      %p555 = pneg %p407
      %p556 = pneg %p404
      %p557 = pneg %p433
      %p558 = pneg %p430
      %p559 = scmp.lt.s32.totalorder %s29, 1
      %s560 = scalar_select %p559, %s29, 1
      %s561 = smul.addr %s560, 8
      %s562 = scalar_lea.vmem %s18, %s561
      %p563 = scmp.lt.s32.totalorder %s29, 1
      %s564 = scalar_select %p563, %s29, 1
      %s565 = smul.addr %s564, 8
      %s566 = scalar_lea.vmem %s0, %s565
      %p567 = scmp.lt.s32.totalorder %s29, 1
      %s568 = scalar_select %p567, %s29, 1
      %s569 = smul.addr %s568, 8
      %s570 = scalar_lea.vmem %s18, %s569
      %v572 = vld [vmem:[%s566] sm:$0xff]
      %v573 = vlaneseq
      %v574 = vand.u32 %v573, 127
      %575 = vset.pattern.permute.xlu0 0
      %576 = vperm.xlu0 %575, %v572
      %v577 = vpop.permute.xlu0 %576
      %vm578 = vcmp.eq.s32.totalorder %v577, %v574
      %v579 = vsel %vm578, 1, 0
      %v580 = vcvt.s32.f32 %v579
      %v581 = vpack.c.bf16 %v580, %v580
      %v582 = vld [vmem:[%s2] sm:$0xf]
      %v583 = vld [vmem:[%s2 + $0x4] sm:$0xf]
      %v584 = vld [vmem:[%s2 + $0x8] sm:$0xf]
      %v585 = vld [vmem:[%s2 + $0xc] sm:$0xf]
      %v586 = vld [vmem:[%s2 + $0x10] sm:$0xf]
      %v587 = vld [vmem:[%s2 + $0x14] sm:$0xf]
      %v588 = vld [vmem:[%s2 + $0x18] sm:$0xf]
      %v589 = vld [vmem:[%s2 + $0x1c] sm:$0xf]
      %v590 = vld [vmem:[%s2 + $0x20] sm:$0x1]
      %v591 = vld [vmem:[%s1] sm:$0xff]
      %v601 = vunpack.c.l.b16 %v582
      %v602 = vunpack.c.l.b16 %v583
      %v603 = vunpack.c.l.b16 %v584
      %v604 = vunpack.c.l.b16 %v585
      %v605 = vunpack.c.l.b16 %v586
      %v606 = vunpack.c.l.b16 %v587
      %v607 = vunpack.c.l.b16 %v588
      %v608 = vunpack.c.l.b16 %v589
      %v609 = vunpack.c.l.b16 %v590
      %v610 = vpack.c.b16 %v602, %v601
      %v611 = vpack.c.b16 %v604, %v603
      %v612 = vpack.c.b16 %v606, %v605
      %v613 = vpack.c.b16 %v608, %v607
      %v614 = vpack.c.b16 %v609, %v609
      %vm619 = vcmask 531456
      %v621 = vsel %vm619, %v581, 0
      %vm623 = vcmask 1040384
      %v624 = vsel 0, 4294967295, 65535
      %v625 = vsel %vm623, %v624, 0
      %v627 = vand.u32 %v614, %v625
      %629 = vmatprep.subr.bf16.mxu0 0
      %630 = vmatpush1.bf16.msra.mxu0 %v610
      %631 = vmatprep.subr.bf16.mxu0 0
      %632 = vmatpush1.bf16.msra.mxu0 %v611
      %633 = vmatprep.subr.bf16.mxu0 0
      %634 = vmatpush1.bf16.msra.mxu0 %v612
      %635 = vmatprep.subr.bf16.mxu0 0
      %636 = vmatpush1.bf16.msra.mxu0 %v613
      %637 = vmatprep.subr.bf16.mxu0 0
      %638 = vmatpush1.bf16.msra.mxu0 %v627
      %639 = vmatprep.subr.bf16.mxu0 0
      %640 = vmatpush1.bf16.msra.mxu0 0
      %641 = vmatprep.subr.bf16.mxu0 0
      %642 = vmatpush1.bf16.msra.mxu0 0
      %643 = vmatprep.subr.bf16.mxu0 0
      %644 = vmatpush1.bf16.msra.mxu0 0
      %645 = vmatprep.subr.bf16.mxu0 0
      %646 = vmatpush1.bf16.msra.mxu0 0
      %647 = vmatprep.subr.bf16.mxu0 0
      %648 = vmatpush1.bf16.msra.mxu0 0
      %649 = vmatprep.subr.bf16.mxu0 0
      %650 = vmatpush1.bf16.msra.mxu0 0
      %651 = vmatprep.subr.bf16.mxu0 0
      %652 = vmatpush1.bf16.msra.mxu0 0
      %653 = vmatprep.subr.bf16.mxu0 0
      %654 = vmatpush1.bf16.msra.mxu0 0
      %655 = vmatprep.subr.bf16.mxu0 0
      %656 = vmatpush1.bf16.msra.mxu0 0
      %657 = vmatprep.subr.bf16.mxu0 0
      %658 = vmatpush1.bf16.msra.mxu0 0
      %659 = vmatprep.subr.bf16.mxu0 0
      %660 = vmatpush1.bf16.msra.mxu0 0
      %661 = vmatprep.mubr.bf16.mxu0 0
      %662 = vmatmul.mubr.bf16.gmra.mrb[0].mxu0 %v621
      %v663 = vpop.f32.mrb[0].mxu0
      %v664 = vadd.f32 %v591, %v663
      %v665 = vpop.f32.mrb[0].mxu0
      %v666 = vpop.f32.mrb[0].mxu0
      %v667 = vpop.f32.mrb[0].mxu0
      %668 = vdwg.mxu0
      %v669 = vlaneseq
      %v670 = vshrl.u32 %v669, 7
      %vm671 = vcmp.ge.s32.totalorder %v670, %v574
      %v672 = vsel %vm671, 0.0, -1e+30
      %v673 = vld [vmem:[%s3] sm:$0x1]
      %v674 = vld [vmem:[%s4] sm:$0x1]
      %vm675 = vcmask 392192
      %v676 = vsel %vm675, %v664, 0.0
      %677 = vadd.xlane.f32.xlu0 %v676
      %v678 = vpop.xlane.xlu0 %677
      %v679 = vrcp.pop 48.0
      %v680 = vmul.f32 %v678, %v679
      %v681 = vsub.f32 %v664, %v680
      %v682 = vmul.f32 %v681, %v681
      %v683 = vsel %vm675, %v682, 0.0
      %684 = vadd.xlane.f32.xlu0 %v683
      %v685 = vpop.xlane.xlu0 %684
      %v686 = vmul.f32 %v685, %v679
      %v687 = vadd.f32 %v686, 1e-05
      %v688 = vrsqrt.pop %v687
      %v689 = vmul.f32 %v681, %v688
      %v691 = vlaneseq
      %v692 = vshrl.u32 %v691, 7
      %v693 = vsub.s32 0, %v692
      %v694 = vrot.slane %v673, %v693
      %v696 = vmul.f32 %v689, %v694
      %v698 = vlaneseq
      %v699 = vshrl.u32 %v698, 7
      %v700 = vsub.s32 0, %v699
      %v701 = vrot.slane %v674, %v700
      %v703 = vadd.f32 %v696, %v701
      %v704 = vpack.c.bf16 %v703, %v703
      %v705 = vld [vmem:[%s5] sm:$0xff]
      %v706 = vld [vmem:[%s5 + $0x8] sm:$0xff]
      %v707 = vld [vmem:[%s5 + $0x10] sm:$0xff]
      %v708 = vld [vmem:[%s5 + $0x18] sm:$0xff]
      %v709 = vld [vmem:[%s5 + $0x20] sm:$0xff]
      %v710 = vld [vmem:[%s5 + $0x28] sm:$0xff]
      %v717 = vunpack.c.l.b16 %v705
      %v718 = vunpack.c.h.b16 %v705
      %v719 = vunpack.c.l.b16 %v706
      %v720 = vunpack.c.h.b16 %v706
      %v721 = vunpack.c.l.b16 %v707
      %v722 = vunpack.c.h.b16 %v707
      %v723 = vunpack.c.l.b16 %v708
      %v724 = vunpack.c.h.b16 %v708
      %v725 = vunpack.c.l.b16 %v709
      %v726 = vunpack.c.h.b16 %v709
      %v727 = vunpack.c.l.b16 %v710
      %v728 = vunpack.c.h.b16 %v710
      %v729 = vpack.c.b16 %v719, %v717
      %v730 = vpack.c.b16 %v720, %v718
      %v731 = vpack.c.b16 %v723, %v721
      %v732 = vpack.c.b16 %v724, %v722
      %v733 = vpack.c.b16 %v727, %v725
      %v734 = vpack.c.b16 %v728, %v726
      %v742 = vsel %vm675, %v704, 0
      %744 = vmatprep.subr.bf16.mxu0 %v730
      %745 = vmatpush1.bf16.msra.mxu0 %v729
      %746 = vmatprep.subr.bf16.mxu0 %v732
      %747 = vmatpush1.bf16.msra.mxu0 %v731
      %748 = vmatprep.subr.bf16.mxu0 %v734
      %749 = vmatpush1.bf16.msra.mxu0 %v733
      %750 = vmatprep.subr.bf16.mxu0 0
      %751 = vmatpush1.bf16.msra.mxu0 0
      %752 = vmatprep.subr.bf16.mxu0 0
      %753 = vmatpush1.bf16.msra.mxu0 0
      %754 = vmatprep.subr.bf16.mxu0 0
      %755 = vmatpush1.bf16.msra.mxu0 0
      %756 = vmatprep.subr.bf16.mxu0 0
      %757 = vmatpush1.bf16.msra.mxu0 0
      %758 = vmatprep.subr.bf16.mxu0 0
      %759 = vmatpush1.bf16.msra.mxu0 0
      %760 = vmatprep.subr.bf16.mxu0 0
      %761 = vmatpush1.bf16.msra.mxu0 0
      %762 = vmatprep.subr.bf16.mxu0 0
      %763 = vmatpush1.bf16.msra.mxu0 0
      %764 = vmatprep.subr.bf16.mxu0 0
      %765 = vmatpush1.bf16.msra.mxu0 0
      %766 = vmatprep.subr.bf16.mxu0 0
      %767 = vmatpush1.bf16.msra.mxu0 0
      %768 = vmatprep.subr.bf16.mxu0 0
      %769 = vmatpush1.bf16.msra.mxu0 0
      %770 = vmatprep.subr.bf16.mxu0 0
      %771 = vmatpush1.bf16.msra.mxu0 0
      %772 = vmatprep.subr.bf16.mxu0 0
      %773 = vmatpush1.bf16.msra.mxu0 0
      %774 = vmatprep.subr.bf16.mxu0 0
      %775 = vmatpush1.bf16.msra.mxu0 0
      %776 = vmatprep.mubr.bf16.mxu0 0
      %777 = vmatmul.mubr.bf16.gmra.mrb[0].mxu0 %v742
      %v778 = vpop.f32.mrb[0].mxu0
      %v779 = vadd.f32 0.0, %v778
      %v780 = vpop.f32.mrb[0].mxu0
      %v781 = vadd.f32 0.0, %v780
      %v782 = vpop.f32.mrb[0].mxu0
      %v783 = vpop.f32.mrb[0].mxu0
      %784 = vdwg.mxu0
      %786 = vrot.lane.b32.xlu0 %v779, 120
      %v787 = vpop.permute.xlu0 %786
      %789 = vrot.lane.b32.xlu0 %v779, 112
      %v790 = vpop.permute.xlu0 %789
      %792 = vrot.lane.b32.xlu0 %v779, 104
      %v793 = vpop.permute.xlu0 %792
      %795 = vrot.lane.b32.xlu0 %v779, 96
      %v796 = vpop.permute.xlu0 %795
      %798 = vrot.lane.b32.xlu0 %v779, 88
      %v799 = vpop.permute.xlu0 %798
      %v801 = vpack.c.bf16 %v779, %v779
      %v802 = vpack.c.bf16 %v787, %v787
      %v803 = vpack.c.bf16 %v790, %v790
      %v804 = vpack.c.bf16 %v793, %v793
      %v805 = vpack.c.bf16 %v796, %v796
      %v806 = vpack.c.bf16 %v799, %v799
      %808 = vrot.lane.b32.xlu0 %v781, 96
      %v809 = vpop.permute.xlu0 %808
      %811 = vrot.lane.b32.xlu0 %v781, 88
      %v812 = vpop.permute.xlu0 %811
      %v814 = vpack.c.bf16 %v809, %v809
      %v815 = vpack.c.bf16 %v812, %v812
      %817 = vrot.lane.b32.xlu0 %v801, 80
      %v818 = vpop.permute.xlu0 %817
      %vm819 = vcmask 64512
      %v821 = vsel %vm819, %v801, 0
      %v824 = vsel %vm819, %v818, 0
      %826 = vmatprep.subr.bf16.mxu0 0
      %827 = vmatpush1.bf16.xpose.msra.mxu0 %v824
      %828 = vmatprep.subr.bf16.mxu0 0
      %829 = vmatpush1.bf16.xpose.msra.mxu0 0
      %830 = vmatprep.subr.bf16.mxu0 0
      %831 = vmatpush1.bf16.xpose.msra.mxu0 0
      %832 = vmatprep.subr.bf16.mxu0 0
      %833 = vmatpush1.bf16.xpose.msra.mxu0 0
      %834 = vmatprep.subr.bf16.mxu0 0
      %835 = vmatpush1.bf16.xpose.msra.mxu0 0
      %836 = vmatprep.subr.bf16.mxu0 0
      %837 = vmatpush1.bf16.xpose.msra.mxu0 0
      %838 = vmatprep.subr.bf16.mxu0 0
      %839 = vmatpush1.bf16.xpose.msra.mxu0 0
      %840 = vmatprep.subr.bf16.mxu0 0
      %841 = vmatpush1.bf16.xpose.msra.mxu0 0
      %842 = vmatprep.subr.bf16.mxu0 0
      %843 = vmatpush1.bf16.xpose.msra.mxu0 0
      %844 = vmatprep.subr.bf16.mxu0 0
      %845 = vmatpush1.bf16.xpose.msra.mxu0 0
      %846 = vmatprep.subr.bf16.mxu0 0
      %847 = vmatpush1.bf16.xpose.msra.mxu0 0
      %848 = vmatprep.subr.bf16.mxu0 0
      %849 = vmatpush1.bf16.xpose.msra.mxu0 0
      %850 = vmatprep.subr.bf16.mxu0 0
      %851 = vmatpush1.bf16.xpose.msra.mxu0 0
      %852 = vmatprep.subr.bf16.mxu0 0
      %853 = vmatpush1.bf16.xpose.msra.mxu0 0
      %854 = vmatprep.subr.bf16.mxu0 0
      %855 = vmatpush1.bf16.xpose.msra.mxu0 0
      %856 = vmatprep.subr.bf16.mxu0 0
      %857 = vmatpush1.bf16.xpose.msra.mxu0 0
      %858 = vmatprep.mubr.bf16.mxu0 0
      %859 = vmatmul.mubr.bf16.gmra.mrb[0].mxu0 %v821
      %v860 = vpop.f32.mrb[0].mxu0
      %v861 = vadd.f32 0.0, %v860
      %v862 = vpop.f32.mrb[0].mxu0
      %v863 = vpop.f32.mrb[0].mxu0
      %v864 = vpop.f32.mrb[0].mxu0
      %865 = vdwg.mxu0
      %867 = vrot.lane.b32.xlu0 %v802, 80
      %v868 = vpop.permute.xlu0 %867
      %v870 = vsel %vm819, %v802, 0
      %v873 = vsel %vm819, %v868, 0
      %875 = vmatprep.subr.bf16.mxu0 0
      %876 = vmatpush1.bf16.xpose.msra.mxu0 %v873
      %877 = vmatprep.subr.bf16.mxu0 0
      %878 = vmatpush1.bf16.xpose.msra.mxu0 0
      %879 = vmatprep.subr.bf16.mxu0 0
      %880 = vmatpush1.bf16.xpose.msra.mxu0 0
      %881 = vmatprep.subr.bf16.mxu0 0
      %882 = vmatpush1.bf16.xpose.msra.mxu0 0
      %883 = vmatprep.subr.bf16.mxu0 0
      %884 = vmatpush1.bf16.xpose.msra.mxu0 0
      %885 = vmatprep.subr.bf16.mxu0 0
      %886 = vmatpush1.bf16.xpose.msra.mxu0 0
      %887 = vmatprep.subr.bf16.mxu0 0
      %888 = vmatpush1.bf16.xpose.msra.mxu0 0
      %889 = vmatprep.subr.bf16.mxu0 0
      %890 = vmatpush1.bf16.xpose.msra.mxu0 0
      %891 = vmatprep.subr.bf16.mxu0 0
      %892 = vmatpush1.bf16.xpose.msra.mxu0 0
      %893 = vmatprep.subr.bf16.mxu0 0
      %894 = vmatpush1.bf16.xpose.msra.mxu0 0
      %895 = vmatprep.subr.bf16.mxu0 0
      %896 = vmatpush1.bf16.xpose.msra.mxu0 0
      %897 = vmatprep.subr.bf16.mxu0 0
      %898 = vmatpush1.bf16.xpose.msra.mxu0 0
      %899 = vmatprep.subr.bf16.mxu0 0
      %900 = vmatpush1.bf16.xpose.msra.mxu0 0
      %901 = vmatprep.subr.bf16.mxu0 0
      %902 = vmatpush1.bf16.xpose.msra.mxu0 0
      %903 = vmatprep.subr.bf16.mxu0 0
      %904 = vmatpush1.bf16.xpose.msra.mxu0 0
      %905 = vmatprep.subr.bf16.mxu0 0
      %906 = vmatpush1.bf16.xpose.msra.mxu0 0
      %907 = vmatprep.mubr.bf16.mxu0 0
      %908 = vmatmul.mubr.bf16.gmra.mrb[0].mxu0 %v870
      %v909 = vpop.f32.mrb[0].mxu0
      %v910 = vadd.f32 0.0, %v909
      %v911 = vpop.f32.mrb[0].mxu0
      %v912 = vpop.f32.mrb[0].mxu0
      %v913 = vpop.f32.mrb[0].mxu0
      %914 = vdwg.mxu0
      %916 = vrot.lane.b32.xlu0 %v803, 80
      %v917 = vpop.permute.xlu0 %916
      %v919 = vsel %vm819, %v803, 0
      %v922 = vsel %vm819, %v917, 0
      %924 = vmatprep.subr.bf16.mxu0 0
      %925 = vmatpush1.bf16.xpose.msra.mxu0 %v922
      %926 = vmatprep.subr.bf16.mxu0 0
      %927 = vmatpush1.bf16.xpose.msra.mxu0 0
      %928 = vmatprep.subr.bf16.mxu0 0
      %929 = vmatpush1.bf16.xpose.msra.mxu0 0
      %930 = vmatprep.subr.bf16.mxu0 0
      %931 = vmatpush1.bf16.xpose.msra.mxu0 0
      %932 = vmatprep.subr.bf16.mxu0 0
      %933 = vmatpush1.bf16.xpose.msra.mxu0 0
      %934 = vmatprep.subr.bf16.mxu0 0
      %935 = vmatpush1.bf16.xpose.msra.mxu0 0
      %936 = vmatprep.subr.bf16.mxu0 0
      %937 = vmatpush1.bf16.xpose.msra.mxu0 0
      %938 = vmatprep.subr.bf16.mxu0 0
      %939 = vmatpush1.bf16.xpose.msra.mxu0 0
      %940 = vmatprep.subr.bf16.mxu0 0
      %941 = vmatpush1.bf16.xpose.msra.mxu0 0
      %942 = vmatprep.subr.bf16.mxu0 0
      %943 = vmatpush1.bf16.xpose.msra.mxu0 0
      %944 = vmatprep.subr.bf16.mxu0 0
      %945 = vmatpush1.bf16.xpose.msra.mxu0 0
      %946 = vmatprep.subr.bf16.mxu0 0
      %947 = vmatpush1.bf16.xpose.msra.mxu0 0
      %948 = vmatprep.subr.bf16.mxu0 0
      %949 = vmatpush1.bf16.xpose.msra.mxu0 0
      %950 = vmatprep.subr.bf16.mxu0 0
      %951 = vmatpush1.bf16.xpose.msra.mxu0 0
      %952 = vmatprep.subr.bf16.mxu0 0
      %953 = vmatpush1.bf16.xpose.msra.mxu0 0
      %954 = vmatprep.subr.bf16.mxu0 0
      %955 = vmatpush1.bf16.xpose.msra.mxu0 0
      %956 = vmatprep.mubr.bf16.mxu0 0
      %957 = vmatmul.mubr.bf16.gmra.mrb[0].mxu0 %v919
      %v958 = vpop.f32.mrb[0].mxu0
      %v959 = vadd.f32 0.0, %v958
      %v960 = vpop.f32.mrb[0].mxu0
      %v961 = vpop.f32.mrb[0].mxu0
      %v962 = vpop.f32.mrb[0].mxu0
      %963 = vdwg.mxu0
      %965 = vrot.lane.b32.xlu0 %v804, 80
      %v966 = vpop.permute.xlu0 %965
      %v968 = vsel %vm819, %v804, 0
      %v971 = vsel %vm819, %v966, 0
      %973 = vmatprep.subr.bf16.mxu0 0
      %974 = vmatpush1.bf16.xpose.msra.mxu0 %v971
      %975 = vmatprep.subr.bf16.mxu0 0
      %976 = vmatpush1.bf16.xpose.msra.mxu0 0
      %977 = vmatprep.subr.bf16.mxu0 0
      %978 = vmatpush1.bf16.xpose.msra.mxu0 0
      %979 = vmatprep.subr.bf16.mxu0 0
      %980 = vmatpush1.bf16.xpose.msra.mxu0 0
      %981 = vmatprep.subr.bf16.mxu0 0
      %982 = vmatpush1.bf16.xpose.msra.mxu0 0
      %983 = vmatprep.subr.bf16.mxu0 0
      %984 = vmatpush1.bf16.xpose.msra.mxu0 0
      %985 = vmatprep.subr.bf16.mxu0 0
      %986 = vmatpush1.bf16.xpose.msra.mxu0 0
      %987 = vmatprep.subr.bf16.mxu0 0
      %988 = vmatpush1.bf16.xpose.msra.mxu0 0
      %989 = vmatprep.subr.bf16.mxu0 0
      %990 = vmatpush1.bf16.xpose.msra.mxu0 0
      %991 = vmatprep.subr.bf16.mxu0 0
      %992 = vmatpush1.bf16.xpose.msra.mxu0 0
      %993 = vmatprep.subr.bf16.mxu0 0
      %994 = vmatpush1.bf16.xpose.msra.mxu0 0
      %995 = vmatprep.subr.bf16.mxu0 0
      %996 = vmatpush1.bf16.xpose.msra.mxu0 0
      %997 = vmatprep.subr.bf16.mxu0 0
      %998 = vmatpush1.bf16.xpose.msra.mxu0 0
      %999 = vmatprep.subr.bf16.mxu0 0
      %1000 = vmatpush1.bf16.xpose.msra.mxu0 0
      %1001 = vmatprep.subr.bf16.mxu0 0
      %1002 = vmatpush1.bf16.xpose.msra.mxu0 0
      %1003 = vmatprep.subr.bf16.mxu0 0
      %1004 = vmatpush1.bf16.xpose.msra.mxu0 0
      %1005 = vmatprep.mubr.bf16.mxu0 0
      %1006 = vmatmul.mubr.bf16.gmra.mrb[0].mxu0 %v968
      %v1007 = vpop.f32.mrb[0].mxu0
      %v1008 = vadd.f32 0.0, %v1007
      %v1009 = vpop.f32.mrb[0].mxu0
      %v1010 = vpop.f32.mrb[0].mxu0
      %v1011 = vpop.f32.mrb[0].mxu0
      %1012 = vdwg.mxu0
      %1014 = vrot.lane.b32.xlu0 %v805, 80
      %v1015 = vpop.permute.xlu0 %1014
      %v1017 = vsel %vm819, %v805, 0
      %v1020 = vsel %vm819, %v1015, 0
      %1022 = vmatprep.subr.bf16.mxu0 0
      %1023 = vmatpush1.bf16.xpose.msra.mxu0 %v1020
      %1024 = vmatprep.subr.bf16.mxu0 0
      %1025 = vmatpush1.bf16.xpose.msra.mxu0 0
      %1026 = vmatprep.subr.bf16.mxu0 0
      %1027 = vmatpush1.bf16.xpose.msra.mxu0 0
      %1028 = vmatprep.subr.bf16.mxu0 0
      %1029 = vmatpush1.bf16.xpose.msra.mxu0 0
      %1030 = vmatprep.subr.bf16.mxu0 0
      %1031 = vmatpush1.bf16.xpose.msra.mxu0 0
      %1032 = vmatprep.subr.bf16.mxu0 0
      %1033 = vmatpush1.bf16.xpose.msra.mxu0 0
      %1034 = vmatprep.subr.bf16.mxu0 0
      %1035 = vmatpush1.bf16.xpose.msra.mxu0 0
      %1036 = vmatprep.subr.bf16.mxu0 0
      %1037 = vmatpush1.bf16.xpose.msra.mxu0 0
      %1038 = vmatprep.subr.bf16.mxu0 0
      %1039 = vmatpush1.bf16.xpose.msra.mxu0 0
      %1040 = vmatprep.subr.bf16.mxu0 0
      %1041 = vmatpush1.bf16.xpose.msra.mxu0 0
      %1042 = vmatprep.subr.bf16.mxu0 0
      %1043 = vmatpush1.bf16.xpose.msra.mxu0 0
      %1044 = vmatprep.subr.bf16.mxu0 0
      %1045 = vmatpush1.bf16.xpose.msra.mxu0 0
      %1046 = vmatprep.subr.bf16.mxu0 0
      %1047 = vmatpush1.bf16.xpose.msra.mxu0 0
      %1048 = vmatprep.subr.bf16.mxu0 0
      %1049 = vmatpush1.bf16.xpose.msra.mxu0 0
      %1050 = vmatprep.subr.bf16.mxu0 0
      %1051 = vmatpush1.bf16.xpose.msra.mxu0 0
      %1052 = vmatprep.subr.bf16.mxu0 0
      %1053 = vmatpush1.bf16.xpose.msra.mxu0 0
      %1054 = vmatprep.mubr.bf16.mxu0 0
      %1055 = vmatmul.mubr.bf16.gmra.mrb[0].mxu0 %v1017
      %v1056 = vpop.f32.mrb[0].mxu0
      %v1057 = vadd.f32 0.0, %v1056
      %v1058 = vpop.f32.mrb[0].mxu0
      %v1059 = vpop.f32.mrb[0].mxu0
      %v1060 = vpop.f32.mrb[0].mxu0
      %1061 = vdwg.mxu0
      %1063 = vrot.lane.b32.xlu0 %v806, 80
      %v1064 = vpop.permute.xlu0 %1063
      %v1066 = vsel %vm819, %v806, 0
      %v1069 = vsel %vm819, %v1064, 0
      %1071 = vmatprep.subr.bf16.mxu0 0
      %1072 = vmatpush1.bf16.xpose.msra.mxu0 %v1069
      %1073 = vmatprep.subr.bf16.mxu0 0
      %1074 = vmatpush1.bf16.xpose.msra.mxu0 0
      %1075 = vmatprep.subr.bf16.mxu0 0
      %1076 = vmatpush1.bf16.xpose.msra.mxu0 0
      %1077 = vmatprep.subr.bf16.mxu0 0
      %1078 = vmatpush1.bf16.xpose.msra.mxu0 0
      %1079 = vmatprep.subr.bf16.mxu0 0
      %1080 = vmatpush1.bf16.xpose.msra.mxu0 0
      %1081 = vmatprep.subr.bf16.mxu0 0
      %1082 = vmatpush1.bf16.xpose.msra.mxu0 0
      %1083 = vmatprep.subr.bf16.mxu0 0
      %1084 = vmatpush1.bf16.xpose.msra.mxu0 0
      %1085 = vmatprep.subr.bf16.mxu0 0
      %1086 = vmatpush1.bf16.xpose.msra.mxu0 0
      %1087 = vmatprep.subr.bf16.mxu0 0
      %1088 = vmatpush1.bf16.xpose.msra.mxu0 0
      %1089 = vmatprep.subr.bf16.mxu0 0
      %1090 = vmatpush1.bf16.xpose.msra.mxu0 0
      %1091 = vmatprep.subr.bf16.mxu0 0
      %1092 = vmatpush1.bf16.xpose.msra.mxu0 0
      %1093 = vmatprep.subr.bf16.mxu0 0
      %1094 = vmatpush1.bf16.xpose.msra.mxu0 0
      %1095 = vmatprep.subr.bf16.mxu0 0
      %1096 = vmatpush1.bf16.xpose.msra.mxu0 0
      %1097 = vmatprep.subr.bf16.mxu0 0
      %1098 = vmatpush1.bf16.xpose.msra.mxu0 0
      %1099 = vmatprep.subr.bf16.mxu0 0
      %1100 = vmatpush1.bf16.xpose.msra.mxu0 0
      %1101 = vmatprep.subr.bf16.mxu0 0
      %1102 = vmatpush1.bf16.xpose.msra.mxu0 0
      %1103 = vmatprep.mubr.bf16.mxu0 0
      %1104 = vmatmul.mubr.bf16.gmra.mrb[0].mxu0 %v1066
      %v1105 = vpop.f32.mrb[0].mxu0
      %v1106 = vadd.f32 0.0, %v1105
      %v1107 = vpop.f32.mrb[0].mxu0
      %v1108 = vpop.f32.mrb[0].mxu0
      %v1109 = vpop.f32.mrb[0].mxu0
      %1110 = vdwg.mxu0
      %v1111 = vmul.f32 %v861, 0.35355338
      %v1112 = vmul.f32 %v910, 0.35355338
      %v1113 = vmul.f32 %v959, 0.35355338
      %v1114 = vmul.f32 %v1008, 0.35355338
      %v1115 = vmul.f32 %v1057, 0.35355338
      %v1116 = vmul.f32 %v1106, 0.35355338
      %v1117 = vadd.f32 %v1111, %v672
      %v1118 = vadd.f32 %v1112, %v672
      %v1119 = vadd.f32 %v1113, %v672
      %v1120 = vadd.f32 %v1114, %v672
      %v1121 = vadd.f32 %v1115, %v672
      %v1122 = vadd.f32 %v1116, %v672
      %v1123 = vsel %vm819, %v1117, -inf
      %1124 = vmax.xlane.f32.xlu0 %v1123
      %v1125 = vpop.xlane.xlu0 %1124
      %v1126 = vsel %vm819, %v1118, -inf
      %1127 = vmax.xlane.f32.xlu0 %v1126
      %v1128 = vpop.xlane.xlu0 %1127
      %v1129 = vsel %vm819, %v1119, -inf
      %1130 = vmax.xlane.f32.xlu0 %v1129
      %v1131 = vpop.xlane.xlu0 %1130
      %v1132 = vsel %vm819, %v1120, -inf
      %1133 = vmax.xlane.f32.xlu0 %v1132
      %v1134 = vpop.xlane.xlu0 %1133
      %v1135 = vsel %vm819, %v1121, -inf
      %1136 = vmax.xlane.f32.xlu0 %v1135
      %v1137 = vpop.xlane.xlu0 %1136
      %v1138 = vsel %vm819, %v1122, -inf
      %1139 = vmax.xlane.f32.xlu0 %v1138
      %v1140 = vpop.xlane.xlu0 %1139
      %v1141 = vsub.f32 %v1117, %v1125
      %v1142 = vsub.f32 %v1118, %v1128
      %v1143 = vsub.f32 %v1119, %v1131
      %v1144 = vsub.f32 %v1120, %v1134
      %v1145 = vsub.f32 %v1121, %v1137
      %v1146 = vsub.f32 %v1122, %v1140
      %v1147 = vmul.f32 %v1141, 1.442695
      %v1148 = vpow.pop %v1147
      %v1149 = vmul.f32 %v1142, 1.442695
      %v1150 = vpow.pop %v1149
      %v1151 = vmul.f32 %v1143, 1.442695
      %v1152 = vpow.pop %v1151
      %v1153 = vmul.f32 %v1144, 1.442695
      %v1154 = vpow.pop %v1153
      %v1155 = vmul.f32 %v1145, 1.442695
      %v1156 = vpow.pop %v1155
      %v1157 = vmul.f32 %v1146, 1.442695
      %v1158 = vpow.pop %v1157
      %v1159 = vsel %vm819, %v1148, 0.0
      %1160 = vadd.xlane.f32.xlu0 %v1159
      %v1161 = vpop.xlane.xlu0 %1160
      %v1162 = vsel %vm819, %v1150, 0.0
      %1163 = vadd.xlane.f32.xlu0 %v1162
      %v1164 = vpop.xlane.xlu0 %1163
      %v1165 = vsel %vm819, %v1152, 0.0
      %1166 = vadd.xlane.f32.xlu0 %v1165
      %v1167 = vpop.xlane.xlu0 %1166
      %v1168 = vsel %vm819, %v1154, 0.0
      %1169 = vadd.xlane.f32.xlu0 %v1168
      %v1170 = vpop.xlane.xlu0 %1169
      %v1171 = vsel %vm819, %v1156, 0.0
      %1172 = vadd.xlane.f32.xlu0 %v1171
      %v1173 = vpop.xlane.xlu0 %1172
      %v1174 = vsel %vm819, %v1158, 0.0
      %1175 = vadd.xlane.f32.xlu0 %v1174
      %v1176 = vpop.xlane.xlu0 %1175
      %v1177 = vrcp.pop %v1161
      %v1178 = vrcp.pop %v1164
      %v1179 = vrcp.pop %v1167
      %v1180 = vrcp.pop %v1170
      %v1181 = vrcp.pop %v1173
      %v1182 = vrcp.pop %v1176
      %v1183 = vmul.f32 %v1148, %v1177
      %v1184 = vmul.f32 %v1150, %v1178
      %v1185 = vmul.f32 %v1152, %v1179
      %v1186 = vmul.f32 %v1154, %v1180
      %v1187 = vmul.f32 %v1156, %v1181
      %v1188 = vmul.f32 %v1158, %v1182
      %v1189 = vpack.c.bf16 %v1183, %v1183
      %v1190 = vpack.c.bf16 %v1184, %v1184
      %v1191 = vpack.c.bf16 %v1185, %v1185
      %v1192 = vpack.c.bf16 %v1186, %v1186
      %v1193 = vpack.c.bf16 %v1187, %v1187
      %v1194 = vpack.c.bf16 %v1188, %v1188
      %1195 = vrot.lane.b32.xlu0 %v801, 32
      %v1196 = vpop.permute.xlu0 %1195
      %v1198 = vsel %vm819, %v1189, 0
      %vm1200 = vcmask 1043456
      %v1202 = vsel %vm1200, %v1196, 0
      %1204 = vmatprep.subr.bf16.mxu0 0
      %1205 = vmatpush1.bf16.msra.mxu0 %v1202
      %1206 = vmatprep.subr.bf16.mxu0 0
      %1207 = vmatpush1.bf16.msra.mxu0 0
      %1208 = vmatprep.subr.bf16.mxu0 0
      %1209 = vmatpush1.bf16.msra.mxu0 0
      %1210 = vmatprep.subr.bf16.mxu0 0
      %1211 = vmatpush1.bf16.msra.mxu0 0
      %1212 = vmatprep.subr.bf16.mxu0 0
      %1213 = vmatpush1.bf16.msra.mxu0 0
      %1214 = vmatprep.subr.bf16.mxu0 0
      %1215 = vmatpush1.bf16.msra.mxu0 0
      %1216 = vmatprep.subr.bf16.mxu0 0
      %1217 = vmatpush1.bf16.msra.mxu0 0
      %1218 = vmatprep.subr.bf16.mxu0 0
      %1219 = vmatpush1.bf16.msra.mxu0 0
      %1220 = vmatprep.subr.bf16.mxu0 0
      %1221 = vmatpush1.bf16.msra.mxu0 0
      %1222 = vmatprep.subr.bf16.mxu0 0
      %1223 = vmatpush1.bf16.msra.mxu0 0
      %1224 = vmatprep.subr.bf16.mxu0 0
      %1225 = vmatpush1.bf16.msra.mxu0 0
      %1226 = vmatprep.subr.bf16.mxu0 0
      %1227 = vmatpush1.bf16.msra.mxu0 0
      %1228 = vmatprep.subr.bf16.mxu0 0
      %1229 = vmatpush1.bf16.msra.mxu0 0
      %1230 = vmatprep.subr.bf16.mxu0 0
      %1231 = vmatpush1.bf16.msra.mxu0 0
      %1232 = vmatprep.subr.bf16.mxu0 0
      %1233 = vmatpush1.bf16.msra.mxu0 0
      %1234 = vmatprep.subr.bf16.mxu0 0
      %1235 = vmatpush1.bf16.msra.mxu0 0
      %1236 = vmatprep.mubr.bf16.mxu0 0
      %1237 = vmatmul.mubr.bf16.gmra.mrb[0].mxu0 %v1198
      %v1238 = vpop.f32.mrb[0].mxu0
      %v1239 = vadd.f32 0.0, %v1238
      %v1240 = vpop.f32.mrb[0].mxu0
      %v1241 = vpop.f32.mrb[0].mxu0
      %v1242 = vpop.f32.mrb[0].mxu0
      %1243 = vdwg.mxu0
      %1244 = vrot.lane.b32.xlu0 %v802, 32
      %v1245 = vpop.permute.xlu0 %1244
      %v1247 = vsel %vm819, %v1190, 0
      %v1250 = vsel %vm1200, %v1245, 0
      %1252 = vmatprep.subr.bf16.mxu0 0
      %1253 = vmatpush1.bf16.msra.mxu0 %v1250
      %1254 = vmatprep.subr.bf16.mxu0 0
      %1255 = vmatpush1.bf16.msra.mxu0 0
      %1256 = vmatprep.subr.bf16.mxu0 0
      %1257 = vmatpush1.bf16.msra.mxu0 0
      %1258 = vmatprep.subr.bf16.mxu0 0
      %1259 = vmatpush1.bf16.msra.mxu0 0
      %1260 = vmatprep.subr.bf16.mxu0 0
      %1261 = vmatpush1.bf16.msra.mxu0 0
      %1262 = vmatprep.subr.bf16.mxu0 0
      %1263 = vmatpush1.bf16.msra.mxu0 0
      %1264 = vmatprep.subr.bf16.mxu0 0
      %1265 = vmatpush1.bf16.msra.mxu0 0
      %1266 = vmatprep.subr.bf16.mxu0 0
      %1267 = vmatpush1.bf16.msra.mxu0 0
      %1268 = vmatprep.subr.bf16.mxu0 0
      %1269 = vmatpush1.bf16.msra.mxu0 0
      %1270 = vmatprep.subr.bf16.mxu0 0
      %1271 = vmatpush1.bf16.msra.mxu0 0
      %1272 = vmatprep.subr.bf16.mxu0 0
      %1273 = vmatpush1.bf16.msra.mxu0 0
      %1274 = vmatprep.subr.bf16.mxu0 0
      %1275 = vmatpush1.bf16.msra.mxu0 0
      %1276 = vmatprep.subr.bf16.mxu0 0
      %1277 = vmatpush1.bf16.msra.mxu0 0
      %1278 = vmatprep.subr.bf16.mxu0 0
      %1279 = vmatpush1.bf16.msra.mxu0 0
      %1280 = vmatprep.subr.bf16.mxu0 0
      %1281 = vmatpush1.bf16.msra.mxu0 0
      %1282 = vmatprep.subr.bf16.mxu0 0
      %1283 = vmatpush1.bf16.msra.mxu0 0
      %1284 = vmatprep.mubr.bf16.mxu0 0
      %1285 = vmatmul.mubr.bf16.gmra.mrb[0].mxu0 %v1247
      %v1286 = vpop.f32.mrb[0].mxu0
      %v1287 = vadd.f32 0.0, %v1286
      %v1288 = vpop.f32.mrb[0].mxu0
      %v1289 = vpop.f32.mrb[0].mxu0
      %v1290 = vpop.f32.mrb[0].mxu0
      %1291 = vdwg.mxu0
      %1292 = vrot.lane.b32.xlu0 %v803, 32
      %v1293 = vpop.permute.xlu0 %1292
      %v1295 = vsel %vm819, %v1191, 0
      %v1298 = vsel %vm1200, %v1293, 0
      %1300 = vmatprep.subr.bf16.mxu0 0
      %1301 = vmatpush1.bf16.msra.mxu0 %v1298
      %1302 = vmatprep.subr.bf16.mxu0 0
      %1303 = vmatpush1.bf16.msra.mxu0 0
      %1304 = vmatprep.subr.bf16.mxu0 0
      %1305 = vmatpush1.bf16.msra.mxu0 0
      %1306 = vmatprep.subr.bf16.mxu0 0
      %1307 = vmatpush1.bf16.msra.mxu0 0
      %1308 = vmatprep.subr.bf16.mxu0 0
      %1309 = vmatpush1.bf16.msra.mxu0 0
      %1310 = vmatprep.subr.bf16.mxu0 0
      %1311 = vmatpush1.bf16.msra.mxu0 0
      %1312 = vmatprep.subr.bf16.mxu0 0
      %1313 = vmatpush1.bf16.msra.mxu0 0
      %1314 = vmatprep.subr.bf16.mxu0 0
      %1315 = vmatpush1.bf16.msra.mxu0 0
      %1316 = vmatprep.subr.bf16.mxu0 0
      %1317 = vmatpush1.bf16.msra.mxu0 0
      %1318 = vmatprep.subr.bf16.mxu0 0
      %1319 = vmatpush1.bf16.msra.mxu0 0
      %1320 = vmatprep.subr.bf16.mxu0 0
      %1321 = vmatpush1.bf16.msra.mxu0 0
      %1322 = vmatprep.subr.bf16.mxu0 0
      %1323 = vmatpush1.bf16.msra.mxu0 0
      %1324 = vmatprep.subr.bf16.mxu0 0
      %1325 = vmatpush1.bf16.msra.mxu0 0
      %1326 = vmatprep.subr.bf16.mxu0 0
      %1327 = vmatpush1.bf16.msra.mxu0 0
      %1328 = vmatprep.subr.bf16.mxu0 0
      %1329 = vmatpush1.bf16.msra.mxu0 0
      %1330 = vmatprep.subr.bf16.mxu0 0
      %1331 = vmatpush1.bf16.msra.mxu0 0
      %1332 = vmatprep.mubr.bf16.mxu0 0
      %1333 = vmatmul.mubr.bf16.gmra.mrb[0].mxu0 %v1295
      %v1334 = vpop.f32.mrb[0].mxu0
      %v1335 = vadd.f32 0.0, %v1334
      %v1336 = vpop.f32.mrb[0].mxu0
      %v1337 = vpop.f32.mrb[0].mxu0
      %v1338 = vpop.f32.mrb[0].mxu0
      %1339 = vdwg.mxu0
      %1340 = vrot.lane.b32.xlu0 %v804, 32
      %v1341 = vpop.permute.xlu0 %1340
      %v1343 = vsel %vm819, %v1192, 0
      %v1346 = vsel %vm1200, %v1341, 0
      %1348 = vmatprep.subr.bf16.mxu0 0
      %1349 = vmatpush1.bf16.msra.mxu0 %v1346
      %1350 = vmatprep.subr.bf16.mxu0 0
      %1351 = vmatpush1.bf16.msra.mxu0 0
      %1352 = vmatprep.subr.bf16.mxu0 0
      %1353 = vmatpush1.bf16.msra.mxu0 0
      %1354 = vmatprep.subr.bf16.mxu0 0
      %1355 = vmatpush1.bf16.msra.mxu0 0
      %1356 = vmatprep.subr.bf16.mxu0 0
      %1357 = vmatpush1.bf16.msra.mxu0 0
      %1358 = vmatprep.subr.bf16.mxu0 0
      %1359 = vmatpush1.bf16.msra.mxu0 0
      %1360 = vmatprep.subr.bf16.mxu0 0
      %1361 = vmatpush1.bf16.msra.mxu0 0
      %1362 = vmatprep.subr.bf16.mxu0 0
      %1363 = vmatpush1.bf16.msra.mxu0 0
      %1364 = vmatprep.subr.bf16.mxu0 0
      %1365 = vmatpush1.bf16.msra.mxu0 0
      %1366 = vmatprep.subr.bf16.mxu0 0
      %1367 = vmatpush1.bf16.msra.mxu0 0
      %1368 = vmatprep.subr.bf16.mxu0 0
      %1369 = vmatpush1.bf16.msra.mxu0 0
      %1370 = vmatprep.subr.bf16.mxu0 0
      %1371 = vmatpush1.bf16.msra.mxu0 0
      %1372 = vmatprep.subr.bf16.mxu0 0
      %1373 = vmatpush1.bf16.msra.mxu0 0
      %1374 = vmatprep.subr.bf16.mxu0 0
      %1375 = vmatpush1.bf16.msra.mxu0 0
      %1376 = vmatprep.subr.bf16.mxu0 0
      %1377 = vmatpush1.bf16.msra.mxu0 0
      %1378 = vmatprep.subr.bf16.mxu0 0
      %1379 = vmatpush1.bf16.msra.mxu0 0
      %1380 = vmatprep.mubr.bf16.mxu0 0
      %1381 = vmatmul.mubr.bf16.gmra.mrb[0].mxu0 %v1343
      %v1382 = vpop.f32.mrb[0].mxu0
      %v1383 = vadd.f32 0.0, %v1382
      %v1384 = vpop.f32.mrb[0].mxu0
      %v1385 = vpop.f32.mrb[0].mxu0
      %v1386 = vpop.f32.mrb[0].mxu0
      %1387 = vdwg.mxu0
      %1389 = vrot.lane.b32.xlu0 %v814, 32
      %v1390 = vpop.permute.xlu0 %1389
      %v1392 = vsel %vm819, %v1193, 0
      %v1395 = vsel %vm1200, %v1390, 0
      %1397 = vmatprep.subr.bf16.mxu0 0
      %1398 = vmatpush1.bf16.msra.mxu0 %v1395
      %1399 = vmatprep.subr.bf16.mxu0 0
      %1400 = vmatpush1.bf16.msra.mxu0 0
      %1401 = vmatprep.subr.bf16.mxu0 0
      %1402 = vmatpush1.bf16.msra.mxu0 0
      %1403 = vmatprep.subr.bf16.mxu0 0
      %1404 = vmatpush1.bf16.msra.mxu0 0
      %1405 = vmatprep.subr.bf16.mxu0 0
      %1406 = vmatpush1.bf16.msra.mxu0 0
      %1407 = vmatprep.subr.bf16.mxu0 0
      %1408 = vmatpush1.bf16.msra.mxu0 0
      %1409 = vmatprep.subr.bf16.mxu0 0
      %1410 = vmatpush1.bf16.msra.mxu0 0
      %1411 = vmatprep.subr.bf16.mxu0 0
      %1412 = vmatpush1.bf16.msra.mxu0 0
      %1413 = vmatprep.subr.bf16.mxu0 0
      %1414 = vmatpush1.bf16.msra.mxu0 0
      %1415 = vmatprep.subr.bf16.mxu0 0
      %1416 = vmatpush1.bf16.msra.mxu0 0
      %1417 = vmatprep.subr.bf16.mxu0 0
      %1418 = vmatpush1.bf16.msra.mxu0 0
      %1419 = vmatprep.subr.bf16.mxu0 0
      %1420 = vmatpush1.bf16.msra.mxu0 0
      %1421 = vmatprep.subr.bf16.mxu0 0
      %1422 = vmatpush1.bf16.msra.mxu0 0
      %1423 = vmatprep.subr.bf16.mxu0 0
      %1424 = vmatpush1.bf16.msra.mxu0 0
      %1425 = vmatprep.subr.bf16.mxu0 0
      %1426 = vmatpush1.bf16.msra.mxu0 0
      %1427 = vmatprep.subr.bf16.mxu0 0
      %1428 = vmatpush1.bf16.msra.mxu0 0
      %1429 = vmatprep.mubr.bf16.mxu0 0
      %1430 = vmatmul.mubr.bf16.gmra.mrb[0].mxu0 %v1392
      %v1431 = vpop.f32.mrb[0].mxu0
      %v1432 = vadd.f32 0.0, %v1431
      %v1433 = vpop.f32.mrb[0].mxu0
      %v1434 = vpop.f32.mrb[0].mxu0
      %v1435 = vpop.f32.mrb[0].mxu0
      %1436 = vdwg.mxu0
      %1438 = vrot.lane.b32.xlu0 %v815, 32
      %v1439 = vpop.permute.xlu0 %1438
      %v1441 = vsel %vm819, %v1194, 0
      %v1444 = vsel %vm1200, %v1439, 0
      %1446 = vmatprep.subr.bf16.mxu0 0
      %1447 = vmatpush1.bf16.msra.mxu0 %v1444
      %1448 = vmatprep.subr.bf16.mxu0 0
      %1449 = vmatpush1.bf16.msra.mxu0 0
      %1450 = vmatprep.subr.bf16.mxu0 0
      %1451 = vmatpush1.bf16.msra.mxu0 0
      %1452 = vmatprep.subr.bf16.mxu0 0
      %1453 = vmatpush1.bf16.msra.mxu0 0
      %1454 = vmatprep.subr.bf16.mxu0 0
      %1455 = vmatpush1.bf16.msra.mxu0 0
      %1456 = vmatprep.subr.bf16.mxu0 0
      %1457 = vmatpush1.bf16.msra.mxu0 0
      %1458 = vmatprep.subr.bf16.mxu0 0
      %1459 = vmatpush1.bf16.msra.mxu0 0
      %1460 = vmatprep.subr.bf16.mxu0 0
      %1461 = vmatpush1.bf16.msra.mxu0 0
      %1462 = vmatprep.subr.bf16.mxu0 0
      %1463 = vmatpush1.bf16.msra.mxu0 0
      %1464 = vmatprep.subr.bf16.mxu0 0
      %1465 = vmatpush1.bf16.msra.mxu0 0
      %1466 = vmatprep.subr.bf16.mxu0 0
      %1467 = vmatpush1.bf16.msra.mxu0 0
      %1468 = vmatprep.subr.bf16.mxu0 0
      %1469 = vmatpush1.bf16.msra.mxu0 0
      %1470 = vmatprep.subr.bf16.mxu0 0
      %1471 = vmatpush1.bf16.msra.mxu0 0
      %1472 = vmatprep.subr.bf16.mxu0 0
      %1473 = vmatpush1.bf16.msra.mxu0 0
      %1474 = vmatprep.subr.bf16.mxu0 0
      %1475 = vmatpush1.bf16.msra.mxu0 0
      %1476 = vmatprep.subr.bf16.mxu0 0
      %1477 = vmatpush1.bf16.msra.mxu0 0
      %1478 = vmatprep.mubr.bf16.mxu0 0
      %1479 = vmatmul.mubr.bf16.gmra.mrb[0].mxu0 %v1441
      %v1480 = vpop.f32.mrb[0].mxu0
      %v1481 = vadd.f32 0.0, %v1480
      %v1482 = vpop.f32.mrb[0].mxu0
      %v1483 = vpop.f32.mrb[0].mxu0
      %v1484 = vpop.f32.mrb[0].mxu0
      %1485 = vdwg.mxu0
      %1487 = vrot.lane.b32.xlu0 %v1287, 8
      %v1488 = vpop.permute.xlu0 %1487
      %1491 = vrot.lane.b32.xlu0 %v1335, 16
      %v1492 = vpop.permute.xlu0 %1491
      %1495 = vrot.lane.b32.xlu0 %v1383, 24
      %v1496 = vpop.permute.xlu0 %1495
      %1499 = vrot.lane.b32.xlu0 %v1432, 32
      %v1500 = vpop.permute.xlu0 %1499
      %1503 = vrot.lane.b32.xlu0 %v1481, 40
      %v1504 = vpop.permute.xlu0 %1503
      %v1506 = vsel %vm819, %v1239, %v1488
      %vm1507 = vcmask 130048
      %v1508 = vsel %vm1507, %v1506, %v1492
      %vm1509 = vcmask 195584
      %v1510 = vsel %vm1509, %v1508, %v1496
      %vm1511 = vcmask 261120
      %v1512 = vsel %vm1511, %v1510, %v1500
      %vm1513 = vcmask 326656
      %v1514 = vsel %vm1513, %v1512, %v1504
      %v1515 = vpack.c.bf16 %v1514, %v1514
      %v1516 = vld [vmem:[%s6] sm:$0xf]
      %v1517 = vld [vmem:[%s6 + $0x4] sm:$0xf]
      %v1518 = vld [vmem:[%s6 + $0x8] sm:$0xf]
      %v1519 = vld [vmem:[%s6 + $0xc] sm:$0xf]
      %v1520 = vld [vmem:[%s6 + $0x10] sm:$0xf]
      %v1521 = vld [vmem:[%s6 + $0x14] sm:$0xf]
      %v1528 = vunpack.c.l.b16 %v1516
      %v1529 = vunpack.c.l.b16 %v1517
      %v1530 = vunpack.c.l.b16 %v1518
      %v1531 = vunpack.c.l.b16 %v1519
      %v1532 = vunpack.c.l.b16 %v1520
      %v1533 = vunpack.c.l.b16 %v1521
      %v1534 = vpack.c.b16 %v1529, %v1528
      %v1535 = vpack.c.b16 %v1531, %v1530
      %v1536 = vpack.c.b16 %v1533, %v1532
      %v1541 = vsel %vm675, %v1515, 0
      %1543 = vmatprep.subr.bf16.mxu0 0
      %1544 = vmatpush1.bf16.msra.mxu0 %v1534
      %1545 = vmatprep.subr.bf16.mxu0 0
      %1546 = vmatpush1.bf16.msra.mxu0 %v1535
      %1547 = vmatprep.subr.bf16.mxu0 0
      %1548 = vmatpush1.bf16.msra.mxu0 %v1536
      %1549 = vmatprep.subr.bf16.mxu0 0
      %1550 = vmatpush1.bf16.msra.mxu0 0
      %1551 = vmatprep.subr.bf16.mxu0 0
      %1552 = vmatpush1.bf16.msra.mxu0 0
      %1553 = vmatprep.subr.bf16.mxu0 0
      %1554 = vmatpush1.bf16.msra.mxu0 0
      %1555 = vmatprep.subr.bf16.mxu0 0
      %1556 = vmatpush1.bf16.msra.mxu0 0
      %1557 = vmatprep.subr.bf16.mxu0 0
      %1558 = vmatpush1.bf16.msra.mxu0 0
      %1559 = vmatprep.subr.bf16.mxu0 0
      %1560 = vmatpush1.bf16.msra.mxu0 0
      %1561 = vmatprep.subr.bf16.mxu0 0
      %1562 = vmatpush1.bf16.msra.mxu0 0
      %1563 = vmatprep.subr.bf16.mxu0 0
      %1564 = vmatpush1.bf16.msra.mxu0 0
      %1565 = vmatprep.subr.bf16.mxu0 0
      %1566 = vmatpush1.bf16.msra.mxu0 0
      %1567 = vmatprep.subr.bf16.mxu0 0
      %1568 = vmatpush1.bf16.msra.mxu0 0
      %1569 = vmatprep.subr.bf16.mxu0 0
      %1570 = vmatpush1.bf16.msra.mxu0 0
      %1571 = vmatprep.subr.bf16.mxu0 0
      %1572 = vmatpush1.bf16.msra.mxu0 0
      %1573 = vmatprep.subr.bf16.mxu0 0
      %1574 = vmatpush1.bf16.msra.mxu0 0
      %1575 = vmatprep.mubr.bf16.mxu0 0
      %1576 = vmatmul.mubr.bf16.gmra.mrb[0].mxu0 %v1541
      %v1577 = vpop.f32.mrb[0].mxu0
      %v1578 = vadd.f32 0.0, %v1577
      %v1579 = vpop.f32.mrb[0].mxu0
      %v1580 = vpop.f32.mrb[0].mxu0
      %v1581 = vpop.f32.mrb[0].mxu0
      %1582 = vdwg.mxu0
      %v1583 = vadd.f32 %v664, %v1578
      %v1584 = vld [vmem:[%s7] sm:$0x1]
      %v1586 = vlaneseq
      %v1587 = vshrl.u32 %v1586, 7
      %v1588 = vsub.s32 0, %v1587
      %v1589 = vrot.slane %v1584, %v1588
      %v1591 = vadd.f32 %v1583, %v1589
      %v1592 = vld [vmem:[%s8] sm:$0x1]
      %v1593 = vld [vmem:[%s9] sm:$0x1]
      %v1594 = vsel %vm675, %v1591, 0.0
      %1595 = vadd.xlane.f32.xlu0 %v1594
      %v1596 = vpop.xlane.xlu0 %1595
      %v1597 = vmul.f32 %v1596, %v679
      %v1598 = vsub.f32 %v1591, %v1597
      %v1599 = vmul.f32 %v1598, %v1598
      %v1600 = vsel %vm675, %v1599, 0.0
      %1601 = vadd.xlane.f32.xlu0 %v1600
      %v1602 = vpop.xlane.xlu0 %1601
      %v1603 = vmul.f32 %v1602, %v679
      %v1604 = vadd.f32 %v1603, 1e-05
      %v1605 = vrsqrt.pop %v1604
      %v1606 = vmul.f32 %v1598, %v1605
      %v1608 = vlaneseq
      %v1609 = vshrl.u32 %v1608, 7
      %v1610 = vsub.s32 0, %v1609
      %v1611 = vrot.slane %v1592, %v1610
      %v1613 = vmul.f32 %v1606, %v1611
      %v1615 = vlaneseq
      %v1616 = vshrl.u32 %v1615, 7
      %v1617 = vsub.s32 0, %v1616
      %v1618 = vrot.slane %v1593, %v1617
      %v1620 = vadd.f32 %v1613, %v1618
      %v1621 = vpack.c.bf16 %v1620, %v1620
      %v1622 = vld [vmem:[%s10] sm:$0xff]
      %v1623 = vld [vmem:[%s10 + $0x8] sm:$0xff]
      %v1624 = vld [vmem:[%s10 + $0x10] sm:$0xff]
      %v1625 = vld [vmem:[%s10 + $0x18] sm:$0xff]
      %v1626 = vld [vmem:[%s10 + $0x20] sm:$0xff]
      %v1627 = vld [vmem:[%s10 + $0x28] sm:$0xff]
      %v1628 = vld [vmem:[%s11] sm:$0x3]
      %v1630 = vlaneseq
      %v1631 = vshrl.u32 %v1630, 7
      %v1632 = vsub.s32 0, %v1631
      %v1633 = vrot.slane %v1628, %v1632
      %v1634 = vlaneseq
      %v1635 = vshrl.u32 %v1634, 7
      %v1636 = vsub.s32 1, %v1635
      %v1637 = vrot.slane %v1628, %v1636
      %v1646 = vunpack.c.l.b16 %v1622
      %v1647 = vunpack.c.h.b16 %v1622
      %v1648 = vunpack.c.l.b16 %v1623
      %v1649 = vunpack.c.h.b16 %v1623
      %v1650 = vunpack.c.l.b16 %v1624
      %v1651 = vunpack.c.h.b16 %v1624
      %v1652 = vunpack.c.l.b16 %v1625
      %v1653 = vunpack.c.h.b16 %v1625
      %v1654 = vunpack.c.l.b16 %v1626
      %v1655 = vunpack.c.h.b16 %v1626
      %v1656 = vunpack.c.l.b16 %v1627
      %v1657 = vunpack.c.h.b16 %v1627
      %v1658 = vpack.c.b16 %v1648, %v1646
      %v1659 = vpack.c.b16 %v1649, %v1647
      %v1660 = vpack.c.b16 %v1652, %v1650
      %v1661 = vpack.c.b16 %v1653, %v1651
      %v1662 = vpack.c.b16 %v1656, %v1654
      %v1663 = vpack.c.b16 %v1657, %v1655
      %v1671 = vsel %vm675, %v1621, 0
      %1673 = vmatprep.subr.bf16.mxu0 %v1659
      %1674 = vmatpush1.bf16.msra.mxu0 %v1658
      %1675 = vmatprep.subr.bf16.mxu0 %v1661
      %1676 = vmatpush1.bf16.msra.mxu0 %v1660
      %1677 = vmatprep.subr.bf16.mxu0 %v1663
      %1678 = vmatpush1.bf16.msra.mxu0 %v1662
      %1679 = vmatprep.subr.bf16.mxu0 0
      %1680 = vmatpush1.bf16.msra.mxu0 0
      %1681 = vmatprep.subr.bf16.mxu0 0
      %1682 = vmatpush1.bf16.msra.mxu0 0
      %1683 = vmatprep.subr.bf16.mxu0 0
      %1684 = vmatpush1.bf16.msra.mxu0 0
      %1685 = vmatprep.subr.bf16.mxu0 0
      %1686 = vmatpush1.bf16.msra.mxu0 0
      %1687 = vmatprep.subr.bf16.mxu0 0
      %1688 = vmatpush1.bf16.msra.mxu0 0
      %1689 = vmatprep.subr.bf16.mxu0 0
      %1690 = vmatpush1.bf16.msra.mxu0 0
      %1691 = vmatprep.subr.bf16.mxu0 0
      %1692 = vmatpush1.bf16.msra.mxu0 0
      %1693 = vmatprep.subr.bf16.mxu0 0
      %1694 = vmatpush1.bf16.msra.mxu0 0
      %1695 = vmatprep.subr.bf16.mxu0 0
      %1696 = vmatpush1.bf16.msra.mxu0 0
      %1697 = vmatprep.subr.bf16.mxu0 0
      %1698 = vmatpush1.bf16.msra.mxu0 0
      %1699 = vmatprep.subr.bf16.mxu0 0
      %1700 = vmatpush1.bf16.msra.mxu0 0
      %1701 = vmatprep.subr.bf16.mxu0 0
      %1702 = vmatpush1.bf16.msra.mxu0 0
      %1703 = vmatprep.subr.bf16.mxu0 0
      %1704 = vmatpush1.bf16.msra.mxu0 0
      %1705 = vmatprep.mubr.bf16.mxu0 0
      %1706 = vmatmul.mubr.bf16.gmra.mrb[0].mxu0 %v1671
      %v1707 = vpop.f32.mrb[0].mxu0
      %v1708 = vadd.f32 %v1633, %v1707
      %v1709 = vpop.f32.mrb[0].mxu0
      %v1710 = vadd.f32 %v1637, %v1709
      %v1711 = vpop.f32.mrb[0].mxu0
      %v1712 = vpop.f32.mrb[0].mxu0
      %1713 = vdwg.mxu0
      %v1714 = vmax.f32 %v1708, 0.0
      %v1715 = vmax.f32 %v1710, 0.0
      %v1716 = vpack.c.bf16 %v1714, %v1714
      %v1717 = vpack.c.bf16 %v1715, %v1715
      %v1718 = vld [vmem:[%s12] sm:$0xf]
      %v1719 = vld [vmem:[%s12 + $0x4] sm:$0xf]
      %v1720 = vld [vmem:[%s12 + $0x8] sm:$0xf]
      %v1721 = vld [vmem:[%s12 + $0xc] sm:$0xf]
      %v1722 = vld [vmem:[%s12 + $0x10] sm:$0xf]
      %v1723 = vld [vmem:[%s12 + $0x14] sm:$0xf]
      %v1724 = vld [vmem:[%s12 + $0x18] sm:$0xf]
      %v1725 = vld [vmem:[%s12 + $0x1c] sm:$0xf]
      %v1726 = vld [vmem:[%s12 + $0x20] sm:$0xf]
      %v1727 = vld [vmem:[%s12 + $0x24] sm:$0xf]
      %v1728 = vld [vmem:[%s12 + $0x28] sm:$0xf]
      %v1729 = vld [vmem:[%s12 + $0x2c] sm:$0xf]
      %v1730 = vld [vmem:[%s12 + $0x30] sm:$0xf]
      %v1731 = vld [vmem:[%s12 + $0x34] sm:$0xf]
      %v1732 = vld [vmem:[%s12 + $0x38] sm:$0xf]
      %v1733 = vld [vmem:[%s12 + $0x3c] sm:$0xf]
      %v1734 = vld [vmem:[%s12 + $0x40] sm:$0xf]
      %v1735 = vld [vmem:[%s12 + $0x44] sm:$0xf]
      %v1736 = vld [vmem:[%s12 + $0x48] sm:$0xf]
      %v1737 = vld [vmem:[%s12 + $0x4c] sm:$0xf]
      %v1738 = vld [vmem:[%s12 + $0x50] sm:$0xf]
      %v1739 = vld [vmem:[%s12 + $0x54] sm:$0xf]
      %v1740 = vld [vmem:[%s12 + $0x58] sm:$0xf]
      %v1741 = vld [vmem:[%s12 + $0x5c] sm:$0xf]
      %v1766 = vunpack.c.l.b16 %v1718
      %v1767 = vunpack.c.l.b16 %v1719
      %v1768 = vunpack.c.l.b16 %v1720
      %v1769 = vunpack.c.l.b16 %v1721
      %v1770 = vunpack.c.l.b16 %v1722
      %v1771 = vunpack.c.l.b16 %v1723
      %v1772 = vunpack.c.l.b16 %v1724
      %v1773 = vunpack.c.l.b16 %v1725
      %v1774 = vunpack.c.l.b16 %v1726
      %v1775 = vunpack.c.l.b16 %v1727
      %v1776 = vunpack.c.l.b16 %v1728
      %v1777 = vunpack.c.l.b16 %v1729
      %v1778 = vunpack.c.l.b16 %v1730
      %v1779 = vunpack.c.l.b16 %v1731
      %v1780 = vunpack.c.l.b16 %v1732
      %v1781 = vunpack.c.l.b16 %v1733
      %v1782 = vunpack.c.l.b16 %v1734
      %v1783 = vunpack.c.l.b16 %v1735
      %v1784 = vunpack.c.l.b16 %v1736
      %v1785 = vunpack.c.l.b16 %v1737
      %v1786 = vunpack.c.l.b16 %v1738
      %v1787 = vunpack.c.l.b16 %v1739
      %v1788 = vunpack.c.l.b16 %v1740
      %v1789 = vunpack.c.l.b16 %v1741
      %v1790 = vpack.c.b16 %v1767, %v1766
      %v1791 = vpack.c.b16 %v1769, %v1768
      %v1792 = vpack.c.b16 %v1771, %v1770
      %v1793 = vpack.c.b16 %v1773, %v1772
      %v1794 = vpack.c.b16 %v1775, %v1774
      %v1795 = vpack.c.b16 %v1777, %v1776
      %v1796 = vpack.c.b16 %v1779, %v1778
      %v1797 = vpack.c.b16 %v1781, %v1780
      %v1798 = vpack.c.b16 %v1783, %v1782
      %v1799 = vpack.c.b16 %v1785, %v1784
      %v1800 = vpack.c.b16 %v1787, %v1786
      %v1801 = vpack.c.b16 %v1789, %v1788
      %vm1814 = vcmask 523264
      %v1816 = vsel %vm1814, %v1717, 0
      %1818 = vmatprep.subr.bf16.mxu0 0
      %1819 = vmatpush1.bf16.msra.mxu0 %v1790
      %1820 = vmatprep.subr.bf16.mxu0 0
      %1821 = vmatpush1.bf16.msra.mxu0 %v1791
      %1822 = vmatprep.subr.bf16.mxu0 0
      %1823 = vmatpush1.bf16.msra.mxu0 %v1792
      %1824 = vmatprep.subr.bf16.mxu0 0
      %1825 = vmatpush1.bf16.msra.mxu0 %v1793
      %1826 = vmatprep.subr.bf16.mxu0 0
      %1827 = vmatpush1.bf16.msra.mxu0 %v1794
      %1828 = vmatprep.subr.bf16.mxu0 0
      %1829 = vmatpush1.bf16.msra.mxu0 %v1795
      %1830 = vmatprep.subr.bf16.mxu0 0
      %1831 = vmatpush1.bf16.msra.mxu0 %v1796
      %1832 = vmatprep.subr.bf16.mxu0 0
      %1833 = vmatpush1.bf16.msra.mxu0 %v1797
      %1834 = vmatprep.subr.bf16.mxu0 0
      %1835 = vmatpush1.bf16.msra.mxu0 %v1798
      %1836 = vmatprep.subr.bf16.mxu0 0
      %1837 = vmatpush1.bf16.msra.mxu0 %v1799
      %1838 = vmatprep.subr.bf16.mxu0 0
      %1839 = vmatpush1.bf16.msra.mxu0 %v1800
      %1840 = vmatprep.subr.bf16.mxu0 0
      %1841 = vmatpush1.bf16.msra.mxu0 %v1801
      %1842 = vmatprep.subr.bf16.mxu0 0
      %1843 = vmatpush1.bf16.msra.mxu0 0
      %1844 = vmatprep.subr.bf16.mxu0 0
      %1845 = vmatpush1.bf16.msra.mxu0 0
      %1846 = vmatprep.subr.bf16.mxu0 0
      %1847 = vmatpush1.bf16.msra.mxu0 0
      %1848 = vmatprep.subr.bf16.mxu0 0
      %1849 = vmatpush1.bf16.msra.mxu0 0
      %1850 = vmatprep.mubr.bf16.mxu0 %v1816
      %1851 = vmatmul.mubr.bf16.gmra.mrb[0].mxu0 %v1716
      %v1852 = vpop.f32.mrb[0].mxu0
      %v1853 = vadd.f32 0.0, %v1852
      %v1854 = vpop.f32.mrb[0].mxu0
      %v1855 = vpop.f32.mrb[0].mxu0
      %v1856 = vpop.f32.mrb[0].mxu0
      %1857 = vdwg.mxu0
      %v1858 = vadd.f32 %v1591, %v1853
      %v1859 = vld [vmem:[%s13] sm:$0x1]
      %v1861 = vlaneseq
      %v1862 = vshrl.u32 %v1861, 7
      %v1863 = vsub.s32 0, %v1862
      %v1864 = vrot.slane %v1859, %v1863
      %v1866 = vadd.f32 %v1858, %v1864
      %s1867 = scalar_lea.vmem %s3, 1
      %v1868 = vld [vmem:[%s1867] sm:$0x1]
      %s1869 = scalar_lea.vmem %s4, 1
      %v1870 = vld [vmem:[%s1869] sm:$0x1]
      %v1871 = vsel %vm675, %v1866, 0.0
      %1872 = vadd.xlane.f32.xlu0 %v1871
      %v1873 = vpop.xlane.xlu0 %1872
      %v1874 = vmul.f32 %v1873, %v679
      %v1875 = vsub.f32 %v1866, %v1874
      %v1876 = vmul.f32 %v1875, %v1875
      %v1877 = vsel %vm675, %v1876, 0.0
      %1878 = vadd.xlane.f32.xlu0 %v1877
      %v1879 = vpop.xlane.xlu0 %1878
      %v1880 = vmul.f32 %v1879, %v679
      %v1881 = vadd.f32 %v1880, 1e-05
      %v1882 = vrsqrt.pop %v1881
      %v1883 = vmul.f32 %v1875, %v1882
      %v1885 = vlaneseq
      %v1886 = vshrl.u32 %v1885, 7
      %v1887 = vsub.s32 0, %v1886
      %v1888 = vrot.slane %v1868, %v1887
      %v1890 = vmul.f32 %v1883, %v1888
      %v1892 = vlaneseq
      %v1893 = vshrl.u32 %v1892, 7
      %v1894 = vsub.s32 0, %v1893
      %v1895 = vrot.slane %v1870, %v1894
      %v1897 = vadd.f32 %v1890, %v1895
      %v1898 = vpack.c.bf16 %v1897, %v1897
      %s1899 = scalar_lea.vmem %s5, 48
      %v1900 = vld [vmem:[%s1899] sm:$0xff]
      %v1901 = vld [vmem:[%s1899 + $0x8] sm:$0xff]
      %v1902 = vld [vmem:[%s1899 + $0x10] sm:$0xff]
      %v1903 = vld [vmem:[%s1899 + $0x18] sm:$0xff]
      %v1904 = vld [vmem:[%s1899 + $0x20] sm:$0xff]
      %v1905 = vld [vmem:[%s1899 + $0x28] sm:$0xff]
      %v1912 = vunpack.c.l.b16 %v1900
      %v1913 = vunpack.c.h.b16 %v1900
      %v1914 = vunpack.c.l.b16 %v1901
      %v1915 = vunpack.c.h.b16 %v1901
      %v1916 = vunpack.c.l.b16 %v1902
      %v1917 = vunpack.c.h.b16 %v1902
      %v1918 = vunpack.c.l.b16 %v1903
      %v1919 = vunpack.c.h.b16 %v1903
      %v1920 = vunpack.c.l.b16 %v1904
      %v1921 = vunpack.c.h.b16 %v1904
      %v1922 = vunpack.c.l.b16 %v1905
      %v1923 = vunpack.c.h.b16 %v1905
      %v1924 = vpack.c.b16 %v1914, %v1912
      %v1925 = vpack.c.b16 %v1915, %v1913
      %v1926 = vpack.c.b16 %v1918, %v1916
      %v1927 = vpack.c.b16 %v1919, %v1917
      %v1928 = vpack.c.b16 %v1922, %v1920
      %v1929 = vpack.c.b16 %v1923, %v1921
      %v1937 = vsel %vm675, %v1898, 0
      %1939 = vmatprep.subr.bf16.mxu0 %v1925
      %1940 = vmatpush1.bf16.msra.mxu0 %v1924
      %1941 = vmatprep.subr.bf16.mxu0 %v1927
      %1942 = vmatpush1.bf16.msra.mxu0 %v1926
      %1943 = vmatprep.subr.bf16.mxu0 %v1929
      %1944 = vmatpush1.bf16.msra.mxu0 %v1928
      %1945 = vmatprep.subr.bf16.mxu0 0
      %1946 = vmatpush1.bf16.msra.mxu0 0
      %1947 = vmatprep.subr.bf16.mxu0 0
      %1948 = vmatpush1.bf16.msra.mxu0 0
      %1949 = vmatprep.subr.bf16.mxu0 0
      %1950 = vmatpush1.bf16.msra.mxu0 0
      %1951 = vmatprep.subr.bf16.mxu0 0
      %1952 = vmatpush1.bf16.msra.mxu0 0
      %1953 = vmatprep.subr.bf16.mxu0 0
      %1954 = vmatpush1.bf16.msra.mxu0 0
      %1955 = vmatprep.subr.bf16.mxu0 0
      %1956 = vmatpush1.bf16.msra.mxu0 0
      %1957 = vmatprep.subr.bf16.mxu0 0
      %1958 = vmatpush1.bf16.msra.mxu0 0
      %1959 = vmatprep.subr.bf16.mxu0 0
      %1960 = vmatpush1.bf16.msra.mxu0 0
      %1961 = vmatprep.subr.bf16.mxu0 0
      %1962 = vmatpush1.bf16.msra.mxu0 0
      %1963 = vmatprep.subr.bf16.mxu0 0
      %1964 = vmatpush1.bf16.msra.mxu0 0
      %1965 = vmatprep.subr.bf16.mxu0 0
      %1966 = vmatpush1.bf16.msra.mxu0 0
      %1967 = vmatprep.subr.bf16.mxu0 0
      %1968 = vmatpush1.bf16.msra.mxu0 0
      %1969 = vmatprep.subr.bf16.mxu0 0
      %1970 = vmatpush1.bf16.msra.mxu0 0
      %1971 = vmatprep.mubr.bf16.mxu0 0
      %1972 = vmatmul.mubr.bf16.gmra.mrb[0].mxu0 %v1937
      %v1973 = vpop.f32.mrb[0].mxu0
      %v1974 = vadd.f32 0.0, %v1973
      %v1975 = vpop.f32.mrb[0].mxu0
      %v1976 = vadd.f32 0.0, %v1975
      %v1977 = vpop.f32.mrb[0].mxu0
      %v1978 = vpop.f32.mrb[0].mxu0
      %1979 = vdwg.mxu0
      %1981 = vrot.lane.b32.xlu0 %v1974, 120
      %v1982 = vpop.permute.xlu0 %1981
      %1984 = vrot.lane.b32.xlu0 %v1974, 112
      %v1985 = vpop.permute.xlu0 %1984
      %1987 = vrot.lane.b32.xlu0 %v1974, 104
      %v1988 = vpop.permute.xlu0 %1987
      %1990 = vrot.lane.b32.xlu0 %v1974, 96
      %v1991 = vpop.permute.xlu0 %1990
      %1993 = vrot.lane.b32.xlu0 %v1974, 88
      %v1994 = vpop.permute.xlu0 %1993
      %v1996 = vpack.c.bf16 %v1974, %v1974
      %v1997 = vpack.c.bf16 %v1982, %v1982
      %v1998 = vpack.c.bf16 %v1985, %v1985
      %v1999 = vpack.c.bf16 %v1988, %v1988
      %v2000 = vpack.c.bf16 %v1991, %v1991
      %v2001 = vpack.c.bf16 %v1994, %v1994
      %2003 = vrot.lane.b32.xlu0 %v1976, 96
      %v2004 = vpop.permute.xlu0 %2003
      %2006 = vrot.lane.b32.xlu0 %v1976, 88
      %v2007 = vpop.permute.xlu0 %2006
      %v2009 = vpack.c.bf16 %v2004, %v2004
      %v2010 = vpack.c.bf16 %v2007, %v2007
      %2012 = vrot.lane.b32.xlu0 %v1996, 80
      %v2013 = vpop.permute.xlu0 %2012
      %v2015 = vsel %vm819, %v1996, 0
      %v2018 = vsel %vm819, %v2013, 0
      %2020 = vmatprep.subr.bf16.mxu0 0
      %2021 = vmatpush1.bf16.xpose.msra.mxu0 %v2018
      %2022 = vmatprep.subr.bf16.mxu0 0
      %2023 = vmatpush1.bf16.xpose.msra.mxu0 0
      %2024 = vmatprep.subr.bf16.mxu0 0
      %2025 = vmatpush1.bf16.xpose.msra.mxu0 0
      %2026 = vmatprep.subr.bf16.mxu0 0
      %2027 = vmatpush1.bf16.xpose.msra.mxu0 0
      %2028 = vmatprep.subr.bf16.mxu0 0
      %2029 = vmatpush1.bf16.xpose.msra.mxu0 0
      %2030 = vmatprep.subr.bf16.mxu0 0
      %2031 = vmatpush1.bf16.xpose.msra.mxu0 0
      %2032 = vmatprep.subr.bf16.mxu0 0
      %2033 = vmatpush1.bf16.xpose.msra.mxu0 0
      %2034 = vmatprep.subr.bf16.mxu0 0
      %2035 = vmatpush1.bf16.xpose.msra.mxu0 0
      %2036 = vmatprep.subr.bf16.mxu0 0
      %2037 = vmatpush1.bf16.xpose.msra.mxu0 0
      %2038 = vmatprep.subr.bf16.mxu0 0
      %2039 = vmatpush1.bf16.xpose.msra.mxu0 0
      %2040 = vmatprep.subr.bf16.mxu0 0
      %2041 = vmatpush1.bf16.xpose.msra.mxu0 0
      %2042 = vmatprep.subr.bf16.mxu0 0
      %2043 = vmatpush1.bf16.xpose.msra.mxu0 0
      %2044 = vmatprep.subr.bf16.mxu0 0
      %2045 = vmatpush1.bf16.xpose.msra.mxu0 0
      %2046 = vmatprep.subr.bf16.mxu0 0
      %2047 = vmatpush1.bf16.xpose.msra.mxu0 0
      %2048 = vmatprep.subr.bf16.mxu0 0
      %2049 = vmatpush1.bf16.xpose.msra.mxu0 0
      %2050 = vmatprep.subr.bf16.mxu0 0
      %2051 = vmatpush1.bf16.xpose.msra.mxu0 0
      %2052 = vmatprep.mubr.bf16.mxu0 0
      %2053 = vmatmul.mubr.bf16.gmra.mrb[0].mxu0 %v2015
      %v2054 = vpop.f32.mrb[0].mxu0
      %v2055 = vadd.f32 0.0, %v2054
      %v2056 = vpop.f32.mrb[0].mxu0
      %v2057 = vpop.f32.mrb[0].mxu0
      %v2058 = vpop.f32.mrb[0].mxu0
      %2059 = vdwg.mxu0
      %2061 = vrot.lane.b32.xlu0 %v1997, 80
      %v2062 = vpop.permute.xlu0 %2061
      %v2064 = vsel %vm819, %v1997, 0
      %v2067 = vsel %vm819, %v2062, 0
      %2069 = vmatprep.subr.bf16.mxu0 0
      %2070 = vmatpush1.bf16.xpose.msra.mxu0 %v2067
      %2071 = vmatprep.subr.bf16.mxu0 0
      %2072 = vmatpush1.bf16.xpose.msra.mxu0 0
      %2073 = vmatprep.subr.bf16.mxu0 0
      %2074 = vmatpush1.bf16.xpose.msra.mxu0 0
      %2075 = vmatprep.subr.bf16.mxu0 0
      %2076 = vmatpush1.bf16.xpose.msra.mxu0 0
      %2077 = vmatprep.subr.bf16.mxu0 0
      %2078 = vmatpush1.bf16.xpose.msra.mxu0 0
      %2079 = vmatprep.subr.bf16.mxu0 0
      %2080 = vmatpush1.bf16.xpose.msra.mxu0 0
      %2081 = vmatprep.subr.bf16.mxu0 0
      %2082 = vmatpush1.bf16.xpose.msra.mxu0 0
      %2083 = vmatprep.subr.bf16.mxu0 0
      %2084 = vmatpush1.bf16.xpose.msra.mxu0 0
      %2085 = vmatprep.subr.bf16.mxu0 0
      %2086 = vmatpush1.bf16.xpose.msra.mxu0 0
      %2087 = vmatprep.subr.bf16.mxu0 0
      %2088 = vmatpush1.bf16.xpose.msra.mxu0 0
      %2089 = vmatprep.subr.bf16.mxu0 0
      %2090 = vmatpush1.bf16.xpose.msra.mxu0 0
      %2091 = vmatprep.subr.bf16.mxu0 0
      %2092 = vmatpush1.bf16.xpose.msra.mxu0 0
      %2093 = vmatprep.subr.bf16.mxu0 0
      %2094 = vmatpush1.bf16.xpose.msra.mxu0 0
      %2095 = vmatprep.subr.bf16.mxu0 0
      %2096 = vmatpush1.bf16.xpose.msra.mxu0 0
      %2097 = vmatprep.subr.bf16.mxu0 0
      %2098 = vmatpush1.bf16.xpose.msra.mxu0 0
      %2099 = vmatprep.subr.bf16.mxu0 0
      %2100 = vmatpush1.bf16.xpose.msra.mxu0 0
      %2101 = vmatprep.mubr.bf16.mxu0 0
      %2102 = vmatmul.mubr.bf16.gmra.mrb[0].mxu0 %v2064
      %v2103 = vpop.f32.mrb[0].mxu0
      %v2104 = vadd.f32 0.0, %v2103
      %v2105 = vpop.f32.mrb[0].mxu0
      %v2106 = vpop.f32.mrb[0].mxu0
      %v2107 = vpop.f32.mrb[0].mxu0
      %2108 = vdwg.mxu0
      %2110 = vrot.lane.b32.xlu0 %v1998, 80
      %v2111 = vpop.permute.xlu0 %2110
      %v2113 = vsel %vm819, %v1998, 0
      %v2116 = vsel %vm819, %v2111, 0
      %2118 = vmatprep.subr.bf16.mxu0 0
      %2119 = vmatpush1.bf16.xpose.msra.mxu0 %v2116
      %2120 = vmatprep.subr.bf16.mxu0 0
      %2121 = vmatpush1.bf16.xpose.msra.mxu0 0
      %2122 = vmatprep.subr.bf16.mxu0 0
      %2123 = vmatpush1.bf16.xpose.msra.mxu0 0
      %2124 = vmatprep.subr.bf16.mxu0 0
      %2125 = vmatpush1.bf16.xpose.msra.mxu0 0
      %2126 = vmatprep.subr.bf16.mxu0 0
      %2127 = vmatpush1.bf16.xpose.msra.mxu0 0
      %2128 = vmatprep.subr.bf16.mxu0 0
      %2129 = vmatpush1.bf16.xpose.msra.mxu0 0
      %2130 = vmatprep.subr.bf16.mxu0 0
      %2131 = vmatpush1.bf16.xpose.msra.mxu0 0
      %2132 = vmatprep.subr.bf16.mxu0 0
      %2133 = vmatpush1.bf16.xpose.msra.mxu0 0
      %2134 = vmatprep.subr.bf16.mxu0 0
      %2135 = vmatpush1.bf16.xpose.msra.mxu0 0
      %2136 = vmatprep.subr.bf16.mxu0 0
      %2137 = vmatpush1.bf16.xpose.msra.mxu0 0
      %2138 = vmatprep.subr.bf16.mxu0 0
      %2139 = vmatpush1.bf16.xpose.msra.mxu0 0
      %2140 = vmatprep.subr.bf16.mxu0 0
      %2141 = vmatpush1.bf16.xpose.msra.mxu0 0
      %2142 = vmatprep.subr.bf16.mxu0 0
      %2143 = vmatpush1.bf16.xpose.msra.mxu0 0
      %2144 = vmatprep.subr.bf16.mxu0 0
      %2145 = vmatpush1.bf16.xpose.msra.mxu0 0
      %2146 = vmatprep.subr.bf16.mxu0 0
      %2147 = vmatpush1.bf16.xpose.msra.mxu0 0
      %2148 = vmatprep.subr.bf16.mxu0 0
      %2149 = vmatpush1.bf16.xpose.msra.mxu0 0
      %2150 = vmatprep.mubr.bf16.mxu0 0
      %2151 = vmatmul.mubr.bf16.gmra.mrb[0].mxu0 %v2113
      %v2152 = vpop.f32.mrb[0].mxu0
      %v2153 = vadd.f32 0.0, %v2152
      %v2154 = vpop.f32.mrb[0].mxu0
      %v2155 = vpop.f32.mrb[0].mxu0
      %v2156 = vpop.f32.mrb[0].mxu0
      %2157 = vdwg.mxu0
      %2159 = vrot.lane.b32.xlu0 %v1999, 80
      %v2160 = vpop.permute.xlu0 %2159
      %v2162 = vsel %vm819, %v1999, 0
      %v2165 = vsel %vm819, %v2160, 0
      %2167 = vmatprep.subr.bf16.mxu0 0
      %2168 = vmatpush1.bf16.xpose.msra.mxu0 %v2165
      %2169 = vmatprep.subr.bf16.mxu0 0
      %2170 = vmatpush1.bf16.xpose.msra.mxu0 0
      %2171 = vmatprep.subr.bf16.mxu0 0
      %2172 = vmatpush1.bf16.xpose.msra.mxu0 0
      %2173 = vmatprep.subr.bf16.mxu0 0
      %2174 = vmatpush1.bf16.xpose.msra.mxu0 0
      %2175 = vmatprep.subr.bf16.mxu0 0
      %2176 = vmatpush1.bf16.xpose.msra.mxu0 0
      %2177 = vmatprep.subr.bf16.mxu0 0
      %2178 = vmatpush1.bf16.xpose.msra.mxu0 0
      %2179 = vmatprep.subr.bf16.mxu0 0
      %2180 = vmatpush1.bf16.xpose.msra.mxu0 0
      %2181 = vmatprep.subr.bf16.mxu0 0
      %2182 = vmatpush1.bf16.xpose.msra.mxu0 0
      %2183 = vmatprep.subr.bf16.mxu0 0
      %2184 = vmatpush1.bf16.xpose.msra.mxu0 0
      %2185 = vmatprep.subr.bf16.mxu0 0
      %2186 = vmatpush1.bf16.xpose.msra.mxu0 0
      %2187 = vmatprep.subr.bf16.mxu0 0
      %2188 = vmatpush1.bf16.xpose.msra.mxu0 0
      %2189 = vmatprep.subr.bf16.mxu0 0
      %2190 = vmatpush1.bf16.xpose.msra.mxu0 0
      %2191 = vmatprep.subr.bf16.mxu0 0
      %2192 = vmatpush1.bf16.xpose.msra.mxu0 0
      %2193 = vmatprep.subr.bf16.mxu0 0
      %2194 = vmatpush1.bf16.xpose.msra.mxu0 0
      %2195 = vmatprep.subr.bf16.mxu0 0
      %2196 = vmatpush1.bf16.xpose.msra.mxu0 0
      %2197 = vmatprep.subr.bf16.mxu0 0
      %2198 = vmatpush1.bf16.xpose.msra.mxu0 0
      %2199 = vmatprep.mubr.bf16.mxu0 0
      %2200 = vmatmul.mubr.bf16.gmra.mrb[0].mxu0 %v2162
      %v2201 = vpop.f32.mrb[0].mxu0
      %v2202 = vadd.f32 0.0, %v2201
      %v2203 = vpop.f32.mrb[0].mxu0
      %v2204 = vpop.f32.mrb[0].mxu0
      %v2205 = vpop.f32.mrb[0].mxu0
      %2206 = vdwg.mxu0
      %2208 = vrot.lane.b32.xlu0 %v2000, 80
      %v2209 = vpop.permute.xlu0 %2208
      %v2211 = vsel %vm819, %v2000, 0
      %v2214 = vsel %vm819, %v2209, 0
      %2216 = vmatprep.subr.bf16.mxu0 0
      %2217 = vmatpush1.bf16.xpose.msra.mxu0 %v2214
      %2218 = vmatprep.subr.bf16.mxu0 0
      %2219 = vmatpush1.bf16.xpose.msra.mxu0 0
      %2220 = vmatprep.subr.bf16.mxu0 0
      %2221 = vmatpush1.bf16.xpose.msra.mxu0 0
      %2222 = vmatprep.subr.bf16.mxu0 0
      %2223 = vmatpush1.bf16.xpose.msra.mxu0 0
      %2224 = vmatprep.subr.bf16.mxu0 0
      %2225 = vmatpush1.bf16.xpose.msra.mxu0 0
      %2226 = vmatprep.subr.bf16.mxu0 0
      %2227 = vmatpush1.bf16.xpose.msra.mxu0 0
      %2228 = vmatprep.subr.bf16.mxu0 0
      %2229 = vmatpush1.bf16.xpose.msra.mxu0 0
      %2230 = vmatprep.subr.bf16.mxu0 0
      %2231 = vmatpush1.bf16.xpose.msra.mxu0 0
      %2232 = vmatprep.subr.bf16.mxu0 0
      %2233 = vmatpush1.bf16.xpose.msra.mxu0 0
      %2234 = vmatprep.subr.bf16.mxu0 0
      %2235 = vmatpush1.bf16.xpose.msra.mxu0 0
      %2236 = vmatprep.subr.bf16.mxu0 0
      %2237 = vmatpush1.bf16.xpose.msra.mxu0 0
      %2238 = vmatprep.subr.bf16.mxu0 0
      %2239 = vmatpush1.bf16.xpose.msra.mxu0 0
      %2240 = vmatprep.subr.bf16.mxu0 0
      %2241 = vmatpush1.bf16.xpose.msra.mxu0 0
      %2242 = vmatprep.subr.bf16.mxu0 0
      %2243 = vmatpush1.bf16.xpose.msra.mxu0 0
      %2244 = vmatprep.subr.bf16.mxu0 0
      %2245 = vmatpush1.bf16.xpose.msra.mxu0 0
      %2246 = vmatprep.subr.bf16.mxu0 0
      %2247 = vmatpush1.bf16.xpose.msra.mxu0 0
      %2248 = vmatprep.mubr.bf16.mxu0 0
      %2249 = vmatmul.mubr.bf16.gmra.mrb[0].mxu0 %v2211
      %v2250 = vpop.f32.mrb[0].mxu0
      %v2251 = vadd.f32 0.0, %v2250
      %v2252 = vpop.f32.mrb[0].mxu0
      %v2253 = vpop.f32.mrb[0].mxu0
      %v2254 = vpop.f32.mrb[0].mxu0
      %2255 = vdwg.mxu0
      %2257 = vrot.lane.b32.xlu0 %v2001, 80
      %v2258 = vpop.permute.xlu0 %2257
      %v2260 = vsel %vm819, %v2001, 0
      %v2263 = vsel %vm819, %v2258, 0
      %2265 = vmatprep.subr.bf16.mxu0 0
      %2266 = vmatpush1.bf16.xpose.msra.mxu0 %v2263
      %2267 = vmatprep.subr.bf16.mxu0 0
      %2268 = vmatpush1.bf16.xpose.msra.mxu0 0
      %2269 = vmatprep.subr.bf16.mxu0 0
      %2270 = vmatpush1.bf16.xpose.msra.mxu0 0
      %2271 = vmatprep.subr.bf16.mxu0 0
      %2272 = vmatpush1.bf16.xpose.msra.mxu0 0
      %2273 = vmatprep.subr.bf16.mxu0 0
      %2274 = vmatpush1.bf16.xpose.msra.mxu0 0
      %2275 = vmatprep.subr.bf16.mxu0 0
      %2276 = vmatpush1.bf16.xpose.msra.mxu0 0
      %2277 = vmatprep.subr.bf16.mxu0 0
      %2278 = vmatpush1.bf16.xpose.msra.mxu0 0
      %2279 = vmatprep.subr.bf16.mxu0 0
      %2280 = vmatpush1.bf16.xpose.msra.mxu0 0
      %2281 = vmatprep.subr.bf16.mxu0 0
      %2282 = vmatpush1.bf16.xpose.msra.mxu0 0
      %2283 = vmatprep.subr.bf16.mxu0 0
      %2284 = vmatpush1.bf16.xpose.msra.mxu0 0
      %2285 = vmatprep.subr.bf16.mxu0 0
      %2286 = vmatpush1.bf16.xpose.msra.mxu0 0
      %2287 = vmatprep.subr.bf16.mxu0 0
      %2288 = vmatpush1.bf16.xpose.msra.mxu0 0
      %2289 = vmatprep.subr.bf16.mxu0 0
      %2290 = vmatpush1.bf16.xpose.msra.mxu0 0
      %2291 = vmatprep.subr.bf16.mxu0 0
      %2292 = vmatpush1.bf16.xpose.msra.mxu0 0
      %2293 = vmatprep.subr.bf16.mxu0 0
      %2294 = vmatpush1.bf16.xpose.msra.mxu0 0
      %2295 = vmatprep.subr.bf16.mxu0 0
      %2296 = vmatpush1.bf16.xpose.msra.mxu0 0
      %2297 = vmatprep.mubr.bf16.mxu0 0
      %2298 = vmatmul.mubr.bf16.gmra.mrb[0].mxu0 %v2260
      %v2299 = vpop.f32.mrb[0].mxu0
      %v2300 = vadd.f32 0.0, %v2299
      %v2301 = vpop.f32.mrb[0].mxu0
      %v2302 = vpop.f32.mrb[0].mxu0
      %v2303 = vpop.f32.mrb[0].mxu0
      %2304 = vdwg.mxu0
      %v2305 = vmul.f32 %v2055, 0.35355338
      %v2306 = vmul.f32 %v2104, 0.35355338
      %v2307 = vmul.f32 %v2153, 0.35355338
      %v2308 = vmul.f32 %v2202, 0.35355338
      %v2309 = vmul.f32 %v2251, 0.35355338
      %v2310 = vmul.f32 %v2300, 0.35355338
      %v2311 = vadd.f32 %v2305, %v672
      %v2312 = vadd.f32 %v2306, %v672
      %v2313 = vadd.f32 %v2307, %v672
      %v2314 = vadd.f32 %v2308, %v672
      %v2315 = vadd.f32 %v2309, %v672
      %v2316 = vadd.f32 %v2310, %v672
      %v2317 = vsel %vm819, %v2311, -inf
      %2318 = vmax.xlane.f32.xlu0 %v2317
      %v2319 = vpop.xlane.xlu0 %2318
      %v2320 = vsel %vm819, %v2312, -inf
      %2321 = vmax.xlane.f32.xlu0 %v2320
      %v2322 = vpop.xlane.xlu0 %2321
      %v2323 = vsel %vm819, %v2313, -inf
      %2324 = vmax.xlane.f32.xlu0 %v2323
      %v2325 = vpop.xlane.xlu0 %2324
      %v2326 = vsel %vm819, %v2314, -inf
      %2327 = vmax.xlane.f32.xlu0 %v2326
      %v2328 = vpop.xlane.xlu0 %2327
      %v2329 = vsel %vm819, %v2315, -inf
      %2330 = vmax.xlane.f32.xlu0 %v2329
      %v2331 = vpop.xlane.xlu0 %2330
      %v2332 = vsel %vm819, %v2316, -inf
      %2333 = vmax.xlane.f32.xlu0 %v2332
      %v2334 = vpop.xlane.xlu0 %2333
      %v2335 = vsub.f32 %v2311, %v2319
      %v2336 = vsub.f32 %v2312, %v2322
      %v2337 = vsub.f32 %v2313, %v2325
      %v2338 = vsub.f32 %v2314, %v2328
      %v2339 = vsub.f32 %v2315, %v2331
      %v2340 = vsub.f32 %v2316, %v2334
      %v2341 = vmul.f32 %v2335, 1.442695
      %v2342 = vpow.pop %v2341
      %v2343 = vmul.f32 %v2336, 1.442695
      %v2344 = vpow.pop %v2343
      %v2345 = vmul.f32 %v2337, 1.442695
      %v2346 = vpow.pop %v2345
      %v2347 = vmul.f32 %v2338, 1.442695
      %v2348 = vpow.pop %v2347
      %v2349 = vmul.f32 %v2339, 1.442695
      %v2350 = vpow.pop %v2349
      %v2351 = vmul.f32 %v2340, 1.442695
      %v2352 = vpow.pop %v2351
      %v2353 = vsel %vm819, %v2342, 0.0
      %2354 = vadd.xlane.f32.xlu0 %v2353
      %v2355 = vpop.xlane.xlu0 %2354
      %v2356 = vsel %vm819, %v2344, 0.0
      %2357 = vadd.xlane.f32.xlu0 %v2356
      %v2358 = vpop.xlane.xlu0 %2357
      %v2359 = vsel %vm819, %v2346, 0.0
      %2360 = vadd.xlane.f32.xlu0 %v2359
      %v2361 = vpop.xlane.xlu0 %2360
      %v2362 = vsel %vm819, %v2348, 0.0
      %2363 = vadd.xlane.f32.xlu0 %v2362
      %v2364 = vpop.xlane.xlu0 %2363
      %v2365 = vsel %vm819, %v2350, 0.0
      %2366 = vadd.xlane.f32.xlu0 %v2365
      %v2367 = vpop.xlane.xlu0 %2366
      %v2368 = vsel %vm819, %v2352, 0.0
      %2369 = vadd.xlane.f32.xlu0 %v2368
      %v2370 = vpop.xlane.xlu0 %2369
      %v2371 = vrcp.pop %v2355
      %v2372 = vrcp.pop %v2358
      %v2373 = vrcp.pop %v2361
      %v2374 = vrcp.pop %v2364
      %v2375 = vrcp.pop %v2367
      %v2376 = vrcp.pop %v2370
      %v2377 = vmul.f32 %v2342, %v2371
      %v2378 = vmul.f32 %v2344, %v2372
      %v2379 = vmul.f32 %v2346, %v2373
      %v2380 = vmul.f32 %v2348, %v2374
      %v2381 = vmul.f32 %v2350, %v2375
      %v2382 = vmul.f32 %v2352, %v2376
      %v2383 = vpack.c.bf16 %v2377, %v2377
      %v2384 = vpack.c.bf16 %v2378, %v2378
      %v2385 = vpack.c.bf16 %v2379, %v2379
      %v2386 = vpack.c.bf16 %v2380, %v2380
      %v2387 = vpack.c.bf16 %v2381, %v2381
      %v2388 = vpack.c.bf16 %v2382, %v2382
      %2389 = vrot.lane.b32.xlu0 %v1996, 32
      %v2390 = vpop.permute.xlu0 %2389
      %v2392 = vsel %vm819, %v2383, 0
      %v2395 = vsel %vm1200, %v2390, 0
      %2397 = vmatprep.subr.bf16.mxu0 0
      %2398 = vmatpush1.bf16.msra.mxu0 %v2395
      %2399 = vmatprep.subr.bf16.mxu0 0
      %2400 = vmatpush1.bf16.msra.mxu0 0
      %2401 = vmatprep.subr.bf16.mxu0 0
      %2402 = vmatpush1.bf16.msra.mxu0 0
      %2403 = vmatprep.subr.bf16.mxu0 0
      %2404 = vmatpush1.bf16.msra.mxu0 0
      %2405 = vmatprep.subr.bf16.mxu0 0
      %2406 = vmatpush1.bf16.msra.mxu0 0
      %2407 = vmatprep.subr.bf16.mxu0 0
      %2408 = vmatpush1.bf16.msra.mxu0 0
      %2409 = vmatprep.subr.bf16.mxu0 0
      %2410 = vmatpush1.bf16.msra.mxu0 0
      %2411 = vmatprep.subr.bf16.mxu0 0
      %2412 = vmatpush1.bf16.msra.mxu0 0
      %2413 = vmatprep.subr.bf16.mxu0 0
      %2414 = vmatpush1.bf16.msra.mxu0 0
      %2415 = vmatprep.subr.bf16.mxu0 0
      %2416 = vmatpush1.bf16.msra.mxu0 0
      %2417 = vmatprep.subr.bf16.mxu0 0
      %2418 = vmatpush1.bf16.msra.mxu0 0
      %2419 = vmatprep.subr.bf16.mxu0 0
      %2420 = vmatpush1.bf16.msra.mxu0 0
      %2421 = vmatprep.subr.bf16.mxu0 0
      %2422 = vmatpush1.bf16.msra.mxu0 0
      %2423 = vmatprep.subr.bf16.mxu0 0
      %2424 = vmatpush1.bf16.msra.mxu0 0
      %2425 = vmatprep.subr.bf16.mxu0 0
      %2426 = vmatpush1.bf16.msra.mxu0 0
      %2427 = vmatprep.subr.bf16.mxu0 0
      %2428 = vmatpush1.bf16.msra.mxu0 0
      %2429 = vmatprep.mubr.bf16.mxu0 0
      %2430 = vmatmul.mubr.bf16.gmra.mrb[0].mxu0 %v2392
      %v2431 = vpop.f32.mrb[0].mxu0
      %v2432 = vadd.f32 0.0, %v2431
      %v2433 = vpop.f32.mrb[0].mxu0
      %v2434 = vpop.f32.mrb[0].mxu0
      %v2435 = vpop.f32.mrb[0].mxu0
      %2436 = vdwg.mxu0
      %2437 = vrot.lane.b32.xlu0 %v1997, 32
      %v2438 = vpop.permute.xlu0 %2437
      %v2440 = vsel %vm819, %v2384, 0
      %v2443 = vsel %vm1200, %v2438, 0
      %2445 = vmatprep.subr.bf16.mxu0 0
      %2446 = vmatpush1.bf16.msra.mxu0 %v2443
      %2447 = vmatprep.subr.bf16.mxu0 0
      %2448 = vmatpush1.bf16.msra.mxu0 0
      %2449 = vmatprep.subr.bf16.mxu0 0
      %2450 = vmatpush1.bf16.msra.mxu0 0
      %2451 = vmatprep.subr.bf16.mxu0 0
      %2452 = vmatpush1.bf16.msra.mxu0 0
      %2453 = vmatprep.subr.bf16.mxu0 0
      %2454 = vmatpush1.bf16.msra.mxu0 0
      %2455 = vmatprep.subr.bf16.mxu0 0
      %2456 = vmatpush1.bf16.msra.mxu0 0
      %2457 = vmatprep.subr.bf16.mxu0 0
      %2458 = vmatpush1.bf16.msra.mxu0 0
      %2459 = vmatprep.subr.bf16.mxu0 0
      %2460 = vmatpush1.bf16.msra.mxu0 0
      %2461 = vmatprep.subr.bf16.mxu0 0
      %2462 = vmatpush1.bf16.msra.mxu0 0
      %2463 = vmatprep.subr.bf16.mxu0 0
      %2464 = vmatpush1.bf16.msra.mxu0 0
      %2465 = vmatprep.subr.bf16.mxu0 0
      %2466 = vmatpush1.bf16.msra.mxu0 0
      %2467 = vmatprep.subr.bf16.mxu0 0
      %2468 = vmatpush1.bf16.msra.mxu0 0
      %2469 = vmatprep.subr.bf16.mxu0 0
      %2470 = vmatpush1.bf16.msra.mxu0 0
      %2471 = vmatprep.subr.bf16.mxu0 0
      %2472 = vmatpush1.bf16.msra.mxu0 0
      %2473 = vmatprep.subr.bf16.mxu0 0
      %2474 = vmatpush1.bf16.msra.mxu0 0
      %2475 = vmatprep.subr.bf16.mxu0 0
      %2476 = vmatpush1.bf16.msra.mxu0 0
      %2477 = vmatprep.mubr.bf16.mxu0 0
      %2478 = vmatmul.mubr.bf16.gmra.mrb[0].mxu0 %v2440
      %v2479 = vpop.f32.mrb[0].mxu0
      %v2480 = vadd.f32 0.0, %v2479
      %v2481 = vpop.f32.mrb[0].mxu0
      %v2482 = vpop.f32.mrb[0].mxu0
      %v2483 = vpop.f32.mrb[0].mxu0
      %2484 = vdwg.mxu0
      %2485 = vrot.lane.b32.xlu0 %v1998, 32
      %v2486 = vpop.permute.xlu0 %2485
      %v2488 = vsel %vm819, %v2385, 0
      %v2491 = vsel %vm1200, %v2486, 0
      %2493 = vmatprep.subr.bf16.mxu0 0
      %2494 = vmatpush1.bf16.msra.mxu0 %v2491
      %2495 = vmatprep.subr.bf16.mxu0 0
      %2496 = vmatpush1.bf16.msra.mxu0 0
      %2497 = vmatprep.subr.bf16.mxu0 0
      %2498 = vmatpush1.bf16.msra.mxu0 0
      %2499 = vmatprep.subr.bf16.mxu0 0
      %2500 = vmatpush1.bf16.msra.mxu0 0
      %2501 = vmatprep.subr.bf16.mxu0 0
      %2502 = vmatpush1.bf16.msra.mxu0 0
      %2503 = vmatprep.subr.bf16.mxu0 0
      %2504 = vmatpush1.bf16.msra.mxu0 0
      %2505 = vmatprep.subr.bf16.mxu0 0
      %2506 = vmatpush1.bf16.msra.mxu0 0
      %2507 = vmatprep.subr.bf16.mxu0 0
      %2508 = vmatpush1.bf16.msra.mxu0 0
      %2509 = vmatprep.subr.bf16.mxu0 0
      %2510 = vmatpush1.bf16.msra.mxu0 0
      %2511 = vmatprep.subr.bf16.mxu0 0
      %2512 = vmatpush1.bf16.msra.mxu0 0
      %2513 = vmatprep.subr.bf16.mxu0 0
      %2514 = vmatpush1.bf16.msra.mxu0 0
      %2515 = vmatprep.subr.bf16.mxu0 0
      %2516 = vmatpush1.bf16.msra.mxu0 0
      %2517 = vmatprep.subr.bf16.mxu0 0
      %2518 = vmatpush1.bf16.msra.mxu0 0
      %2519 = vmatprep.subr.bf16.mxu0 0
      %2520 = vmatpush1.bf16.msra.mxu0 0
      %2521 = vmatprep.subr.bf16.mxu0 0
      %2522 = vmatpush1.bf16.msra.mxu0 0
      %2523 = vmatprep.subr.bf16.mxu0 0
      %2524 = vmatpush1.bf16.msra.mxu0 0
      %2525 = vmatprep.mubr.bf16.mxu0 0
      %2526 = vmatmul.mubr.bf16.gmra.mrb[0].mxu0 %v2488
      %v2527 = vpop.f32.mrb[0].mxu0
      %v2528 = vadd.f32 0.0, %v2527
      %v2529 = vpop.f32.mrb[0].mxu0
      %v2530 = vpop.f32.mrb[0].mxu0
      %v2531 = vpop.f32.mrb[0].mxu0
      %2532 = vdwg.mxu0
      %2533 = vrot.lane.b32.xlu0 %v1999, 32
      %v2534 = vpop.permute.xlu0 %2533
      %v2536 = vsel %vm819, %v2386, 0
      %v2539 = vsel %vm1200, %v2534, 0
      %2541 = vmatprep.subr.bf16.mxu0 0
      %2542 = vmatpush1.bf16.msra.mxu0 %v2539
      %2543 = vmatprep.subr.bf16.mxu0 0
      %2544 = vmatpush1.bf16.msra.mxu0 0
      %2545 = vmatprep.subr.bf16.mxu0 0
      %2546 = vmatpush1.bf16.msra.mxu0 0
      %2547 = vmatprep.subr.bf16.mxu0 0
      %2548 = vmatpush1.bf16.msra.mxu0 0
      %2549 = vmatprep.subr.bf16.mxu0 0
      %2550 = vmatpush1.bf16.msra.mxu0 0
      %2551 = vmatprep.subr.bf16.mxu0 0
      %2552 = vmatpush1.bf16.msra.mxu0 0
      %2553 = vmatprep.subr.bf16.mxu0 0
      %2554 = vmatpush1.bf16.msra.mxu0 0
      %2555 = vmatprep.subr.bf16.mxu0 0
      %2556 = vmatpush1.bf16.msra.mxu0 0
      %2557 = vmatprep.subr.bf16.mxu0 0
      %2558 = vmatpush1.bf16.msra.mxu0 0
      %2559 = vmatprep.subr.bf16.mxu0 0
      %2560 = vmatpush1.bf16.msra.mxu0 0
      %2561 = vmatprep.subr.bf16.mxu0 0
      %2562 = vmatpush1.bf16.msra.mxu0 0
      %2563 = vmatprep.subr.bf16.mxu0 0
      %2564 = vmatpush1.bf16.msra.mxu0 0
      %2565 = vmatprep.subr.bf16.mxu0 0
      %2566 = vmatpush1.bf16.msra.mxu0 0
      %2567 = vmatprep.subr.bf16.mxu0 0
      %2568 = vmatpush1.bf16.msra.mxu0 0
      %2569 = vmatprep.subr.bf16.mxu0 0
      %2570 = vmatpush1.bf16.msra.mxu0 0
      %2571 = vmatprep.subr.bf16.mxu0 0
      %2572 = vmatpush1.bf16.msra.mxu0 0
      %2573 = vmatprep.mubr.bf16.mxu0 0
      %2574 = vmatmul.mubr.bf16.gmra.mrb[0].mxu0 %v2536
      %v2575 = vpop.f32.mrb[0].mxu0
      %v2576 = vadd.f32 0.0, %v2575
      %v2577 = vpop.f32.mrb[0].mxu0
      %v2578 = vpop.f32.mrb[0].mxu0
      %v2579 = vpop.f32.mrb[0].mxu0
      %2580 = vdwg.mxu0
      %2582 = vrot.lane.b32.xlu0 %v2009, 32
      %v2583 = vpop.permute.xlu0 %2582
      %v2585 = vsel %vm819, %v2387, 0
      %v2588 = vsel %vm1200, %v2583, 0
      %2590 = vmatprep.subr.bf16.mxu0 0
      %2591 = vmatpush1.bf16.msra.mxu0 %v2588
      %2592 = vmatprep.subr.bf16.mxu0 0
      %2593 = vmatpush1.bf16.msra.mxu0 0
      %2594 = vmatprep.subr.bf16.mxu0 0
      %2595 = vmatpush1.bf16.msra.mxu0 0
      %2596 = vmatprep.subr.bf16.mxu0 0
      %2597 = vmatpush1.bf16.msra.mxu0 0
      %2598 = vmatprep.subr.bf16.mxu0 0
      %2599 = vmatpush1.bf16.msra.mxu0 0
      %2600 = vmatprep.subr.bf16.mxu0 0
      %2601 = vmatpush1.bf16.msra.mxu0 0
      %2602 = vmatprep.subr.bf16.mxu0 0
      %2603 = vmatpush1.bf16.msra.mxu0 0
      %2604 = vmatprep.subr.bf16.mxu0 0
      %2605 = vmatpush1.bf16.msra.mxu0 0
      %2606 = vmatprep.subr.bf16.mxu0 0
      %2607 = vmatpush1.bf16.msra.mxu0 0
      %2608 = vmatprep.subr.bf16.mxu0 0
      %2609 = vmatpush1.bf16.msra.mxu0 0
      %2610 = vmatprep.subr.bf16.mxu0 0
      %2611 = vmatpush1.bf16.msra.mxu0 0
      %2612 = vmatprep.subr.bf16.mxu0 0
      %2613 = vmatpush1.bf16.msra.mxu0 0
      %2614 = vmatprep.subr.bf16.mxu0 0
      %2615 = vmatpush1.bf16.msra.mxu0 0
      %2616 = vmatprep.subr.bf16.mxu0 0
      %2617 = vmatpush1.bf16.msra.mxu0 0
      %2618 = vmatprep.subr.bf16.mxu0 0
      %2619 = vmatpush1.bf16.msra.mxu0 0
      %2620 = vmatprep.subr.bf16.mxu0 0
      %2621 = vmatpush1.bf16.msra.mxu0 0
      %2622 = vmatprep.mubr.bf16.mxu0 0
      %2623 = vmatmul.mubr.bf16.gmra.mrb[0].mxu0 %v2585
      %v2624 = vpop.f32.mrb[0].mxu0
      %v2625 = vadd.f32 0.0, %v2624
      %v2626 = vpop.f32.mrb[0].mxu0
      %v2627 = vpop.f32.mrb[0].mxu0
      %v2628 = vpop.f32.mrb[0].mxu0
      %2629 = vdwg.mxu0
      %2631 = vrot.lane.b32.xlu0 %v2010, 32
      %v2632 = vpop.permute.xlu0 %2631
      %v2634 = vsel %vm819, %v2388, 0
      %v2637 = vsel %vm1200, %v2632, 0
      %2639 = vmatprep.subr.bf16.mxu0 0
      %2640 = vmatpush1.bf16.msra.mxu0 %v2637
      %2641 = vmatprep.subr.bf16.mxu0 0
      %2642 = vmatpush1.bf16.msra.mxu0 0
      %2643 = vmatprep.subr.bf16.mxu0 0
      %2644 = vmatpush1.bf16.msra.mxu0 0
      %2645 = vmatprep.subr.bf16.mxu0 0
      %2646 = vmatpush1.bf16.msra.mxu0 0
      %2647 = vmatprep.subr.bf16.mxu0 0
      %2648 = vmatpush1.bf16.msra.mxu0 0
      %2649 = vmatprep.subr.bf16.mxu0 0
      %2650 = vmatpush1.bf16.msra.mxu0 0
      %2651 = vmatprep.subr.bf16.mxu0 0
      %2652 = vmatpush1.bf16.msra.mxu0 0
      %2653 = vmatprep.subr.bf16.mxu0 0
      %2654 = vmatpush1.bf16.msra.mxu0 0
      %2655 = vmatprep.subr.bf16.mxu0 0
      %2656 = vmatpush1.bf16.msra.mxu0 0
      %2657 = vmatprep.subr.bf16.mxu0 0
      %2658 = vmatpush1.bf16.msra.mxu0 0
      %2659 = vmatprep.subr.bf16.mxu0 0
      %2660 = vmatpush1.bf16.msra.mxu0 0
      %2661 = vmatprep.subr.bf16.mxu0 0
      %2662 = vmatpush1.bf16.msra.mxu0 0
      %2663 = vmatprep.subr.bf16.mxu0 0
      %2664 = vmatpush1.bf16.msra.mxu0 0
      %2665 = vmatprep.subr.bf16.mxu0 0
      %2666 = vmatpush1.bf16.msra.mxu0 0
      %2667 = vmatprep.subr.bf16.mxu0 0
      %2668 = vmatpush1.bf16.msra.mxu0 0
      %2669 = vmatprep.subr.bf16.mxu0 0
      %2670 = vmatpush1.bf16.msra.mxu0 0
      %2671 = vmatprep.mubr.bf16.mxu0 0
      %2672 = vmatmul.mubr.bf16.gmra.mrb[0].mxu0 %v2634
      %v2673 = vpop.f32.mrb[0].mxu0
      %v2674 = vadd.f32 0.0, %v2673
      %v2675 = vpop.f32.mrb[0].mxu0
      %v2676 = vpop.f32.mrb[0].mxu0
      %v2677 = vpop.f32.mrb[0].mxu0
      %2678 = vdwg.mxu0
      %2680 = vrot.lane.b32.xlu0 %v2480, 8
      %v2681 = vpop.permute.xlu0 %2680
      %2684 = vrot.lane.b32.xlu0 %v2528, 16
      %v2685 = vpop.permute.xlu0 %2684
      %2688 = vrot.lane.b32.xlu0 %v2576, 24
      %v2689 = vpop.permute.xlu0 %2688
      %2692 = vrot.lane.b32.xlu0 %v2625, 32
      %v2693 = vpop.permute.xlu0 %2692
      %2696 = vrot.lane.b32.xlu0 %v2674, 40
      %v2697 = vpop.permute.xlu0 %2696
      %v2699 = vsel %vm819, %v2432, %v2681
      %v2700 = vsel %vm1507, %v2699, %v2685
      %v2701 = vsel %vm1509, %v2700, %v2689
      %v2702 = vsel %vm1511, %v2701, %v2693
      %v2703 = vsel %vm1513, %v2702, %v2697
      %v2704 = vpack.c.bf16 %v2703, %v2703
      %s2705 = scalar_lea.vmem %s6, 24
      %v2706 = vld [vmem:[%s2705] sm:$0xf]
      %v2707 = vld [vmem:[%s2705 + $0x4] sm:$0xf]
      %v2708 = vld [vmem:[%s2705 + $0x8] sm:$0xf]
      %v2709 = vld [vmem:[%s2705 + $0xc] sm:$0xf]
      %v2710 = vld [vmem:[%s2705 + $0x10] sm:$0xf]
      %v2711 = vld [vmem:[%s2705 + $0x14] sm:$0xf]
      %v2718 = vunpack.c.l.b16 %v2706
      %v2719 = vunpack.c.l.b16 %v2707
      %v2720 = vunpack.c.l.b16 %v2708
      %v2721 = vunpack.c.l.b16 %v2709
      %v2722 = vunpack.c.l.b16 %v2710
      %v2723 = vunpack.c.l.b16 %v2711
      %v2724 = vpack.c.b16 %v2719, %v2718
      %v2725 = vpack.c.b16 %v2721, %v2720
      %v2726 = vpack.c.b16 %v2723, %v2722
      %v2731 = vsel %vm675, %v2704, 0
      %2733 = vmatprep.subr.bf16.mxu0 0
      %2734 = vmatpush1.bf16.msra.mxu0 %v2724
      %2735 = vmatprep.subr.bf16.mxu0 0
      %2736 = vmatpush1.bf16.msra.mxu0 %v2725
      %2737 = vmatprep.subr.bf16.mxu0 0
      %2738 = vmatpush1.bf16.msra.mxu0 %v2726
      %2739 = vmatprep.subr.bf16.mxu0 0
      %2740 = vmatpush1.bf16.msra.mxu0 0
      %2741 = vmatprep.subr.bf16.mxu0 0
      %2742 = vmatpush1.bf16.msra.mxu0 0
      %2743 = vmatprep.subr.bf16.mxu0 0
      %2744 = vmatpush1.bf16.msra.mxu0 0
      %2745 = vmatprep.subr.bf16.mxu0 0
      %2746 = vmatpush1.bf16.msra.mxu0 0
      %2747 = vmatprep.subr.bf16.mxu0 0
      %2748 = vmatpush1.bf16.msra.mxu0 0
      %2749 = vmatprep.subr.bf16.mxu0 0
      %2750 = vmatpush1.bf16.msra.mxu0 0
      %2751 = vmatprep.subr.bf16.mxu0 0
      %2752 = vmatpush1.bf16.msra.mxu0 0
      %2753 = vmatprep.subr.bf16.mxu0 0
      %2754 = vmatpush1.bf16.msra.mxu0 0
      %2755 = vmatprep.subr.bf16.mxu0 0
      %2756 = vmatpush1.bf16.msra.mxu0 0
      %2757 = vmatprep.subr.bf16.mxu0 0
      %2758 = vmatpush1.bf16.msra.mxu0 0
      %2759 = vmatprep.subr.bf16.mxu0 0
      %2760 = vmatpush1.bf16.msra.mxu0 0
      %2761 = vmatprep.subr.bf16.mxu0 0
      %2762 = vmatpush1.bf16.msra.mxu0 0
      %2763 = vmatprep.subr.bf16.mxu0 0
      %2764 = vmatpush1.bf16.msra.mxu0 0
      %2765 = vmatprep.mubr.bf16.mxu0 0
      %2766 = vmatmul.mubr.bf16.gmra.mrb[0].mxu0 %v2731
      %v2767 = vpop.f32.mrb[0].mxu0
      %v2768 = vadd.f32 0.0, %v2767
      %v2769 = vpop.f32.mrb[0].mxu0
      %v2770 = vpop.f32.mrb[0].mxu0
      %v2771 = vpop.f32.mrb[0].mxu0
      %2772 = vdwg.mxu0
      %v2773 = vadd.f32 %v1866, %v2768
      %s2774 = scalar_lea.vmem %s7, 1
      %v2775 = vld [vmem:[%s2774] sm:$0x1]
      %v2777 = vlaneseq
      %v2778 = vshrl.u32 %v2777, 7
      %v2779 = vsub.s32 0, %v2778
      %v2780 = vrot.slane %v2775, %v2779
      %v2782 = vadd.f32 %v2773, %v2780
      %s2783 = scalar_lea.vmem %s8, 1
      %v2784 = vld [vmem:[%s2783] sm:$0x1]
      %s2785 = scalar_lea.vmem %s9, 1
      %v2786 = vld [vmem:[%s2785] sm:$0x1]
      %v2787 = vsel %vm675, %v2782, 0.0
      %2788 = vadd.xlane.f32.xlu0 %v2787
      %v2789 = vpop.xlane.xlu0 %2788
      %v2790 = vmul.f32 %v2789, %v679
      %v2791 = vsub.f32 %v2782, %v2790
      %v2792 = vmul.f32 %v2791, %v2791
      %v2793 = vsel %vm675, %v2792, 0.0
      %2794 = vadd.xlane.f32.xlu0 %v2793
      %v2795 = vpop.xlane.xlu0 %2794
      %v2796 = vmul.f32 %v2795, %v679
      %v2797 = vadd.f32 %v2796, 1e-05
      %v2798 = vrsqrt.pop %v2797
      %v2799 = vmul.f32 %v2791, %v2798
      %v2801 = vlaneseq
      %v2802 = vshrl.u32 %v2801, 7
      %v2803 = vsub.s32 0, %v2802
      %v2804 = vrot.slane %v2784, %v2803
      %v2806 = vmul.f32 %v2799, %v2804
      %v2808 = vlaneseq
      %v2809 = vshrl.u32 %v2808, 7
      %v2810 = vsub.s32 0, %v2809
      %v2811 = vrot.slane %v2786, %v2810
      %v2813 = vadd.f32 %v2806, %v2811
      %v2814 = vpack.c.bf16 %v2813, %v2813
      %s2815 = scalar_lea.vmem %s10, 48
      %v2816 = vld [vmem:[%s2815] sm:$0xff]
      %v2817 = vld [vmem:[%s2815 + $0x8] sm:$0xff]
      %v2818 = vld [vmem:[%s2815 + $0x10] sm:$0xff]
      %v2819 = vld [vmem:[%s2815 + $0x18] sm:$0xff]
      %v2820 = vld [vmem:[%s2815 + $0x20] sm:$0xff]
      %v2821 = vld [vmem:[%s2815 + $0x28] sm:$0xff]
      %s2822 = scalar_lea.vmem %s11, 2
      %v2823 = vld [vmem:[%s2822] sm:$0x3]
      %v2825 = vlaneseq
      %v2826 = vshrl.u32 %v2825, 7
      %v2827 = vsub.s32 0, %v2826
      %v2828 = vrot.slane %v2823, %v2827
      %v2829 = vlaneseq
      %v2830 = vshrl.u32 %v2829, 7
      %v2831 = vsub.s32 1, %v2830
      %v2832 = vrot.slane %v2823, %v2831
      %v2841 = vunpack.c.l.b16 %v2816
      %v2842 = vunpack.c.h.b16 %v2816
      %v2843 = vunpack.c.l.b16 %v2817
      %v2844 = vunpack.c.h.b16 %v2817
      %v2845 = vunpack.c.l.b16 %v2818
      %v2846 = vunpack.c.h.b16 %v2818
      %v2847 = vunpack.c.l.b16 %v2819
      %v2848 = vunpack.c.h.b16 %v2819
      %v2849 = vunpack.c.l.b16 %v2820
      %v2850 = vunpack.c.h.b16 %v2820
      %v2851 = vunpack.c.l.b16 %v2821
      %v2852 = vunpack.c.h.b16 %v2821
      %v2853 = vpack.c.b16 %v2843, %v2841
      %v2854 = vpack.c.b16 %v2844, %v2842
      %v2855 = vpack.c.b16 %v2847, %v2845
      %v2856 = vpack.c.b16 %v2848, %v2846
      %v2857 = vpack.c.b16 %v2851, %v2849
      %v2858 = vpack.c.b16 %v2852, %v2850
      %v2866 = vsel %vm675, %v2814, 0
      %2868 = vmatprep.subr.bf16.mxu0 %v2854
      %2869 = vmatpush1.bf16.msra.mxu0 %v2853
      %2870 = vmatprep.subr.bf16.mxu0 %v2856
      %2871 = vmatpush1.bf16.msra.mxu0 %v2855
      %2872 = vmatprep.subr.bf16.mxu0 %v2858
      %2873 = vmatpush1.bf16.msra.mxu0 %v2857
      %2874 = vmatprep.subr.bf16.mxu0 0
      %2875 = vmatpush1.bf16.msra.mxu0 0
      %2876 = vmatprep.subr.bf16.mxu0 0
      %2877 = vmatpush1.bf16.msra.mxu0 0
      %2878 = vmatprep.subr.bf16.mxu0 0
      %2879 = vmatpush1.bf16.msra.mxu0 0
      %2880 = vmatprep.subr.bf16.mxu0 0
      %2881 = vmatpush1.bf16.msra.mxu0 0
      %2882 = vmatprep.subr.bf16.mxu0 0
      %2883 = vmatpush1.bf16.msra.mxu0 0
      %2884 = vmatprep.subr.bf16.mxu0 0
      %2885 = vmatpush1.bf16.msra.mxu0 0
      %2886 = vmatprep.subr.bf16.mxu0 0
      %2887 = vmatpush1.bf16.msra.mxu0 0
      %2888 = vmatprep.subr.bf16.mxu0 0
      %2889 = vmatpush1.bf16.msra.mxu0 0
      %2890 = vmatprep.subr.bf16.mxu0 0
      %2891 = vmatpush1.bf16.msra.mxu0 0
      %2892 = vmatprep.subr.bf16.mxu0 0
      %2893 = vmatpush1.bf16.msra.mxu0 0
      %2894 = vmatprep.subr.bf16.mxu0 0
      %2895 = vmatpush1.bf16.msra.mxu0 0
      %2896 = vmatprep.subr.bf16.mxu0 0
      %2897 = vmatpush1.bf16.msra.mxu0 0
      %2898 = vmatprep.subr.bf16.mxu0 0
      %2899 = vmatpush1.bf16.msra.mxu0 0
      %2900 = vmatprep.mubr.bf16.mxu0 0
      %2901 = vmatmul.mubr.bf16.gmra.mrb[0].mxu0 %v2866
      %v2902 = vpop.f32.mrb[0].mxu0
      %v2903 = vadd.f32 %v2828, %v2902
      %v2904 = vpop.f32.mrb[0].mxu0
      %v2905 = vadd.f32 %v2832, %v2904
      %v2906 = vpop.f32.mrb[0].mxu0
      %v2907 = vpop.f32.mrb[0].mxu0
      %2908 = vdwg.mxu0
      %v2909 = vmax.f32 %v2903, 0.0
      %v2910 = vmax.f32 %v2905, 0.0
      %v2911 = vpack.c.bf16 %v2909, %v2909
      %v2912 = vpack.c.bf16 %v2910, %v2910
      %s2913 = scalar_lea.vmem %s12, 96
      %v2914 = vld [vmem:[%s2913] sm:$0xf]
      %v2915 = vld [vmem:[%s2913 + $0x4] sm:$0xf]
      %v2916 = vld [vmem:[%s2913 + $0x8] sm:$0xf]
      %v2917 = vld [vmem:[%s2913 + $0xc] sm:$0xf]
      %v2918 = vld [vmem:[%s2913 + $0x10] sm:$0xf]
      %v2919 = vld [vmem:[%s2913 + $0x14] sm:$0xf]
      %v2920 = vld [vmem:[%s2913 + $0x18] sm:$0xf]
      %v2921 = vld [vmem:[%s2913 + $0x1c] sm:$0xf]
      %v2922 = vld [vmem:[%s2913 + $0x20] sm:$0xf]
      %v2923 = vld [vmem:[%s2913 + $0x24] sm:$0xf]
      %v2924 = vld [vmem:[%s2913 + $0x28] sm:$0xf]
      %v2925 = vld [vmem:[%s2913 + $0x2c] sm:$0xf]
      %v2926 = vld [vmem:[%s2913 + $0x30] sm:$0xf]
      %v2927 = vld [vmem:[%s2913 + $0x34] sm:$0xf]
      %v2928 = vld [vmem:[%s2913 + $0x38] sm:$0xf]
      %v2929 = vld [vmem:[%s2913 + $0x3c] sm:$0xf]
      %v2930 = vld [vmem:[%s2913 + $0x40] sm:$0xf]
      %v2931 = vld [vmem:[%s2913 + $0x44] sm:$0xf]
      %v2932 = vld [vmem:[%s2913 + $0x48] sm:$0xf]
      %v2933 = vld [vmem:[%s2913 + $0x4c] sm:$0xf]
      %v2934 = vld [vmem:[%s2913 + $0x50] sm:$0xf]
      %v2935 = vld [vmem:[%s2913 + $0x54] sm:$0xf]
      %v2936 = vld [vmem:[%s2913 + $0x58] sm:$0xf]
      %v2937 = vld [vmem:[%s2913 + $0x5c] sm:$0xf]
      %v2962 = vunpack.c.l.b16 %v2914
      %v2963 = vunpack.c.l.b16 %v2915
      %v2964 = vunpack.c.l.b16 %v2916
      %v2965 = vunpack.c.l.b16 %v2917
      %v2966 = vunpack.c.l.b16 %v2918
      %v2967 = vunpack.c.l.b16 %v2919
      %v2968 = vunpack.c.l.b16 %v2920
      %v2969 = vunpack.c.l.b16 %v2921
      %v2970 = vunpack.c.l.b16 %v2922
      %v2971 = vunpack.c.l.b16 %v2923
      %v2972 = vunpack.c.l.b16 %v2924
      %v2973 = vunpack.c.l.b16 %v2925
      %v2974 = vunpack.c.l.b16 %v2926
      %v2975 = vunpack.c.l.b16 %v2927
      %v2976 = vunpack.c.l.b16 %v2928
      %v2977 = vunpack.c.l.b16 %v2929
      %v2978 = vunpack.c.l.b16 %v2930
      %v2979 = vunpack.c.l.b16 %v2931
      %v2980 = vunpack.c.l.b16 %v2932
      %v2981 = vunpack.c.l.b16 %v2933
      %v2982 = vunpack.c.l.b16 %v2934
      %v2983 = vunpack.c.l.b16 %v2935
      %v2984 = vunpack.c.l.b16 %v2936
      %v2985 = vunpack.c.l.b16 %v2937
      %v2986 = vpack.c.b16 %v2963, %v2962
      %v2987 = vpack.c.b16 %v2965, %v2964
      %v2988 = vpack.c.b16 %v2967, %v2966
      %v2989 = vpack.c.b16 %v2969, %v2968
      %v2990 = vpack.c.b16 %v2971, %v2970
      %v2991 = vpack.c.b16 %v2973, %v2972
      %v2992 = vpack.c.b16 %v2975, %v2974
      %v2993 = vpack.c.b16 %v2977, %v2976
      %v2994 = vpack.c.b16 %v2979, %v2978
      %v2995 = vpack.c.b16 %v2981, %v2980
      %v2996 = vpack.c.b16 %v2983, %v2982
      %v2997 = vpack.c.b16 %v2985, %v2984
      %v3011 = vsel %vm1814, %v2912, 0
      %3013 = vmatprep.subr.bf16.mxu0 0
      %3014 = vmatpush1.bf16.msra.mxu0 %v2986
      %3015 = vmatprep.subr.bf16.mxu0 0
      %3016 = vmatpush1.bf16.msra.mxu0 %v2987
      %3017 = vmatprep.subr.bf16.mxu0 0
      %3018 = vmatpush1.bf16.msra.mxu0 %v2988
      %3019 = vmatprep.subr.bf16.mxu0 0
      %3020 = vmatpush1.bf16.msra.mxu0 %v2989
      %3021 = vmatprep.subr.bf16.mxu0 0
      %3022 = vmatpush1.bf16.msra.mxu0 %v2990
      %3023 = vmatprep.subr.bf16.mxu0 0
      %3024 = vmatpush1.bf16.msra.mxu0 %v2991
      %3025 = vmatprep.subr.bf16.mxu0 0
      %3026 = vmatpush1.bf16.msra.mxu0 %v2992
      %3027 = vmatprep.subr.bf16.mxu0 0
      %3028 = vmatpush1.bf16.msra.mxu0 %v2993
      %3029 = vmatprep.subr.bf16.mxu0 0
      %3030 = vmatpush1.bf16.msra.mxu0 %v2994
      %3031 = vmatprep.subr.bf16.mxu0 0
      %3032 = vmatpush1.bf16.msra.mxu0 %v2995
      %3033 = vmatprep.subr.bf16.mxu0 0
      %3034 = vmatpush1.bf16.msra.mxu0 %v2996
      %3035 = vmatprep.subr.bf16.mxu0 0
      %3036 = vmatpush1.bf16.msra.mxu0 %v2997
      %3037 = vmatprep.subr.bf16.mxu0 0
      %3038 = vmatpush1.bf16.msra.mxu0 0
      %3039 = vmatprep.subr.bf16.mxu0 0
      %3040 = vmatpush1.bf16.msra.mxu0 0
      %3041 = vmatprep.subr.bf16.mxu0 0
      %3042 = vmatpush1.bf16.msra.mxu0 0
      %3043 = vmatprep.subr.bf16.mxu0 0
      %3044 = vmatpush1.bf16.msra.mxu0 0
      %3045 = vmatprep.mubr.bf16.mxu0 %v3011
      %3046 = vmatmul.mubr.bf16.gmra.mrb[0].mxu0 %v2911
      %v3047 = vpop.f32.mrb[0].mxu0
      %v3048 = vadd.f32 0.0, %v3047
      %v3049 = vpop.f32.mrb[0].mxu0
      %v3050 = vpop.f32.mrb[0].mxu0
      %v3051 = vpop.f32.mrb[0].mxu0
      %3052 = vdwg.mxu0
      %v3053 = vadd.f32 %v2782, %v3048
      %s3054 = scalar_lea.vmem %s13, 1
      %v3055 = vld [vmem:[%s3054] sm:$0x1]
      %v3057 = vlaneseq
      %v3058 = vshrl.u32 %v3057, 7
      %v3059 = vsub.s32 0, %v3058
      %v3060 = vrot.slane %v3055, %v3059
      %v3062 = vadd.f32 %v3053, %v3060
      %s3063 = scalar_lea.vmem %s3, 2
      %v3064 = vld [vmem:[%s3063] sm:$0x1]
      %s3065 = scalar_lea.vmem %s4, 2
      %v3066 = vld [vmem:[%s3065] sm:$0x1]
      %v3067 = vsel %vm675, %v3062, 0.0
      %3068 = vadd.xlane.f32.xlu0 %v3067
      %v3069 = vpop.xlane.xlu0 %3068
      %v3070 = vmul.f32 %v3069, %v679
      %v3071 = vsub.f32 %v3062, %v3070
      %v3072 = vmul.f32 %v3071, %v3071
      %v3073 = vsel %vm675, %v3072, 0.0
      %3074 = vadd.xlane.f32.xlu0 %v3073
      %v3075 = vpop.xlane.xlu0 %3074
      %v3076 = vmul.f32 %v3075, %v679
      %v3077 = vadd.f32 %v3076, 1e-05
      %v3078 = vrsqrt.pop %v3077
      %v3079 = vmul.f32 %v3071, %v3078
      %v3081 = vlaneseq
      %v3082 = vshrl.u32 %v3081, 7
      %v3083 = vsub.s32 0, %v3082
      %v3084 = vrot.slane %v3064, %v3083
      %v3086 = vmul.f32 %v3079, %v3084
      %v3088 = vlaneseq
      %v3089 = vshrl.u32 %v3088, 7
      %v3090 = vsub.s32 0, %v3089
      %v3091 = vrot.slane %v3066, %v3090
      %v3093 = vadd.f32 %v3086, %v3091
      %v3094 = vpack.c.bf16 %v3093, %v3093
      %s3095 = scalar_lea.vmem %s5, 96
      %v3096 = vld [vmem:[%s3095] sm:$0xff]
      %v3097 = vld [vmem:[%s3095 + $0x8] sm:$0xff]
      %v3098 = vld [vmem:[%s3095 + $0x10] sm:$0xff]
      %v3099 = vld [vmem:[%s3095 + $0x18] sm:$0xff]
      %v3100 = vld [vmem:[%s3095 + $0x20] sm:$0xff]
      %v3101 = vld [vmem:[%s3095 + $0x28] sm:$0xff]
      %v3108 = vunpack.c.l.b16 %v3096
      %v3109 = vunpack.c.h.b16 %v3096
      %v3110 = vunpack.c.l.b16 %v3097
      %v3111 = vunpack.c.h.b16 %v3097
      %v3112 = vunpack.c.l.b16 %v3098
      %v3113 = vunpack.c.h.b16 %v3098
      %v3114 = vunpack.c.l.b16 %v3099
      %v3115 = vunpack.c.h.b16 %v3099
      %v3116 = vunpack.c.l.b16 %v3100
      %v3117 = vunpack.c.h.b16 %v3100
      %v3118 = vunpack.c.l.b16 %v3101
      %v3119 = vunpack.c.h.b16 %v3101
      %v3120 = vpack.c.b16 %v3110, %v3108
      %v3121 = vpack.c.b16 %v3111, %v3109
      %v3122 = vpack.c.b16 %v3114, %v3112
      %v3123 = vpack.c.b16 %v3115, %v3113
      %v3124 = vpack.c.b16 %v3118, %v3116
      %v3125 = vpack.c.b16 %v3119, %v3117
      %v3133 = vsel %vm675, %v3094, 0
      %3135 = vmatprep.subr.bf16.mxu0 %v3121
      %3136 = vmatpush1.bf16.msra.mxu0 %v3120
      %3137 = vmatprep.subr.bf16.mxu0 %v3123
      %3138 = vmatpush1.bf16.msra.mxu0 %v3122
      %3139 = vmatprep.subr.bf16.mxu0 %v3125
      %3140 = vmatpush1.bf16.msra.mxu0 %v3124
      %3141 = vmatprep.subr.bf16.mxu0 0
      %3142 = vmatpush1.bf16.msra.mxu0 0
      %3143 = vmatprep.subr.bf16.mxu0 0
      %3144 = vmatpush1.bf16.msra.mxu0 0
      %3145 = vmatprep.subr.bf16.mxu0 0
      %3146 = vmatpush1.bf16.msra.mxu0 0
      %3147 = vmatprep.subr.bf16.mxu0 0
      %3148 = vmatpush1.bf16.msra.mxu0 0
      %3149 = vmatprep.subr.bf16.mxu0 0
      %3150 = vmatpush1.bf16.msra.mxu0 0
      %3151 = vmatprep.subr.bf16.mxu0 0
      %3152 = vmatpush1.bf16.msra.mxu0 0
      %3153 = vmatprep.subr.bf16.mxu0 0
      %3154 = vmatpush1.bf16.msra.mxu0 0
      %3155 = vmatprep.subr.bf16.mxu0 0
      %3156 = vmatpush1.bf16.msra.mxu0 0
      %3157 = vmatprep.subr.bf16.mxu0 0
      %3158 = vmatpush1.bf16.msra.mxu0 0
      %3159 = vmatprep.subr.bf16.mxu0 0
      %3160 = vmatpush1.bf16.msra.mxu0 0
      %3161 = vmatprep.subr.bf16.mxu0 0
      %3162 = vmatpush1.bf16.msra.mxu0 0
      %3163 = vmatprep.subr.bf16.mxu0 0
      %3164 = vmatpush1.bf16.msra.mxu0 0
      %3165 = vmatprep.subr.bf16.mxu0 0
      %3166 = vmatpush1.bf16.msra.mxu0 0
      %3167 = vmatprep.mubr.bf16.mxu0 0
      %3168 = vmatmul.mubr.bf16.gmra.mrb[0].mxu0 %v3133
      %v3169 = vpop.f32.mrb[0].mxu0
      %v3170 = vadd.f32 0.0, %v3169
      %v3171 = vpop.f32.mrb[0].mxu0
      %v3172 = vadd.f32 0.0, %v3171
      %v3173 = vpop.f32.mrb[0].mxu0
      %v3174 = vpop.f32.mrb[0].mxu0
      %3175 = vdwg.mxu0
      %3177 = vrot.lane.b32.xlu0 %v3170, 120
      %v3178 = vpop.permute.xlu0 %3177
      %3180 = vrot.lane.b32.xlu0 %v3170, 112
      %v3181 = vpop.permute.xlu0 %3180
      %3183 = vrot.lane.b32.xlu0 %v3170, 104
      %v3184 = vpop.permute.xlu0 %3183
      %3186 = vrot.lane.b32.xlu0 %v3170, 96
      %v3187 = vpop.permute.xlu0 %3186
      %3189 = vrot.lane.b32.xlu0 %v3170, 88
      %v3190 = vpop.permute.xlu0 %3189
      %v3192 = vpack.c.bf16 %v3170, %v3170
      %v3193 = vpack.c.bf16 %v3178, %v3178
      %v3194 = vpack.c.bf16 %v3181, %v3181
      %v3195 = vpack.c.bf16 %v3184, %v3184
      %v3196 = vpack.c.bf16 %v3187, %v3187
      %v3197 = vpack.c.bf16 %v3190, %v3190
      %3199 = vrot.lane.b32.xlu0 %v3172, 96
      %v3200 = vpop.permute.xlu0 %3199
      %3202 = vrot.lane.b32.xlu0 %v3172, 88
      %v3203 = vpop.permute.xlu0 %3202
      %v3205 = vpack.c.bf16 %v3200, %v3200
      %v3206 = vpack.c.bf16 %v3203, %v3203
      %3208 = vrot.lane.b32.xlu0 %v3192, 80
      %v3209 = vpop.permute.xlu0 %3208
      %v3211 = vsel %vm819, %v3192, 0
      %v3214 = vsel %vm819, %v3209, 0
      %3216 = vmatprep.subr.bf16.mxu0 0
      %3217 = vmatpush1.bf16.xpose.msra.mxu0 %v3214
      %3218 = vmatprep.subr.bf16.mxu0 0
      %3219 = vmatpush1.bf16.xpose.msra.mxu0 0
      %3220 = vmatprep.subr.bf16.mxu0 0
      %3221 = vmatpush1.bf16.xpose.msra.mxu0 0
      %3222 = vmatprep.subr.bf16.mxu0 0
      %3223 = vmatpush1.bf16.xpose.msra.mxu0 0
      %3224 = vmatprep.subr.bf16.mxu0 0
      %3225 = vmatpush1.bf16.xpose.msra.mxu0 0
      %3226 = vmatprep.subr.bf16.mxu0 0
      %3227 = vmatpush1.bf16.xpose.msra.mxu0 0
      %3228 = vmatprep.subr.bf16.mxu0 0
      %3229 = vmatpush1.bf16.xpose.msra.mxu0 0
      %3230 = vmatprep.subr.bf16.mxu0 0
      %3231 = vmatpush1.bf16.xpose.msra.mxu0 0
      %3232 = vmatprep.subr.bf16.mxu0 0
      %3233 = vmatpush1.bf16.xpose.msra.mxu0 0
      %3234 = vmatprep.subr.bf16.mxu0 0
      %3235 = vmatpush1.bf16.xpose.msra.mxu0 0
      %3236 = vmatprep.subr.bf16.mxu0 0
      %3237 = vmatpush1.bf16.xpose.msra.mxu0 0
      %3238 = vmatprep.subr.bf16.mxu0 0
      %3239 = vmatpush1.bf16.xpose.msra.mxu0 0
      %3240 = vmatprep.subr.bf16.mxu0 0
      %3241 = vmatpush1.bf16.xpose.msra.mxu0 0
      %3242 = vmatprep.subr.bf16.mxu0 0
      %3243 = vmatpush1.bf16.xpose.msra.mxu0 0
      %3244 = vmatprep.subr.bf16.mxu0 0
      %3245 = vmatpush1.bf16.xpose.msra.mxu0 0
      %3246 = vmatprep.subr.bf16.mxu0 0
      %3247 = vmatpush1.bf16.xpose.msra.mxu0 0
      %3248 = vmatprep.mubr.bf16.mxu0 0
      %3249 = vmatmul.mubr.bf16.gmra.mrb[0].mxu0 %v3211
      %v3250 = vpop.f32.mrb[0].mxu0
      %v3251 = vadd.f32 0.0, %v3250
      %v3252 = vpop.f32.mrb[0].mxu0
      %v3253 = vpop.f32.mrb[0].mxu0
      %v3254 = vpop.f32.mrb[0].mxu0
      %3255 = vdwg.mxu0
      %3257 = vrot.lane.b32.xlu0 %v3193, 80
      %v3258 = vpop.permute.xlu0 %3257
      %v3260 = vsel %vm819, %v3193, 0
      %v3263 = vsel %vm819, %v3258, 0
      %3265 = vmatprep.subr.bf16.mxu0 0
      %3266 = vmatpush1.bf16.xpose.msra.mxu0 %v3263
      %3267 = vmatprep.subr.bf16.mxu0 0
      %3268 = vmatpush1.bf16.xpose.msra.mxu0 0
      %3269 = vmatprep.subr.bf16.mxu0 0
      %3270 = vmatpush1.bf16.xpose.msra.mxu0 0
      %3271 = vmatprep.subr.bf16.mxu0 0
      %3272 = vmatpush1.bf16.xpose.msra.mxu0 0
      %3273 = vmatprep.subr.bf16.mxu0 0
      %3274 = vmatpush1.bf16.xpose.msra.mxu0 0
      %3275 = vmatprep.subr.bf16.mxu0 0
      %3276 = vmatpush1.bf16.xpose.msra.mxu0 0
      %3277 = vmatprep.subr.bf16.mxu0 0
      %3278 = vmatpush1.bf16.xpose.msra.mxu0 0
      %3279 = vmatprep.subr.bf16.mxu0 0
      %3280 = vmatpush1.bf16.xpose.msra.mxu0 0
      %3281 = vmatprep.subr.bf16.mxu0 0
      %3282 = vmatpush1.bf16.xpose.msra.mxu0 0
      %3283 = vmatprep.subr.bf16.mxu0 0
      %3284 = vmatpush1.bf16.xpose.msra.mxu0 0
      %3285 = vmatprep.subr.bf16.mxu0 0
      %3286 = vmatpush1.bf16.xpose.msra.mxu0 0
      %3287 = vmatprep.subr.bf16.mxu0 0
      %3288 = vmatpush1.bf16.xpose.msra.mxu0 0
      %3289 = vmatprep.subr.bf16.mxu0 0
      %3290 = vmatpush1.bf16.xpose.msra.mxu0 0
      %3291 = vmatprep.subr.bf16.mxu0 0
      %3292 = vmatpush1.bf16.xpose.msra.mxu0 0
      %3293 = vmatprep.subr.bf16.mxu0 0
      %3294 = vmatpush1.bf16.xpose.msra.mxu0 0
      %3295 = vmatprep.subr.bf16.mxu0 0
      %3296 = vmatpush1.bf16.xpose.msra.mxu0 0
      %3297 = vmatprep.mubr.bf16.mxu0 0
      %3298 = vmatmul.mubr.bf16.gmra.mrb[0].mxu0 %v3260
      %v3299 = vpop.f32.mrb[0].mxu0
      %v3300 = vadd.f32 0.0, %v3299
      %v3301 = vpop.f32.mrb[0].mxu0
      %v3302 = vpop.f32.mrb[0].mxu0
      %v3303 = vpop.f32.mrb[0].mxu0
      %3304 = vdwg.mxu0
      %3306 = vrot.lane.b32.xlu0 %v3194, 80
      %v3307 = vpop.permute.xlu0 %3306
      %v3309 = vsel %vm819, %v3194, 0
      %v3312 = vsel %vm819, %v3307, 0
      %3314 = vmatprep.subr.bf16.mxu0 0
      %3315 = vmatpush1.bf16.xpose.msra.mxu0 %v3312
      %3316 = vmatprep.subr.bf16.mxu0 0
      %3317 = vmatpush1.bf16.xpose.msra.mxu0 0
      %3318 = vmatprep.subr.bf16.mxu0 0
      %3319 = vmatpush1.bf16.xpose.msra.mxu0 0
      %3320 = vmatprep.subr.bf16.mxu0 0
      %3321 = vmatpush1.bf16.xpose.msra.mxu0 0
      %3322 = vmatprep.subr.bf16.mxu0 0
      %3323 = vmatpush1.bf16.xpose.msra.mxu0 0
      %3324 = vmatprep.subr.bf16.mxu0 0
      %3325 = vmatpush1.bf16.xpose.msra.mxu0 0
      %3326 = vmatprep.subr.bf16.mxu0 0
      %3327 = vmatpush1.bf16.xpose.msra.mxu0 0
      %3328 = vmatprep.subr.bf16.mxu0 0
      %3329 = vmatpush1.bf16.xpose.msra.mxu0 0
      %3330 = vmatprep.subr.bf16.mxu0 0
      %3331 = vmatpush1.bf16.xpose.msra.mxu0 0
      %3332 = vmatprep.subr.bf16.mxu0 0
      %3333 = vmatpush1.bf16.xpose.msra.mxu0 0
      %3334 = vmatprep.subr.bf16.mxu0 0
      %3335 = vmatpush1.bf16.xpose.msra.mxu0 0
      %3336 = vmatprep.subr.bf16.mxu0 0
      %3337 = vmatpush1.bf16.xpose.msra.mxu0 0
      %3338 = vmatprep.subr.bf16.mxu0 0
      %3339 = vmatpush1.bf16.xpose.msra.mxu0 0
      %3340 = vmatprep.subr.bf16.mxu0 0
      %3341 = vmatpush1.bf16.xpose.msra.mxu0 0
      %3342 = vmatprep.subr.bf16.mxu0 0
      %3343 = vmatpush1.bf16.xpose.msra.mxu0 0
      %3344 = vmatprep.subr.bf16.mxu0 0
      %3345 = vmatpush1.bf16.xpose.msra.mxu0 0
      %3346 = vmatprep.mubr.bf16.mxu0 0
      %3347 = vmatmul.mubr.bf16.gmra.mrb[0].mxu0 %v3309
      %v3348 = vpop.f32.mrb[0].mxu0
      %v3349 = vadd.f32 0.0, %v3348
      %v3350 = vpop.f32.mrb[0].mxu0
      %v3351 = vpop.f32.mrb[0].mxu0
      %v3352 = vpop.f32.mrb[0].mxu0
      %3353 = vdwg.mxu0
      %3355 = vrot.lane.b32.xlu0 %v3195, 80
      %v3356 = vpop.permute.xlu0 %3355
      %v3358 = vsel %vm819, %v3195, 0
      %v3361 = vsel %vm819, %v3356, 0
      %3363 = vmatprep.subr.bf16.mxu0 0
      %3364 = vmatpush1.bf16.xpose.msra.mxu0 %v3361
      %3365 = vmatprep.subr.bf16.mxu0 0
      %3366 = vmatpush1.bf16.xpose.msra.mxu0 0
      %3367 = vmatprep.subr.bf16.mxu0 0
      %3368 = vmatpush1.bf16.xpose.msra.mxu0 0
      %3369 = vmatprep.subr.bf16.mxu0 0
      %3370 = vmatpush1.bf16.xpose.msra.mxu0 0
      %3371 = vmatprep.subr.bf16.mxu0 0
      %3372 = vmatpush1.bf16.xpose.msra.mxu0 0
      %3373 = vmatprep.subr.bf16.mxu0 0
      %3374 = vmatpush1.bf16.xpose.msra.mxu0 0
      %3375 = vmatprep.subr.bf16.mxu0 0
      %3376 = vmatpush1.bf16.xpose.msra.mxu0 0
      %3377 = vmatprep.subr.bf16.mxu0 0
      %3378 = vmatpush1.bf16.xpose.msra.mxu0 0
      %3379 = vmatprep.subr.bf16.mxu0 0
      %3380 = vmatpush1.bf16.xpose.msra.mxu0 0
      %3381 = vmatprep.subr.bf16.mxu0 0
      %3382 = vmatpush1.bf16.xpose.msra.mxu0 0
      %3383 = vmatprep.subr.bf16.mxu0 0
      %3384 = vmatpush1.bf16.xpose.msra.mxu0 0
      %3385 = vmatprep.subr.bf16.mxu0 0
      %3386 = vmatpush1.bf16.xpose.msra.mxu0 0
      %3387 = vmatprep.subr.bf16.mxu0 0
      %3388 = vmatpush1.bf16.xpose.msra.mxu0 0
      %3389 = vmatprep.subr.bf16.mxu0 0
      %3390 = vmatpush1.bf16.xpose.msra.mxu0 0
      %3391 = vmatprep.subr.bf16.mxu0 0
      %3392 = vmatpush1.bf16.xpose.msra.mxu0 0
      %3393 = vmatprep.subr.bf16.mxu0 0
      %3394 = vmatpush1.bf16.xpose.msra.mxu0 0
      %3395 = vmatprep.mubr.bf16.mxu0 0
      %3396 = vmatmul.mubr.bf16.gmra.mrb[0].mxu0 %v3358
      %v3397 = vpop.f32.mrb[0].mxu0
      %v3398 = vadd.f32 0.0, %v3397
      %v3399 = vpop.f32.mrb[0].mxu0
      %v3400 = vpop.f32.mrb[0].mxu0
      %v3401 = vpop.f32.mrb[0].mxu0
      %3402 = vdwg.mxu0
      %3404 = vrot.lane.b32.xlu0 %v3196, 80
      %v3405 = vpop.permute.xlu0 %3404
      %v3407 = vsel %vm819, %v3196, 0
      %v3410 = vsel %vm819, %v3405, 0
      %3412 = vmatprep.subr.bf16.mxu0 0
      %3413 = vmatpush1.bf16.xpose.msra.mxu0 %v3410
      %3414 = vmatprep.subr.bf16.mxu0 0
      %3415 = vmatpush1.bf16.xpose.msra.mxu0 0
      %3416 = vmatprep.subr.bf16.mxu0 0
      %3417 = vmatpush1.bf16.xpose.msra.mxu0 0
      %3418 = vmatprep.subr.bf16.mxu0 0
      %3419 = vmatpush1.bf16.xpose.msra.mxu0 0
      %3420 = vmatprep.subr.bf16.mxu0 0
      %3421 = vmatpush1.bf16.xpose.msra.mxu0 0
      %3422 = vmatprep.subr.bf16.mxu0 0
      %3423 = vmatpush1.bf16.xpose.msra.mxu0 0
      %3424 = vmatprep.subr.bf16.mxu0 0
      %3425 = vmatpush1.bf16.xpose.msra.mxu0 0
      %3426 = vmatprep.subr.bf16.mxu0 0
      %3427 = vmatpush1.bf16.xpose.msra.mxu0 0
      %3428 = vmatprep.subr.bf16.mxu0 0
      %3429 = vmatpush1.bf16.xpose.msra.mxu0 0
      %3430 = vmatprep.subr.bf16.mxu0 0
      %3431 = vmatpush1.bf16.xpose.msra.mxu0 0
      %3432 = vmatprep.subr.bf16.mxu0 0
      %3433 = vmatpush1.bf16.xpose.msra.mxu0 0
      %3434 = vmatprep.subr.bf16.mxu0 0
      %3435 = vmatpush1.bf16.xpose.msra.mxu0 0
      %3436 = vmatprep.subr.bf16.mxu0 0
      %3437 = vmatpush1.bf16.xpose.msra.mxu0 0
      %3438 = vmatprep.subr.bf16.mxu0 0
      %3439 = vmatpush1.bf16.xpose.msra.mxu0 0
      %3440 = vmatprep.subr.bf16.mxu0 0
      %3441 = vmatpush1.bf16.xpose.msra.mxu0 0
      %3442 = vmatprep.subr.bf16.mxu0 0
      %3443 = vmatpush1.bf16.xpose.msra.mxu0 0
      %3444 = vmatprep.mubr.bf16.mxu0 0
      %3445 = vmatmul.mubr.bf16.gmra.mrb[0].mxu0 %v3407
      %v3446 = vpop.f32.mrb[0].mxu0
      %v3447 = vadd.f32 0.0, %v3446
      %v3448 = vpop.f32.mrb[0].mxu0
      %v3449 = vpop.f32.mrb[0].mxu0
      %v3450 = vpop.f32.mrb[0].mxu0
      %3451 = vdwg.mxu0
      %3453 = vrot.lane.b32.xlu0 %v3197, 80
      %v3454 = vpop.permute.xlu0 %3453
      %v3456 = vsel %vm819, %v3197, 0
      %v3459 = vsel %vm819, %v3454, 0
      %3461 = vmatprep.subr.bf16.mxu0 0
      %3462 = vmatpush1.bf16.xpose.msra.mxu0 %v3459
      %3463 = vmatprep.subr.bf16.mxu0 0
      %3464 = vmatpush1.bf16.xpose.msra.mxu0 0
      %3465 = vmatprep.subr.bf16.mxu0 0
      %3466 = vmatpush1.bf16.xpose.msra.mxu0 0
      %3467 = vmatprep.subr.bf16.mxu0 0
      %3468 = vmatpush1.bf16.xpose.msra.mxu0 0
      %3469 = vmatprep.subr.bf16.mxu0 0
      %3470 = vmatpush1.bf16.xpose.msra.mxu0 0
      %3471 = vmatprep.subr.bf16.mxu0 0
      %3472 = vmatpush1.bf16.xpose.msra.mxu0 0
      %3473 = vmatprep.subr.bf16.mxu0 0
      %3474 = vmatpush1.bf16.xpose.msra.mxu0 0
      %3475 = vmatprep.subr.bf16.mxu0 0
      %3476 = vmatpush1.bf16.xpose.msra.mxu0 0
      %3477 = vmatprep.subr.bf16.mxu0 0
      %3478 = vmatpush1.bf16.xpose.msra.mxu0 0
      %3479 = vmatprep.subr.bf16.mxu0 0
      %3480 = vmatpush1.bf16.xpose.msra.mxu0 0
      %3481 = vmatprep.subr.bf16.mxu0 0
      %3482 = vmatpush1.bf16.xpose.msra.mxu0 0
      %3483 = vmatprep.subr.bf16.mxu0 0
      %3484 = vmatpush1.bf16.xpose.msra.mxu0 0
      %3485 = vmatprep.subr.bf16.mxu0 0
      %3486 = vmatpush1.bf16.xpose.msra.mxu0 0
      %3487 = vmatprep.subr.bf16.mxu0 0
      %3488 = vmatpush1.bf16.xpose.msra.mxu0 0
      %3489 = vmatprep.subr.bf16.mxu0 0
      %3490 = vmatpush1.bf16.xpose.msra.mxu0 0
      %3491 = vmatprep.subr.bf16.mxu0 0
      %3492 = vmatpush1.bf16.xpose.msra.mxu0 0
      %3493 = vmatprep.mubr.bf16.mxu0 0
      %3494 = vmatmul.mubr.bf16.gmra.mrb[0].mxu0 %v3456
      %v3495 = vpop.f32.mrb[0].mxu0
      %v3496 = vadd.f32 0.0, %v3495
      %v3497 = vpop.f32.mrb[0].mxu0
      %v3498 = vpop.f32.mrb[0].mxu0
      %v3499 = vpop.f32.mrb[0].mxu0
      %3500 = vdwg.mxu0
      %v3501 = vmul.f32 %v3251, 0.35355338
      %v3502 = vmul.f32 %v3300, 0.35355338
      %v3503 = vmul.f32 %v3349, 0.35355338
      %v3504 = vmul.f32 %v3398, 0.35355338
      %v3505 = vmul.f32 %v3447, 0.35355338
      %v3506 = vmul.f32 %v3496, 0.35355338
      %v3507 = vadd.f32 %v3501, %v672
      %v3508 = vadd.f32 %v3502, %v672
      %v3509 = vadd.f32 %v3503, %v672
      %v3510 = vadd.f32 %v3504, %v672
      %v3511 = vadd.f32 %v3505, %v672
      %v3512 = vadd.f32 %v3506, %v672
      %v3513 = vsel %vm819, %v3507, -inf
      %3514 = vmax.xlane.f32.xlu0 %v3513
      %v3515 = vpop.xlane.xlu0 %3514
      %v3516 = vsel %vm819, %v3508, -inf
      %3517 = vmax.xlane.f32.xlu0 %v3516
      %v3518 = vpop.xlane.xlu0 %3517
      %v3519 = vsel %vm819, %v3509, -inf
      %3520 = vmax.xlane.f32.xlu0 %v3519
      %v3521 = vpop.xlane.xlu0 %3520
      %v3522 = vsel %vm819, %v3510, -inf
      %3523 = vmax.xlane.f32.xlu0 %v3522
      %v3524 = vpop.xlane.xlu0 %3523
      %v3525 = vsel %vm819, %v3511, -inf
      %3526 = vmax.xlane.f32.xlu0 %v3525
      %v3527 = vpop.xlane.xlu0 %3526
      %v3528 = vsel %vm819, %v3512, -inf
      %3529 = vmax.xlane.f32.xlu0 %v3528
      %v3530 = vpop.xlane.xlu0 %3529
      %v3531 = vsub.f32 %v3507, %v3515
      %v3532 = vsub.f32 %v3508, %v3518
      %v3533 = vsub.f32 %v3509, %v3521
      %v3534 = vsub.f32 %v3510, %v3524
      %v3535 = vsub.f32 %v3511, %v3527
      %v3536 = vsub.f32 %v3512, %v3530
      %v3537 = vmul.f32 %v3531, 1.442695
      %v3538 = vpow.pop %v3537
      %v3539 = vmul.f32 %v3532, 1.442695
      %v3540 = vpow.pop %v3539
      %v3541 = vmul.f32 %v3533, 1.442695
      %v3542 = vpow.pop %v3541
      %v3543 = vmul.f32 %v3534, 1.442695
      %v3544 = vpow.pop %v3543
      %v3545 = vmul.f32 %v3535, 1.442695
      %v3546 = vpow.pop %v3545
      %v3547 = vmul.f32 %v3536, 1.442695
      %v3548 = vpow.pop %v3547
      %v3549 = vsel %vm819, %v3538, 0.0
      %3550 = vadd.xlane.f32.xlu0 %v3549
      %v3551 = vpop.xlane.xlu0 %3550
      %v3552 = vsel %vm819, %v3540, 0.0
      %3553 = vadd.xlane.f32.xlu0 %v3552
      %v3554 = vpop.xlane.xlu0 %3553
      %v3555 = vsel %vm819, %v3542, 0.0
      %3556 = vadd.xlane.f32.xlu0 %v3555
      %v3557 = vpop.xlane.xlu0 %3556
      %v3558 = vsel %vm819, %v3544, 0.0
      %3559 = vadd.xlane.f32.xlu0 %v3558
      %v3560 = vpop.xlane.xlu0 %3559
      %v3561 = vsel %vm819, %v3546, 0.0
      %3562 = vadd.xlane.f32.xlu0 %v3561
      %v3563 = vpop.xlane.xlu0 %3562
      %v3564 = vsel %vm819, %v3548, 0.0
      %3565 = vadd.xlane.f32.xlu0 %v3564
      %v3566 = vpop.xlane.xlu0 %3565
      %v3567 = vrcp.pop %v3551
      %v3568 = vrcp.pop %v3554
      %v3569 = vrcp.pop %v3557
      %v3570 = vrcp.pop %v3560
      %v3571 = vrcp.pop %v3563
      %v3572 = vrcp.pop %v3566
      %v3573 = vmul.f32 %v3538, %v3567
      %v3574 = vmul.f32 %v3540, %v3568
      %v3575 = vmul.f32 %v3542, %v3569
      %v3576 = vmul.f32 %v3544, %v3570
      %v3577 = vmul.f32 %v3546, %v3571
      %v3578 = vmul.f32 %v3548, %v3572
      %v3579 = vpack.c.bf16 %v3573, %v3573
      %v3580 = vpack.c.bf16 %v3574, %v3574
      %v3581 = vpack.c.bf16 %v3575, %v3575
      %v3582 = vpack.c.bf16 %v3576, %v3576
      %v3583 = vpack.c.bf16 %v3577, %v3577
      %v3584 = vpack.c.bf16 %v3578, %v3578
      %3585 = vrot.lane.b32.xlu0 %v3192, 32
      %v3586 = vpop.permute.xlu0 %3585
      %v3588 = vsel %vm819, %v3579, 0
      %v3591 = vsel %vm1200, %v3586, 0
      %3593 = vmatprep.subr.bf16.mxu0 0
      %3594 = vmatpush1.bf16.msra.mxu0 %v3591
      %3595 = vmatprep.subr.bf16.mxu0 0
      %3596 = vmatpush1.bf16.msra.mxu0 0
      %3597 = vmatprep.subr.bf16.mxu0 0
      %3598 = vmatpush1.bf16.msra.mxu0 0
      %3599 = vmatprep.subr.bf16.mxu0 0
      %3600 = vmatpush1.bf16.msra.mxu0 0
      %3601 = vmatprep.subr.bf16.mxu0 0
      %3602 = vmatpush1.bf16.msra.mxu0 0
      %3603 = vmatprep.subr.bf16.mxu0 0
      %3604 = vmatpush1.bf16.msra.mxu0 0
      %3605 = vmatprep.subr.bf16.mxu0 0
      %3606 = vmatpush1.bf16.msra.mxu0 0
      %3607 = vmatprep.subr.bf16.mxu0 0
      %3608 = vmatpush1.bf16.msra.mxu0 0
      %3609 = vmatprep.subr.bf16.mxu0 0
      %3610 = vmatpush1.bf16.msra.mxu0 0
      %3611 = vmatprep.subr.bf16.mxu0 0
      %3612 = vmatpush1.bf16.msra.mxu0 0
      %3613 = vmatprep.subr.bf16.mxu0 0
      %3614 = vmatpush1.bf16.msra.mxu0 0
      %3615 = vmatprep.subr.bf16.mxu0 0
      %3616 = vmatpush1.bf16.msra.mxu0 0
      %3617 = vmatprep.subr.bf16.mxu0 0
      %3618 = vmatpush1.bf16.msra.mxu0 0
      %3619 = vmatprep.subr.bf16.mxu0 0
      %3620 = vmatpush1.bf16.msra.mxu0 0
      %3621 = vmatprep.subr.bf16.mxu0 0
      %3622 = vmatpush1.bf16.msra.mxu0 0
      %3623 = vmatprep.subr.bf16.mxu0 0
      %3624 = vmatpush1.bf16.msra.mxu0 0
      %3625 = vmatprep.mubr.bf16.mxu0 0
      %3626 = vmatmul.mubr.bf16.gmra.mrb[0].mxu0 %v3588
      %v3627 = vpop.f32.mrb[0].mxu0
      %v3628 = vadd.f32 0.0, %v3627
      %v3629 = vpop.f32.mrb[0].mxu0
      %v3630 = vpop.f32.mrb[0].mxu0
      %v3631 = vpop.f32.mrb[0].mxu0
      %3632 = vdwg.mxu0
      %3633 = vrot.lane.b32.xlu0 %v3193, 32
      %v3634 = vpop.permute.xlu0 %3633
      %v3636 = vsel %vm819, %v3580, 0
      %v3639 = vsel %vm1200, %v3634, 0
      %3641 = vmatprep.subr.bf16.mxu0 0
      %3642 = vmatpush1.bf16.msra.mxu0 %v3639
      %3643 = vmatprep.subr.bf16.mxu0 0
      %3644 = vmatpush1.bf16.msra.mxu0 0
      %3645 = vmatprep.subr.bf16.mxu0 0
      %3646 = vmatpush1.bf16.msra.mxu0 0
      %3647 = vmatprep.subr.bf16.mxu0 0
      %3648 = vmatpush1.bf16.msra.mxu0 0
      %3649 = vmatprep.subr.bf16.mxu0 0
      %3650 = vmatpush1.bf16.msra.mxu0 0
      %3651 = vmatprep.subr.bf16.mxu0 0
      %3652 = vmatpush1.bf16.msra.mxu0 0
      %3653 = vmatprep.subr.bf16.mxu0 0
      %3654 = vmatpush1.bf16.msra.mxu0 0
      %3655 = vmatprep.subr.bf16.mxu0 0
      %3656 = vmatpush1.bf16.msra.mxu0 0
      %3657 = vmatprep.subr.bf16.mxu0 0
      %3658 = vmatpush1.bf16.msra.mxu0 0
      %3659 = vmatprep.subr.bf16.mxu0 0
      %3660 = vmatpush1.bf16.msra.mxu0 0
      %3661 = vmatprep.subr.bf16.mxu0 0
      %3662 = vmatpush1.bf16.msra.mxu0 0
      %3663 = vmatprep.subr.bf16.mxu0 0
      %3664 = vmatpush1.bf16.msra.mxu0 0
      %3665 = vmatprep.subr.bf16.mxu0 0
      %3666 = vmatpush1.bf16.msra.mxu0 0
      %3667 = vmatprep.subr.bf16.mxu0 0
      %3668 = vmatpush1.bf16.msra.mxu0 0
      %3669 = vmatprep.subr.bf16.mxu0 0
      %3670 = vmatpush1.bf16.msra.mxu0 0
      %3671 = vmatprep.subr.bf16.mxu0 0
      %3672 = vmatpush1.bf16.msra.mxu0 0
      %3673 = vmatprep.mubr.bf16.mxu0 0
      %3674 = vmatmul.mubr.bf16.gmra.mrb[0].mxu0 %v3636
      %v3675 = vpop.f32.mrb[0].mxu0
      %v3676 = vadd.f32 0.0, %v3675
      %v3677 = vpop.f32.mrb[0].mxu0
      %v3678 = vpop.f32.mrb[0].mxu0
      %v3679 = vpop.f32.mrb[0].mxu0
      %3680 = vdwg.mxu0
      %3681 = vrot.lane.b32.xlu0 %v3194, 32
      %v3682 = vpop.permute.xlu0 %3681
      %v3684 = vsel %vm819, %v3581, 0
      %v3687 = vsel %vm1200, %v3682, 0
      %3689 = vmatprep.subr.bf16.mxu0 0
      %3690 = vmatpush1.bf16.msra.mxu0 %v3687
      %3691 = vmatprep.subr.bf16.mxu0 0
      %3692 = vmatpush1.bf16.msra.mxu0 0
      %3693 = vmatprep.subr.bf16.mxu0 0
      %3694 = vmatpush1.bf16.msra.mxu0 0
      %3695 = vmatprep.subr.bf16.mxu0 0
      %3696 = vmatpush1.bf16.msra.mxu0 0
      %3697 = vmatprep.subr.bf16.mxu0 0
      %3698 = vmatpush1.bf16.msra.mxu0 0
      %3699 = vmatprep.subr.bf16.mxu0 0
      %3700 = vmatpush1.bf16.msra.mxu0 0
      %3701 = vmatprep.subr.bf16.mxu0 0
      %3702 = vmatpush1.bf16.msra.mxu0 0
      %3703 = vmatprep.subr.bf16.mxu0 0
      %3704 = vmatpush1.bf16.msra.mxu0 0
      %3705 = vmatprep.subr.bf16.mxu0 0
      %3706 = vmatpush1.bf16.msra.mxu0 0
      %3707 = vmatprep.subr.bf16.mxu0 0
      %3708 = vmatpush1.bf16.msra.mxu0 0
      %3709 = vmatprep.subr.bf16.mxu0 0
      %3710 = vmatpush1.bf16.msra.mxu0 0
      %3711 = vmatprep.subr.bf16.mxu0 0
      %3712 = vmatpush1.bf16.msra.mxu0 0
      %3713 = vmatprep.subr.bf16.mxu0 0
      %3714 = vmatpush1.bf16.msra.mxu0 0
      %3715 = vmatprep.subr.bf16.mxu0 0
      %3716 = vmatpush1.bf16.msra.mxu0 0
      %3717 = vmatprep.subr.bf16.mxu0 0
      %3718 = vmatpush1.bf16.msra.mxu0 0
      %3719 = vmatprep.subr.bf16.mxu0 0
      %3720 = vmatpush1.bf16.msra.mxu0 0
      %3721 = vmatprep.mubr.bf16.mxu0 0
      %3722 = vmatmul.mubr.bf16.gmra.mrb[0].mxu0 %v3684
      %v3723 = vpop.f32.mrb[0].mxu0
      %v3724 = vadd.f32 0.0, %v3723
      %v3725 = vpop.f32.mrb[0].mxu0
      %v3726 = vpop.f32.mrb[0].mxu0
      %v3727 = vpop.f32.mrb[0].mxu0
      %3728 = vdwg.mxu0
      %3729 = vrot.lane.b32.xlu0 %v3195, 32
      %v3730 = vpop.permute.xlu0 %3729
      %v3732 = vsel %vm819, %v3582, 0
      %v3735 = vsel %vm1200, %v3730, 0
      %3737 = vmatprep.subr.bf16.mxu0 0
      %3738 = vmatpush1.bf16.msra.mxu0 %v3735
      %3739 = vmatprep.subr.bf16.mxu0 0
      %3740 = vmatpush1.bf16.msra.mxu0 0
      %3741 = vmatprep.subr.bf16.mxu0 0
      %3742 = vmatpush1.bf16.msra.mxu0 0
      %3743 = vmatprep.subr.bf16.mxu0 0
      %3744 = vmatpush1.bf16.msra.mxu0 0
      %3745 = vmatprep.subr.bf16.mxu0 0
      %3746 = vmatpush1.bf16.msra.mxu0 0
      %3747 = vmatprep.subr.bf16.mxu0 0
      %3748 = vmatpush1.bf16.msra.mxu0 0
      %3749 = vmatprep.subr.bf16.mxu0 0
      %3750 = vmatpush1.bf16.msra.mxu0 0
      %3751 = vmatprep.subr.bf16.mxu0 0
      %3752 = vmatpush1.bf16.msra.mxu0 0
      %3753 = vmatprep.subr.bf16.mxu0 0
      %3754 = vmatpush1.bf16.msra.mxu0 0
      %3755 = vmatprep.subr.bf16.mxu0 0
      %3756 = vmatpush1.bf16.msra.mxu0 0
      %3757 = vmatprep.subr.bf16.mxu0 0
      %3758 = vmatpush1.bf16.msra.mxu0 0
      %3759 = vmatprep.subr.bf16.mxu0 0
      %3760 = vmatpush1.bf16.msra.mxu0 0
      %3761 = vmatprep.subr.bf16.mxu0 0
      %3762 = vmatpush1.bf16.msra.mxu0 0
      %3763 = vmatprep.subr.bf16.mxu0 0
      %3764 = vmatpush1.bf16.msra.mxu0 0
      %3765 = vmatprep.subr.bf16.mxu0 0
      %3766 = vmatpush1.bf16.msra.mxu0 0
      %3767 = vmatprep.subr.bf16.mxu0 0
      %3768 = vmatpush1.bf16.msra.mxu0 0
      %3769 = vmatprep.mubr.bf16.mxu0 0
      %3770 = vmatmul.mubr.bf16.gmra.mrb[0].mxu0 %v3732
      %v3771 = vpop.f32.mrb[0].mxu0
      %v3772 = vadd.f32 0.0, %v3771
      %v3773 = vpop.f32.mrb[0].mxu0
      %v3774 = vpop.f32.mrb[0].mxu0
      %v3775 = vpop.f32.mrb[0].mxu0
      %3776 = vdwg.mxu0
      %3778 = vrot.lane.b32.xlu0 %v3205, 32
      %v3779 = vpop.permute.xlu0 %3778
      %v3781 = vsel %vm819, %v3583, 0
      %v3784 = vsel %vm1200, %v3779, 0
      %3786 = vmatprep.subr.bf16.mxu0 0
      %3787 = vmatpush1.bf16.msra.mxu0 %v3784
      %3788 = vmatprep.subr.bf16.mxu0 0
      %3789 = vmatpush1.bf16.msra.mxu0 0
      %3790 = vmatprep.subr.bf16.mxu0 0
      %3791 = vmatpush1.bf16.msra.mxu0 0
      %3792 = vmatprep.subr.bf16.mxu0 0
      %3793 = vmatpush1.bf16.msra.mxu0 0
      %3794 = vmatprep.subr.bf16.mxu0 0
      %3795 = vmatpush1.bf16.msra.mxu0 0
      %3796 = vmatprep.subr.bf16.mxu0 0
      %3797 = vmatpush1.bf16.msra.mxu0 0
      %3798 = vmatprep.subr.bf16.mxu0 0
      %3799 = vmatpush1.bf16.msra.mxu0 0
      %3800 = vmatprep.subr.bf16.mxu0 0
      %3801 = vmatpush1.bf16.msra.mxu0 0
      %3802 = vmatprep.subr.bf16.mxu0 0
      %3803 = vmatpush1.bf16.msra.mxu0 0
      %3804 = vmatprep.subr.bf16.mxu0 0
      %3805 = vmatpush1.bf16.msra.mxu0 0
      %3806 = vmatprep.subr.bf16.mxu0 0
      %3807 = vmatpush1.bf16.msra.mxu0 0
      %3808 = vmatprep.subr.bf16.mxu0 0
      %3809 = vmatpush1.bf16.msra.mxu0 0
      %3810 = vmatprep.subr.bf16.mxu0 0
      %3811 = vmatpush1.bf16.msra.mxu0 0
      %3812 = vmatprep.subr.bf16.mxu0 0
      %3813 = vmatpush1.bf16.msra.mxu0 0
      %3814 = vmatprep.subr.bf16.mxu0 0
      %3815 = vmatpush1.bf16.msra.mxu0 0
      %3816 = vmatprep.subr.bf16.mxu0 0
      %3817 = vmatpush1.bf16.msra.mxu0 0
      %3818 = vmatprep.mubr.bf16.mxu0 0
      %3819 = vmatmul.mubr.bf16.gmra.mrb[0].mxu0 %v3781
      %v3820 = vpop.f32.mrb[0].mxu0
      %v3821 = vadd.f32 0.0, %v3820
      %v3822 = vpop.f32.mrb[0].mxu0
      %v3823 = vpop.f32.mrb[0].mxu0
      %v3824 = vpop.f32.mrb[0].mxu0
      %3825 = vdwg.mxu0
      %3827 = vrot.lane.b32.xlu0 %v3206, 32
      %v3828 = vpop.permute.xlu0 %3827
      %v3830 = vsel %vm819, %v3584, 0
      %v3833 = vsel %vm1200, %v3828, 0
      %3835 = vmatprep.subr.bf16.mxu0 0
      %3836 = vmatpush1.bf16.msra.mxu0 %v3833
      %3837 = vmatprep.subr.bf16.mxu0 0
      %3838 = vmatpush1.bf16.msra.mxu0 0
      %3839 = vmatprep.subr.bf16.mxu0 0
      %3840 = vmatpush1.bf16.msra.mxu0 0
      %3841 = vmatprep.subr.bf16.mxu0 0
      %3842 = vmatpush1.bf16.msra.mxu0 0
      %3843 = vmatprep.subr.bf16.mxu0 0
      %3844 = vmatpush1.bf16.msra.mxu0 0
      %3845 = vmatprep.subr.bf16.mxu0 0
      %3846 = vmatpush1.bf16.msra.mxu0 0
      %3847 = vmatprep.subr.bf16.mxu0 0
      %3848 = vmatpush1.bf16.msra.mxu0 0
      %3849 = vmatprep.subr.bf16.mxu0 0
      %3850 = vmatpush1.bf16.msra.mxu0 0
      %3851 = vmatprep.subr.bf16.mxu0 0
      %3852 = vmatpush1.bf16.msra.mxu0 0
      %3853 = vmatprep.subr.bf16.mxu0 0
      %3854 = vmatpush1.bf16.msra.mxu0 0
      %3855 = vmatprep.subr.bf16.mxu0 0
      %3856 = vmatpush1.bf16.msra.mxu0 0
      %3857 = vmatprep.subr.bf16.mxu0 0
      %3858 = vmatpush1.bf16.msra.mxu0 0
      %3859 = vmatprep.subr.bf16.mxu0 0
      %3860 = vmatpush1.bf16.msra.mxu0 0
      %3861 = vmatprep.subr.bf16.mxu0 0
      %3862 = vmatpush1.bf16.msra.mxu0 0
      %3863 = vmatprep.subr.bf16.mxu0 0
      %3864 = vmatpush1.bf16.msra.mxu0 0
      %3865 = vmatprep.subr.bf16.mxu0 0
      %3866 = vmatpush1.bf16.msra.mxu0 0
      %3867 = vmatprep.mubr.bf16.mxu0 0
      %3868 = vmatmul.mubr.bf16.gmra.mrb[0].mxu0 %v3830
      %v3869 = vpop.f32.mrb[0].mxu0
      %v3870 = vadd.f32 0.0, %v3869
      %v3871 = vpop.f32.mrb[0].mxu0
      %v3872 = vpop.f32.mrb[0].mxu0
      %v3873 = vpop.f32.mrb[0].mxu0
      %3874 = vdwg.mxu0
      %3876 = vrot.lane.b32.xlu0 %v3676, 8
      %v3877 = vpop.permute.xlu0 %3876
      %3880 = vrot.lane.b32.xlu0 %v3724, 16
      %v3881 = vpop.permute.xlu0 %3880
      %3884 = vrot.lane.b32.xlu0 %v3772, 24
      %v3885 = vpop.permute.xlu0 %3884
      %3888 = vrot.lane.b32.xlu0 %v3821, 32
      %v3889 = vpop.permute.xlu0 %3888
      %3892 = vrot.lane.b32.xlu0 %v3870, 40
      %v3893 = vpop.permute.xlu0 %3892
      %v3895 = vsel %vm819, %v3628, %v3877
      %v3896 = vsel %vm1507, %v3895, %v3881
      %v3897 = vsel %vm1509, %v3896, %v3885
      %v3898 = vsel %vm1511, %v3897, %v3889
      %v3899 = vsel %vm1513, %v3898, %v3893
      %v3900 = vpack.c.bf16 %v3899, %v3899
      %s3901 = scalar_lea.vmem %s6, 48
      %v3902 = vld [vmem:[%s3901] sm:$0xf]
      %v3903 = vld [vmem:[%s3901 + $0x4] sm:$0xf]
      %v3904 = vld [vmem:[%s3901 + $0x8] sm:$0xf]
      %v3905 = vld [vmem:[%s3901 + $0xc] sm:$0xf]
      %v3906 = vld [vmem:[%s3901 + $0x10] sm:$0xf]
      %v3907 = vld [vmem:[%s3901 + $0x14] sm:$0xf]
      %v3914 = vunpack.c.l.b16 %v3902
      %v3915 = vunpack.c.l.b16 %v3903
      %v3916 = vunpack.c.l.b16 %v3904
      %v3917 = vunpack.c.l.b16 %v3905
      %v3918 = vunpack.c.l.b16 %v3906
      %v3919 = vunpack.c.l.b16 %v3907
      %v3920 = vpack.c.b16 %v3915, %v3914
      %v3921 = vpack.c.b16 %v3917, %v3916
      %v3922 = vpack.c.b16 %v3919, %v3918
      %v3927 = vsel %vm675, %v3900, 0
      %3929 = vmatprep.subr.bf16.mxu0 0
      %3930 = vmatpush1.bf16.msra.mxu0 %v3920
      %3931 = vmatprep.subr.bf16.mxu0 0
      %3932 = vmatpush1.bf16.msra.mxu0 %v3921
      %3933 = vmatprep.subr.bf16.mxu0 0
      %3934 = vmatpush1.bf16.msra.mxu0 %v3922
      %3935 = vmatprep.subr.bf16.mxu0 0
      %3936 = vmatpush1.bf16.msra.mxu0 0
      %3937 = vmatprep.subr.bf16.mxu0 0
      %3938 = vmatpush1.bf16.msra.mxu0 0
      %3939 = vmatprep.subr.bf16.mxu0 0
      %3940 = vmatpush1.bf16.msra.mxu0 0
      %3941 = vmatprep.subr.bf16.mxu0 0
      %3942 = vmatpush1.bf16.msra.mxu0 0
      %3943 = vmatprep.subr.bf16.mxu0 0
      %3944 = vmatpush1.bf16.msra.mxu0 0
      %3945 = vmatprep.subr.bf16.mxu0 0
      %3946 = vmatpush1.bf16.msra.mxu0 0
      %3947 = vmatprep.subr.bf16.mxu0 0
      %3948 = vmatpush1.bf16.msra.mxu0 0
      %3949 = vmatprep.subr.bf16.mxu0 0
      %3950 = vmatpush1.bf16.msra.mxu0 0
      %3951 = vmatprep.subr.bf16.mxu0 0
      %3952 = vmatpush1.bf16.msra.mxu0 0
      %3953 = vmatprep.subr.bf16.mxu0 0
      %3954 = vmatpush1.bf16.msra.mxu0 0
      %3955 = vmatprep.subr.bf16.mxu0 0
      %3956 = vmatpush1.bf16.msra.mxu0 0
      %3957 = vmatprep.subr.bf16.mxu0 0
      %3958 = vmatpush1.bf16.msra.mxu0 0
      %3959 = vmatprep.subr.bf16.mxu0 0
      %3960 = vmatpush1.bf16.msra.mxu0 0
      %3961 = vmatprep.mubr.bf16.mxu0 0
      %3962 = vmatmul.mubr.bf16.gmra.mrb[0].mxu0 %v3927
      %v3963 = vpop.f32.mrb[0].mxu0
      %v3964 = vadd.f32 0.0, %v3963
      %v3965 = vpop.f32.mrb[0].mxu0
      %v3966 = vpop.f32.mrb[0].mxu0
      %v3967 = vpop.f32.mrb[0].mxu0
      %3968 = vdwg.mxu0
      %v3969 = vadd.f32 %v3062, %v3964
      %s3970 = scalar_lea.vmem %s7, 2
      %v3971 = vld [vmem:[%s3970] sm:$0x1]
      %v3973 = vlaneseq
      %v3974 = vshrl.u32 %v3973, 7
      %v3975 = vsub.s32 0, %v3974
      %v3976 = vrot.slane %v3971, %v3975
      %v3978 = vadd.f32 %v3969, %v3976
      %s3979 = scalar_lea.vmem %s8, 2
      %v3980 = vld [vmem:[%s3979] sm:$0x1]
      %s3981 = scalar_lea.vmem %s9, 2
      %v3982 = vld [vmem:[%s3981] sm:$0x1]
      %v3983 = vsel %vm675, %v3978, 0.0
      %3984 = vadd.xlane.f32.xlu0 %v3983
      %v3985 = vpop.xlane.xlu0 %3984
      %v3986 = vmul.f32 %v3985, %v679
      %v3987 = vsub.f32 %v3978, %v3986
      %v3988 = vmul.f32 %v3987, %v3987
      %v3989 = vsel %vm675, %v3988, 0.0
      %3990 = vadd.xlane.f32.xlu0 %v3989
      %v3991 = vpop.xlane.xlu0 %3990
      %v3992 = vmul.f32 %v3991, %v679
      %v3993 = vadd.f32 %v3992, 1e-05
      %v3994 = vrsqrt.pop %v3993
      %v3995 = vmul.f32 %v3987, %v3994
      %v3997 = vlaneseq
      %v3998 = vshrl.u32 %v3997, 7
      %v3999 = vsub.s32 0, %v3998
      %v4000 = vrot.slane %v3980, %v3999
      %v4002 = vmul.f32 %v3995, %v4000
      %v4004 = vlaneseq
      %v4005 = vshrl.u32 %v4004, 7
      %v4006 = vsub.s32 0, %v4005
      %v4007 = vrot.slane %v3982, %v4006
      %v4009 = vadd.f32 %v4002, %v4007
      %v4010 = vpack.c.bf16 %v4009, %v4009
      %s4011 = scalar_lea.vmem %s10, 96
      %v4012 = vld [vmem:[%s4011] sm:$0xff]
      %v4013 = vld [vmem:[%s4011 + $0x8] sm:$0xff]
      %v4014 = vld [vmem:[%s4011 + $0x10] sm:$0xff]
      %v4015 = vld [vmem:[%s4011 + $0x18] sm:$0xff]
      %v4016 = vld [vmem:[%s4011 + $0x20] sm:$0xff]
      %v4017 = vld [vmem:[%s4011 + $0x28] sm:$0xff]
      %s4018 = scalar_lea.vmem %s11, 4
      %v4019 = vld [vmem:[%s4018] sm:$0x3]
      %v4021 = vlaneseq
      %v4022 = vshrl.u32 %v4021, 7
      %v4023 = vsub.s32 0, %v4022
      %v4024 = vrot.slane %v4019, %v4023
      %v4025 = vlaneseq
      %v4026 = vshrl.u32 %v4025, 7
      %v4027 = vsub.s32 1, %v4026
      %v4028 = vrot.slane %v4019, %v4027
      %v4037 = vunpack.c.l.b16 %v4012
      %v4038 = vunpack.c.h.b16 %v4012
      %v4039 = vunpack.c.l.b16 %v4013
      %v4040 = vunpack.c.h.b16 %v4013
      %v4041 = vunpack.c.l.b16 %v4014
      %v4042 = vunpack.c.h.b16 %v4014
      %v4043 = vunpack.c.l.b16 %v4015
      %v4044 = vunpack.c.h.b16 %v4015
      %v4045 = vunpack.c.l.b16 %v4016
      %v4046 = vunpack.c.h.b16 %v4016
      %v4047 = vunpack.c.l.b16 %v4017
      %v4048 = vunpack.c.h.b16 %v4017
      %v4049 = vpack.c.b16 %v4039, %v4037
      %v4050 = vpack.c.b16 %v4040, %v4038
      %v4051 = vpack.c.b16 %v4043, %v4041
      %v4052 = vpack.c.b16 %v4044, %v4042
      %v4053 = vpack.c.b16 %v4047, %v4045
      %v4054 = vpack.c.b16 %v4048, %v4046
      %v4062 = vsel %vm675, %v4010, 0
      %4064 = vmatprep.subr.bf16.mxu0 %v4050
      %4065 = vmatpush1.bf16.msra.mxu0 %v4049
      %4066 = vmatprep.subr.bf16.mxu0 %v4052
      %4067 = vmatpush1.bf16.msra.mxu0 %v4051
      %4068 = vmatprep.subr.bf16.mxu0 %v4054
      %4069 = vmatpush1.bf16.msra.mxu0 %v4053
      %4070 = vmatprep.subr.bf16.mxu0 0
      %4071 = vmatpush1.bf16.msra.mxu0 0
      %4072 = vmatprep.subr.bf16.mxu0 0
      %4073 = vmatpush1.bf16.msra.mxu0 0
      %4074 = vmatprep.subr.bf16.mxu0 0
      %4075 = vmatpush1.bf16.msra.mxu0 0
      %4076 = vmatprep.subr.bf16.mxu0 0
      %4077 = vmatpush1.bf16.msra.mxu0 0
      %4078 = vmatprep.subr.bf16.mxu0 0
      %4079 = vmatpush1.bf16.msra.mxu0 0
      %4080 = vmatprep.subr.bf16.mxu0 0
      %4081 = vmatpush1.bf16.msra.mxu0 0
      %4082 = vmatprep.subr.bf16.mxu0 0
      %4083 = vmatpush1.bf16.msra.mxu0 0
      %4084 = vmatprep.subr.bf16.mxu0 0
      %4085 = vmatpush1.bf16.msra.mxu0 0
      %4086 = vmatprep.subr.bf16.mxu0 0
      %4087 = vmatpush1.bf16.msra.mxu0 0
      %4088 = vmatprep.subr.bf16.mxu0 0
      %4089 = vmatpush1.bf16.msra.mxu0 0
      %4090 = vmatprep.subr.bf16.mxu0 0
      %4091 = vmatpush1.bf16.msra.mxu0 0
      %4092 = vmatprep.subr.bf16.mxu0 0
      %4093 = vmatpush1.bf16.msra.mxu0 0
      %4094 = vmatprep.subr.bf16.mxu0 0
      %4095 = vmatpush1.bf16.msra.mxu0 0
      %4096 = vmatprep.mubr.bf16.mxu0 0
      %4097 = vmatmul.mubr.bf16.gmra.mrb[0].mxu0 %v4062
      %v4098 = vpop.f32.mrb[0].mxu0
      %v4099 = vadd.f32 %v4024, %v4098
      %v4100 = vpop.f32.mrb[0].mxu0
      %v4101 = vadd.f32 %v4028, %v4100
      %v4102 = vpop.f32.mrb[0].mxu0
      %v4103 = vpop.f32.mrb[0].mxu0
      %4104 = vdwg.mxu0
      %v4105 = vmax.f32 %v4099, 0.0
      %v4106 = vmax.f32 %v4101, 0.0
      %v4107 = vpack.c.bf16 %v4105, %v4105
      %v4108 = vpack.c.bf16 %v4106, %v4106
      %s4109 = scalar_lea.vmem %s12, 192
      %v4110 = vld [vmem:[%s4109] sm:$0xf]
      %v4111 = vld [vmem:[%s4109 + $0x4] sm:$0xf]
      %v4112 = vld [vmem:[%s4109 + $0x8] sm:$0xf]
      %v4113 = vld [vmem:[%s4109 + $0xc] sm:$0xf]
      %v4114 = vld [vmem:[%s4109 + $0x10] sm:$0xf]
      %v4115 = vld [vmem:[%s4109 + $0x14] sm:$0xf]
      %v4116 = vld [vmem:[%s4109 + $0x18] sm:$0xf]
      %v4117 = vld [vmem:[%s4109 + $0x1c] sm:$0xf]
      %v4118 = vld [vmem:[%s4109 + $0x20] sm:$0xf]
      %v4119 = vld [vmem:[%s4109 + $0x24] sm:$0xf]
      %v4120 = vld [vmem:[%s4109 + $0x28] sm:$0xf]
      %v4121 = vld [vmem:[%s4109 + $0x2c] sm:$0xf]
      %v4122 = vld [vmem:[%s4109 + $0x30] sm:$0xf]
      %v4123 = vld [vmem:[%s4109 + $0x34] sm:$0xf]
      %v4124 = vld [vmem:[%s4109 + $0x38] sm:$0xf]
      %v4125 = vld [vmem:[%s4109 + $0x3c] sm:$0xf]
      %v4126 = vld [vmem:[%s4109 + $0x40] sm:$0xf]
      %v4127 = vld [vmem:[%s4109 + $0x44] sm:$0xf]
      %v4128 = vld [vmem:[%s4109 + $0x48] sm:$0xf]
      %v4129 = vld [vmem:[%s4109 + $0x4c] sm:$0xf]
      %v4130 = vld [vmem:[%s4109 + $0x50] sm:$0xf]
      %v4131 = vld [vmem:[%s4109 + $0x54] sm:$0xf]
      %v4132 = vld [vmem:[%s4109 + $0x58] sm:$0xf]
      %v4133 = vld [vmem:[%s4109 + $0x5c] sm:$0xf]
      %v4158 = vunpack.c.l.b16 %v4110
      %v4159 = vunpack.c.l.b16 %v4111
      %v4160 = vunpack.c.l.b16 %v4112
      %v4161 = vunpack.c.l.b16 %v4113
      %v4162 = vunpack.c.l.b16 %v4114
      %v4163 = vunpack.c.l.b16 %v4115
      %v4164 = vunpack.c.l.b16 %v4116
      %v4165 = vunpack.c.l.b16 %v4117
      %v4166 = vunpack.c.l.b16 %v4118
      %v4167 = vunpack.c.l.b16 %v4119
      %v4168 = vunpack.c.l.b16 %v4120
      %v4169 = vunpack.c.l.b16 %v4121
      %v4170 = vunpack.c.l.b16 %v4122
      %v4171 = vunpack.c.l.b16 %v4123
      %v4172 = vunpack.c.l.b16 %v4124
      %v4173 = vunpack.c.l.b16 %v4125
      %v4174 = vunpack.c.l.b16 %v4126
      %v4175 = vunpack.c.l.b16 %v4127
      %v4176 = vunpack.c.l.b16 %v4128
      %v4177 = vunpack.c.l.b16 %v4129
      %v4178 = vunpack.c.l.b16 %v4130
      %v4179 = vunpack.c.l.b16 %v4131
      %v4180 = vunpack.c.l.b16 %v4132
      %v4181 = vunpack.c.l.b16 %v4133
      %v4182 = vpack.c.b16 %v4159, %v4158
      %v4183 = vpack.c.b16 %v4161, %v4160
      %v4184 = vpack.c.b16 %v4163, %v4162
      %v4185 = vpack.c.b16 %v4165, %v4164
      %v4186 = vpack.c.b16 %v4167, %v4166
      %v4187 = vpack.c.b16 %v4169, %v4168
      %v4188 = vpack.c.b16 %v4171, %v4170
      %v4189 = vpack.c.b16 %v4173, %v4172
      %v4190 = vpack.c.b16 %v4175, %v4174
      %v4191 = vpack.c.b16 %v4177, %v4176
      %v4192 = vpack.c.b16 %v4179, %v4178
      %v4193 = vpack.c.b16 %v4181, %v4180
      %v4207 = vsel %vm1814, %v4108, 0
      %4209 = vmatprep.subr.bf16.mxu0 0
      %4210 = vmatpush1.bf16.msra.mxu0 %v4182
      %4211 = vmatprep.subr.bf16.mxu0 0
      %4212 = vmatpush1.bf16.msra.mxu0 %v4183
      %4213 = vmatprep.subr.bf16.mxu0 0
      %4214 = vmatpush1.bf16.msra.mxu0 %v4184
      %4215 = vmatprep.subr.bf16.mxu0 0
      %4216 = vmatpush1.bf16.msra.mxu0 %v4185
      %4217 = vmatprep.subr.bf16.mxu0 0
      %4218 = vmatpush1.bf16.msra.mxu0 %v4186
      %4219 = vmatprep.subr.bf16.mxu0 0
      %4220 = vmatpush1.bf16.msra.mxu0 %v4187
      %4221 = vmatprep.subr.bf16.mxu0 0
      %4222 = vmatpush1.bf16.msra.mxu0 %v4188
      %4223 = vmatprep.subr.bf16.mxu0 0
      %4224 = vmatpush1.bf16.msra.mxu0 %v4189
      %4225 = vmatprep.subr.bf16.mxu0 0
      %4226 = vmatpush1.bf16.msra.mxu0 %v4190
      %4227 = vmatprep.subr.bf16.mxu0 0
      %4228 = vmatpush1.bf16.msra.mxu0 %v4191
      %4229 = vmatprep.subr.bf16.mxu0 0
      %4230 = vmatpush1.bf16.msra.mxu0 %v4192
      %4231 = vmatprep.subr.bf16.mxu0 0
      %4232 = vmatpush1.bf16.msra.mxu0 %v4193
      %4233 = vmatprep.subr.bf16.mxu0 0
      %4234 = vmatpush1.bf16.msra.mxu0 0
      %4235 = vmatprep.subr.bf16.mxu0 0
      %4236 = vmatpush1.bf16.msra.mxu0 0
      %4237 = vmatprep.subr.bf16.mxu0 0
      %4238 = vmatpush1.bf16.msra.mxu0 0
      %4239 = vmatprep.subr.bf16.mxu0 0
      %4240 = vmatpush1.bf16.msra.mxu0 0
      %4241 = vmatprep.mubr.bf16.mxu0 %v4207
      %4242 = vmatmul.mubr.bf16.gmra.mrb[0].mxu0 %v4107
      %v4243 = vpop.f32.mrb[0].mxu0
      %v4244 = vadd.f32 0.0, %v4243
      %v4245 = vpop.f32.mrb[0].mxu0
      %v4246 = vpop.f32.mrb[0].mxu0
      %v4247 = vpop.f32.mrb[0].mxu0
      %4248 = vdwg.mxu0
      %v4249 = vadd.f32 %v3978, %v4244
      %s4250 = scalar_lea.vmem %s13, 2
      %v4251 = vld [vmem:[%s4250] sm:$0x1]
      %v4253 = vlaneseq
      %v4254 = vshrl.u32 %v4253, 7
      %v4255 = vsub.s32 0, %v4254
      %v4256 = vrot.slane %v4251, %v4255
      %v4258 = vadd.f32 %v4249, %v4256
      %s4259 = scalar_lea.vmem %s3, 3
      %v4260 = vld [vmem:[%s4259] sm:$0x1]
      %s4261 = scalar_lea.vmem %s4, 3
      %v4262 = vld [vmem:[%s4261] sm:$0x1]
      %v4263 = vsel %vm675, %v4258, 0.0
      %4264 = vadd.xlane.f32.xlu0 %v4263
      %v4265 = vpop.xlane.xlu0 %4264
      %v4266 = vmul.f32 %v4265, %v679
      %v4267 = vsub.f32 %v4258, %v4266
      %v4268 = vmul.f32 %v4267, %v4267
      %v4269 = vsel %vm675, %v4268, 0.0
      %4270 = vadd.xlane.f32.xlu0 %v4269
      %v4271 = vpop.xlane.xlu0 %4270
      %v4272 = vmul.f32 %v4271, %v679
      %v4273 = vadd.f32 %v4272, 1e-05
      %v4274 = vrsqrt.pop %v4273
      %v4275 = vmul.f32 %v4267, %v4274
      %v4277 = vlaneseq
      %v4278 = vshrl.u32 %v4277, 7
      %v4279 = vsub.s32 0, %v4278
      %v4280 = vrot.slane %v4260, %v4279
      %v4282 = vmul.f32 %v4275, %v4280
      %v4284 = vlaneseq
      %v4285 = vshrl.u32 %v4284, 7
      %v4286 = vsub.s32 0, %v4285
      %v4287 = vrot.slane %v4262, %v4286
      %v4289 = vadd.f32 %v4282, %v4287
      %v4290 = vpack.c.bf16 %v4289, %v4289
      %s4291 = scalar_lea.vmem %s5, 144
      %v4292 = vld [vmem:[%s4291] sm:$0xff]
      %v4293 = vld [vmem:[%s4291 + $0x8] sm:$0xff]
      %v4294 = vld [vmem:[%s4291 + $0x10] sm:$0xff]
      %v4295 = vld [vmem:[%s4291 + $0x18] sm:$0xff]
      %v4296 = vld [vmem:[%s4291 + $0x20] sm:$0xff]
      %v4297 = vld [vmem:[%s4291 + $0x28] sm:$0xff]
      %v4304 = vunpack.c.l.b16 %v4292
      %v4305 = vunpack.c.h.b16 %v4292
      %v4306 = vunpack.c.l.b16 %v4293
      %v4307 = vunpack.c.h.b16 %v4293
      %v4308 = vunpack.c.l.b16 %v4294
      %v4309 = vunpack.c.h.b16 %v4294
      %v4310 = vunpack.c.l.b16 %v4295
      %v4311 = vunpack.c.h.b16 %v4295
      %v4312 = vunpack.c.l.b16 %v4296
      %v4313 = vunpack.c.h.b16 %v4296
      %v4314 = vunpack.c.l.b16 %v4297
      %v4315 = vunpack.c.h.b16 %v4297
      %v4316 = vpack.c.b16 %v4306, %v4304
      %v4317 = vpack.c.b16 %v4307, %v4305
      %v4318 = vpack.c.b16 %v4310, %v4308
      %v4319 = vpack.c.b16 %v4311, %v4309
      %v4320 = vpack.c.b16 %v4314, %v4312
      %v4321 = vpack.c.b16 %v4315, %v4313
      %v4329 = vsel %vm675, %v4290, 0
      %4331 = vmatprep.subr.bf16.mxu0 %v4317
      %4332 = vmatpush1.bf16.msra.mxu0 %v4316
      %4333 = vmatprep.subr.bf16.mxu0 %v4319
      %4334 = vmatpush1.bf16.msra.mxu0 %v4318
      %4335 = vmatprep.subr.bf16.mxu0 %v4321
      %4336 = vmatpush1.bf16.msra.mxu0 %v4320
      %4337 = vmatprep.subr.bf16.mxu0 0
      %4338 = vmatpush1.bf16.msra.mxu0 0
      %4339 = vmatprep.subr.bf16.mxu0 0
      %4340 = vmatpush1.bf16.msra.mxu0 0
      %4341 = vmatprep.subr.bf16.mxu0 0
      %4342 = vmatpush1.bf16.msra.mxu0 0
      %4343 = vmatprep.subr.bf16.mxu0 0
      %4344 = vmatpush1.bf16.msra.mxu0 0
      %4345 = vmatprep.subr.bf16.mxu0 0
      %4346 = vmatpush1.bf16.msra.mxu0 0
      %4347 = vmatprep.subr.bf16.mxu0 0
      %4348 = vmatpush1.bf16.msra.mxu0 0
      %4349 = vmatprep.subr.bf16.mxu0 0
      %4350 = vmatpush1.bf16.msra.mxu0 0
      %4351 = vmatprep.subr.bf16.mxu0 0
      %4352 = vmatpush1.bf16.msra.mxu0 0
      %4353 = vmatprep.subr.bf16.mxu0 0
      %4354 = vmatpush1.bf16.msra.mxu0 0
      %4355 = vmatprep.subr.bf16.mxu0 0
      %4356 = vmatpush1.bf16.msra.mxu0 0
      %4357 = vmatprep.subr.bf16.mxu0 0
      %4358 = vmatpush1.bf16.msra.mxu0 0
      %4359 = vmatprep.subr.bf16.mxu0 0
      %4360 = vmatpush1.bf16.msra.mxu0 0
      %4361 = vmatprep.subr.bf16.mxu0 0
      %4362 = vmatpush1.bf16.msra.mxu0 0
      %4363 = vmatprep.mubr.bf16.mxu0 0
      %4364 = vmatmul.mubr.bf16.gmra.mrb[0].mxu0 %v4329
      %v4365 = vpop.f32.mrb[0].mxu0
      %v4366 = vadd.f32 0.0, %v4365
      %v4367 = vpop.f32.mrb[0].mxu0
      %v4368 = vadd.f32 0.0, %v4367
      %v4369 = vpop.f32.mrb[0].mxu0
      %v4370 = vpop.f32.mrb[0].mxu0
      %4371 = vdwg.mxu0
      %4373 = vrot.lane.b32.xlu0 %v4366, 120
      %v4374 = vpop.permute.xlu0 %4373
      %4376 = vrot.lane.b32.xlu0 %v4366, 112
      %v4377 = vpop.permute.xlu0 %4376
      %4379 = vrot.lane.b32.xlu0 %v4366, 104
      %v4380 = vpop.permute.xlu0 %4379
      %4382 = vrot.lane.b32.xlu0 %v4366, 96
      %v4383 = vpop.permute.xlu0 %4382
      %4385 = vrot.lane.b32.xlu0 %v4366, 88
      %v4386 = vpop.permute.xlu0 %4385
      %v4388 = vpack.c.bf16 %v4366, %v4366
      %v4389 = vpack.c.bf16 %v4374, %v4374
      %v4390 = vpack.c.bf16 %v4377, %v4377
      %v4391 = vpack.c.bf16 %v4380, %v4380
      %v4392 = vpack.c.bf16 %v4383, %v4383
      %v4393 = vpack.c.bf16 %v4386, %v4386
      %4395 = vrot.lane.b32.xlu0 %v4368, 96
      %v4396 = vpop.permute.xlu0 %4395
      %4398 = vrot.lane.b32.xlu0 %v4368, 88
      %v4399 = vpop.permute.xlu0 %4398
      %v4401 = vpack.c.bf16 %v4396, %v4396
      %v4402 = vpack.c.bf16 %v4399, %v4399
      %4404 = vrot.lane.b32.xlu0 %v4388, 80
      %v4405 = vpop.permute.xlu0 %4404
      %v4407 = vsel %vm819, %v4388, 0
      %v4410 = vsel %vm819, %v4405, 0
      %4412 = vmatprep.subr.bf16.mxu0 0
      %4413 = vmatpush1.bf16.xpose.msra.mxu0 %v4410
      %4414 = vmatprep.subr.bf16.mxu0 0
      %4415 = vmatpush1.bf16.xpose.msra.mxu0 0
      %4416 = vmatprep.subr.bf16.mxu0 0
      %4417 = vmatpush1.bf16.xpose.msra.mxu0 0
      %4418 = vmatprep.subr.bf16.mxu0 0
      %4419 = vmatpush1.bf16.xpose.msra.mxu0 0
      %4420 = vmatprep.subr.bf16.mxu0 0
      %4421 = vmatpush1.bf16.xpose.msra.mxu0 0
      %4422 = vmatprep.subr.bf16.mxu0 0
      %4423 = vmatpush1.bf16.xpose.msra.mxu0 0
      %4424 = vmatprep.subr.bf16.mxu0 0
      %4425 = vmatpush1.bf16.xpose.msra.mxu0 0
      %4426 = vmatprep.subr.bf16.mxu0 0
      %4427 = vmatpush1.bf16.xpose.msra.mxu0 0
      %4428 = vmatprep.subr.bf16.mxu0 0
      %4429 = vmatpush1.bf16.xpose.msra.mxu0 0
      %4430 = vmatprep.subr.bf16.mxu0 0
      %4431 = vmatpush1.bf16.xpose.msra.mxu0 0
      %4432 = vmatprep.subr.bf16.mxu0 0
      %4433 = vmatpush1.bf16.xpose.msra.mxu0 0
      %4434 = vmatprep.subr.bf16.mxu0 0
      %4435 = vmatpush1.bf16.xpose.msra.mxu0 0
      %4436 = vmatprep.subr.bf16.mxu0 0
      %4437 = vmatpush1.bf16.xpose.msra.mxu0 0
      %4438 = vmatprep.subr.bf16.mxu0 0
      %4439 = vmatpush1.bf16.xpose.msra.mxu0 0
      %4440 = vmatprep.subr.bf16.mxu0 0
      %4441 = vmatpush1.bf16.xpose.msra.mxu0 0
      %4442 = vmatprep.subr.bf16.mxu0 0
      %4443 = vmatpush1.bf16.xpose.msra.mxu0 0
      %4444 = vmatprep.mubr.bf16.mxu0 0
      %4445 = vmatmul.mubr.bf16.gmra.mrb[0].mxu0 %v4407
      %v4446 = vpop.f32.mrb[0].mxu0
      %v4447 = vadd.f32 0.0, %v4446
      %v4448 = vpop.f32.mrb[0].mxu0
      %v4449 = vpop.f32.mrb[0].mxu0
      %v4450 = vpop.f32.mrb[0].mxu0
      %4451 = vdwg.mxu0
      %4453 = vrot.lane.b32.xlu0 %v4389, 80
      %v4454 = vpop.permute.xlu0 %4453
      %v4456 = vsel %vm819, %v4389, 0
      %v4459 = vsel %vm819, %v4454, 0
      %4461 = vmatprep.subr.bf16.mxu0 0
      %4462 = vmatpush1.bf16.xpose.msra.mxu0 %v4459
      %4463 = vmatprep.subr.bf16.mxu0 0
      %4464 = vmatpush1.bf16.xpose.msra.mxu0 0
      %4465 = vmatprep.subr.bf16.mxu0 0
      %4466 = vmatpush1.bf16.xpose.msra.mxu0 0
      %4467 = vmatprep.subr.bf16.mxu0 0
      %4468 = vmatpush1.bf16.xpose.msra.mxu0 0
      %4469 = vmatprep.subr.bf16.mxu0 0
      %4470 = vmatpush1.bf16.xpose.msra.mxu0 0
      %4471 = vmatprep.subr.bf16.mxu0 0
      %4472 = vmatpush1.bf16.xpose.msra.mxu0 0
      %4473 = vmatprep.subr.bf16.mxu0 0
      %4474 = vmatpush1.bf16.xpose.msra.mxu0 0
      %4475 = vmatprep.subr.bf16.mxu0 0
      %4476 = vmatpush1.bf16.xpose.msra.mxu0 0
      %4477 = vmatprep.subr.bf16.mxu0 0
      %4478 = vmatpush1.bf16.xpose.msra.mxu0 0
      %4479 = vmatprep.subr.bf16.mxu0 0
      %4480 = vmatpush1.bf16.xpose.msra.mxu0 0
      %4481 = vmatprep.subr.bf16.mxu0 0
      %4482 = vmatpush1.bf16.xpose.msra.mxu0 0
      %4483 = vmatprep.subr.bf16.mxu0 0
      %4484 = vmatpush1.bf16.xpose.msra.mxu0 0
      %4485 = vmatprep.subr.bf16.mxu0 0
      %4486 = vmatpush1.bf16.xpose.msra.mxu0 0
      %4487 = vmatprep.subr.bf16.mxu0 0
      %4488 = vmatpush1.bf16.xpose.msra.mxu0 0
      %4489 = vmatprep.subr.bf16.mxu0 0
      %4490 = vmatpush1.bf16.xpose.msra.mxu0 0
      %4491 = vmatprep.subr.bf16.mxu0 0
      %4492 = vmatpush1.bf16.xpose.msra.mxu0 0
      %4493 = vmatprep.mubr.bf16.mxu0 0
      %4494 = vmatmul.mubr.bf16.gmra.mrb[0].mxu0 %v4456
      %v4495 = vpop.f32.mrb[0].mxu0
      %v4496 = vadd.f32 0.0, %v4495
      %v4497 = vpop.f32.mrb[0].mxu0
      %v4498 = vpop.f32.mrb[0].mxu0
      %v4499 = vpop.f32.mrb[0].mxu0
      %4500 = vdwg.mxu0
      %4502 = vrot.lane.b32.xlu0 %v4390, 80
      %v4503 = vpop.permute.xlu0 %4502
      %v4505 = vsel %vm819, %v4390, 0
      %v4508 = vsel %vm819, %v4503, 0
      %4510 = vmatprep.subr.bf16.mxu0 0
      %4511 = vmatpush1.bf16.xpose.msra.mxu0 %v4508
      %4512 = vmatprep.subr.bf16.mxu0 0
      %4513 = vmatpush1.bf16.xpose.msra.mxu0 0
      %4514 = vmatprep.subr.bf16.mxu0 0
      %4515 = vmatpush1.bf16.xpose.msra.mxu0 0
      %4516 = vmatprep.subr.bf16.mxu0 0
      %4517 = vmatpush1.bf16.xpose.msra.mxu0 0
      %4518 = vmatprep.subr.bf16.mxu0 0
      %4519 = vmatpush1.bf16.xpose.msra.mxu0 0
      %4520 = vmatprep.subr.bf16.mxu0 0
      %4521 = vmatpush1.bf16.xpose.msra.mxu0 0
      %4522 = vmatprep.subr.bf16.mxu0 0
      %4523 = vmatpush1.bf16.xpose.msra.mxu0 0
      %4524 = vmatprep.subr.bf16.mxu0 0
      %4525 = vmatpush1.bf16.xpose.msra.mxu0 0
      %4526 = vmatprep.subr.bf16.mxu0 0
      %4527 = vmatpush1.bf16.xpose.msra.mxu0 0
      %4528 = vmatprep.subr.bf16.mxu0 0
      %4529 = vmatpush1.bf16.xpose.msra.mxu0 0
      %4530 = vmatprep.subr.bf16.mxu0 0
      %4531 = vmatpush1.bf16.xpose.msra.mxu0 0
      %4532 = vmatprep.subr.bf16.mxu0 0
      %4533 = vmatpush1.bf16.xpose.msra.mxu0 0
      %4534 = vmatprep.subr.bf16.mxu0 0
      %4535 = vmatpush1.bf16.xpose.msra.mxu0 0
      %4536 = vmatprep.subr.bf16.mxu0 0
      %4537 = vmatpush1.bf16.xpose.msra.mxu0 0
      %4538 = vmatprep.subr.bf16.mxu0 0
      %4539 = vmatpush1.bf16.xpose.msra.mxu0 0
      %4540 = vmatprep.subr.bf16.mxu0 0
      %4541 = vmatpush1.bf16.xpose.msra.mxu0 0
      %4542 = vmatprep.mubr.bf16.mxu0 0
      %4543 = vmatmul.mubr.bf16.gmra.mrb[0].mxu0 %v4505
      %v4544 = vpop.f32.mrb[0].mxu0
      %v4545 = vadd.f32 0.0, %v4544
      %v4546 = vpop.f32.mrb[0].mxu0
      %v4547 = vpop.f32.mrb[0].mxu0
      %v4548 = vpop.f32.mrb[0].mxu0
      %4549 = vdwg.mxu0
      %4551 = vrot.lane.b32.xlu0 %v4391, 80
      %v4552 = vpop.permute.xlu0 %4551
      %v4554 = vsel %vm819, %v4391, 0
      %v4557 = vsel %vm819, %v4552, 0
      %4559 = vmatprep.subr.bf16.mxu0 0
      %4560 = vmatpush1.bf16.xpose.msra.mxu0 %v4557
      %4561 = vmatprep.subr.bf16.mxu0 0
      %4562 = vmatpush1.bf16.xpose.msra.mxu0 0
      %4563 = vmatprep.subr.bf16.mxu0 0
      %4564 = vmatpush1.bf16.xpose.msra.mxu0 0
      %4565 = vmatprep.subr.bf16.mxu0 0
      %4566 = vmatpush1.bf16.xpose.msra.mxu0 0
      %4567 = vmatprep.subr.bf16.mxu0 0
      %4568 = vmatpush1.bf16.xpose.msra.mxu0 0
      %4569 = vmatprep.subr.bf16.mxu0 0
      %4570 = vmatpush1.bf16.xpose.msra.mxu0 0
      %4571 = vmatprep.subr.bf16.mxu0 0
      %4572 = vmatpush1.bf16.xpose.msra.mxu0 0
      %4573 = vmatprep.subr.bf16.mxu0 0
      %4574 = vmatpush1.bf16.xpose.msra.mxu0 0
      %4575 = vmatprep.subr.bf16.mxu0 0
      %4576 = vmatpush1.bf16.xpose.msra.mxu0 0
      %4577 = vmatprep.subr.bf16.mxu0 0
      %4578 = vmatpush1.bf16.xpose.msra.mxu0 0
      %4579 = vmatprep.subr.bf16.mxu0 0
      %4580 = vmatpush1.bf16.xpose.msra.mxu0 0
      %4581 = vmatprep.subr.bf16.mxu0 0
      %4582 = vmatpush1.bf16.xpose.msra.mxu0 0
      %4583 = vmatprep.subr.bf16.mxu0 0
      %4584 = vmatpush1.bf16.xpose.msra.mxu0 0
      %4585 = vmatprep.subr.bf16.mxu0 0
      %4586 = vmatpush1.bf16.xpose.msra.mxu0 0
      %4587 = vmatprep.subr.bf16.mxu0 0
      %4588 = vmatpush1.bf16.xpose.msra.mxu0 0
      %4589 = vmatprep.subr.bf16.mxu0 0
      %4590 = vmatpush1.bf16.xpose.msra.mxu0 0
      %4591 = vmatprep.mubr.bf16.mxu0 0
      %4592 = vmatmul.mubr.bf16.gmra.mrb[0].mxu0 %v4554
      %v4593 = vpop.f32.mrb[0].mxu0
      %v4594 = vadd.f32 0.0, %v4593
      %v4595 = vpop.f32.mrb[0].mxu0
      %v4596 = vpop.f32.mrb[0].mxu0
      %v4597 = vpop.f32.mrb[0].mxu0
      %4598 = vdwg.mxu0
      %4600 = vrot.lane.b32.xlu0 %v4392, 80
      %v4601 = vpop.permute.xlu0 %4600
      %v4603 = vsel %vm819, %v4392, 0
      %v4606 = vsel %vm819, %v4601, 0
      %4608 = vmatprep.subr.bf16.mxu0 0
      %4609 = vmatpush1.bf16.xpose.msra.mxu0 %v4606
      %4610 = vmatprep.subr.bf16.mxu0 0
      %4611 = vmatpush1.bf16.xpose.msra.mxu0 0
      %4612 = vmatprep.subr.bf16.mxu0 0
      %4613 = vmatpush1.bf16.xpose.msra.mxu0 0
      %4614 = vmatprep.subr.bf16.mxu0 0
      %4615 = vmatpush1.bf16.xpose.msra.mxu0 0
      %4616 = vmatprep.subr.bf16.mxu0 0
      %4617 = vmatpush1.bf16.xpose.msra.mxu0 0
      %4618 = vmatprep.subr.bf16.mxu0 0
      %4619 = vmatpush1.bf16.xpose.msra.mxu0 0
      %4620 = vmatprep.subr.bf16.mxu0 0
      %4621 = vmatpush1.bf16.xpose.msra.mxu0 0
      %4622 = vmatprep.subr.bf16.mxu0 0
      %4623 = vmatpush1.bf16.xpose.msra.mxu0 0
      %4624 = vmatprep.subr.bf16.mxu0 0
      %4625 = vmatpush1.bf16.xpose.msra.mxu0 0
      %4626 = vmatprep.subr.bf16.mxu0 0
      %4627 = vmatpush1.bf16.xpose.msra.mxu0 0
      %4628 = vmatprep.subr.bf16.mxu0 0
      %4629 = vmatpush1.bf16.xpose.msra.mxu0 0
      %4630 = vmatprep.subr.bf16.mxu0 0
      %4631 = vmatpush1.bf16.xpose.msra.mxu0 0
      %4632 = vmatprep.subr.bf16.mxu0 0
      %4633 = vmatpush1.bf16.xpose.msra.mxu0 0
      %4634 = vmatprep.subr.bf16.mxu0 0
      %4635 = vmatpush1.bf16.xpose.msra.mxu0 0
      %4636 = vmatprep.subr.bf16.mxu0 0
      %4637 = vmatpush1.bf16.xpose.msra.mxu0 0
      %4638 = vmatprep.subr.bf16.mxu0 0
      %4639 = vmatpush1.bf16.xpose.msra.mxu0 0
      %4640 = vmatprep.mubr.bf16.mxu0 0
      %4641 = vmatmul.mubr.bf16.gmra.mrb[0].mxu0 %v4603
      %v4642 = vpop.f32.mrb[0].mxu0
      %v4643 = vadd.f32 0.0, %v4642
      %v4644 = vpop.f32.mrb[0].mxu0
      %v4645 = vpop.f32.mrb[0].mxu0
      %v4646 = vpop.f32.mrb[0].mxu0
      %4647 = vdwg.mxu0
      %4649 = vrot.lane.b32.xlu0 %v4393, 80
      %v4650 = vpop.permute.xlu0 %4649
      %v4652 = vsel %vm819, %v4393, 0
      %v4655 = vsel %vm819, %v4650, 0
      %4657 = vmatprep.subr.bf16.mxu0 0
      %4658 = vmatpush1.bf16.xpose.msra.mxu0 %v4655
      %4659 = vmatprep.subr.bf16.mxu0 0
      %4660 = vmatpush1.bf16.xpose.msra.mxu0 0
      %4661 = vmatprep.subr.bf16.mxu0 0
      %4662 = vmatpush1.bf16.xpose.msra.mxu0 0
      %4663 = vmatprep.subr.bf16.mxu0 0
      %4664 = vmatpush1.bf16.xpose.msra.mxu0 0
      %4665 = vmatprep.subr.bf16.mxu0 0
      %4666 = vmatpush1.bf16.xpose.msra.mxu0 0
      %4667 = vmatprep.subr.bf16.mxu0 0
      %4668 = vmatpush1.bf16.xpose.msra.mxu0 0
      %4669 = vmatprep.subr.bf16.mxu0 0
      %4670 = vmatpush1.bf16.xpose.msra.mxu0 0
      %4671 = vmatprep.subr.bf16.mxu0 0
      %4672 = vmatpush1.bf16.xpose.msra.mxu0 0
      %4673 = vmatprep.subr.bf16.mxu0 0
      %4674 = vmatpush1.bf16.xpose.msra.mxu0 0
      %4675 = vmatprep.subr.bf16.mxu0 0
      %4676 = vmatpush1.bf16.xpose.msra.mxu0 0
      %4677 = vmatprep.subr.bf16.mxu0 0
      %4678 = vmatpush1.bf16.xpose.msra.mxu0 0
      %4679 = vmatprep.subr.bf16.mxu0 0
      %4680 = vmatpush1.bf16.xpose.msra.mxu0 0
      %4681 = vmatprep.subr.bf16.mxu0 0
      %4682 = vmatpush1.bf16.xpose.msra.mxu0 0
      %4683 = vmatprep.subr.bf16.mxu0 0
      %4684 = vmatpush1.bf16.xpose.msra.mxu0 0
      %4685 = vmatprep.subr.bf16.mxu0 0
      %4686 = vmatpush1.bf16.xpose.msra.mxu0 0
      %4687 = vmatprep.subr.bf16.mxu0 0
      %4688 = vmatpush1.bf16.xpose.msra.mxu0 0
      %4689 = vmatprep.mubr.bf16.mxu0 0
      %4690 = vmatmul.mubr.bf16.gmra.mrb[0].mxu0 %v4652
      %v4691 = vpop.f32.mrb[0].mxu0
      %v4692 = vadd.f32 0.0, %v4691
      %v4693 = vpop.f32.mrb[0].mxu0
      %v4694 = vpop.f32.mrb[0].mxu0
      %v4695 = vpop.f32.mrb[0].mxu0
      %4696 = vdwg.mxu0
      %v4697 = vmul.f32 %v4447, 0.35355338
      %v4698 = vmul.f32 %v4496, 0.35355338
      %v4699 = vmul.f32 %v4545, 0.35355338
      %v4700 = vmul.f32 %v4594, 0.35355338
      %v4701 = vmul.f32 %v4643, 0.35355338
      %v4702 = vmul.f32 %v4692, 0.35355338
      %v4703 = vadd.f32 %v4697, %v672
      %v4704 = vadd.f32 %v4698, %v672
      %v4705 = vadd.f32 %v4699, %v672
      %v4706 = vadd.f32 %v4700, %v672
      %v4707 = vadd.f32 %v4701, %v672
      %v4708 = vadd.f32 %v4702, %v672
      %v4709 = vsel %vm819, %v4703, -inf
      %4710 = vmax.xlane.f32.xlu0 %v4709
      %v4711 = vpop.xlane.xlu0 %4710
      %v4712 = vsel %vm819, %v4704, -inf
      %4713 = vmax.xlane.f32.xlu0 %v4712
      %v4714 = vpop.xlane.xlu0 %4713
      %v4715 = vsel %vm819, %v4705, -inf
      %4716 = vmax.xlane.f32.xlu0 %v4715
      %v4717 = vpop.xlane.xlu0 %4716
      %v4718 = vsel %vm819, %v4706, -inf
      %4719 = vmax.xlane.f32.xlu0 %v4718
      %v4720 = vpop.xlane.xlu0 %4719
      %v4721 = vsel %vm819, %v4707, -inf
      %4722 = vmax.xlane.f32.xlu0 %v4721
      %v4723 = vpop.xlane.xlu0 %4722
      %v4724 = vsel %vm819, %v4708, -inf
      %4725 = vmax.xlane.f32.xlu0 %v4724
      %v4726 = vpop.xlane.xlu0 %4725
      %v4727 = vsub.f32 %v4703, %v4711
      %v4728 = vsub.f32 %v4704, %v4714
      %v4729 = vsub.f32 %v4705, %v4717
      %v4730 = vsub.f32 %v4706, %v4720
      %v4731 = vsub.f32 %v4707, %v4723
      %v4732 = vsub.f32 %v4708, %v4726
      %v4733 = vmul.f32 %v4727, 1.442695
      %v4734 = vpow.pop %v4733
      %v4735 = vmul.f32 %v4728, 1.442695
      %v4736 = vpow.pop %v4735
      %v4737 = vmul.f32 %v4729, 1.442695
      %v4738 = vpow.pop %v4737
      %v4739 = vmul.f32 %v4730, 1.442695
      %v4740 = vpow.pop %v4739
      %v4741 = vmul.f32 %v4731, 1.442695
      %v4742 = vpow.pop %v4741
      %v4743 = vmul.f32 %v4732, 1.442695
      %v4744 = vpow.pop %v4743
      %v4745 = vsel %vm819, %v4734, 0.0
      %4746 = vadd.xlane.f32.xlu0 %v4745
      %v4747 = vpop.xlane.xlu0 %4746
      %v4748 = vsel %vm819, %v4736, 0.0
      %4749 = vadd.xlane.f32.xlu0 %v4748
      %v4750 = vpop.xlane.xlu0 %4749
      %v4751 = vsel %vm819, %v4738, 0.0
      %4752 = vadd.xlane.f32.xlu0 %v4751
      %v4753 = vpop.xlane.xlu0 %4752
      %v4754 = vsel %vm819, %v4740, 0.0
      %4755 = vadd.xlane.f32.xlu0 %v4754
      %v4756 = vpop.xlane.xlu0 %4755
      %v4757 = vsel %vm819, %v4742, 0.0
      %4758 = vadd.xlane.f32.xlu0 %v4757
      %v4759 = vpop.xlane.xlu0 %4758
      %v4760 = vsel %vm819, %v4744, 0.0
      %4761 = vadd.xlane.f32.xlu0 %v4760
      %v4762 = vpop.xlane.xlu0 %4761
      %v4763 = vrcp.pop %v4747
      %v4764 = vrcp.pop %v4750
      %v4765 = vrcp.pop %v4753
      %v4766 = vrcp.pop %v4756
      %v4767 = vrcp.pop %v4759
      %v4768 = vrcp.pop %v4762
      %v4769 = vmul.f32 %v4734, %v4763
      %v4770 = vmul.f32 %v4736, %v4764
      %v4771 = vmul.f32 %v4738, %v4765
      %v4772 = vmul.f32 %v4740, %v4766
      %v4773 = vmul.f32 %v4742, %v4767
      %v4774 = vmul.f32 %v4744, %v4768
      %v4775 = vpack.c.bf16 %v4769, %v4769
      %v4776 = vpack.c.bf16 %v4770, %v4770
      %v4777 = vpack.c.bf16 %v4771, %v4771
      %v4778 = vpack.c.bf16 %v4772, %v4772
      %v4779 = vpack.c.bf16 %v4773, %v4773
      %v4780 = vpack.c.bf16 %v4774, %v4774
      %4781 = vrot.lane.b32.xlu0 %v4388, 32
      %v4782 = vpop.permute.xlu0 %4781
      %v4784 = vsel %vm819, %v4775, 0
      %v4787 = vsel %vm1200, %v4782, 0
      %4789 = vmatprep.subr.bf16.mxu0 0
      %4790 = vmatpush1.bf16.msra.mxu0 %v4787
      %4791 = vmatprep.subr.bf16.mxu0 0
      %4792 = vmatpush1.bf16.msra.mxu0 0
      %4793 = vmatprep.subr.bf16.mxu0 0
      %4794 = vmatpush1.bf16.msra.mxu0 0
      %4795 = vmatprep.subr.bf16.mxu0 0
      %4796 = vmatpush1.bf16.msra.mxu0 0
      %4797 = vmatprep.subr.bf16.mxu0 0
      %4798 = vmatpush1.bf16.msra.mxu0 0
      %4799 = vmatprep.subr.bf16.mxu0 0
      %4800 = vmatpush1.bf16.msra.mxu0 0
      %4801 = vmatprep.subr.bf16.mxu0 0
      %4802 = vmatpush1.bf16.msra.mxu0 0
      %4803 = vmatprep.subr.bf16.mxu0 0
      %4804 = vmatpush1.bf16.msra.mxu0 0
      %4805 = vmatprep.subr.bf16.mxu0 0
      %4806 = vmatpush1.bf16.msra.mxu0 0
      %4807 = vmatprep.subr.bf16.mxu0 0
      %4808 = vmatpush1.bf16.msra.mxu0 0
      %4809 = vmatprep.subr.bf16.mxu0 0
      %4810 = vmatpush1.bf16.msra.mxu0 0
      %4811 = vmatprep.subr.bf16.mxu0 0
      %4812 = vmatpush1.bf16.msra.mxu0 0
      %4813 = vmatprep.subr.bf16.mxu0 0
      %4814 = vmatpush1.bf16.msra.mxu0 0
      %4815 = vmatprep.subr.bf16.mxu0 0
      %4816 = vmatpush1.bf16.msra.mxu0 0
      %4817 = vmatprep.subr.bf16.mxu0 0
      %4818 = vmatpush1.bf16.msra.mxu0 0
      %4819 = vmatprep.subr.bf16.mxu0 0
      %4820 = vmatpush1.bf16.msra.mxu0 0
      %4821 = vmatprep.mubr.bf16.mxu0 0
      %4822 = vmatmul.mubr.bf16.gmra.mrb[0].mxu0 %v4784
      %v4823 = vpop.f32.mrb[0].mxu0
      %v4824 = vadd.f32 0.0, %v4823
      %v4825 = vpop.f32.mrb[0].mxu0
      %v4826 = vpop.f32.mrb[0].mxu0
      %v4827 = vpop.f32.mrb[0].mxu0
      %4828 = vdwg.mxu0
      %4829 = vrot.lane.b32.xlu0 %v4389, 32
      %v4830 = vpop.permute.xlu0 %4829
      %v4832 = vsel %vm819, %v4776, 0
      %v4835 = vsel %vm1200, %v4830, 0
      %4837 = vmatprep.subr.bf16.mxu0 0
      %4838 = vmatpush1.bf16.msra.mxu0 %v4835
      %4839 = vmatprep.subr.bf16.mxu0 0
      %4840 = vmatpush1.bf16.msra.mxu0 0
      %4841 = vmatprep.subr.bf16.mxu0 0
      %4842 = vmatpush1.bf16.msra.mxu0 0
      %4843 = vmatprep.subr.bf16.mxu0 0
      %4844 = vmatpush1.bf16.msra.mxu0 0
      %4845 = vmatprep.subr.bf16.mxu0 0
      %4846 = vmatpush1.bf16.msra.mxu0 0
      %4847 = vmatprep.subr.bf16.mxu0 0
      %4848 = vmatpush1.bf16.msra.mxu0 0
      %4849 = vmatprep.subr.bf16.mxu0 0
      %4850 = vmatpush1.bf16.msra.mxu0 0
      %4851 = vmatprep.subr.bf16.mxu0 0
      %4852 = vmatpush1.bf16.msra.mxu0 0
      %4853 = vmatprep.subr.bf16.mxu0 0
      %4854 = vmatpush1.bf16.msra.mxu0 0
      %4855 = vmatprep.subr.bf16.mxu0 0
      %4856 = vmatpush1.bf16.msra.mxu0 0
      %4857 = vmatprep.subr.bf16.mxu0 0
      %4858 = vmatpush1.bf16.msra.mxu0 0
      %4859 = vmatprep.subr.bf16.mxu0 0
      %4860 = vmatpush1.bf16.msra.mxu0 0
      %4861 = vmatprep.subr.bf16.mxu0 0
      %4862 = vmatpush1.bf16.msra.mxu0 0
      %4863 = vmatprep.subr.bf16.mxu0 0
      %4864 = vmatpush1.bf16.msra.mxu0 0
      %4865 = vmatprep.subr.bf16.mxu0 0
      %4866 = vmatpush1.bf16.msra.mxu0 0
      %4867 = vmatprep.subr.bf16.mxu0 0
      %4868 = vmatpush1.bf16.msra.mxu0 0
      %4869 = vmatprep.mubr.bf16.mxu0 0
      %4870 = vmatmul.mubr.bf16.gmra.mrb[0].mxu0 %v4832
      %v4871 = vpop.f32.mrb[0].mxu0
      %v4872 = vadd.f32 0.0, %v4871
      %v4873 = vpop.f32.mrb[0].mxu0
      %v4874 = vpop.f32.mrb[0].mxu0
      %v4875 = vpop.f32.mrb[0].mxu0
      %4876 = vdwg.mxu0
      %4877 = vrot.lane.b32.xlu0 %v4390, 32
      %v4878 = vpop.permute.xlu0 %4877
      %v4880 = vsel %vm819, %v4777, 0
      %v4883 = vsel %vm1200, %v4878, 0
      %4885 = vmatprep.subr.bf16.mxu0 0
      %4886 = vmatpush1.bf16.msra.mxu0 %v4883
      %4887 = vmatprep.subr.bf16.mxu0 0
      %4888 = vmatpush1.bf16.msra.mxu0 0
      %4889 = vmatprep.subr.bf16.mxu0 0
      %4890 = vmatpush1.bf16.msra.mxu0 0
      %4891 = vmatprep.subr.bf16.mxu0 0
      %4892 = vmatpush1.bf16.msra.mxu0 0
      %4893 = vmatprep.subr.bf16.mxu0 0
      %4894 = vmatpush1.bf16.msra.mxu0 0
      %4895 = vmatprep.subr.bf16.mxu0 0
      %4896 = vmatpush1.bf16.msra.mxu0 0
      %4897 = vmatprep.subr.bf16.mxu0 0
      %4898 = vmatpush1.bf16.msra.mxu0 0
      %4899 = vmatprep.subr.bf16.mxu0 0
      %4900 = vmatpush1.bf16.msra.mxu0 0
      %4901 = vmatprep.subr.bf16.mxu0 0
      %4902 = vmatpush1.bf16.msra.mxu0 0
      %4903 = vmatprep.subr.bf16.mxu0 0
      %4904 = vmatpush1.bf16.msra.mxu0 0
      %4905 = vmatprep.subr.bf16.mxu0 0
      %4906 = vmatpush1.bf16.msra.mxu0 0
      %4907 = vmatprep.subr.bf16.mxu0 0
      %4908 = vmatpush1.bf16.msra.mxu0 0
      %4909 = vmatprep.subr.bf16.mxu0 0
      %4910 = vmatpush1.bf16.msra.mxu0 0
      %4911 = vmatprep.subr.bf16.mxu0 0
      %4912 = vmatpush1.bf16.msra.mxu0 0
      %4913 = vmatprep.subr.bf16.mxu0 0
      %4914 = vmatpush1.bf16.msra.mxu0 0
      %4915 = vmatprep.subr.bf16.mxu0 0
      %4916 = vmatpush1.bf16.msra.mxu0 0
      %4917 = vmatprep.mubr.bf16.mxu0 0
      %4918 = vmatmul.mubr.bf16.gmra.mrb[0].mxu0 %v4880
      %v4919 = vpop.f32.mrb[0].mxu0
      %v4920 = vadd.f32 0.0, %v4919
      %v4921 = vpop.f32.mrb[0].mxu0
      %v4922 = vpop.f32.mrb[0].mxu0
      %v4923 = vpop.f32.mrb[0].mxu0
      %4924 = vdwg.mxu0
      %4925 = vrot.lane.b32.xlu0 %v4391, 32
      %v4926 = vpop.permute.xlu0 %4925
      %v4928 = vsel %vm819, %v4778, 0
      %v4931 = vsel %vm1200, %v4926, 0
      %4933 = vmatprep.subr.bf16.mxu0 0
      %4934 = vmatpush1.bf16.msra.mxu0 %v4931
      %4935 = vmatprep.subr.bf16.mxu0 0
      %4936 = vmatpush1.bf16.msra.mxu0 0
      %4937 = vmatprep.subr.bf16.mxu0 0
      %4938 = vmatpush1.bf16.msra.mxu0 0
      %4939 = vmatprep.subr.bf16.mxu0 0
      %4940 = vmatpush1.bf16.msra.mxu0 0
      %4941 = vmatprep.subr.bf16.mxu0 0
      %4942 = vmatpush1.bf16.msra.mxu0 0
      %4943 = vmatprep.subr.bf16.mxu0 0
      %4944 = vmatpush1.bf16.msra.mxu0 0
      %4945 = vmatprep.subr.bf16.mxu0 0
      %4946 = vmatpush1.bf16.msra.mxu0 0
      %4947 = vmatprep.subr.bf16.mxu0 0
      %4948 = vmatpush1.bf16.msra.mxu0 0
      %4949 = vmatprep.subr.bf16.mxu0 0
      %4950 = vmatpush1.bf16.msra.mxu0 0
      %4951 = vmatprep.subr.bf16.mxu0 0
      %4952 = vmatpush1.bf16.msra.mxu0 0
      %4953 = vmatprep.subr.bf16.mxu0 0
      %4954 = vmatpush1.bf16.msra.mxu0 0
      %4955 = vmatprep.subr.bf16.mxu0 0
      %4956 = vmatpush1.bf16.msra.mxu0 0
      %4957 = vmatprep.subr.bf16.mxu0 0
      %4958 = vmatpush1.bf16.msra.mxu0 0
      %4959 = vmatprep.subr.bf16.mxu0 0
      %4960 = vmatpush1.bf16.msra.mxu0 0
      %4961 = vmatprep.subr.bf16.mxu0 0
      %4962 = vmatpush1.bf16.msra.mxu0 0
      %4963 = vmatprep.subr.bf16.mxu0 0
      %4964 = vmatpush1.bf16.msra.mxu0 0
      %4965 = vmatprep.mubr.bf16.mxu0 0
      %4966 = vmatmul.mubr.bf16.gmra.mrb[0].mxu0 %v4928
      %v4967 = vpop.f32.mrb[0].mxu0
      %v4968 = vadd.f32 0.0, %v4967
      %v4969 = vpop.f32.mrb[0].mxu0
      %v4970 = vpop.f32.mrb[0].mxu0
      %v4971 = vpop.f32.mrb[0].mxu0
      %4972 = vdwg.mxu0
      %4974 = vrot.lane.b32.xlu0 %v4401, 32
      %v4975 = vpop.permute.xlu0 %4974
      %v4977 = vsel %vm819, %v4779, 0
      %v4980 = vsel %vm1200, %v4975, 0
      %4982 = vmatprep.subr.bf16.mxu0 0
      %4983 = vmatpush1.bf16.msra.mxu0 %v4980
      %4984 = vmatprep.subr.bf16.mxu0 0
      %4985 = vmatpush1.bf16.msra.mxu0 0
      %4986 = vmatprep.subr.bf16.mxu0 0
      %4987 = vmatpush1.bf16.msra.mxu0 0
      %4988 = vmatprep.subr.bf16.mxu0 0
      %4989 = vmatpush1.bf16.msra.mxu0 0
      %4990 = vmatprep.subr.bf16.mxu0 0
      %4991 = vmatpush1.bf16.msra.mxu0 0
      %4992 = vmatprep.subr.bf16.mxu0 0
      %4993 = vmatpush1.bf16.msra.mxu0 0
      %4994 = vmatprep.subr.bf16.mxu0 0
      %4995 = vmatpush1.bf16.msra.mxu0 0
      %4996 = vmatprep.subr.bf16.mxu0 0
      %4997 = vmatpush1.bf16.msra.mxu0 0
      %4998 = vmatprep.subr.bf16.mxu0 0
      %4999 = vmatpush1.bf16.msra.mxu0 0
      %5000 = vmatprep.subr.bf16.mxu0 0
      %5001 = vmatpush1.bf16.msra.mxu0 0
      %5002 = vmatprep.subr.bf16.mxu0 0
      %5003 = vmatpush1.bf16.msra.mxu0 0
      %5004 = vmatprep.subr.bf16.mxu0 0
      %5005 = vmatpush1.bf16.msra.mxu0 0
      %5006 = vmatprep.subr.bf16.mxu0 0
      %5007 = vmatpush1.bf16.msra.mxu0 0
      %5008 = vmatprep.subr.bf16.mxu0 0
      %5009 = vmatpush1.bf16.msra.mxu0 0
      %5010 = vmatprep.subr.bf16.mxu0 0
      %5011 = vmatpush1.bf16.msra.mxu0 0
      %5012 = vmatprep.subr.bf16.mxu0 0
      %5013 = vmatpush1.bf16.msra.mxu0 0
      %5014 = vmatprep.mubr.bf16.mxu0 0
      %5015 = vmatmul.mubr.bf16.gmra.mrb[0].mxu0 %v4977
      %v5016 = vpop.f32.mrb[0].mxu0
      %v5017 = vadd.f32 0.0, %v5016
      %v5018 = vpop.f32.mrb[0].mxu0
      %v5019 = vpop.f32.mrb[0].mxu0
      %v5020 = vpop.f32.mrb[0].mxu0
      %5021 = vdwg.mxu0
      %5023 = vrot.lane.b32.xlu0 %v4402, 32
      %v5024 = vpop.permute.xlu0 %5023
      %v5026 = vsel %vm819, %v4780, 0
      %v5029 = vsel %vm1200, %v5024, 0
      %5031 = vmatprep.subr.bf16.mxu0 0
      %5032 = vmatpush1.bf16.msra.mxu0 %v5029
      %5033 = vmatprep.subr.bf16.mxu0 0
      %5034 = vmatpush1.bf16.msra.mxu0 0
      %5035 = vmatprep.subr.bf16.mxu0 0
      %5036 = vmatpush1.bf16.msra.mxu0 0
      %5037 = vmatprep.subr.bf16.mxu0 0
      %5038 = vmatpush1.bf16.msra.mxu0 0
      %5039 = vmatprep.subr.bf16.mxu0 0
      %5040 = vmatpush1.bf16.msra.mxu0 0
      %5041 = vmatprep.subr.bf16.mxu0 0
      %5042 = vmatpush1.bf16.msra.mxu0 0
      %5043 = vmatprep.subr.bf16.mxu0 0
      %5044 = vmatpush1.bf16.msra.mxu0 0
      %5045 = vmatprep.subr.bf16.mxu0 0
      %5046 = vmatpush1.bf16.msra.mxu0 0
      %5047 = vmatprep.subr.bf16.mxu0 0
      %5048 = vmatpush1.bf16.msra.mxu0 0
      %5049 = vmatprep.subr.bf16.mxu0 0
      %5050 = vmatpush1.bf16.msra.mxu0 0
      %5051 = vmatprep.subr.bf16.mxu0 0
      %5052 = vmatpush1.bf16.msra.mxu0 0
      %5053 = vmatprep.subr.bf16.mxu0 0
      %5054 = vmatpush1.bf16.msra.mxu0 0
      %5055 = vmatprep.subr.bf16.mxu0 0
      %5056 = vmatpush1.bf16.msra.mxu0 0
      %5057 = vmatprep.subr.bf16.mxu0 0
      %5058 = vmatpush1.bf16.msra.mxu0 0
      %5059 = vmatprep.subr.bf16.mxu0 0
      %5060 = vmatpush1.bf16.msra.mxu0 0
      %5061 = vmatprep.subr.bf16.mxu0 0
      %5062 = vmatpush1.bf16.msra.mxu0 0
      %5063 = vmatprep.mubr.bf16.mxu0 0
      %5064 = vmatmul.mubr.bf16.gmra.mrb[0].mxu0 %v5026
      %v5065 = vpop.f32.mrb[0].mxu0
      %v5066 = vadd.f32 0.0, %v5065
      %v5067 = vpop.f32.mrb[0].mxu0
      %v5068 = vpop.f32.mrb[0].mxu0
      %v5069 = vpop.f32.mrb[0].mxu0
      %5070 = vdwg.mxu0
      %5072 = vrot.lane.b32.xlu0 %v4872, 8
      %v5073 = vpop.permute.xlu0 %5072
      %5076 = vrot.lane.b32.xlu0 %v4920, 16
      %v5077 = vpop.permute.xlu0 %5076
      %5080 = vrot.lane.b32.xlu0 %v4968, 24
      %v5081 = vpop.permute.xlu0 %5080
      %5084 = vrot.lane.b32.xlu0 %v5017, 32
      %v5085 = vpop.permute.xlu0 %5084
      %5088 = vrot.lane.b32.xlu0 %v5066, 40
      %v5089 = vpop.permute.xlu0 %5088
      %v5091 = vsel %vm819, %v4824, %v5073
      %v5092 = vsel %vm1507, %v5091, %v5077
      %v5093 = vsel %vm1509, %v5092, %v5081
      %v5094 = vsel %vm1511, %v5093, %v5085
      %v5095 = vsel %vm1513, %v5094, %v5089
      %v5096 = vpack.c.bf16 %v5095, %v5095
      %s5097 = scalar_lea.vmem %s6, 72
      %v5098 = vld [vmem:[%s5097] sm:$0xf]
      %v5099 = vld [vmem:[%s5097 + $0x4] sm:$0xf]
      %v5100 = vld [vmem:[%s5097 + $0x8] sm:$0xf]
      %v5101 = vld [vmem:[%s5097 + $0xc] sm:$0xf]
      %v5102 = vld [vmem:[%s5097 + $0x10] sm:$0xf]
      %v5103 = vld [vmem:[%s5097 + $0x14] sm:$0xf]
      %v5110 = vunpack.c.l.b16 %v5098
      %v5111 = vunpack.c.l.b16 %v5099
      %v5112 = vunpack.c.l.b16 %v5100
      %v5113 = vunpack.c.l.b16 %v5101
      %v5114 = vunpack.c.l.b16 %v5102
      %v5115 = vunpack.c.l.b16 %v5103
      %v5116 = vpack.c.b16 %v5111, %v5110
      %v5117 = vpack.c.b16 %v5113, %v5112
      %v5118 = vpack.c.b16 %v5115, %v5114
      %v5123 = vsel %vm675, %v5096, 0
      %5125 = vmatprep.subr.bf16.mxu0 0
      %5126 = vmatpush1.bf16.msra.mxu0 %v5116
      %5127 = vmatprep.subr.bf16.mxu0 0
      %5128 = vmatpush1.bf16.msra.mxu0 %v5117
      %5129 = vmatprep.subr.bf16.mxu0 0
      %5130 = vmatpush1.bf16.msra.mxu0 %v5118
      %5131 = vmatprep.subr.bf16.mxu0 0
      %5132 = vmatpush1.bf16.msra.mxu0 0
      %5133 = vmatprep.subr.bf16.mxu0 0
      %5134 = vmatpush1.bf16.msra.mxu0 0
      %5135 = vmatprep.subr.bf16.mxu0 0
      %5136 = vmatpush1.bf16.msra.mxu0 0
      %5137 = vmatprep.subr.bf16.mxu0 0
      %5138 = vmatpush1.bf16.msra.mxu0 0
      %5139 = vmatprep.subr.bf16.mxu0 0
      %5140 = vmatpush1.bf16.msra.mxu0 0
      %5141 = vmatprep.subr.bf16.mxu0 0
      %5142 = vmatpush1.bf16.msra.mxu0 0
      %5143 = vmatprep.subr.bf16.mxu0 0
      %5144 = vmatpush1.bf16.msra.mxu0 0
      %5145 = vmatprep.subr.bf16.mxu0 0
      %5146 = vmatpush1.bf16.msra.mxu0 0
      %5147 = vmatprep.subr.bf16.mxu0 0
      %5148 = vmatpush1.bf16.msra.mxu0 0
      %5149 = vmatprep.subr.bf16.mxu0 0
      %5150 = vmatpush1.bf16.msra.mxu0 0
      %5151 = vmatprep.subr.bf16.mxu0 0
      %5152 = vmatpush1.bf16.msra.mxu0 0
      %5153 = vmatprep.subr.bf16.mxu0 0
      %5154 = vmatpush1.bf16.msra.mxu0 0
      %5155 = vmatprep.subr.bf16.mxu0 0
      %5156 = vmatpush1.bf16.msra.mxu0 0
      %5157 = vmatprep.mubr.bf16.mxu0 0
      %5158 = vmatmul.mubr.bf16.gmra.mrb[0].mxu0 %v5123
      %v5159 = vpop.f32.mrb[0].mxu0
      %v5160 = vadd.f32 0.0, %v5159
      %v5161 = vpop.f32.mrb[0].mxu0
      %v5162 = vpop.f32.mrb[0].mxu0
      %v5163 = vpop.f32.mrb[0].mxu0
      %5164 = vdwg.mxu0
      %v5165 = vadd.f32 %v4258, %v5160
      %s5166 = scalar_lea.vmem %s7, 3
      %v5167 = vld [vmem:[%s5166] sm:$0x1]
      %v5169 = vlaneseq
      %v5170 = vshrl.u32 %v5169, 7
      %v5171 = vsub.s32 0, %v5170
      %v5172 = vrot.slane %v5167, %v5171
      %v5174 = vadd.f32 %v5165, %v5172
      %s5175 = scalar_lea.vmem %s8, 3
      %v5176 = vld [vmem:[%s5175] sm:$0x1]
      %s5177 = scalar_lea.vmem %s9, 3
      %v5178 = vld [vmem:[%s5177] sm:$0x1]
      %v5179 = vsel %vm675, %v5174, 0.0
      %5180 = vadd.xlane.f32.xlu0 %v5179
      %v5181 = vpop.xlane.xlu0 %5180
      %v5182 = vmul.f32 %v5181, %v679
      %v5183 = vsub.f32 %v5174, %v5182
      %v5184 = vmul.f32 %v5183, %v5183
      %v5185 = vsel %vm675, %v5184, 0.0
      %5186 = vadd.xlane.f32.xlu0 %v5185
      %v5187 = vpop.xlane.xlu0 %5186
      %v5188 = vmul.f32 %v5187, %v679
      %v5189 = vadd.f32 %v5188, 1e-05
      %v5190 = vrsqrt.pop %v5189
      %v5191 = vmul.f32 %v5183, %v5190
      %v5193 = vlaneseq
      %v5194 = vshrl.u32 %v5193, 7
      %v5195 = vsub.s32 0, %v5194
      %v5196 = vrot.slane %v5176, %v5195
      %v5198 = vmul.f32 %v5191, %v5196
      %v5200 = vlaneseq
      %v5201 = vshrl.u32 %v5200, 7
      %v5202 = vsub.s32 0, %v5201
      %v5203 = vrot.slane %v5178, %v5202
      %v5205 = vadd.f32 %v5198, %v5203
      %v5206 = vpack.c.bf16 %v5205, %v5205
      %s5207 = scalar_lea.vmem %s10, 144
      %v5208 = vld [vmem:[%s5207] sm:$0xff]
      %v5209 = vld [vmem:[%s5207 + $0x8] sm:$0xff]
      %v5210 = vld [vmem:[%s5207 + $0x10] sm:$0xff]
      %v5211 = vld [vmem:[%s5207 + $0x18] sm:$0xff]
      %v5212 = vld [vmem:[%s5207 + $0x20] sm:$0xff]
      %v5213 = vld [vmem:[%s5207 + $0x28] sm:$0xff]
      %s5214 = scalar_lea.vmem %s11, 6
      %v5215 = vld [vmem:[%s5214] sm:$0x3]
      %v5217 = vlaneseq
      %v5218 = vshrl.u32 %v5217, 7
      %v5219 = vsub.s32 0, %v5218
      %v5220 = vrot.slane %v5215, %v5219
      %v5221 = vlaneseq
      %v5222 = vshrl.u32 %v5221, 7
      %v5223 = vsub.s32 1, %v5222
      %v5224 = vrot.slane %v5215, %v5223
      %v5233 = vunpack.c.l.b16 %v5208
      %v5234 = vunpack.c.h.b16 %v5208
      %v5235 = vunpack.c.l.b16 %v5209
      %v5236 = vunpack.c.h.b16 %v5209
      %v5237 = vunpack.c.l.b16 %v5210
      %v5238 = vunpack.c.h.b16 %v5210
      %v5239 = vunpack.c.l.b16 %v5211
      %v5240 = vunpack.c.h.b16 %v5211
      %v5241 = vunpack.c.l.b16 %v5212
      %v5242 = vunpack.c.h.b16 %v5212
      %v5243 = vunpack.c.l.b16 %v5213
      %v5244 = vunpack.c.h.b16 %v5213
      %v5245 = vpack.c.b16 %v5235, %v5233
      %v5246 = vpack.c.b16 %v5236, %v5234
      %v5247 = vpack.c.b16 %v5239, %v5237
      %v5248 = vpack.c.b16 %v5240, %v5238
      %v5249 = vpack.c.b16 %v5243, %v5241
      %v5250 = vpack.c.b16 %v5244, %v5242
      %v5258 = vsel %vm675, %v5206, 0
      %5260 = vmatprep.subr.bf16.mxu0 %v5246
      %5261 = vmatpush1.bf16.msra.mxu0 %v5245
      %5262 = vmatprep.subr.bf16.mxu0 %v5248
      %5263 = vmatpush1.bf16.msra.mxu0 %v5247
      %5264 = vmatprep.subr.bf16.mxu0 %v5250
      %5265 = vmatpush1.bf16.msra.mxu0 %v5249
      %5266 = vmatprep.subr.bf16.mxu0 0
      %5267 = vmatpush1.bf16.msra.mxu0 0
      %5268 = vmatprep.subr.bf16.mxu0 0
      %5269 = vmatpush1.bf16.msra.mxu0 0
      %5270 = vmatprep.subr.bf16.mxu0 0
      %5271 = vmatpush1.bf16.msra.mxu0 0
      %5272 = vmatprep.subr.bf16.mxu0 0
      %5273 = vmatpush1.bf16.msra.mxu0 0
      %5274 = vmatprep.subr.bf16.mxu0 0
      %5275 = vmatpush1.bf16.msra.mxu0 0
      %5276 = vmatprep.subr.bf16.mxu0 0
      %5277 = vmatpush1.bf16.msra.mxu0 0
      %5278 = vmatprep.subr.bf16.mxu0 0
      %5279 = vmatpush1.bf16.msra.mxu0 0
      %5280 = vmatprep.subr.bf16.mxu0 0
      %5281 = vmatpush1.bf16.msra.mxu0 0
      %5282 = vmatprep.subr.bf16.mxu0 0
      %5283 = vmatpush1.bf16.msra.mxu0 0
      %5284 = vmatprep.subr.bf16.mxu0 0
      %5285 = vmatpush1.bf16.msra.mxu0 0
      %5286 = vmatprep.subr.bf16.mxu0 0
      %5287 = vmatpush1.bf16.msra.mxu0 0
      %5288 = vmatprep.subr.bf16.mxu0 0
      %5289 = vmatpush1.bf16.msra.mxu0 0
      %5290 = vmatprep.subr.bf16.mxu0 0
      %5291 = vmatpush1.bf16.msra.mxu0 0
      %5292 = vmatprep.mubr.bf16.mxu0 0
      %5293 = vmatmul.mubr.bf16.gmra.mrb[0].mxu0 %v5258
      %v5294 = vpop.f32.mrb[0].mxu0
      %v5295 = vadd.f32 %v5220, %v5294
      %v5296 = vpop.f32.mrb[0].mxu0
      %v5297 = vadd.f32 %v5224, %v5296
      %v5298 = vpop.f32.mrb[0].mxu0
      %v5299 = vpop.f32.mrb[0].mxu0
      %5300 = vdwg.mxu0
      %v5301 = vmax.f32 %v5295, 0.0
      %v5302 = vmax.f32 %v5297, 0.0
      %v5303 = vpack.c.bf16 %v5301, %v5301
      %v5304 = vpack.c.bf16 %v5302, %v5302
      %s5305 = scalar_lea.vmem %s12, 288
      %v5306 = vld [vmem:[%s5305] sm:$0xf]
      %v5307 = vld [vmem:[%s5305 + $0x4] sm:$0xf]
      %v5308 = vld [vmem:[%s5305 + $0x8] sm:$0xf]
      %v5309 = vld [vmem:[%s5305 + $0xc] sm:$0xf]
      %v5310 = vld [vmem:[%s5305 + $0x10] sm:$0xf]
      %v5311 = vld [vmem:[%s5305 + $0x14] sm:$0xf]
      %v5312 = vld [vmem:[%s5305 + $0x18] sm:$0xf]
      %v5313 = vld [vmem:[%s5305 + $0x1c] sm:$0xf]
      %v5314 = vld [vmem:[%s5305 + $0x20] sm:$0xf]
      %v5315 = vld [vmem:[%s5305 + $0x24] sm:$0xf]
      %v5316 = vld [vmem:[%s5305 + $0x28] sm:$0xf]
      %v5317 = vld [vmem:[%s5305 + $0x2c] sm:$0xf]
      %v5318 = vld [vmem:[%s5305 + $0x30] sm:$0xf]
      %v5319 = vld [vmem:[%s5305 + $0x34] sm:$0xf]
      %v5320 = vld [vmem:[%s5305 + $0x38] sm:$0xf]
      %v5321 = vld [vmem:[%s5305 + $0x3c] sm:$0xf]
      %v5322 = vld [vmem:[%s5305 + $0x40] sm:$0xf]
      %v5323 = vld [vmem:[%s5305 + $0x44] sm:$0xf]
      %v5324 = vld [vmem:[%s5305 + $0x48] sm:$0xf]
      %v5325 = vld [vmem:[%s5305 + $0x4c] sm:$0xf]
      %v5326 = vld [vmem:[%s5305 + $0x50] sm:$0xf]
      %v5327 = vld [vmem:[%s5305 + $0x54] sm:$0xf]
      %v5328 = vld [vmem:[%s5305 + $0x58] sm:$0xf]
      %v5329 = vld [vmem:[%s5305 + $0x5c] sm:$0xf]
      %v5354 = vunpack.c.l.b16 %v5306
      %v5355 = vunpack.c.l.b16 %v5307
      %v5356 = vunpack.c.l.b16 %v5308
      %v5357 = vunpack.c.l.b16 %v5309
      %v5358 = vunpack.c.l.b16 %v5310
      %v5359 = vunpack.c.l.b16 %v5311
      %v5360 = vunpack.c.l.b16 %v5312
      %v5361 = vunpack.c.l.b16 %v5313
      %v5362 = vunpack.c.l.b16 %v5314
      %v5363 = vunpack.c.l.b16 %v5315
      %v5364 = vunpack.c.l.b16 %v5316
      %v5365 = vunpack.c.l.b16 %v5317
      %v5366 = vunpack.c.l.b16 %v5318
      %v5367 = vunpack.c.l.b16 %v5319
      %v5368 = vunpack.c.l.b16 %v5320
      %v5369 = vunpack.c.l.b16 %v5321
      %v5370 = vunpack.c.l.b16 %v5322
      %v5371 = vunpack.c.l.b16 %v5323
      %v5372 = vunpack.c.l.b16 %v5324
      %v5373 = vunpack.c.l.b16 %v5325
      %v5374 = vunpack.c.l.b16 %v5326
      %v5375 = vunpack.c.l.b16 %v5327
      %v5376 = vunpack.c.l.b16 %v5328
      %v5377 = vunpack.c.l.b16 %v5329
      %v5378 = vpack.c.b16 %v5355, %v5354
      %v5379 = vpack.c.b16 %v5357, %v5356
      %v5380 = vpack.c.b16 %v5359, %v5358
      %v5381 = vpack.c.b16 %v5361, %v5360
      %v5382 = vpack.c.b16 %v5363, %v5362
      %v5383 = vpack.c.b16 %v5365, %v5364
      %v5384 = vpack.c.b16 %v5367, %v5366
      %v5385 = vpack.c.b16 %v5369, %v5368
      %v5386 = vpack.c.b16 %v5371, %v5370
      %v5387 = vpack.c.b16 %v5373, %v5372
      %v5388 = vpack.c.b16 %v5375, %v5374
      %v5389 = vpack.c.b16 %v5377, %v5376
      %v5403 = vsel %vm1814, %v5304, 0
      %5405 = vmatprep.subr.bf16.mxu0 0
      %5406 = vmatpush1.bf16.msra.mxu0 %v5378
      %5407 = vmatprep.subr.bf16.mxu0 0
      %5408 = vmatpush1.bf16.msra.mxu0 %v5379
      %5409 = vmatprep.subr.bf16.mxu0 0
      %5410 = vmatpush1.bf16.msra.mxu0 %v5380
      %5411 = vmatprep.subr.bf16.mxu0 0
      %5412 = vmatpush1.bf16.msra.mxu0 %v5381
      %5413 = vmatprep.subr.bf16.mxu0 0
      %5414 = vmatpush1.bf16.msra.mxu0 %v5382
      %5415 = vmatprep.subr.bf16.mxu0 0
      %5416 = vmatpush1.bf16.msra.mxu0 %v5383
      %5417 = vmatprep.subr.bf16.mxu0 0
      %5418 = vmatpush1.bf16.msra.mxu0 %v5384
      %5419 = vmatprep.subr.bf16.mxu0 0
      %5420 = vmatpush1.bf16.msra.mxu0 %v5385
      %5421 = vmatprep.subr.bf16.mxu0 0
      %5422 = vmatpush1.bf16.msra.mxu0 %v5386
      %5423 = vmatprep.subr.bf16.mxu0 0
      %5424 = vmatpush1.bf16.msra.mxu0 %v5387
      %5425 = vmatprep.subr.bf16.mxu0 0
      %5426 = vmatpush1.bf16.msra.mxu0 %v5388
      %5427 = vmatprep.subr.bf16.mxu0 0
      %5428 = vmatpush1.bf16.msra.mxu0 %v5389
      %5429 = vmatprep.subr.bf16.mxu0 0
      %5430 = vmatpush1.bf16.msra.mxu0 0
      %5431 = vmatprep.subr.bf16.mxu0 0
      %5432 = vmatpush1.bf16.msra.mxu0 0
      %5433 = vmatprep.subr.bf16.mxu0 0
      %5434 = vmatpush1.bf16.msra.mxu0 0
      %5435 = vmatprep.subr.bf16.mxu0 0
      %5436 = vmatpush1.bf16.msra.mxu0 0
      %5437 = vmatprep.mubr.bf16.mxu0 %v5403
      %5438 = vmatmul.mubr.bf16.gmra.mrb[0].mxu0 %v5303
      %v5439 = vpop.f32.mrb[0].mxu0
      %v5440 = vadd.f32 0.0, %v5439
      %v5441 = vpop.f32.mrb[0].mxu0
      %v5442 = vpop.f32.mrb[0].mxu0
      %v5443 = vpop.f32.mrb[0].mxu0
      %5444 = vdwg.mxu0
      %v5445 = vadd.f32 %v5174, %v5440
      %s5446 = scalar_lea.vmem %s13, 3
      %v5447 = vld [vmem:[%s5446] sm:$0x1]
      %v5449 = vlaneseq
      %v5450 = vshrl.u32 %v5449, 7
      %v5451 = vsub.s32 0, %v5450
      %v5452 = vrot.slane %v5447, %v5451
      %v5454 = vadd.f32 %v5445, %v5452
      %s5455 = scalar_lea.vmem %s3, 4
      %v5456 = vld [vmem:[%s5455] sm:$0x1]
      %s5457 = scalar_lea.vmem %s4, 4
      %v5458 = vld [vmem:[%s5457] sm:$0x1]
      %v5459 = vsel %vm675, %v5454, 0.0
      %5460 = vadd.xlane.f32.xlu0 %v5459
      %v5461 = vpop.xlane.xlu0 %5460
      %v5462 = vmul.f32 %v5461, %v679
      %v5463 = vsub.f32 %v5454, %v5462
      %v5464 = vmul.f32 %v5463, %v5463
      %v5465 = vsel %vm675, %v5464, 0.0
      %5466 = vadd.xlane.f32.xlu0 %v5465
      %v5467 = vpop.xlane.xlu0 %5466
      %v5468 = vmul.f32 %v5467, %v679
      %v5469 = vadd.f32 %v5468, 1e-05
      %v5470 = vrsqrt.pop %v5469
      %v5471 = vmul.f32 %v5463, %v5470
      %v5473 = vlaneseq
      %v5474 = vshrl.u32 %v5473, 7
      %v5475 = vsub.s32 0, %v5474
      %v5476 = vrot.slane %v5456, %v5475
      %v5478 = vmul.f32 %v5471, %v5476
      %v5480 = vlaneseq
      %v5481 = vshrl.u32 %v5480, 7
      %v5482 = vsub.s32 0, %v5481
      %v5483 = vrot.slane %v5458, %v5482
      %v5485 = vadd.f32 %v5478, %v5483
      %v5486 = vpack.c.bf16 %v5485, %v5485
      %s5487 = scalar_lea.vmem %s5, 192
      %v5488 = vld [vmem:[%s5487] sm:$0xff]
      %v5489 = vld [vmem:[%s5487 + $0x8] sm:$0xff]
      %v5490 = vld [vmem:[%s5487 + $0x10] sm:$0xff]
      %v5491 = vld [vmem:[%s5487 + $0x18] sm:$0xff]
      %v5492 = vld [vmem:[%s5487 + $0x20] sm:$0xff]
      %v5493 = vld [vmem:[%s5487 + $0x28] sm:$0xff]
      %v5500 = vunpack.c.l.b16 %v5488
      %v5501 = vunpack.c.h.b16 %v5488
      %v5502 = vunpack.c.l.b16 %v5489
      %v5503 = vunpack.c.h.b16 %v5489
      %v5504 = vunpack.c.l.b16 %v5490
      %v5505 = vunpack.c.h.b16 %v5490
      %v5506 = vunpack.c.l.b16 %v5491
      %v5507 = vunpack.c.h.b16 %v5491
      %v5508 = vunpack.c.l.b16 %v5492
      %v5509 = vunpack.c.h.b16 %v5492
      %v5510 = vunpack.c.l.b16 %v5493
      %v5511 = vunpack.c.h.b16 %v5493
      %v5512 = vpack.c.b16 %v5502, %v5500
      %v5513 = vpack.c.b16 %v5503, %v5501
      %v5514 = vpack.c.b16 %v5506, %v5504
      %v5515 = vpack.c.b16 %v5507, %v5505
      %v5516 = vpack.c.b16 %v5510, %v5508
      %v5517 = vpack.c.b16 %v5511, %v5509
      %v5525 = vsel %vm675, %v5486, 0
      %5527 = vmatprep.subr.bf16.mxu0 %v5513
      %5528 = vmatpush1.bf16.msra.mxu0 %v5512
      %5529 = vmatprep.subr.bf16.mxu0 %v5515
      %5530 = vmatpush1.bf16.msra.mxu0 %v5514
      %5531 = vmatprep.subr.bf16.mxu0 %v5517
      %5532 = vmatpush1.bf16.msra.mxu0 %v5516
      %5533 = vmatprep.subr.bf16.mxu0 0
      %5534 = vmatpush1.bf16.msra.mxu0 0
      %5535 = vmatprep.subr.bf16.mxu0 0
      %5536 = vmatpush1.bf16.msra.mxu0 0
      %5537 = vmatprep.subr.bf16.mxu0 0
      %5538 = vmatpush1.bf16.msra.mxu0 0
      %5539 = vmatprep.subr.bf16.mxu0 0
      %5540 = vmatpush1.bf16.msra.mxu0 0
      %5541 = vmatprep.subr.bf16.mxu0 0
      %5542 = vmatpush1.bf16.msra.mxu0 0
      %5543 = vmatprep.subr.bf16.mxu0 0
      %5544 = vmatpush1.bf16.msra.mxu0 0
      %5545 = vmatprep.subr.bf16.mxu0 0
      %5546 = vmatpush1.bf16.msra.mxu0 0
      %5547 = vmatprep.subr.bf16.mxu0 0
      %5548 = vmatpush1.bf16.msra.mxu0 0
      %5549 = vmatprep.subr.bf16.mxu0 0
      %5550 = vmatpush1.bf16.msra.mxu0 0
      %5551 = vmatprep.subr.bf16.mxu0 0
      %5552 = vmatpush1.bf16.msra.mxu0 0
      %5553 = vmatprep.subr.bf16.mxu0 0
      %5554 = vmatpush1.bf16.msra.mxu0 0
      %5555 = vmatprep.subr.bf16.mxu0 0
      %5556 = vmatpush1.bf16.msra.mxu0 0
      %5557 = vmatprep.subr.bf16.mxu0 0
      %5558 = vmatpush1.bf16.msra.mxu0 0
      %5559 = vmatprep.mubr.bf16.mxu0 0
      %5560 = vmatmul.mubr.bf16.gmra.mrb[0].mxu0 %v5525
      %v5561 = vpop.f32.mrb[0].mxu0
      %v5562 = vadd.f32 0.0, %v5561
      %v5563 = vpop.f32.mrb[0].mxu0
      %v5564 = vadd.f32 0.0, %v5563
      %v5565 = vpop.f32.mrb[0].mxu0
      %v5566 = vpop.f32.mrb[0].mxu0
      %5567 = vdwg.mxu0
      %5569 = vrot.lane.b32.xlu0 %v5562, 120
      %v5570 = vpop.permute.xlu0 %5569
      %5572 = vrot.lane.b32.xlu0 %v5562, 112
      %v5573 = vpop.permute.xlu0 %5572
      %5575 = vrot.lane.b32.xlu0 %v5562, 104
      %v5576 = vpop.permute.xlu0 %5575
      %5578 = vrot.lane.b32.xlu0 %v5562, 96
      %v5579 = vpop.permute.xlu0 %5578
      %5581 = vrot.lane.b32.xlu0 %v5562, 88
      %v5582 = vpop.permute.xlu0 %5581
      %v5584 = vpack.c.bf16 %v5562, %v5562
      %v5585 = vpack.c.bf16 %v5570, %v5570
      %v5586 = vpack.c.bf16 %v5573, %v5573
      %v5587 = vpack.c.bf16 %v5576, %v5576
      %v5588 = vpack.c.bf16 %v5579, %v5579
      %v5589 = vpack.c.bf16 %v5582, %v5582
      %5591 = vrot.lane.b32.xlu0 %v5564, 96
      %v5592 = vpop.permute.xlu0 %5591
      %5594 = vrot.lane.b32.xlu0 %v5564, 88
      %v5595 = vpop.permute.xlu0 %5594
      %v5597 = vpack.c.bf16 %v5592, %v5592
      %v5598 = vpack.c.bf16 %v5595, %v5595
      %5600 = vrot.lane.b32.xlu0 %v5584, 80
      %v5601 = vpop.permute.xlu0 %5600
      %v5603 = vsel %vm819, %v5584, 0
      %v5606 = vsel %vm819, %v5601, 0
      %5608 = vmatprep.subr.bf16.mxu0 0
      %5609 = vmatpush1.bf16.xpose.msra.mxu0 %v5606
      %5610 = vmatprep.subr.bf16.mxu0 0
      %5611 = vmatpush1.bf16.xpose.msra.mxu0 0
      %5612 = vmatprep.subr.bf16.mxu0 0
      %5613 = vmatpush1.bf16.xpose.msra.mxu0 0
      %5614 = vmatprep.subr.bf16.mxu0 0
      %5615 = vmatpush1.bf16.xpose.msra.mxu0 0
      %5616 = vmatprep.subr.bf16.mxu0 0
      %5617 = vmatpush1.bf16.xpose.msra.mxu0 0
      %5618 = vmatprep.subr.bf16.mxu0 0
      %5619 = vmatpush1.bf16.xpose.msra.mxu0 0
      %5620 = vmatprep.subr.bf16.mxu0 0
      %5621 = vmatpush1.bf16.xpose.msra.mxu0 0
      %5622 = vmatprep.subr.bf16.mxu0 0
      %5623 = vmatpush1.bf16.xpose.msra.mxu0 0
      %5624 = vmatprep.subr.bf16.mxu0 0
      %5625 = vmatpush1.bf16.xpose.msra.mxu0 0
      %5626 = vmatprep.subr.bf16.mxu0 0
      %5627 = vmatpush1.bf16.xpose.msra.mxu0 0
      %5628 = vmatprep.subr.bf16.mxu0 0
      %5629 = vmatpush1.bf16.xpose.msra.mxu0 0
      %5630 = vmatprep.subr.bf16.mxu0 0
      %5631 = vmatpush1.bf16.xpose.msra.mxu0 0
      %5632 = vmatprep.subr.bf16.mxu0 0
      %5633 = vmatpush1.bf16.xpose.msra.mxu0 0
      %5634 = vmatprep.subr.bf16.mxu0 0
      %5635 = vmatpush1.bf16.xpose.msra.mxu0 0
      %5636 = vmatprep.subr.bf16.mxu0 0
      %5637 = vmatpush1.bf16.xpose.msra.mxu0 0
      %5638 = vmatprep.subr.bf16.mxu0 0
      %5639 = vmatpush1.bf16.xpose.msra.mxu0 0
      %5640 = vmatprep.mubr.bf16.mxu0 0
      %5641 = vmatmul.mubr.bf16.gmra.mrb[0].mxu0 %v5603
      %v5642 = vpop.f32.mrb[0].mxu0
      %v5643 = vadd.f32 0.0, %v5642
      %v5644 = vpop.f32.mrb[0].mxu0
      %v5645 = vpop.f32.mrb[0].mxu0
      %v5646 = vpop.f32.mrb[0].mxu0
      %5647 = vdwg.mxu0
      %5649 = vrot.lane.b32.xlu0 %v5585, 80
      %v5650 = vpop.permute.xlu0 %5649
      %v5652 = vsel %vm819, %v5585, 0
      %v5655 = vsel %vm819, %v5650, 0
      %5657 = vmatprep.subr.bf16.mxu0 0
      %5658 = vmatpush1.bf16.xpose.msra.mxu0 %v5655
      %5659 = vmatprep.subr.bf16.mxu0 0
      %5660 = vmatpush1.bf16.xpose.msra.mxu0 0
      %5661 = vmatprep.subr.bf16.mxu0 0
      %5662 = vmatpush1.bf16.xpose.msra.mxu0 0
      %5663 = vmatprep.subr.bf16.mxu0 0
      %5664 = vmatpush1.bf16.xpose.msra.mxu0 0
      %5665 = vmatprep.subr.bf16.mxu0 0
      %5666 = vmatpush1.bf16.xpose.msra.mxu0 0
      %5667 = vmatprep.subr.bf16.mxu0 0
      %5668 = vmatpush1.bf16.xpose.msra.mxu0 0
      %5669 = vmatprep.subr.bf16.mxu0 0
      %5670 = vmatpush1.bf16.xpose.msra.mxu0 0
      %5671 = vmatprep.subr.bf16.mxu0 0
      %5672 = vmatpush1.bf16.xpose.msra.mxu0 0
      %5673 = vmatprep.subr.bf16.mxu0 0
      %5674 = vmatpush1.bf16.xpose.msra.mxu0 0
      %5675 = vmatprep.subr.bf16.mxu0 0
      %5676 = vmatpush1.bf16.xpose.msra.mxu0 0
      %5677 = vmatprep.subr.bf16.mxu0 0
      %5678 = vmatpush1.bf16.xpose.msra.mxu0 0
      %5679 = vmatprep.subr.bf16.mxu0 0
      %5680 = vmatpush1.bf16.xpose.msra.mxu0 0
      %5681 = vmatprep.subr.bf16.mxu0 0
      %5682 = vmatpush1.bf16.xpose.msra.mxu0 0
      %5683 = vmatprep.subr.bf16.mxu0 0
      %5684 = vmatpush1.bf16.xpose.msra.mxu0 0
      %5685 = vmatprep.subr.bf16.mxu0 0
      %5686 = vmatpush1.bf16.xpose.msra.mxu0 0
      %5687 = vmatprep.subr.bf16.mxu0 0
      %5688 = vmatpush1.bf16.xpose.msra.mxu0 0
      %5689 = vmatprep.mubr.bf16.mxu0 0
      %5690 = vmatmul.mubr.bf16.gmra.mrb[0].mxu0 %v5652
      %v5691 = vpop.f32.mrb[0].mxu0
      %v5692 = vadd.f32 0.0, %v5691
      %v5693 = vpop.f32.mrb[0].mxu0
      %v5694 = vpop.f32.mrb[0].mxu0
      %v5695 = vpop.f32.mrb[0].mxu0
      %5696 = vdwg.mxu0
      %5698 = vrot.lane.b32.xlu0 %v5586, 80
      %v5699 = vpop.permute.xlu0 %5698
      %v5701 = vsel %vm819, %v5586, 0
      %v5704 = vsel %vm819, %v5699, 0
      %5706 = vmatprep.subr.bf16.mxu0 0
      %5707 = vmatpush1.bf16.xpose.msra.mxu0 %v5704
      %5708 = vmatprep.subr.bf16.mxu0 0
      %5709 = vmatpush1.bf16.xpose.msra.mxu0 0
      %5710 = vmatprep.subr.bf16.mxu0 0
      %5711 = vmatpush1.bf16.xpose.msra.mxu0 0
      %5712 = vmatprep.subr.bf16.mxu0 0
      %5713 = vmatpush1.bf16.xpose.msra.mxu0 0
      %5714 = vmatprep.subr.bf16.mxu0 0
      %5715 = vmatpush1.bf16.xpose.msra.mxu0 0
      %5716 = vmatprep.subr.bf16.mxu0 0
      %5717 = vmatpush1.bf16.xpose.msra.mxu0 0
      %5718 = vmatprep.subr.bf16.mxu0 0
      %5719 = vmatpush1.bf16.xpose.msra.mxu0 0
      %5720 = vmatprep.subr.bf16.mxu0 0
      %5721 = vmatpush1.bf16.xpose.msra.mxu0 0
      %5722 = vmatprep.subr.bf16.mxu0 0
      %5723 = vmatpush1.bf16.xpose.msra.mxu0 0
      %5724 = vmatprep.subr.bf16.mxu0 0
      %5725 = vmatpush1.bf16.xpose.msra.mxu0 0
      %5726 = vmatprep.subr.bf16.mxu0 0
      %5727 = vmatpush1.bf16.xpose.msra.mxu0 0
      %5728 = vmatprep.subr.bf16.mxu0 0
      %5729 = vmatpush1.bf16.xpose.msra.mxu0 0
      %5730 = vmatprep.subr.bf16.mxu0 0
      %5731 = vmatpush1.bf16.xpose.msra.mxu0 0
      %5732 = vmatprep.subr.bf16.mxu0 0
      %5733 = vmatpush1.bf16.xpose.msra.mxu0 0
      %5734 = vmatprep.subr.bf16.mxu0 0
      %5735 = vmatpush1.bf16.xpose.msra.mxu0 0
      %5736 = vmatprep.subr.bf16.mxu0 0
      %5737 = vmatpush1.bf16.xpose.msra.mxu0 0
      %5738 = vmatprep.mubr.bf16.mxu0 0
      %5739 = vmatmul.mubr.bf16.gmra.mrb[0].mxu0 %v5701
      %v5740 = vpop.f32.mrb[0].mxu0
      %v5741 = vadd.f32 0.0, %v5740
      %v5742 = vpop.f32.mrb[0].mxu0
      %v5743 = vpop.f32.mrb[0].mxu0
      %v5744 = vpop.f32.mrb[0].mxu0
      %5745 = vdwg.mxu0
      %5747 = vrot.lane.b32.xlu0 %v5587, 80
      %v5748 = vpop.permute.xlu0 %5747
      %v5750 = vsel %vm819, %v5587, 0
      %v5753 = vsel %vm819, %v5748, 0
      %5755 = vmatprep.subr.bf16.mxu0 0
      %5756 = vmatpush1.bf16.xpose.msra.mxu0 %v5753
      %5757 = vmatprep.subr.bf16.mxu0 0
      %5758 = vmatpush1.bf16.xpose.msra.mxu0 0
      %5759 = vmatprep.subr.bf16.mxu0 0
      %5760 = vmatpush1.bf16.xpose.msra.mxu0 0
      %5761 = vmatprep.subr.bf16.mxu0 0
      %5762 = vmatpush1.bf16.xpose.msra.mxu0 0
      %5763 = vmatprep.subr.bf16.mxu0 0
      %5764 = vmatpush1.bf16.xpose.msra.mxu0 0
      %5765 = vmatprep.subr.bf16.mxu0 0
      %5766 = vmatpush1.bf16.xpose.msra.mxu0 0
      %5767 = vmatprep.subr.bf16.mxu0 0
      %5768 = vmatpush1.bf16.xpose.msra.mxu0 0
      %5769 = vmatprep.subr.bf16.mxu0 0
      %5770 = vmatpush1.bf16.xpose.msra.mxu0 0
      %5771 = vmatprep.subr.bf16.mxu0 0
      %5772 = vmatpush1.bf16.xpose.msra.mxu0 0
      %5773 = vmatprep.subr.bf16.mxu0 0
      %5774 = vmatpush1.bf16.xpose.msra.mxu0 0
      %5775 = vmatprep.subr.bf16.mxu0 0
      %5776 = vmatpush1.bf16.xpose.msra.mxu0 0
      %5777 = vmatprep.subr.bf16.mxu0 0
      %5778 = vmatpush1.bf16.xpose.msra.mxu0 0
      %5779 = vmatprep.subr.bf16.mxu0 0
      %5780 = vmatpush1.bf16.xpose.msra.mxu0 0
      %5781 = vmatprep.subr.bf16.mxu0 0
      %5782 = vmatpush1.bf16.xpose.msra.mxu0 0
      %5783 = vmatprep.subr.bf16.mxu0 0
      %5784 = vmatpush1.bf16.xpose.msra.mxu0 0
      %5785 = vmatprep.subr.bf16.mxu0 0
      %5786 = vmatpush1.bf16.xpose.msra.mxu0 0
      %5787 = vmatprep.mubr.bf16.mxu0 0
      %5788 = vmatmul.mubr.bf16.gmra.mrb[0].mxu0 %v5750
      %v5789 = vpop.f32.mrb[0].mxu0
      %v5790 = vadd.f32 0.0, %v5789
      %v5791 = vpop.f32.mrb[0].mxu0
      %v5792 = vpop.f32.mrb[0].mxu0
      %v5793 = vpop.f32.mrb[0].mxu0
      %5794 = vdwg.mxu0
      %5796 = vrot.lane.b32.xlu0 %v5588, 80
      %v5797 = vpop.permute.xlu0 %5796
      %v5799 = vsel %vm819, %v5588, 0
      %v5802 = vsel %vm819, %v5797, 0
      %5804 = vmatprep.subr.bf16.mxu0 0
      %5805 = vmatpush1.bf16.xpose.msra.mxu0 %v5802
      %5806 = vmatprep.subr.bf16.mxu0 0
      %5807 = vmatpush1.bf16.xpose.msra.mxu0 0
      %5808 = vmatprep.subr.bf16.mxu0 0
      %5809 = vmatpush1.bf16.xpose.msra.mxu0 0
      %5810 = vmatprep.subr.bf16.mxu0 0
      %5811 = vmatpush1.bf16.xpose.msra.mxu0 0
      %5812 = vmatprep.subr.bf16.mxu0 0
      %5813 = vmatpush1.bf16.xpose.msra.mxu0 0
      %5814 = vmatprep.subr.bf16.mxu0 0
      %5815 = vmatpush1.bf16.xpose.msra.mxu0 0
      %5816 = vmatprep.subr.bf16.mxu0 0
      %5817 = vmatpush1.bf16.xpose.msra.mxu0 0
      %5818 = vmatprep.subr.bf16.mxu0 0
      %5819 = vmatpush1.bf16.xpose.msra.mxu0 0
      %5820 = vmatprep.subr.bf16.mxu0 0
      %5821 = vmatpush1.bf16.xpose.msra.mxu0 0
      %5822 = vmatprep.subr.bf16.mxu0 0
      %5823 = vmatpush1.bf16.xpose.msra.mxu0 0
      %5824 = vmatprep.subr.bf16.mxu0 0
      %5825 = vmatpush1.bf16.xpose.msra.mxu0 0
      %5826 = vmatprep.subr.bf16.mxu0 0
      %5827 = vmatpush1.bf16.xpose.msra.mxu0 0
      %5828 = vmatprep.subr.bf16.mxu0 0
      %5829 = vmatpush1.bf16.xpose.msra.mxu0 0
      %5830 = vmatprep.subr.bf16.mxu0 0
      %5831 = vmatpush1.bf16.xpose.msra.mxu0 0
      %5832 = vmatprep.subr.bf16.mxu0 0
      %5833 = vmatpush1.bf16.xpose.msra.mxu0 0
      %5834 = vmatprep.subr.bf16.mxu0 0
      %5835 = vmatpush1.bf16.xpose.msra.mxu0 0
      %5836 = vmatprep.mubr.bf16.mxu0 0
      %5837 = vmatmul.mubr.bf16.gmra.mrb[0].mxu0 %v5799
      %v5838 = vpop.f32.mrb[0].mxu0
      %v5839 = vadd.f32 0.0, %v5838
      %v5840 = vpop.f32.mrb[0].mxu0
      %v5841 = vpop.f32.mrb[0].mxu0
      %v5842 = vpop.f32.mrb[0].mxu0
      %5843 = vdwg.mxu0
      %5845 = vrot.lane.b32.xlu0 %v5589, 80
      %v5846 = vpop.permute.xlu0 %5845
      %v5848 = vsel %vm819, %v5589, 0
      %v5851 = vsel %vm819, %v5846, 0
      %5853 = vmatprep.subr.bf16.mxu0 0
      %5854 = vmatpush1.bf16.xpose.msra.mxu0 %v5851
      %5855 = vmatprep.subr.bf16.mxu0 0
      %5856 = vmatpush1.bf16.xpose.msra.mxu0 0
      %5857 = vmatprep.subr.bf16.mxu0 0
      %5858 = vmatpush1.bf16.xpose.msra.mxu0 0
      %5859 = vmatprep.subr.bf16.mxu0 0
      %5860 = vmatpush1.bf16.xpose.msra.mxu0 0
      %5861 = vmatprep.subr.bf16.mxu0 0
      %5862 = vmatpush1.bf16.xpose.msra.mxu0 0
      %5863 = vmatprep.subr.bf16.mxu0 0
      %5864 = vmatpush1.bf16.xpose.msra.mxu0 0
      %5865 = vmatprep.subr.bf16.mxu0 0
      %5866 = vmatpush1.bf16.xpose.msra.mxu0 0
      %5867 = vmatprep.subr.bf16.mxu0 0
      %5868 = vmatpush1.bf16.xpose.msra.mxu0 0
      %5869 = vmatprep.subr.bf16.mxu0 0
      %5870 = vmatpush1.bf16.xpose.msra.mxu0 0
      %5871 = vmatprep.subr.bf16.mxu0 0
      %5872 = vmatpush1.bf16.xpose.msra.mxu0 0
      %5873 = vmatprep.subr.bf16.mxu0 0
      %5874 = vmatpush1.bf16.xpose.msra.mxu0 0
      %5875 = vmatprep.subr.bf16.mxu0 0
      %5876 = vmatpush1.bf16.xpose.msra.mxu0 0
      %5877 = vmatprep.subr.bf16.mxu0 0
      %5878 = vmatpush1.bf16.xpose.msra.mxu0 0
      %5879 = vmatprep.subr.bf16.mxu0 0
      %5880 = vmatpush1.bf16.xpose.msra.mxu0 0
      %5881 = vmatprep.subr.bf16.mxu0 0
      %5882 = vmatpush1.bf16.xpose.msra.mxu0 0
      %5883 = vmatprep.subr.bf16.mxu0 0
      %5884 = vmatpush1.bf16.xpose.msra.mxu0 0
      %5885 = vmatprep.mubr.bf16.mxu0 0
      %5886 = vmatmul.mubr.bf16.gmra.mrb[0].mxu0 %v5848
      %v5887 = vpop.f32.mrb[0].mxu0
      %v5888 = vadd.f32 0.0, %v5887
      %v5889 = vpop.f32.mrb[0].mxu0
      %v5890 = vpop.f32.mrb[0].mxu0
      %v5891 = vpop.f32.mrb[0].mxu0
      %5892 = vdwg.mxu0
      %v5893 = vmul.f32 %v5643, 0.35355338
      %v5894 = vmul.f32 %v5692, 0.35355338
      %v5895 = vmul.f32 %v5741, 0.35355338
      %v5896 = vmul.f32 %v5790, 0.35355338
      %v5897 = vmul.f32 %v5839, 0.35355338
      %v5898 = vmul.f32 %v5888, 0.35355338
      %v5899 = vadd.f32 %v5893, %v672
      %v5900 = vadd.f32 %v5894, %v672
      %v5901 = vadd.f32 %v5895, %v672
      %v5902 = vadd.f32 %v5896, %v672
      %v5903 = vadd.f32 %v5897, %v672
      %v5904 = vadd.f32 %v5898, %v672
      %v5905 = vsel %vm819, %v5899, -inf
      %5906 = vmax.xlane.f32.xlu0 %v5905
      %v5907 = vpop.xlane.xlu0 %5906
      %v5908 = vsel %vm819, %v5900, -inf
      %5909 = vmax.xlane.f32.xlu0 %v5908
      %v5910 = vpop.xlane.xlu0 %5909
      %v5911 = vsel %vm819, %v5901, -inf
      %5912 = vmax.xlane.f32.xlu0 %v5911
      %v5913 = vpop.xlane.xlu0 %5912
      %v5914 = vsel %vm819, %v5902, -inf
      %5915 = vmax.xlane.f32.xlu0 %v5914
      %v5916 = vpop.xlane.xlu0 %5915
      %v5917 = vsel %vm819, %v5903, -inf
      %5918 = vmax.xlane.f32.xlu0 %v5917
      %v5919 = vpop.xlane.xlu0 %5918
      %v5920 = vsel %vm819, %v5904, -inf
      %5921 = vmax.xlane.f32.xlu0 %v5920
      %v5922 = vpop.xlane.xlu0 %5921
      %v5923 = vsub.f32 %v5899, %v5907
      %v5924 = vsub.f32 %v5900, %v5910
      %v5925 = vsub.f32 %v5901, %v5913
      %v5926 = vsub.f32 %v5902, %v5916
      %v5927 = vsub.f32 %v5903, %v5919
      %v5928 = vsub.f32 %v5904, %v5922
      %v5929 = vmul.f32 %v5923, 1.442695
      %v5930 = vpow.pop %v5929
      %v5931 = vmul.f32 %v5924, 1.442695
      %v5932 = vpow.pop %v5931
      %v5933 = vmul.f32 %v5925, 1.442695
      %v5934 = vpow.pop %v5933
      %v5935 = vmul.f32 %v5926, 1.442695
      %v5936 = vpow.pop %v5935
      %v5937 = vmul.f32 %v5927, 1.442695
      %v5938 = vpow.pop %v5937
      %v5939 = vmul.f32 %v5928, 1.442695
      %v5940 = vpow.pop %v5939
      %v5941 = vsel %vm819, %v5930, 0.0
      %5942 = vadd.xlane.f32.xlu0 %v5941
      %v5943 = vpop.xlane.xlu0 %5942
      %v5944 = vsel %vm819, %v5932, 0.0
      %5945 = vadd.xlane.f32.xlu0 %v5944
      %v5946 = vpop.xlane.xlu0 %5945
      %v5947 = vsel %vm819, %v5934, 0.0
      %5948 = vadd.xlane.f32.xlu0 %v5947
      %v5949 = vpop.xlane.xlu0 %5948
      %v5950 = vsel %vm819, %v5936, 0.0
      %5951 = vadd.xlane.f32.xlu0 %v5950
      %v5952 = vpop.xlane.xlu0 %5951
      %v5953 = vsel %vm819, %v5938, 0.0
      %5954 = vadd.xlane.f32.xlu0 %v5953
      %v5955 = vpop.xlane.xlu0 %5954
      %v5956 = vsel %vm819, %v5940, 0.0
      %5957 = vadd.xlane.f32.xlu0 %v5956
      %v5958 = vpop.xlane.xlu0 %5957
      %v5959 = vrcp.pop %v5943
      %v5960 = vrcp.pop %v5946
      %v5961 = vrcp.pop %v5949
      %v5962 = vrcp.pop %v5952
      %v5963 = vrcp.pop %v5955
      %v5964 = vrcp.pop %v5958
      %v5965 = vmul.f32 %v5930, %v5959
      %v5966 = vmul.f32 %v5932, %v5960
      %v5967 = vmul.f32 %v5934, %v5961
      %v5968 = vmul.f32 %v5936, %v5962
      %v5969 = vmul.f32 %v5938, %v5963
      %v5970 = vmul.f32 %v5940, %v5964
      %v5971 = vpack.c.bf16 %v5965, %v5965
      %v5972 = vpack.c.bf16 %v5966, %v5966
      %v5973 = vpack.c.bf16 %v5967, %v5967
      %v5974 = vpack.c.bf16 %v5968, %v5968
      %v5975 = vpack.c.bf16 %v5969, %v5969
      %v5976 = vpack.c.bf16 %v5970, %v5970
      %5977 = vrot.lane.b32.xlu0 %v5584, 32
      %v5978 = vpop.permute.xlu0 %5977
      %v5980 = vsel %vm819, %v5971, 0
      %v5983 = vsel %vm1200, %v5978, 0
      %5985 = vmatprep.subr.bf16.mxu0 0
      %5986 = vmatpush1.bf16.msra.mxu0 %v5983
      %5987 = vmatprep.subr.bf16.mxu0 0
      %5988 = vmatpush1.bf16.msra.mxu0 0
      %5989 = vmatprep.subr.bf16.mxu0 0
      %5990 = vmatpush1.bf16.msra.mxu0 0
      %5991 = vmatprep.subr.bf16.mxu0 0
      %5992 = vmatpush1.bf16.msra.mxu0 0
      %5993 = vmatprep.subr.bf16.mxu0 0
      %5994 = vmatpush1.bf16.msra.mxu0 0
      %5995 = vmatprep.subr.bf16.mxu0 0
      %5996 = vmatpush1.bf16.msra.mxu0 0
      %5997 = vmatprep.subr.bf16.mxu0 0
      %5998 = vmatpush1.bf16.msra.mxu0 0
      %5999 = vmatprep.subr.bf16.mxu0 0
      %6000 = vmatpush1.bf16.msra.mxu0 0
      %6001 = vmatprep.subr.bf16.mxu0 0
      %6002 = vmatpush1.bf16.msra.mxu0 0
      %6003 = vmatprep.subr.bf16.mxu0 0
      %6004 = vmatpush1.bf16.msra.mxu0 0
      %6005 = vmatprep.subr.bf16.mxu0 0
      %6006 = vmatpush1.bf16.msra.mxu0 0
      %6007 = vmatprep.subr.bf16.mxu0 0
      %6008 = vmatpush1.bf16.msra.mxu0 0
      %6009 = vmatprep.subr.bf16.mxu0 0
      %6010 = vmatpush1.bf16.msra.mxu0 0
      %6011 = vmatprep.subr.bf16.mxu0 0
      %6012 = vmatpush1.bf16.msra.mxu0 0
      %6013 = vmatprep.subr.bf16.mxu0 0
      %6014 = vmatpush1.bf16.msra.mxu0 0
      %6015 = vmatprep.subr.bf16.mxu0 0
      %6016 = vmatpush1.bf16.msra.mxu0 0
      %6017 = vmatprep.mubr.bf16.mxu0 0
      %6018 = vmatmul.mubr.bf16.gmra.mrb[0].mxu0 %v5980
      %v6019 = vpop.f32.mrb[0].mxu0
      %v6020 = vadd.f32 0.0, %v6019
      %v6021 = vpop.f32.mrb[0].mxu0
      %v6022 = vpop.f32.mrb[0].mxu0
      %v6023 = vpop.f32.mrb[0].mxu0
      %6024 = vdwg.mxu0
      %6025 = vrot.lane.b32.xlu0 %v5585, 32
      %v6026 = vpop.permute.xlu0 %6025
      %v6028 = vsel %vm819, %v5972, 0
      %v6031 = vsel %vm1200, %v6026, 0
      %6033 = vmatprep.subr.bf16.mxu0 0
      %6034 = vmatpush1.bf16.msra.mxu0 %v6031
      %6035 = vmatprep.subr.bf16.mxu0 0
      %6036 = vmatpush1.bf16.msra.mxu0 0
      %6037 = vmatprep.subr.bf16.mxu0 0
      %6038 = vmatpush1.bf16.msra.mxu0 0
      %6039 = vmatprep.subr.bf16.mxu0 0
      %6040 = vmatpush1.bf16.msra.mxu0 0
      %6041 = vmatprep.subr.bf16.mxu0 0
      %6042 = vmatpush1.bf16.msra.mxu0 0
      %6043 = vmatprep.subr.bf16.mxu0 0
      %6044 = vmatpush1.bf16.msra.mxu0 0
      %6045 = vmatprep.subr.bf16.mxu0 0
      %6046 = vmatpush1.bf16.msra.mxu0 0
      %6047 = vmatprep.subr.bf16.mxu0 0
      %6048 = vmatpush1.bf16.msra.mxu0 0
      %6049 = vmatprep.subr.bf16.mxu0 0
      %6050 = vmatpush1.bf16.msra.mxu0 0
      %6051 = vmatprep.subr.bf16.mxu0 0
      %6052 = vmatpush1.bf16.msra.mxu0 0
      %6053 = vmatprep.subr.bf16.mxu0 0
      %6054 = vmatpush1.bf16.msra.mxu0 0
      %6055 = vmatprep.subr.bf16.mxu0 0
      %6056 = vmatpush1.bf16.msra.mxu0 0
      %6057 = vmatprep.subr.bf16.mxu0 0
      %6058 = vmatpush1.bf16.msra.mxu0 0
      %6059 = vmatprep.subr.bf16.mxu0 0
      %6060 = vmatpush1.bf16.msra.mxu0 0
      %6061 = vmatprep.subr.bf16.mxu0 0
      %6062 = vmatpush1.bf16.msra.mxu0 0
      %6063 = vmatprep.subr.bf16.mxu0 0
      %6064 = vmatpush1.bf16.msra.mxu0 0
      %6065 = vmatprep.mubr.bf16.mxu0 0
      %6066 = vmatmul.mubr.bf16.gmra.mrb[0].mxu0 %v6028
      %v6067 = vpop.f32.mrb[0].mxu0
      %v6068 = vadd.f32 0.0, %v6067
      %v6069 = vpop.f32.mrb[0].mxu0
      %v6070 = vpop.f32.mrb[0].mxu0
      %v6071 = vpop.f32.mrb[0].mxu0
      %6072 = vdwg.mxu0
      %6073 = vrot.lane.b32.xlu0 %v5586, 32
      %v6074 = vpop.permute.xlu0 %6073
      %v6076 = vsel %vm819, %v5973, 0
      %v6079 = vsel %vm1200, %v6074, 0
      %6081 = vmatprep.subr.bf16.mxu0 0
      %6082 = vmatpush1.bf16.msra.mxu0 %v6079
      %6083 = vmatprep.subr.bf16.mxu0 0
      %6084 = vmatpush1.bf16.msra.mxu0 0
      %6085 = vmatprep.subr.bf16.mxu0 0
      %6086 = vmatpush1.bf16.msra.mxu0 0
      %6087 = vmatprep.subr.bf16.mxu0 0
      %6088 = vmatpush1.bf16.msra.mxu0 0
      %6089 = vmatprep.subr.bf16.mxu0 0
      %6090 = vmatpush1.bf16.msra.mxu0 0
      %6091 = vmatprep.subr.bf16.mxu0 0
      %6092 = vmatpush1.bf16.msra.mxu0 0
      %6093 = vmatprep.subr.bf16.mxu0 0
      %6094 = vmatpush1.bf16.msra.mxu0 0
      %6095 = vmatprep.subr.bf16.mxu0 0
      %6096 = vmatpush1.bf16.msra.mxu0 0
      %6097 = vmatprep.subr.bf16.mxu0 0
      %6098 = vmatpush1.bf16.msra.mxu0 0
      %6099 = vmatprep.subr.bf16.mxu0 0
      %6100 = vmatpush1.bf16.msra.mxu0 0
      %6101 = vmatprep.subr.bf16.mxu0 0
      %6102 = vmatpush1.bf16.msra.mxu0 0
      %6103 = vmatprep.subr.bf16.mxu0 0
      %6104 = vmatpush1.bf16.msra.mxu0 0
      %6105 = vmatprep.subr.bf16.mxu0 0
      %6106 = vmatpush1.bf16.msra.mxu0 0
      %6107 = vmatprep.subr.bf16.mxu0 0
      %6108 = vmatpush1.bf16.msra.mxu0 0
      %6109 = vmatprep.subr.bf16.mxu0 0
      %6110 = vmatpush1.bf16.msra.mxu0 0
      %6111 = vmatprep.subr.bf16.mxu0 0
      %6112 = vmatpush1.bf16.msra.mxu0 0
      %6113 = vmatprep.mubr.bf16.mxu0 0
      %6114 = vmatmul.mubr.bf16.gmra.mrb[0].mxu0 %v6076
      %v6115 = vpop.f32.mrb[0].mxu0
      %v6116 = vadd.f32 0.0, %v6115
      %v6117 = vpop.f32.mrb[0].mxu0
      %v6118 = vpop.f32.mrb[0].mxu0
      %v6119 = vpop.f32.mrb[0].mxu0
      %6120 = vdwg.mxu0
      %6121 = vrot.lane.b32.xlu0 %v5587, 32
      %v6122 = vpop.permute.xlu0 %6121
      %v6124 = vsel %vm819, %v5974, 0
      %v6127 = vsel %vm1200, %v6122, 0
      %6129 = vmatprep.subr.bf16.mxu0 0
      %6130 = vmatpush1.bf16.msra.mxu0 %v6127
      %6131 = vmatprep.subr.bf16.mxu0 0
      %6132 = vmatpush1.bf16.msra.mxu0 0
      %6133 = vmatprep.subr.bf16.mxu0 0
      %6134 = vmatpush1.bf16.msra.mxu0 0
      %6135 = vmatprep.subr.bf16.mxu0 0
      %6136 = vmatpush1.bf16.msra.mxu0 0
      %6137 = vmatprep.subr.bf16.mxu0 0
      %6138 = vmatpush1.bf16.msra.mxu0 0
      %6139 = vmatprep.subr.bf16.mxu0 0
      %6140 = vmatpush1.bf16.msra.mxu0 0
      %6141 = vmatprep.subr.bf16.mxu0 0
      %6142 = vmatpush1.bf16.msra.mxu0 0
      %6143 = vmatprep.subr.bf16.mxu0 0
      %6144 = vmatpush1.bf16.msra.mxu0 0
      %6145 = vmatprep.subr.bf16.mxu0 0
      %6146 = vmatpush1.bf16.msra.mxu0 0
      %6147 = vmatprep.subr.bf16.mxu0 0
      %6148 = vmatpush1.bf16.msra.mxu0 0
      %6149 = vmatprep.subr.bf16.mxu0 0
      %6150 = vmatpush1.bf16.msra.mxu0 0
      %6151 = vmatprep.subr.bf16.mxu0 0
      %6152 = vmatpush1.bf16.msra.mxu0 0
      %6153 = vmatprep.subr.bf16.mxu0 0
      %6154 = vmatpush1.bf16.msra.mxu0 0
      %6155 = vmatprep.subr.bf16.mxu0 0
      %6156 = vmatpush1.bf16.msra.mxu0 0
      %6157 = vmatprep.subr.bf16.mxu0 0
      %6158 = vmatpush1.bf16.msra.mxu0 0
      %6159 = vmatprep.subr.bf16.mxu0 0
      %6160 = vmatpush1.bf16.msra.mxu0 0
      %6161 = vmatprep.mubr.bf16.mxu0 0
      %6162 = vmatmul.mubr.bf16.gmra.mrb[0].mxu0 %v6124
      %v6163 = vpop.f32.mrb[0].mxu0
      %v6164 = vadd.f32 0.0, %v6163
      %v6165 = vpop.f32.mrb[0].mxu0
      %v6166 = vpop.f32.mrb[0].mxu0
      %v6167 = vpop.f32.mrb[0].mxu0
      %6168 = vdwg.mxu0
      %6170 = vrot.lane.b32.xlu0 %v5597, 32
      %v6171 = vpop.permute.xlu0 %6170
      %v6173 = vsel %vm819, %v5975, 0
      %v6176 = vsel %vm1200, %v6171, 0
      %6178 = vmatprep.subr.bf16.mxu0 0
      %6179 = vmatpush1.bf16.msra.mxu0 %v6176
      %6180 = vmatprep.subr.bf16.mxu0 0
      %6181 = vmatpush1.bf16.msra.mxu0 0
      %6182 = vmatprep.subr.bf16.mxu0 0
      %6183 = vmatpush1.bf16.msra.mxu0 0
      %6184 = vmatprep.subr.bf16.mxu0 0
      %6185 = vmatpush1.bf16.msra.mxu0 0
      %6186 = vmatprep.subr.bf16.mxu0 0
      %6187 = vmatpush1.bf16.msra.mxu0 0
      %6188 = vmatprep.subr.bf16.mxu0 0
      %6189 = vmatpush1.bf16.msra.mxu0 0
      %6190 = vmatprep.subr.bf16.mxu0 0
      %6191 = vmatpush1.bf16.msra.mxu0 0
      %6192 = vmatprep.subr.bf16.mxu0 0
      %6193 = vmatpush1.bf16.msra.mxu0 0
      %6194 = vmatprep.subr.bf16.mxu0 0
      %6195 = vmatpush1.bf16.msra.mxu0 0
      %6196 = vmatprep.subr.bf16.mxu0 0
      %6197 = vmatpush1.bf16.msra.mxu0 0
      %6198 = vmatprep.subr.bf16.mxu0 0
      %6199 = vmatpush1.bf16.msra.mxu0 0
      %6200 = vmatprep.subr.bf16.mxu0 0
      %6201 = vmatpush1.bf16.msra.mxu0 0
      %6202 = vmatprep.subr.bf16.mxu0 0
      %6203 = vmatpush1.bf16.msra.mxu0 0
      %6204 = vmatprep.subr.bf16.mxu0 0
      %6205 = vmatpush1.bf16.msra.mxu0 0
      %6206 = vmatprep.subr.bf16.mxu0 0
      %6207 = vmatpush1.bf16.msra.mxu0 0
      %6208 = vmatprep.subr.bf16.mxu0 0
      %6209 = vmatpush1.bf16.msra.mxu0 0
      %6210 = vmatprep.mubr.bf16.mxu0 0
      %6211 = vmatmul.mubr.bf16.gmra.mrb[0].mxu0 %v6173
      %v6212 = vpop.f32.mrb[0].mxu0
      %v6213 = vadd.f32 0.0, %v6212
      %v6214 = vpop.f32.mrb[0].mxu0
      %v6215 = vpop.f32.mrb[0].mxu0
      %v6216 = vpop.f32.mrb[0].mxu0
      %6217 = vdwg.mxu0
      %6219 = vrot.lane.b32.xlu0 %v5598, 32
      %v6220 = vpop.permute.xlu0 %6219
      %v6222 = vsel %vm819, %v5976, 0
      %v6225 = vsel %vm1200, %v6220, 0
      %6227 = vmatprep.subr.bf16.mxu0 0
      %6228 = vmatpush1.bf16.msra.mxu0 %v6225
      %6229 = vmatprep.subr.bf16.mxu0 0
      %6230 = vmatpush1.bf16.msra.mxu0 0
      %6231 = vmatprep.subr.bf16.mxu0 0
      %6232 = vmatpush1.bf16.msra.mxu0 0
      %6233 = vmatprep.subr.bf16.mxu0 0
      %6234 = vmatpush1.bf16.msra.mxu0 0
      %6235 = vmatprep.subr.bf16.mxu0 0
      %6236 = vmatpush1.bf16.msra.mxu0 0
      %6237 = vmatprep.subr.bf16.mxu0 0
      %6238 = vmatpush1.bf16.msra.mxu0 0
      %6239 = vmatprep.subr.bf16.mxu0 0
      %6240 = vmatpush1.bf16.msra.mxu0 0
      %6241 = vmatprep.subr.bf16.mxu0 0
      %6242 = vmatpush1.bf16.msra.mxu0 0
      %6243 = vmatprep.subr.bf16.mxu0 0
      %6244 = vmatpush1.bf16.msra.mxu0 0
      %6245 = vmatprep.subr.bf16.mxu0 0
      %6246 = vmatpush1.bf16.msra.mxu0 0
      %6247 = vmatprep.subr.bf16.mxu0 0
      %6248 = vmatpush1.bf16.msra.mxu0 0
      %6249 = vmatprep.subr.bf16.mxu0 0
      %6250 = vmatpush1.bf16.msra.mxu0 0
      %6251 = vmatprep.subr.bf16.mxu0 0
      %6252 = vmatpush1.bf16.msra.mxu0 0
      %6253 = vmatprep.subr.bf16.mxu0 0
      %6254 = vmatpush1.bf16.msra.mxu0 0
      %6255 = vmatprep.subr.bf16.mxu0 0
      %6256 = vmatpush1.bf16.msra.mxu0 0
      %6257 = vmatprep.subr.bf16.mxu0 0
      %6258 = vmatpush1.bf16.msra.mxu0 0
      %6259 = vmatprep.mubr.bf16.mxu0 0
      %6260 = vmatmul.mubr.bf16.gmra.mrb[0].mxu0 %v6222
      %v6261 = vpop.f32.mrb[0].mxu0
      %v6262 = vadd.f32 0.0, %v6261
      %v6263 = vpop.f32.mrb[0].mxu0
      %v6264 = vpop.f32.mrb[0].mxu0
      %v6265 = vpop.f32.mrb[0].mxu0
      %6266 = vdwg.mxu0
      %6268 = vrot.lane.b32.xlu0 %v6068, 8
      %v6269 = vpop.permute.xlu0 %6268
      %6272 = vrot.lane.b32.xlu0 %v6116, 16
      %v6273 = vpop.permute.xlu0 %6272
      %6276 = vrot.lane.b32.xlu0 %v6164, 24
      %v6277 = vpop.permute.xlu0 %6276
      %6280 = vrot.lane.b32.xlu0 %v6213, 32
      %v6281 = vpop.permute.xlu0 %6280
      %6284 = vrot.lane.b32.xlu0 %v6262, 40
      %v6285 = vpop.permute.xlu0 %6284
      %v6287 = vsel %vm819, %v6020, %v6269
      %v6288 = vsel %vm1507, %v6287, %v6273
      %v6289 = vsel %vm1509, %v6288, %v6277
      %v6290 = vsel %vm1511, %v6289, %v6281
      %v6291 = vsel %vm1513, %v6290, %v6285
      %v6292 = vpack.c.bf16 %v6291, %v6291
      %s6293 = scalar_lea.vmem %s6, 96
      %v6294 = vld [vmem:[%s6293] sm:$0xf]
      %v6295 = vld [vmem:[%s6293 + $0x4] sm:$0xf]
      %v6296 = vld [vmem:[%s6293 + $0x8] sm:$0xf]
      %v6297 = vld [vmem:[%s6293 + $0xc] sm:$0xf]
      %v6298 = vld [vmem:[%s6293 + $0x10] sm:$0xf]
      %v6299 = vld [vmem:[%s6293 + $0x14] sm:$0xf]
      %v6306 = vunpack.c.l.b16 %v6294
      %v6307 = vunpack.c.l.b16 %v6295
      %v6308 = vunpack.c.l.b16 %v6296
      %v6309 = vunpack.c.l.b16 %v6297
      %v6310 = vunpack.c.l.b16 %v6298
      %v6311 = vunpack.c.l.b16 %v6299
      %v6312 = vpack.c.b16 %v6307, %v6306
      %v6313 = vpack.c.b16 %v6309, %v6308
      %v6314 = vpack.c.b16 %v6311, %v6310
      %v6319 = vsel %vm675, %v6292, 0
      %6321 = vmatprep.subr.bf16.mxu0 0
      %6322 = vmatpush1.bf16.msra.mxu0 %v6312
      %6323 = vmatprep.subr.bf16.mxu0 0
      %6324 = vmatpush1.bf16.msra.mxu0 %v6313
      %6325 = vmatprep.subr.bf16.mxu0 0
      %6326 = vmatpush1.bf16.msra.mxu0 %v6314
      %6327 = vmatprep.subr.bf16.mxu0 0
      %6328 = vmatpush1.bf16.msra.mxu0 0
      %6329 = vmatprep.subr.bf16.mxu0 0
      %6330 = vmatpush1.bf16.msra.mxu0 0
      %6331 = vmatprep.subr.bf16.mxu0 0
      %6332 = vmatpush1.bf16.msra.mxu0 0
      %6333 = vmatprep.subr.bf16.mxu0 0
      %6334 = vmatpush1.bf16.msra.mxu0 0
      %6335 = vmatprep.subr.bf16.mxu0 0
      %6336 = vmatpush1.bf16.msra.mxu0 0
      %6337 = vmatprep.subr.bf16.mxu0 0
      %6338 = vmatpush1.bf16.msra.mxu0 0
      %6339 = vmatprep.subr.bf16.mxu0 0
      %6340 = vmatpush1.bf16.msra.mxu0 0
      %6341 = vmatprep.subr.bf16.mxu0 0
      %6342 = vmatpush1.bf16.msra.mxu0 0
      %6343 = vmatprep.subr.bf16.mxu0 0
      %6344 = vmatpush1.bf16.msra.mxu0 0
      %6345 = vmatprep.subr.bf16.mxu0 0
      %6346 = vmatpush1.bf16.msra.mxu0 0
      %6347 = vmatprep.subr.bf16.mxu0 0
      %6348 = vmatpush1.bf16.msra.mxu0 0
      %6349 = vmatprep.subr.bf16.mxu0 0
      %6350 = vmatpush1.bf16.msra.mxu0 0
      %6351 = vmatprep.subr.bf16.mxu0 0
      %6352 = vmatpush1.bf16.msra.mxu0 0
      %6353 = vmatprep.mubr.bf16.mxu0 0
      %6354 = vmatmul.mubr.bf16.gmra.mrb[0].mxu0 %v6319
      %v6355 = vpop.f32.mrb[0].mxu0
      %v6356 = vadd.f32 0.0, %v6355
      %v6357 = vpop.f32.mrb[0].mxu0
      %v6358 = vpop.f32.mrb[0].mxu0
      %v6359 = vpop.f32.mrb[0].mxu0
      %6360 = vdwg.mxu0
      %v6361 = vadd.f32 %v5454, %v6356
      %s6362 = scalar_lea.vmem %s7, 4
      %v6363 = vld [vmem:[%s6362] sm:$0x1]
      %v6365 = vlaneseq
      %v6366 = vshrl.u32 %v6365, 7
      %v6367 = vsub.s32 0, %v6366
      %v6368 = vrot.slane %v6363, %v6367
      %v6370 = vadd.f32 %v6361, %v6368
      %s6371 = scalar_lea.vmem %s8, 4
      %v6372 = vld [vmem:[%s6371] sm:$0x1]
      %s6373 = scalar_lea.vmem %s9, 4
      %v6374 = vld [vmem:[%s6373] sm:$0x1]
      %v6375 = vsel %vm675, %v6370, 0.0
      %6376 = vadd.xlane.f32.xlu0 %v6375
      %v6377 = vpop.xlane.xlu0 %6376
      %v6378 = vmul.f32 %v6377, %v679
      %v6379 = vsub.f32 %v6370, %v6378
      %v6380 = vmul.f32 %v6379, %v6379
      %v6381 = vsel %vm675, %v6380, 0.0
      %6382 = vadd.xlane.f32.xlu0 %v6381
      %v6383 = vpop.xlane.xlu0 %6382
      %v6384 = vmul.f32 %v6383, %v679
      %v6385 = vadd.f32 %v6384, 1e-05
      %v6386 = vrsqrt.pop %v6385
      %v6387 = vmul.f32 %v6379, %v6386
      %v6389 = vlaneseq
      %v6390 = vshrl.u32 %v6389, 7
      %v6391 = vsub.s32 0, %v6390
      %v6392 = vrot.slane %v6372, %v6391
      %v6394 = vmul.f32 %v6387, %v6392
      %v6396 = vlaneseq
      %v6397 = vshrl.u32 %v6396, 7
      %v6398 = vsub.s32 0, %v6397
      %v6399 = vrot.slane %v6374, %v6398
      %v6401 = vadd.f32 %v6394, %v6399
      %v6402 = vpack.c.bf16 %v6401, %v6401
      %s6403 = scalar_lea.vmem %s10, 192
      %v6404 = vld [vmem:[%s6403] sm:$0xff]
      %v6405 = vld [vmem:[%s6403 + $0x8] sm:$0xff]
      %v6406 = vld [vmem:[%s6403 + $0x10] sm:$0xff]
      %v6407 = vld [vmem:[%s6403 + $0x18] sm:$0xff]
      %v6408 = vld [vmem:[%s6403 + $0x20] sm:$0xff]
      %v6409 = vld [vmem:[%s6403 + $0x28] sm:$0xff]
      %s6410 = scalar_lea.vmem %s11, 8
      %v6411 = vld [vmem:[%s6410] sm:$0x3]
      %v6413 = vlaneseq
      %v6414 = vshrl.u32 %v6413, 7
      %v6415 = vsub.s32 0, %v6414
      %v6416 = vrot.slane %v6411, %v6415
      %v6417 = vlaneseq
      %v6418 = vshrl.u32 %v6417, 7
      %v6419 = vsub.s32 1, %v6418
      %v6420 = vrot.slane %v6411, %v6419
      %v6429 = vunpack.c.l.b16 %v6404
      %v6430 = vunpack.c.h.b16 %v6404
      %v6431 = vunpack.c.l.b16 %v6405
      %v6432 = vunpack.c.h.b16 %v6405
      %v6433 = vunpack.c.l.b16 %v6406
      %v6434 = vunpack.c.h.b16 %v6406
      %v6435 = vunpack.c.l.b16 %v6407
      %v6436 = vunpack.c.h.b16 %v6407
      %v6437 = vunpack.c.l.b16 %v6408
      %v6438 = vunpack.c.h.b16 %v6408
      %v6439 = vunpack.c.l.b16 %v6409
      %v6440 = vunpack.c.h.b16 %v6409
      %v6441 = vpack.c.b16 %v6431, %v6429
      %v6442 = vpack.c.b16 %v6432, %v6430
      %v6443 = vpack.c.b16 %v6435, %v6433
      %v6444 = vpack.c.b16 %v6436, %v6434
      %v6445 = vpack.c.b16 %v6439, %v6437
      %v6446 = vpack.c.b16 %v6440, %v6438
      %v6454 = vsel %vm675, %v6402, 0
      %6456 = vmatprep.subr.bf16.mxu0 %v6442
      %6457 = vmatpush1.bf16.msra.mxu0 %v6441
      %6458 = vmatprep.subr.bf16.mxu0 %v6444
      %6459 = vmatpush1.bf16.msra.mxu0 %v6443
      %6460 = vmatprep.subr.bf16.mxu0 %v6446
      %6461 = vmatpush1.bf16.msra.mxu0 %v6445
      %6462 = vmatprep.subr.bf16.mxu0 0
      %6463 = vmatpush1.bf16.msra.mxu0 0
      %6464 = vmatprep.subr.bf16.mxu0 0
      %6465 = vmatpush1.bf16.msra.mxu0 0
      %6466 = vmatprep.subr.bf16.mxu0 0
      %6467 = vmatpush1.bf16.msra.mxu0 0
      %6468 = vmatprep.subr.bf16.mxu0 0
      %6469 = vmatpush1.bf16.msra.mxu0 0
      %6470 = vmatprep.subr.bf16.mxu0 0
      %6471 = vmatpush1.bf16.msra.mxu0 0
      %6472 = vmatprep.subr.bf16.mxu0 0
      %6473 = vmatpush1.bf16.msra.mxu0 0
      %6474 = vmatprep.subr.bf16.mxu0 0
      %6475 = vmatpush1.bf16.msra.mxu0 0
      %6476 = vmatprep.subr.bf16.mxu0 0
      %6477 = vmatpush1.bf16.msra.mxu0 0
      %6478 = vmatprep.subr.bf16.mxu0 0
      %6479 = vmatpush1.bf16.msra.mxu0 0
      %6480 = vmatprep.subr.bf16.mxu0 0
      %6481 = vmatpush1.bf16.msra.mxu0 0
      %6482 = vmatprep.subr.bf16.mxu0 0
      %6483 = vmatpush1.bf16.msra.mxu0 0
      %6484 = vmatprep.subr.bf16.mxu0 0
      %6485 = vmatpush1.bf16.msra.mxu0 0
      %6486 = vmatprep.subr.bf16.mxu0 0
      %6487 = vmatpush1.bf16.msra.mxu0 0
      %6488 = vmatprep.mubr.bf16.mxu0 0
      %6489 = vmatmul.mubr.bf16.gmra.mrb[0].mxu0 %v6454
      %v6490 = vpop.f32.mrb[0].mxu0
      %v6491 = vadd.f32 %v6416, %v6490
      %v6492 = vpop.f32.mrb[0].mxu0
      %v6493 = vadd.f32 %v6420, %v6492
      %v6494 = vpop.f32.mrb[0].mxu0
      %v6495 = vpop.f32.mrb[0].mxu0
      %6496 = vdwg.mxu0
      %v6497 = vmax.f32 %v6491, 0.0
      %v6498 = vmax.f32 %v6493, 0.0
      %v6499 = vpack.c.bf16 %v6497, %v6497
      %v6500 = vpack.c.bf16 %v6498, %v6498
      %s6501 = scalar_lea.vmem %s12, 384
      %v6502 = vld [vmem:[%s6501] sm:$0xf]
      %v6503 = vld [vmem:[%s6501 + $0x4] sm:$0xf]
      %v6504 = vld [vmem:[%s6501 + $0x8] sm:$0xf]
      %v6505 = vld [vmem:[%s6501 + $0xc] sm:$0xf]
      %v6506 = vld [vmem:[%s6501 + $0x10] sm:$0xf]
      %v6507 = vld [vmem:[%s6501 + $0x14] sm:$0xf]
      %v6508 = vld [vmem:[%s6501 + $0x18] sm:$0xf]
      %v6509 = vld [vmem:[%s6501 + $0x1c] sm:$0xf]
      %v6510 = vld [vmem:[%s6501 + $0x20] sm:$0xf]
      %v6511 = vld [vmem:[%s6501 + $0x24] sm:$0xf]
      %v6512 = vld [vmem:[%s6501 + $0x28] sm:$0xf]
      %v6513 = vld [vmem:[%s6501 + $0x2c] sm:$0xf]
      %v6514 = vld [vmem:[%s6501 + $0x30] sm:$0xf]
      %v6515 = vld [vmem:[%s6501 + $0x34] sm:$0xf]
      %v6516 = vld [vmem:[%s6501 + $0x38] sm:$0xf]
      %v6517 = vld [vmem:[%s6501 + $0x3c] sm:$0xf]
      %v6518 = vld [vmem:[%s6501 + $0x40] sm:$0xf]
      %v6519 = vld [vmem:[%s6501 + $0x44] sm:$0xf]
      %v6520 = vld [vmem:[%s6501 + $0x48] sm:$0xf]
      %v6521 = vld [vmem:[%s6501 + $0x4c] sm:$0xf]
      %v6522 = vld [vmem:[%s6501 + $0x50] sm:$0xf]
      %v6523 = vld [vmem:[%s6501 + $0x54] sm:$0xf]
      %v6524 = vld [vmem:[%s6501 + $0x58] sm:$0xf]
      %v6525 = vld [vmem:[%s6501 + $0x5c] sm:$0xf]
      %v6550 = vunpack.c.l.b16 %v6502
      %v6551 = vunpack.c.l.b16 %v6503
      %v6552 = vunpack.c.l.b16 %v6504
      %v6553 = vunpack.c.l.b16 %v6505
      %v6554 = vunpack.c.l.b16 %v6506
      %v6555 = vunpack.c.l.b16 %v6507
      %v6556 = vunpack.c.l.b16 %v6508
      %v6557 = vunpack.c.l.b16 %v6509
      %v6558 = vunpack.c.l.b16 %v6510
      %v6559 = vunpack.c.l.b16 %v6511
      %v6560 = vunpack.c.l.b16 %v6512
      %v6561 = vunpack.c.l.b16 %v6513
      %v6562 = vunpack.c.l.b16 %v6514
      %v6563 = vunpack.c.l.b16 %v6515
      %v6564 = vunpack.c.l.b16 %v6516
      %v6565 = vunpack.c.l.b16 %v6517
      %v6566 = vunpack.c.l.b16 %v6518
      %v6567 = vunpack.c.l.b16 %v6519
      %v6568 = vunpack.c.l.b16 %v6520
      %v6569 = vunpack.c.l.b16 %v6521
      %v6570 = vunpack.c.l.b16 %v6522
      %v6571 = vunpack.c.l.b16 %v6523
      %v6572 = vunpack.c.l.b16 %v6524
      %v6573 = vunpack.c.l.b16 %v6525
      %v6574 = vpack.c.b16 %v6551, %v6550
      %v6575 = vpack.c.b16 %v6553, %v6552
      %v6576 = vpack.c.b16 %v6555, %v6554
      %v6577 = vpack.c.b16 %v6557, %v6556
      %v6578 = vpack.c.b16 %v6559, %v6558
      %v6579 = vpack.c.b16 %v6561, %v6560
      %v6580 = vpack.c.b16 %v6563, %v6562
      %v6581 = vpack.c.b16 %v6565, %v6564
      %v6582 = vpack.c.b16 %v6567, %v6566
      %v6583 = vpack.c.b16 %v6569, %v6568
      %v6584 = vpack.c.b16 %v6571, %v6570
      %v6585 = vpack.c.b16 %v6573, %v6572
      %v6599 = vsel %vm1814, %v6500, 0
      %6601 = vmatprep.subr.bf16.mxu0 0
      %6602 = vmatpush1.bf16.msra.mxu0 %v6574
      %6603 = vmatprep.subr.bf16.mxu0 0
      %6604 = vmatpush1.bf16.msra.mxu0 %v6575
      %6605 = vmatprep.subr.bf16.mxu0 0
      %6606 = vmatpush1.bf16.msra.mxu0 %v6576
      %6607 = vmatprep.subr.bf16.mxu0 0
      %6608 = vmatpush1.bf16.msra.mxu0 %v6577
      %6609 = vmatprep.subr.bf16.mxu0 0
      %6610 = vmatpush1.bf16.msra.mxu0 %v6578
      %6611 = vmatprep.subr.bf16.mxu0 0
      %6612 = vmatpush1.bf16.msra.mxu0 %v6579
      %6613 = vmatprep.subr.bf16.mxu0 0
      %6614 = vmatpush1.bf16.msra.mxu0 %v6580
      %6615 = vmatprep.subr.bf16.mxu0 0
      %6616 = vmatpush1.bf16.msra.mxu0 %v6581
      %6617 = vmatprep.subr.bf16.mxu0 0
      %6618 = vmatpush1.bf16.msra.mxu0 %v6582
      %6619 = vmatprep.subr.bf16.mxu0 0
      %6620 = vmatpush1.bf16.msra.mxu0 %v6583
      %6621 = vmatprep.subr.bf16.mxu0 0
      %6622 = vmatpush1.bf16.msra.mxu0 %v6584
      %6623 = vmatprep.subr.bf16.mxu0 0
      %6624 = vmatpush1.bf16.msra.mxu0 %v6585
      %6625 = vmatprep.subr.bf16.mxu0 0
      %6626 = vmatpush1.bf16.msra.mxu0 0
      %6627 = vmatprep.subr.bf16.mxu0 0
      %6628 = vmatpush1.bf16.msra.mxu0 0
      %6629 = vmatprep.subr.bf16.mxu0 0
      %6630 = vmatpush1.bf16.msra.mxu0 0
      %6631 = vmatprep.subr.bf16.mxu0 0
      %6632 = vmatpush1.bf16.msra.mxu0 0
      %6633 = vmatprep.mubr.bf16.mxu0 %v6599
      %6634 = vmatmul.mubr.bf16.gmra.mrb[0].mxu0 %v6499
      %v6635 = vpop.f32.mrb[0].mxu0
      %v6636 = vadd.f32 0.0, %v6635
      %v6637 = vpop.f32.mrb[0].mxu0
      %v6638 = vpop.f32.mrb[0].mxu0
      %v6639 = vpop.f32.mrb[0].mxu0
      %6640 = vdwg.mxu0
      %v6641 = vadd.f32 %v6370, %v6636
      %s6642 = scalar_lea.vmem %s13, 4
      %v6643 = vld [vmem:[%s6642] sm:$0x1]
      %v6645 = vlaneseq
      %v6646 = vshrl.u32 %v6645, 7
      %v6647 = vsub.s32 0, %v6646
      %v6648 = vrot.slane %v6643, %v6647
      %v6650 = vadd.f32 %v6641, %v6648
      %v6651 = vld [vmem:[%s14] sm:$0x1]
      %v6652 = vld [vmem:[%s15] sm:$0x1]
      %v6653 = vsel %vm675, %v6650, 0.0
      %6654 = vadd.xlane.f32.xlu0 %v6653
      %v6655 = vpop.xlane.xlu0 %6654
      %v6656 = vmul.f32 %v6655, %v679
      %v6657 = vsub.f32 %v6650, %v6656
      %v6658 = vmul.f32 %v6657, %v6657
      %v6659 = vsel %vm675, %v6658, 0.0
      %6660 = vadd.xlane.f32.xlu0 %v6659
      %v6661 = vpop.xlane.xlu0 %6660
      %v6662 = vmul.f32 %v6661, %v679
      %v6663 = vadd.f32 %v6662, 1e-05
      %v6664 = vrsqrt.pop %v6663
      %v6665 = vmul.f32 %v6657, %v6664
      %v6667 = vlaneseq
      %v6668 = vshrl.u32 %v6667, 7
      %v6669 = vsub.s32 0, %v6668
      %v6670 = vrot.slane %v6651, %v6669
      %v6672 = vmul.f32 %v6665, %v6670
      %v6674 = vlaneseq
      %v6675 = vshrl.u32 %v6674, 7
      %v6676 = vsub.s32 0, %v6675
      %v6677 = vrot.slane %v6652, %v6676
      %v6679 = vadd.f32 %v6672, %v6677
      %v6680 = vpack.c.bf16 %v6679, %v6679
      %v6681 = vld [vmem:[%s16] sm:$0xf]
      %v6682 = vld [vmem:[%s16 + $0x4] sm:$0xf]
      %v6683 = vld [vmem:[%s16 + $0x8] sm:$0xf]
      %v6684 = vld [vmem:[%s16 + $0xc] sm:$0xf]
      %v6685 = vld [vmem:[%s16 + $0x10] sm:$0xf]
      %v6686 = vld [vmem:[%s16 + $0x14] sm:$0xf]
      %v6687 = vld [vmem:[%s17] sm:$0x1]
      %v6689 = vlaneseq
      %v6690 = vshrl.u32 %v6689, 7
      %v6691 = vsub.s32 0, %v6690
      %v6692 = vrot.slane %v6687, %v6691
      %v6700 = vunpack.c.l.b16 %v6681
      %v6701 = vunpack.c.l.b16 %v6682
      %v6702 = vunpack.c.l.b16 %v6683
      %v6703 = vunpack.c.l.b16 %v6684
      %v6704 = vunpack.c.l.b16 %v6685
      %v6705 = vunpack.c.l.b16 %v6686
      %v6706 = vpack.c.b16 %v6701, %v6700
      %v6707 = vpack.c.b16 %v6703, %v6702
      %v6708 = vpack.c.b16 %v6705, %v6704
      %v6713 = vsel %vm675, %v6680, 0
      %6715 = vmatprep.subr.bf16.mxu0 0
      %6716 = vmatpush1.bf16.msra.mxu0 %v6706
      %6717 = vmatprep.subr.bf16.mxu0 0
      %6718 = vmatpush1.bf16.msra.mxu0 %v6707
      %6719 = vmatprep.subr.bf16.mxu0 0
      %6720 = vmatpush1.bf16.msra.mxu0 %v6708
      %6721 = vmatprep.subr.bf16.mxu0 0
      %6722 = vmatpush1.bf16.msra.mxu0 0
      %6723 = vmatprep.subr.bf16.mxu0 0
      %6724 = vmatpush1.bf16.msra.mxu0 0
      %6725 = vmatprep.subr.bf16.mxu0 0
      %6726 = vmatpush1.bf16.msra.mxu0 0
      %6727 = vmatprep.subr.bf16.mxu0 0
      %6728 = vmatpush1.bf16.msra.mxu0 0
      %6729 = vmatprep.subr.bf16.mxu0 0
      %6730 = vmatpush1.bf16.msra.mxu0 0
      %6731 = vmatprep.subr.bf16.mxu0 0
      %6732 = vmatpush1.bf16.msra.mxu0 0
      %6733 = vmatprep.subr.bf16.mxu0 0
      %6734 = vmatpush1.bf16.msra.mxu0 0
      %6735 = vmatprep.subr.bf16.mxu0 0
      %6736 = vmatpush1.bf16.msra.mxu0 0
      %6737 = vmatprep.subr.bf16.mxu0 0
      %6738 = vmatpush1.bf16.msra.mxu0 0
      %6739 = vmatprep.subr.bf16.mxu0 0
      %6740 = vmatpush1.bf16.msra.mxu0 0
      %6741 = vmatprep.subr.bf16.mxu0 0
      %6742 = vmatpush1.bf16.msra.mxu0 0
      %6743 = vmatprep.subr.bf16.mxu0 0
      %6744 = vmatpush1.bf16.msra.mxu0 0
      %6745 = vmatprep.subr.bf16.mxu0 0
      %6746 = vmatpush1.bf16.msra.mxu0 0
      %6747 = vmatprep.mubr.bf16.mxu0 0
      %6748 = vmatmul.mubr.bf16.gmra.mrb[0].mxu0 %v6713
      %v6749 = vpop.f32.mrb[0].mxu0
      %v6750 = vadd.f32 %v6692, %v6749
      %v6751 = vpop.f32.mrb[0].mxu0
      %v6752 = vpop.f32.mrb[0].mxu0
      %v6753 = vpop.f32.mrb[0].mxu0
      %6754 = vdwg.mxu0
      %6755 = vst [vmem:[%s570] sm:$0xff] %v6750
      %p6756 = scmp.lt.s32.totalorder %s29, 1
      %s6757 = scalar_select %p6756, %s29, 1
      %s6758 = smul.addr %s6757, 8
      %s6759 = scalar_lea.vmem %s18, %s6758
      // Predicated region
      $region93: #{forward.1} parent=91 // pred_check
        %p6760 = pneg %p430
      $region94: #{forward.1} parent=91 // pred_check_branch
        %6762 = sbr.rel (%p6760) target = $region96
      $region95: #{forward.1} parent=91 // pred_region
        _
      $region96: #{forward.1} parent=91 // pred_fallthru
        _
    $region92: #{forward.1} parent=5 // pred_fallthru
      _
    %p6763 = scmp.le.s32.totalorder 2, %s24
    // Predicated region
    $region97: #{forward.1} parent=5 // pred_check
      %p6764 = pneg %p6763
    $region98: #{forward.1} parent=5 // pred_check_branch
      %6766 = sbr.rel (%p6764) target = $region100
    $region99: #{forward.1} parent=5 // pred_region
      %s6767 = ssub.s32 %s24, 2
      // Predicated region
      $region101: #{forward.1} parent=99 // pred_check
        %p6768 = pneg %p436
      $region102: #{forward.1} parent=99 // pred_check_branch
        %6770 = sbr.rel (%p6768) target = $region104
      $region103: #{forward.1} parent=99 // pred_region
        %p6771 = scmp.lt.s32.totalorder %s30, 1
        %s6772 = scalar_select %p6771, %s30, 1
        %s6773 = smul.addr %s6772, 8
        %s6774 = scalar_lea.vmem %s18, %s6773
      $region104: #{forward.1} parent=99 // pred_fallthru
        _
    $region100: #{forward.1} parent=5 // pred_fallthru
      _
  $region6: #{forward.1} parent=0 // loop_footer
    %s28 = sadd.s32 1, %s24
  $region7: #{forward.1} parent=0 // loop_footer_branch
    %23 = sbr.rel target = $region3
  $region8: #{forward.1} parent=0 // loop_exit
    _

</llo_original>
